<compile_context>
chip_gen: v7x
topology: tpu7x:2x2x1
jax: 0.10.0
libtpu: 0.0.40
codegen_flags: <defaults>
</compile_context>

<pallas_src>
import jax
import jax.numpy as jnp
from jax.experimental import pallas as pl
from jax.experimental.pallas import tpu as pltpu

# ----- small, TPU-aligned shapes consistent with the module's structure -----
B = 2          # batch
T = 128        # seq length == block_size (tril mask requires T == block_size)
C = 128        # n_embedding (small-shape stand-in for 384)
H = 8          # num_heads
HS = C // H    # head_size = 16
FF = 4 * C     # feed-forward hidden
EPS = 1e-5
SCALE = float(B) ** 0.5   # reproduces `wei = q @ k^T / k.shape[0] ** (-0.5)`


def _layernorm(x, g, b):
    # One-pass stats: E[x], E[x^2]  ->  var = E[x^2] - E[x]^2.
    m1 = jnp.mean(x, axis=-1, keepdims=True)
    m2 = jnp.mean(x * x, axis=-1, keepdims=True)
    var = m2 - m1 * m1
    return (x - m1) * jax.lax.rsqrt(var + EPS) * g + b


def transformer_block_kernel(x_ref, wqkv_ref, wproj_ref, bproj_ref,
                             ln1g_ref, ln1b_ref, ln2g_ref, ln2b_ref,
                             w1_ref, b1_ref, w2_ref, b2_ref,
                             out_ref, qkv_ref):
    # ---------------- x = x + sa(ln1(x)) ----------------
    # x_ref is consumed immediately by the layernorm; the residual is
    # re-read from VMEM later so its vregs are not live across the head loop.
    h = _layernorm(x_ref[...], ln1g_ref[...], ln1b_ref[...])

    # Fused QKV projection: one (T,C) x (C,3C) MXU matmul, f32 accumulation.
    # Result goes straight to a VMEM scratch (bf16) to end its vreg live range.
    # SCALE is already folded into the Q columns of wqkv (wrapper-side).
    qkv_ref[...] = jnp.dot(h.astype(jnp.bfloat16), wqkv_ref[...],
                           preferred_element_type=jnp.float32
                           ).astype(jnp.bfloat16)

    row = jax.lax.broadcasted_iota(jnp.int32, (T, T), 0)
    col = jax.lax.broadcasted_iota(jnp.int32, (T, T), 1)
    causal = col <= row                                     # == (tril != 0)

    sa = jnp.zeros((T, C), jnp.float32)
    for hd in range(H):                                     # static unroll over heads
        q = qkv_ref[:, hd * HS:(hd + 1) * HS]               # (T, HS) bf16
        k = qkv_ref[:, C + hd * HS:C + (hd + 1) * HS]       # (T, HS)
        v = qkv_ref[:, 2 * C + hd * HS:2 * C + (hd + 1) * HS]

        # scores = (SCALE*q) @ k^T (contract over HS), f32 accumulation.
        scores = jax.lax.dot_general(
            q, k, (((1,), (1,)), ((), ())),
            preferred_element_type=jnp.float32)
        scores = jnp.where(causal, scores, -jnp.inf)
        p = jnp.exp(scores - jnp.max(scores, axis=-1, keepdims=True))
        inv_l = pl.reciprocal(jnp.sum(p, axis=-1, keepdims=True), approx=True)
        # (attention dropout: identity in eval mode)

        # Lane-dense epilogue: (softmax @ v) @ Wp  ==  softmax @ (v @ Wp).
        vw = jnp.dot(v, wproj_ref[hd * HS:(hd + 1) * HS, :],
                     preferred_element_type=jnp.float32
                     ).astype(jnp.bfloat16)                 # (T, C)
        sa = sa + jnp.dot((p * inv_l).astype(jnp.bfloat16), vw,
                          preferred_element_type=jnp.float32)

    x = x_ref[...] + sa + bproj_ref[...]                    # residual re-read here

    # ---------------- x = x + ffwd(ln2(x)) ----------------
    h2 = _layernorm(x, ln2g_ref[...], ln2b_ref[...])
    f = jnp.dot(h2.astype(jnp.bfloat16), w1_ref[...],
                preferred_element_type=jnp.float32) + b1_ref[...]
    f = jnp.maximum(f, 0.0)
    f = jnp.dot(f.astype(jnp.bfloat16), w2_ref[...],
                preferred_element_type=jnp.float32) + b2_ref[...]
    out_ref[...] = x + f


def transformer_block(x, params):
    (wq, wk, wv, wproj, bproj,
     ln1g, ln1b, ln2g, ln2b, w1, b1, w2, b2) = params

    # Fuse per-head (H, C, HS) weights into one (C, 3C) matrix, head-major
    # columns; fold the score SCALE into the Q columns; pre-cast all MXU
    # weight operands to bf16 (halves DMA bytes; f32 accumulation in-kernel).
    def heads_to_cols(w):                       # (H, C, HS) -> (C, H*HS)
        return jnp.transpose(w, (1, 0, 2)).reshape(C, H * HS)

    wqkv = jnp.concatenate(
        [heads_to_cols(wq) * SCALE, heads_to_cols(wk), heads_to_cols(wv)],
        axis=1).astype(jnp.bfloat16)            # (C, 3C)
    wproj_bf = wproj.astype(jnp.bfloat16)
    w1_bf = w1.astype(jnp.bfloat16)
    w2_bf = w2.astype(jnp.bfloat16)

    def full(shape):
        # Grid-invariant weight block (constant index map -> no re-DMA across steps).
        return pl.BlockSpec(shape, lambda b: (0,) * len(shape))

    act_spec = pl.BlockSpec((pl.Squeezed(), T, C), lambda b: (b, 0, 0))

    grid_spec = pltpu.PrefetchScalarGridSpec(
        num_scalar_prefetch=0,
        grid=(B,),
        in_specs=[
            act_spec,                                       # x
            full((C, 3 * C)),                               # fused Wqkv (bf16)
            full((C, C)), full((1, C)),                     # Wproj (bf16), bproj
            full((1, C)), full((1, C)), full((1, C)), full((1, C)),  # ln1/ln2 g,b
            full((C, FF)), full((1, FF)), full((FF, C)), full((1, C)),  # ffwd
        ],
        out_specs=act_spec,
        scratch_shapes=[pltpu.VMEM((T, 3 * C), jnp.bfloat16)],   # fused QKV slab
    )

    # Advisory cost estimate for XLA's scheduler around the custom call.
    flops = 2 * B * (T * C * 3 * C                           # fused QKV
                     + H * (T * T * HS + T * HS * C + T * T * C)  # attention
                     + 2 * T * C * FF)                       # feed-forward
    transcendentals = B * H * T * T                          # softmax exp
    bytes_accessed = (2 * B * T * C * 4                      # x in + out (f32)
                      + (C * 3 * C + C * C + C * FF + FF * C) * 2   # bf16 weights
                      + (6 * C + FF) * 4)                    # biases / LN params

    return pl.pallas_call(
        transformer_block_kernel,
        out_shape=jax.ShapeDtypeStruct((B, T, C), jnp.float32),
        grid_spec=grid_spec,
        compiler_params=pltpu.CompilerParams(
            dimension_semantics=("parallel",)),
        cost_estimate=pl.CostEstimate(flops=flops,
                                      transcendentals=transcendentals,
                                      bytes_accessed=bytes_accessed),
    )(x, wqkv, wproj_bf, bproj, ln1g, ln1b, ln2g, ln2b, w1_bf, b1, w2_bf, b2)


def reference(x, params):
    """Pure-JAX f32 reference mirroring the PyTorch forward (eval mode)."""
    (wq, wk, wv, wproj, bproj,
     ln1g, ln1b, ln2g, ln2b, w1, b1, w2, b2) = params

    def ln(y, g, b):
        mu = y.mean(-1, keepdims=True)
        var = ((y - mu) ** 2).mean(-1, keepdims=True)
        return (y - mu) / jnp.sqrt(var + EPS) * g + b

    h = ln(x, ln1g, ln1b)
    q = jnp.einsum('btc,hcd->bhtd', h, wq)
    k = jnp.einsum('btc,hcd->bhtd', h, wk)
    v = jnp.einsum('btc,hcd->bhtd', h, wv)
    scores = jnp.einsum('bhtd,bhsd->bhts', q, k) * SCALE
    mask = jnp.tril(jnp.ones((T, T), bool))
    scores = jnp.where(mask, scores, -jnp.inf)
    p = jax.nn.softmax(scores, axis=-1)
    att = jnp.einsum('bhts,bhsd->bthd', p, v).reshape(B, T, C)
    x = x + (att @ wproj + bproj)
    h2 = ln(x, ln2g, ln2b)
    f = jnp.maximum(h2 @ w1 + b1, 0.0) @ w2 + b2
    return x + f


if __name__ == "__main__":
    key = jax.random.PRNGKey(0)
    ks = jax.random.split(key, 10)
    s = 0.02
    x = jax.random.normal(ks[0], (B, T, C), jnp.float32)

    params = (
        s * jax.random.normal(ks[1], (H, C, HS), jnp.float32),   # Wq (per head)
        s * jax.random.normal(ks[2], (H, C, HS), jnp.float32),   # Wk
        s * jax.random.normal(ks[3], (H, C, HS), jnp.float32),   # Wv
        s * jax.random.normal(ks[4], (C, C), jnp.float32),       # Wproj
        s * jax.random.normal(ks[5], (1, C), jnp.float32),       # bproj
        jnp.ones((1, C), jnp.float32),                           # ln1 gamma
        jnp.zeros((1, C), jnp.float32),                          # ln1 beta
        jnp.ones((1, C), jnp.float32),                           # ln2 gamma
        jnp.zeros((1, C), jnp.float32),                          # ln2 beta
        s * jax.random.normal(ks[6], (C, FF), jnp.float32),      # ffwd W1
        s * jax.random.normal(ks[7], (1, FF), jnp.float32),      # ffwd b1
        s * jax.random.normal(ks[8], (FF, C), jnp.float32),      # ffwd W2
        s * jax.random.normal(ks[9], (1, C), jnp.float32),       # ffwd b2
    )

    out = transformer_block(x, params)
    out = jax.block_until_ready(out)

    ref = reference(x, params)
    assert out.shape == (B, T, C) and out.dtype == jnp.float32
    assert jnp.allclose(out, ref, atol=2e-2, rtol=2e-2), "kernel/reference mismatch"
    print("KERNEL_OK")
</pallas_src>

<mosaic_0001>
module attributes {stable_mosaic.version = 11 : i64} {
  func.func @transformer_block_kernel(%arg0: i32, %arg1: memref<1x128x128xf32, #tpu.memory_space<vmem>>, %arg2: memref<128x384xbf16, #tpu.memory_space<vmem>>, %arg3: memref<128x128xbf16, #tpu.memory_space<vmem>>, %arg4: memref<1x128xf32, #tpu.memory_space<vmem>>, %arg5: memref<1x128xf32, #tpu.memory_space<vmem>>, %arg6: memref<1x128xf32, #tpu.memory_space<vmem>>, %arg7: memref<1x128xf32, #tpu.memory_space<vmem>>, %arg8: memref<1x128xf32, #tpu.memory_space<vmem>>, %arg9: memref<128x512xbf16, #tpu.memory_space<vmem>>, %arg10: memref<1x512xf32, #tpu.memory_space<vmem>>, %arg11: memref<512x128xbf16, #tpu.memory_space<vmem>>, %arg12: memref<1x128xf32, #tpu.memory_space<vmem>>, %arg13: memref<1x128x128xf32, #tpu.memory_space<vmem>>, %arg14: memref<128x384xbf16, #tpu.memory_space<vmem>>) attributes {dimension_semantics = [#tpu.dimension_semantics<parallel>], iteration_bounds = array<i64: 2>, scalar_prefetch = 0 : i64, scratch_operands = 1 : i64, tpu.core_type = #tpu.core_type<tc>, window_params = [{transform_indices = @transform_0, window_bounds = array<i64: 1, 128, 128>}, {pipeline_mode = #tpu.pipeline_mode<synchronous>, transform_indices = @transform_1, window_bounds = array<i64: 128, 384>}, {pipeline_mode = #tpu.pipeline_mode<synchronous>, transform_indices = @transform_2, window_bounds = array<i64: 128, 128>}, {pipeline_mode = #tpu.pipeline_mode<synchronous>, transform_indices = @transform_3, window_bounds = array<i64: 1, 128>}, {pipeline_mode = #tpu.pipeline_mode<synchronous>, transform_indices = @transform_4, window_bounds = array<i64: 1, 128>}, {pipeline_mode = #tpu.pipeline_mode<synchronous>, transform_indices = @transform_5, window_bounds = array<i64: 1, 128>}, {pipeline_mode = #tpu.pipeline_mode<synchronous>, transform_indices = @transform_6, window_bounds = array<i64: 1, 128>}, {pipeline_mode = #tpu.pipeline_mode<synchronous>, transform_indices = @transform_7, window_bounds = array<i64: 1, 128>}, {pipeline_mode = #tpu.pipeline_mode<synchronous>, transform_indices = @transform_8, window_bounds = array<i64: 128, 512>}, {pipeline_mode = #tpu.pipeline_mode<synchronous>, transform_indices = @transform_9, window_bounds = array<i64: 1, 512>}, {pipeline_mode = #tpu.pipeline_mode<synchronous>, transform_indices = @transform_10, window_bounds = array<i64: 512, 128>}, {pipeline_mode = #tpu.pipeline_mode<synchronous>, transform_indices = @transform_11, window_bounds = array<i64: 1, 128>}, {transform_indices = @transform_12, window_bounds = array<i64: 1, 128, 128>}]} {
    %c0 = arith.constant 0 : index
    %c0_0 = arith.constant 0 : index
    %c0_1 = arith.constant 0 : index
    %0 = vector.load %arg1[%c0, %c0_0, %c0_1] : memref<1x128x128xf32, #tpu.memory_space<vmem>>, vector<1x128x128xf32>
    %1 = vector.shape_cast %0 : vector<1x128x128xf32> to vector<128x128xf32>
    %c0_2 = arith.constant 0 : index
    %c0_3 = arith.constant 0 : index
    %2 = vector.load %arg5[%c0_2, %c0_3] : memref<1x128xf32, #tpu.memory_space<vmem>>, vector<1x128xf32>
    %c0_4 = arith.constant 0 : index
    %c0_5 = arith.constant 0 : index
    %3 = vector.load %arg6[%c0_4, %c0_5] : memref<1x128xf32, #tpu.memory_space<vmem>>, vector<1x128xf32>
    %cst = arith.constant dense<0.000000e+00> : vector<128xf32>
    %4 = vector.multi_reduction <add>, %1, %cst [1] : vector<128x128xf32> to vector<128xf32>
    %5 = vector.shape_cast %4 : vector<128xf32> to vector<128x1xf32>
    %cst_6 = arith.constant 1.280000e+02 : f32
    %6 = vector.broadcast %cst_6 : f32 to vector<128x1xf32>
    %7 = arith.divf %5, %6 : vector<128x1xf32>
    %8 = arith.mulf %1, %1 : vector<128x128xf32>
    %cst_7 = arith.constant dense<0.000000e+00> : vector<128xf32>
    %9 = vector.multi_reduction <add>, %8, %cst_7 [1] : vector<128x128xf32> to vector<128xf32>
    %10 = vector.shape_cast %9 : vector<128xf32> to vector<128x1xf32>
    %cst_8 = arith.constant 1.280000e+02 : f32
    %11 = vector.broadcast %cst_8 : f32 to vector<128x1xf32>
    %12 = arith.divf %10, %11 : vector<128x1xf32>
    %13 = arith.mulf %7, %7 : vector<128x1xf32>
    %14 = arith.subf %12, %13 : vector<128x1xf32>
    %15 = vector.broadcast %7 : vector<128x1xf32> to vector<128x128xf32>
    %16 = arith.subf %1, %15 : vector<128x128xf32>
    %cst_9 = arith.constant 9.99999974E-6 : f32
    %17 = vector.broadcast %cst_9 : f32 to vector<128x1xf32>
    %18 = arith.addf %14, %17 : vector<128x1xf32>
    %19 = math.rsqrt %18 : vector<128x1xf32>
    %20 = vector.broadcast %19 : vector<128x1xf32> to vector<128x128xf32>
    %21 = arith.mulf %16, %20 : vector<128x128xf32>
    %22 = vector.broadcast %2 : vector<1x128xf32> to vector<128x128xf32>
    %23 = arith.mulf %21, %22 : vector<128x128xf32>
    %24 = vector.broadcast %3 : vector<1x128xf32> to vector<128x128xf32>
    %25 = arith.addf %23, %24 : vector<128x128xf32>
    %26 = arith.truncf %25 : vector<128x128xf32> to vector<128x128xbf16>
    %c0_10 = arith.constant 0 : index
    %c0_11 = arith.constant 0 : index
    %27 = vector.load %arg2[%c0_10, %c0_11] : memref<128x384xbf16, #tpu.memory_space<vmem>>, vector<128x384xbf16>
    %cst_12 = arith.constant dense<0.000000e+00> : vector<128x384xf32>
    %28 = tpu.matmul %26, %27, %cst_12 {dimension_numbers = #tpu.dot_dimension_numbers<[1], [0], [0], [1], [0, 0, 1, 1], [], []>} : vector<128x128xbf16>, vector<128x384xbf16>, vector<128x384xf32> -> vector<128x384xf32>
    %29 = arith.truncf %28 : vector<128x384xf32> to vector<128x384xbf16>
    %c0_13 = arith.constant 0 : index
    %c0_14 = arith.constant 0 : index
    %30 = vector.load %arg14[%c0_13, %c0_14] : memref<128x384xbf16, #tpu.memory_space<vmem>>, vector<128x384xbf16>
    tpu.vector_store %arg14[%c0_13, %c0_14], %29 {strides = array<i32>} : memref<128x384xbf16, #tpu.memory_space<vmem>>, vector<128x384xbf16>,
    %31 = tpu.iota {dimensions = array<i32: 0>} : vector<128x128xi32>
    %32 = tpu.iota {dimensions = array<i32: 1>} : vector<128x128xi32>
    %33 = arith.cmpi sle, %32, %31 : vector<128x128xi32>
    %cst_15 = arith.constant 0.000000e+00 : f32
    %34 = vector.broadcast %cst_15 : f32 to vector<128x128xf32>
    %c0_16 = arith.constant 0 : index
    %c0_17 = arith.constant 0 : index
    %35 = vector.load %arg14[%c0_16, %c0_17] : memref<128x384xbf16, #tpu.memory_space<vmem>>, vector<128x16xbf16>
    %c0_18 = arith.constant 0 : index
    %c128 = arith.constant 128 : index
    %36 = vector.load %arg14[%c0_18, %c128] : memref<128x384xbf16, #tpu.memory_space<vmem>>, vector<128x16xbf16>
    %c0_19 = arith.constant 0 : index
    %c256 = arith.constant 256 : index
    %37 = vector.load %arg14[%c0_19, %c256] : memref<128x384xbf16, #tpu.memory_space<vmem>>, vector<128x16xbf16>
    %cst_20 = arith.constant dense<0.000000e+00> : vector<128x128xf32>
    %38 = tpu.matmul %35, %36, %cst_20 {dimension_numbers = #tpu.dot_dimension_numbers<[1], [1], [0], [0], [0, 0, 1, 0], [], []>} : vector<128x16xbf16>, vector<128x16xbf16>, vector<128x128xf32> -> vector<128x128xf32>
    %cst_21 = arith.constant 0xFF800000 : f32
    %39 = vector.broadcast %cst_21 : f32 to vector<128x128xf32>
    %40 = arith.select %33, %38, %39 : vector<128x128xi1>, vector<128x128xf32>
    %cst_22 = arith.constant dense<0xFF800000> : vector<128xf32>
    %41 = vector.multi_reduction <maximumf>, %40, %cst_22 [1] : vector<128x128xf32> to vector<128xf32>
    %42 = vector.shape_cast %41 : vector<128xf32> to vector<128x1xf32>
    %43 = vector.broadcast %42 : vector<128x1xf32> to vector<128x128xf32>
    %44 = arith.subf %40, %43 : vector<128x128xf32>
    %45 = math.exp %44 : vector<128x128xf32>
    %cst_23 = arith.constant dense<0.000000e+00> : vector<128xf32>
    %46 = vector.multi_reduction <add>, %45, %cst_23 [1] : vector<128x128xf32> to vector<128xf32>
    %47 = vector.shape_cast %46 : vector<128xf32> to vector<128x1xf32>
    %48 = tpu.reciprocal %47 {approx = true} : vector<128x1xf32> -> vector<128x1xf32>
    %c0_24 = arith.constant 0 : index
    %c0_25 = arith.constant 0 : index
    %49 = vector.load %arg3[%c0_24, %c0_25] : memref<128x128xbf16, #tpu.memory_space<vmem>>, vector<16x128xbf16>
    %cst_26 = arith.constant dense<0.000000e+00> : vector<128x128xf32>
    %50 = tpu.matmul %37, %49, %cst_26 {dimension_numbers = #tpu.dot_dimension_numbers<[1], [0], [0], [1], [0, 0, 1, 1], [], []>} : vector<128x16xbf16>, vector<16x128xbf16>, vector<128x128xf32> -> vector<128x128xf32>
    %51 = arith.truncf %50 : vector<128x128xf32> to vector<128x128xbf16>
    %52 = vector.broadcast %48 : vector<128x1xf32> to vector<128x128xf32>
    %53 = arith.mulf %45, %52 : vector<128x128xf32>
    %54 = arith.truncf %53 : vector<128x128xf32> to vector<128x128xbf16>
    %cst_27 = arith.constant dense<0.000000e+00> : vector<128x128xf32>
    %55 = tpu.matmul %54, %51, %cst_27 {dimension_numbers = #tpu.dot_dimension_numbers<[1], [0], [0], [1], [0, 0, 1, 1], [], []>} : vector<128x128xbf16>, vector<128x128xbf16>, vector<128x128xf32> -> vector<128x128xf32>
    %56 = arith.addf %34, %55 : vector<128x128xf32>
    %c0_28 = arith.constant 0 : index
    %c16 = arith.constant 16 : index
    %57 = vector.load %arg14[%c0_28, %c16] : memref<128x384xbf16, #tpu.memory_space<vmem>>, vector<128x16xbf16>
    %c0_29 = arith.constant 0 : index
    %c144 = arith.constant 144 : index
    %58 = vector.load %arg14[%c0_29, %c144] : memref<128x384xbf16, #tpu.memory_space<vmem>>, vector<128x16xbf16>
    %c0_30 = arith.constant 0 : index
    %c272 = arith.constant 272 : index
    %59 = vector.load %arg14[%c0_30, %c272] : memref<128x384xbf16, #tpu.memory_space<vmem>>, vector<128x16xbf16>
    %cst_31 = arith.constant dense<0.000000e+00> : vector<128x128xf32>
    %60 = tpu.matmul %57, %58, %cst_31 {dimension_numbers = #tpu.dot_dimension_numbers<[1], [1], [0], [0], [0, 0, 1, 0], [], []>} : vector<128x16xbf16>, vector<128x16xbf16>, vector<128x128xf32> -> vector<128x128xf32>
    %cst_32 = arith.constant 0xFF800000 : f32
    %61 = vector.broadcast %cst_32 : f32 to vector<128x128xf32>
    %62 = arith.select %33, %60, %61 : vector<128x128xi1>, vector<128x128xf32>
    %cst_33 = arith.constant dense<0xFF800000> : vector<128xf32>
    %63 = vector.multi_reduction <maximumf>, %62, %cst_33 [1] : vector<128x128xf32> to vector<128xf32>
    %64 = vector.shape_cast %63 : vector<128xf32> to vector<128x1xf32>
    %65 = vector.broadcast %64 : vector<128x1xf32> to vector<128x128xf32>
    %66 = arith.subf %62, %65 : vector<128x128xf32>
    %67 = math.exp %66 : vector<128x128xf32>
    %cst_34 = arith.constant dense<0.000000e+00> : vector<128xf32>
    %68 = vector.multi_reduction <add>, %67, %cst_34 [1] : vector<128x128xf32> to vector<128xf32>
    %69 = vector.shape_cast %68 : vector<128xf32> to vector<128x1xf32>
    %70 = tpu.reciprocal %69 {approx = true} : vector<128x1xf32> -> vector<128x1xf32>
    %c16_35 = arith.constant 16 : index
    %c0_36 = arith.constant 0 : index
    %71 = vector.load %arg3[%c16_35, %c0_36] : memref<128x128xbf16, #tpu.memory_space<vmem>>, vector<16x128xbf16>
    %cst_37 = arith.constant dense<0.000000e+00> : vector<128x128xf32>
    %72 = tpu.matmul %59, %71, %cst_37 {dimension_numbers = #tpu.dot_dimension_numbers<[1], [0], [0], [1], [0, 0, 1, 1], [], []>} : vector<128x16xbf16>, vector<16x128xbf16>, vector<128x128xf32> -> vector<128x128xf32>
    %73 = arith.truncf %72 : vector<128x128xf32> to vector<128x128xbf16>
    %74 = vector.broadcast %70 : vector<128x1xf32> to vector<128x128xf32>
    %75 = arith.mulf %67, %74 : vector<128x128xf32>
    %76 = arith.truncf %75 : vector<128x128xf32> to vector<128x128xbf16>
    %cst_38 = arith.constant dense<0.000000e+00> : vector<128x128xf32>
    %77 = tpu.matmul %76, %73, %cst_38 {dimension_numbers = #tpu.dot_dimension_numbers<[1], [0], [0], [1], [0, 0, 1, 1], [], []>} : vector<128x128xbf16>, vector<128x128xbf16>, vector<128x128xf32> -> vector<128x128xf32>
    %78 = arith.addf %56, %77 : vector<128x128xf32>
    %c0_39 = arith.constant 0 : index
    %c32 = arith.constant 32 : index
    %79 = vector.load %arg14[%c0_39, %c32] : memref<128x384xbf16, #tpu.memory_space<vmem>>, vector<128x16xbf16>
    %c0_40 = arith.constant 0 : index
    %c160 = arith.constant 160 : index
    %80 = vector.load %arg14[%c0_40, %c160] : memref<128x384xbf16, #tpu.memory_space<vmem>>, vector<128x16xbf16>
    %c0_41 = arith.constant 0 : index
    %c288 = arith.constant 288 : index
    %81 = vector.load %arg14[%c0_41, %c288] : memref<128x384xbf16, #tpu.memory_space<vmem>>, vector<128x16xbf16>
    %cst_42 = arith.constant dense<0.000000e+00> : vector<128x128xf32>
    %82 = tpu.matmul %79, %80, %cst_42 {dimension_numbers = #tpu.dot_dimension_numbers<[1], [1], [0], [0], [0, 0, 1, 0], [], []>} : vector<128x16xbf16>, vector<128x16xbf16>, vector<128x128xf32> -> vector<128x128xf32>
    %cst_43 = arith.constant 0xFF800000 : f32
    %83 = vector.broadcast %cst_43 : f32 to vector<128x128xf32>
    %84 = arith.select %33, %82, %83 : vector<128x128xi1>, vector<128x128xf32>
    %cst_44 = arith.constant dense<0xFF800000> : vector<128xf32>
    %85 = vector.multi_reduction <maximumf>, %84, %cst_44 [1] : vector<128x128xf32> to vector<128xf32>
    %86 = vector.shape_cast %85 : vector<128xf32> to vector<128x1xf32>
    %87 = vector.broadcast %86 : vector<128x1xf32> to vector<128x128xf32>
    %88 = arith.subf %84, %87 : vector<128x128xf32>
    %89 = math.exp %88 : vector<128x128xf32>
    %cst_45 = arith.constant dense<0.000000e+00> : vector<128xf32>
    %90 = vector.multi_reduction <add>, %89, %cst_45 [1] : vector<128x128xf32> to vector<128xf32>
    %91 = vector.shape_cast %90 : vector<128xf32> to vector<128x1xf32>
    %92 = tpu.reciprocal %91 {approx = true} : vector<128x1xf32> -> vector<128x1xf32>
    %c32_46 = arith.constant 32 : index
    %c0_47 = arith.constant 0 : index
    %93 = vector.load %arg3[%c32_46, %c0_47] : memref<128x128xbf16, #tpu.memory_space<vmem>>, vector<16x128xbf16>
    %cst_48 = arith.constant dense<0.000000e+00> : vector<128x128xf32>
    %94 = tpu.matmul %81, %93, %cst_48 {dimension_numbers = #tpu.dot_dimension_numbers<[1], [0], [0], [1], [0, 0, 1, 1], [], []>} : vector<128x16xbf16>, vector<16x128xbf16>, vector<128x128xf32> -> vector<128x128xf32>
    %95 = arith.truncf %94 : vector<128x128xf32> to vector<128x128xbf16>
    %96 = vector.broadcast %92 : vector<128x1xf32> to vector<128x128xf32>
    %97 = arith.mulf %89, %96 : vector<128x128xf32>
    %98 = arith.truncf %97 : vector<128x128xf32> to vector<128x128xbf16>
    %cst_49 = arith.constant dense<0.000000e+00> : vector<128x128xf32>
    %99 = tpu.matmul %98, %95, %cst_49 {dimension_numbers = #tpu.dot_dimension_numbers<[1], [0], [0], [1], [0, 0, 1, 1], [], []>} : vector<128x128xbf16>, vector<128x128xbf16>, vector<128x128xf32> -> vector<128x128xf32>
    %100 = arith.addf %78, %99 : vector<128x128xf32>
    %c0_50 = arith.constant 0 : index
    %c48 = arith.constant 48 : index
    %101 = vector.load %arg14[%c0_50, %c48] : memref<128x384xbf16, #tpu.memory_space<vmem>>, vector<128x16xbf16>
    %c0_51 = arith.constant 0 : index
    %c176 = arith.constant 176 : index
    %102 = vector.load %arg14[%c0_51, %c176] : memref<128x384xbf16, #tpu.memory_space<vmem>>, vector<128x16xbf16>
    %c0_52 = arith.constant 0 : index
    %c304 = arith.constant 304 : index
    %103 = vector.load %arg14[%c0_52, %c304] : memref<128x384xbf16, #tpu.memory_space<vmem>>, vector<128x16xbf16>
    %cst_53 = arith.constant dense<0.000000e+00> : vector<128x128xf32>
    %104 = tpu.matmul %101, %102, %cst_53 {dimension_numbers = #tpu.dot_dimension_numbers<[1], [1], [0], [0], [0, 0, 1, 0], [], []>} : vector<128x16xbf16>, vector<128x16xbf16>, vector<128x128xf32> -> vector<128x128xf32>
    %cst_54 = arith.constant 0xFF800000 : f32
    %105 = vector.broadcast %cst_54 : f32 to vector<128x128xf32>
    %106 = arith.select %33, %104, %105 : vector<128x128xi1>, vector<128x128xf32>
    %cst_55 = arith.constant dense<0xFF800000> : vector<128xf32>
    %107 = vector.multi_reduction <maximumf>, %106, %cst_55 [1] : vector<128x128xf32> to vector<128xf32>
    %108 = vector.shape_cast %107 : vector<128xf32> to vector<128x1xf32>
    %109 = vector.broadcast %108 : vector<128x1xf32> to vector<128x128xf32>
    %110 = arith.subf %106, %109 : vector<128x128xf32>
    %111 = math.exp %110 : vector<128x128xf32>
    %cst_56 = arith.constant dense<0.000000e+00> : vector<128xf32>
    %112 = vector.multi_reduction <add>, %111, %cst_56 [1] : vector<128x128xf32> to vector<128xf32>
    %113 = vector.shape_cast %112 : vector<128xf32> to vector<128x1xf32>
    %114 = tpu.reciprocal %113 {approx = true} : vector<128x1xf32> -> vector<128x1xf32>
    %c48_57 = arith.constant 48 : index
    %c0_58 = arith.constant 0 : index
    %115 = vector.load %arg3[%c48_57, %c0_58] : memref<128x128xbf16, #tpu.memory_space<vmem>>, vector<16x128xbf16>
    %cst_59 = arith.constant dense<0.000000e+00> : vector<128x128xf32>
    %116 = tpu.matmul %103, %115, %cst_59 {dimension_numbers = #tpu.dot_dimension_numbers<[1], [0], [0], [1], [0, 0, 1, 1], [], []>} : vector<128x16xbf16>, vector<16x128xbf16>, vector<128x128xf32> -> vector<128x128xf32>
    %117 = arith.truncf %116 : vector<128x128xf32> to vector<128x128xbf16>
    %118 = vector.broadcast %114 : vector<128x1xf32> to vector<128x128xf32>
    %119 = arith.mulf %111, %118 : vector<128x128xf32>
    %120 = arith.truncf %119 : vector<128x128xf32> to vector<128x128xbf16>
    %cst_60 = arith.constant dense<0.000000e+00> : vector<128x128xf32>
    %121 = tpu.matmul %120, %117, %cst_60 {dimension_numbers = #tpu.dot_dimension_numbers<[1], [0], [0], [1], [0, 0, 1, 1], [], []>} : vector<128x128xbf16>, vector<128x128xbf16>, vector<128x128xf32> -> vector<128x128xf32>
    %122 = arith.addf %100, %121 : vector<128x128xf32>
    %c0_61 = arith.constant 0 : index
    %c64 = arith.constant 64 : index
    %123 = vector.load %arg14[%c0_61, %c64] : memref<128x384xbf16, #tpu.memory_space<vmem>>, vector<128x16xbf16>
    %c0_62 = arith.constant 0 : index
    %c192 = arith.constant 192 : index
    %124 = vector.load %arg14[%c0_62, %c192] : memref<128x384xbf16, #tpu.memory_space<vmem>>, vector<128x16xbf16>
    %c0_63 = arith.constant 0 : index
    %c320 = arith.constant 320 : index
    %125 = vector.load %arg14[%c0_63, %c320] : memref<128x384xbf16, #tpu.memory_space<vmem>>, vector<128x16xbf16>
    %cst_64 = arith.constant dense<0.000000e+00> : vector<128x128xf32>
    %126 = tpu.matmul %123, %124, %cst_64 {dimension_numbers = #tpu.dot_dimension_numbers<[1], [1], [0], [0], [0, 0, 1, 0], [], []>} : vector<128x16xbf16>, vector<128x16xbf16>, vector<128x128xf32> -> vector<128x128xf32>
    %cst_65 = arith.constant 0xFF800000 : f32
    %127 = vector.broadcast %cst_65 : f32 to vector<128x128xf32>
    %128 = arith.select %33, %126, %127 : vector<128x128xi1>, vector<128x128xf32>
    %cst_66 = arith.constant dense<0xFF800000> : vector<128xf32>
    %129 = vector.multi_reduction <maximumf>, %128, %cst_66 [1] : vector<128x128xf32> to vector<128xf32>
    %130 = vector.shape_cast %129 : vector<128xf32> to vector<128x1xf32>
    %131 = vector.broadcast %130 : vector<128x1xf32> to vector<128x128xf32>
    %132 = arith.subf %128, %131 : vector<128x128xf32>
    %133 = math.exp %132 : vector<128x128xf32>
    %cst_67 = arith.constant dense<0.000000e+00> : vector<128xf32>
    %134 = vector.multi_reduction <add>, %133, %cst_67 [1] : vector<128x128xf32> to vector<128xf32>
    %135 = vector.shape_cast %134 : vector<128xf32> to vector<128x1xf32>
    %136 = tpu.reciprocal %135 {approx = true} : vector<128x1xf32> -> vector<128x1xf32>
    %c64_68 = arith.constant 64 : index
    %c0_69 = arith.constant 0 : index
    %137 = vector.load %arg3[%c64_68, %c0_69] : memref<128x128xbf16, #tpu.memory_space<vmem>>, vector<16x128xbf16>
    %cst_70 = arith.constant dense<0.000000e+00> : vector<128x128xf32>
    %138 = tpu.matmul %125, %137, %cst_70 {dimension_numbers = #tpu.dot_dimension_numbers<[1], [0], [0], [1], [0, 0, 1, 1], [], []>} : vector<128x16xbf16>, vector<16x128xbf16>, vector<128x128xf32> -> vector<128x128xf32>
    %139 = arith.truncf %138 : vector<128x128xf32> to vector<128x128xbf16>
    %140 = vector.broadcast %136 : vector<128x1xf32> to vector<128x128xf32>
    %141 = arith.mulf %133, %140 : vector<128x128xf32>
    %142 = arith.truncf %141 : vector<128x128xf32> to vector<128x128xbf16>
    %cst_71 = arith.constant dense<0.000000e+00> : vector<128x128xf32>
    %143 = tpu.matmul %142, %139, %cst_71 {dimension_numbers = #tpu.dot_dimension_numbers<[1], [0], [0], [1], [0, 0, 1, 1], [], []>} : vector<128x128xbf16>, vector<128x128xbf16>, vector<128x128xf32> -> vector<128x128xf32>
    %144 = arith.addf %122, %143 : vector<128x128xf32>
    %c0_72 = arith.constant 0 : index
    %c80 = arith.constant 80 : index
    %145 = vector.load %arg14[%c0_72, %c80] : memref<128x384xbf16, #tpu.memory_space<vmem>>, vector<128x16xbf16>
    %c0_73 = arith.constant 0 : index
    %c208 = arith.constant 208 : index
    %146 = vector.load %arg14[%c0_73, %c208] : memref<128x384xbf16, #tpu.memory_space<vmem>>, vector<128x16xbf16>
    %c0_74 = arith.constant 0 : index
    %c336 = arith.constant 336 : index
    %147 = vector.load %arg14[%c0_74, %c336] : memref<128x384xbf16, #tpu.memory_space<vmem>>, vector<128x16xbf16>
    %cst_75 = arith.constant dense<0.000000e+00> : vector<128x128xf32>
    %148 = tpu.matmul %145, %146, %cst_75 {dimension_numbers = #tpu.dot_dimension_numbers<[1], [1], [0], [0], [0, 0, 1, 0], [], []>} : vector<128x16xbf16>, vector<128x16xbf16>, vector<128x128xf32> -> vector<128x128xf32>
    %cst_76 = arith.constant 0xFF800000 : f32
    %149 = vector.broadcast %cst_76 : f32 to vector<128x128xf32>
    %150 = arith.select %33, %148, %149 : vector<128x128xi1>, vector<128x128xf32>
    %cst_77 = arith.constant dense<0xFF800000> : vector<128xf32>
    %151 = vector.multi_reduction <maximumf>, %150, %cst_77 [1] : vector<128x128xf32> to vector<128xf32>
    %152 = vector.shape_cast %151 : vector<128xf32> to vector<128x1xf32>
    %153 = vector.broadcast %152 : vector<128x1xf32> to vector<128x128xf32>
    %154 = arith.subf %150, %153 : vector<128x128xf32>
    %155 = math.exp %154 : vector<128x128xf32>
    %cst_78 = arith.constant dense<0.000000e+00> : vector<128xf32>
    %156 = vector.multi_reduction <add>, %155, %cst_78 [1] : vector<128x128xf32> to vector<128xf32>
    %157 = vector.shape_cast %156 : vector<128xf32> to vector<128x1xf32>
    %158 = tpu.reciprocal %157 {approx = true} : vector<128x1xf32> -> vector<128x1xf32>
    %c80_79 = arith.constant 80 : index
    %c0_80 = arith.constant 0 : index
    %159 = vector.load %arg3[%c80_79, %c0_80] : memref<128x128xbf16, #tpu.memory_space<vmem>>, vector<16x128xbf16>
    %cst_81 = arith.constant dense<0.000000e+00> : vector<128x128xf32>
    %160 = tpu.matmul %147, %159, %cst_81 {dimension_numbers = #tpu.dot_dimension_numbers<[1], [0], [0], [1], [0, 0, 1, 1], [], []>} : vector<128x16xbf16>, vector<16x128xbf16>, vector<128x128xf32> -> vector<128x128xf32>
    %161 = arith.truncf %160 : vector<128x128xf32> to vector<128x128xbf16>
    %162 = vector.broadcast %158 : vector<128x1xf32> to vector<128x128xf32>
    %163 = arith.mulf %155, %162 : vector<128x128xf32>
    %164 = arith.truncf %163 : vector<128x128xf32> to vector<128x128xbf16>
    %cst_82 = arith.constant dense<0.000000e+00> : vector<128x128xf32>
    %165 = tpu.matmul %164, %161, %cst_82 {dimension_numbers = #tpu.dot_dimension_numbers<[1], [0], [0], [1], [0, 0, 1, 1], [], []>} : vector<128x128xbf16>, vector<128x128xbf16>, vector<128x128xf32> -> vector<128x128xf32>
    %166 = arith.addf %144, %165 : vector<128x128xf32>
    %c0_83 = arith.constant 0 : index
    %c96 = arith.constant 96 : index
    %167 = vector.load %arg14[%c0_83, %c96] : memref<128x384xbf16, #tpu.memory_space<vmem>>, vector<128x16xbf16>
    %c0_84 = arith.constant 0 : index
    %c224 = arith.constant 224 : index
    %168 = vector.load %arg14[%c0_84, %c224] : memref<128x384xbf16, #tpu.memory_space<vmem>>, vector<128x16xbf16>
    %c0_85 = arith.constant 0 : index
    %c352 = arith.constant 352 : index
    %169 = vector.load %arg14[%c0_85, %c352] : memref<128x384xbf16, #tpu.memory_space<vmem>>, vector<128x16xbf16>
    %cst_86 = arith.constant dense<0.000000e+00> : vector<128x128xf32>
    %170 = tpu.matmul %167, %168, %cst_86 {dimension_numbers = #tpu.dot_dimension_numbers<[1], [1], [0], [0], [0, 0, 1, 0], [], []>} : vector<128x16xbf16>, vector<128x16xbf16>, vector<128x128xf32> -> vector<128x128xf32>
    %cst_87 = arith.constant 0xFF800000 : f32
    %171 = vector.broadcast %cst_87 : f32 to vector<128x128xf32>
    %172 = arith.select %33, %170, %171 : vector<128x128xi1>, vector<128x128xf32>
    %cst_88 = arith.constant dense<0xFF800000> : vector<128xf32>
    %173 = vector.multi_reduction <maximumf>, %172, %cst_88 [1] : vector<128x128xf32> to vector<128xf32>
    %174 = vector.shape_cast %173 : vector<128xf32> to vector<128x1xf32>
    %175 = vector.broadcast %174 : vector<128x1xf32> to vector<128x128xf32>
    %176 = arith.subf %172, %175 : vector<128x128xf32>
    %177 = math.exp %176 : vector<128x128xf32>
    %cst_89 = arith.constant dense<0.000000e+00> : vector<128xf32>
    %178 = vector.multi_reduction <add>, %177, %cst_89 [1] : vector<128x128xf32> to vector<128xf32>
    %179 = vector.shape_cast %178 : vector<128xf32> to vector<128x1xf32>
    %180 = tpu.reciprocal %179 {approx = true} : vector<128x1xf32> -> vector<128x1xf32>
    %c96_90 = arith.constant 96 : index
    %c0_91 = arith.constant 0 : index
    %181 = vector.load %arg3[%c96_90, %c0_91] : memref<128x128xbf16, #tpu.memory_space<vmem>>, vector<16x128xbf16>
    %cst_92 = arith.constant dense<0.000000e+00> : vector<128x128xf32>
    %182 = tpu.matmul %169, %181, %cst_92 {dimension_numbers = #tpu.dot_dimension_numbers<[1], [0], [0], [1], [0, 0, 1, 1], [], []>} : vector<128x16xbf16>, vector<16x128xbf16>, vector<128x128xf32> -> vector<128x128xf32>
    %183 = arith.truncf %182 : vector<128x128xf32> to vector<128x128xbf16>
    %184 = vector.broadcast %180 : vector<128x1xf32> to vector<128x128xf32>
    %185 = arith.mulf %177, %184 : vector<128x128xf32>
    %186 = arith.truncf %185 : vector<128x128xf32> to vector<128x128xbf16>
    %cst_93 = arith.constant dense<0.000000e+00> : vector<128x128xf32>
    %187 = tpu.matmul %186, %183, %cst_93 {dimension_numbers = #tpu.dot_dimension_numbers<[1], [0], [0], [1], [0, 0, 1, 1], [], []>} : vector<128x128xbf16>, vector<128x128xbf16>, vector<128x128xf32> -> vector<128x128xf32>
    %188 = arith.addf %166, %187 : vector<128x128xf32>
    %c0_94 = arith.constant 0 : index
    %c112 = arith.constant 112 : index
    %189 = vector.load %arg14[%c0_94, %c112] : memref<128x384xbf16, #tpu.memory_space<vmem>>, vector<128x16xbf16>
    %c0_95 = arith.constant 0 : index
    %c240 = arith.constant 240 : index
    %190 = vector.load %arg14[%c0_95, %c240] : memref<128x384xbf16, #tpu.memory_space<vmem>>, vector<128x16xbf16>
    %c0_96 = arith.constant 0 : index
    %c368 = arith.constant 368 : index
    %191 = vector.load %arg14[%c0_96, %c368] : memref<128x384xbf16, #tpu.memory_space<vmem>>, vector<128x16xbf16>
    %cst_97 = arith.constant dense<0.000000e+00> : vector<128x128xf32>
    %192 = tpu.matmul %189, %190, %cst_97 {dimension_numbers = #tpu.dot_dimension_numbers<[1], [1], [0], [0], [0, 0, 1, 0], [], []>} : vector<128x16xbf16>, vector<128x16xbf16>, vector<128x128xf32> -> vector<128x128xf32>
    %cst_98 = arith.constant 0xFF800000 : f32
    %193 = vector.broadcast %cst_98 : f32 to vector<128x128xf32>
    %194 = arith.select %33, %192, %193 : vector<128x128xi1>, vector<128x128xf32>
    %cst_99 = arith.constant dense<0xFF800000> : vector<128xf32>
    %195 = vector.multi_reduction <maximumf>, %194, %cst_99 [1] : vector<128x128xf32> to vector<128xf32>
    %196 = vector.shape_cast %195 : vector<128xf32> to vector<128x1xf32>
    %197 = vector.broadcast %196 : vector<128x1xf32> to vector<128x128xf32>
    %198 = arith.subf %194, %197 : vector<128x128xf32>
    %199 = math.exp %198 : vector<128x128xf32>
    %cst_100 = arith.constant dense<0.000000e+00> : vector<128xf32>
    %200 = vector.multi_reduction <add>, %199, %cst_100 [1] : vector<128x128xf32> to vector<128xf32>
    %201 = vector.shape_cast %200 : vector<128xf32> to vector<128x1xf32>
    %202 = tpu.reciprocal %201 {approx = true} : vector<128x1xf32> -> vector<128x1xf32>
    %c112_101 = arith.constant 112 : index
    %c0_102 = arith.constant 0 : index
    %203 = vector.load %arg3[%c112_101, %c0_102] : memref<128x128xbf16, #tpu.memory_space<vmem>>, vector<16x128xbf16>
    %cst_103 = arith.constant dense<0.000000e+00> : vector<128x128xf32>
    %204 = tpu.matmul %191, %203, %cst_103 {dimension_numbers = #tpu.dot_dimension_numbers<[1], [0], [0], [1], [0, 0, 1, 1], [], []>} : vector<128x16xbf16>, vector<16x128xbf16>, vector<128x128xf32> -> vector<128x128xf32>
    %205 = arith.truncf %204 : vector<128x128xf32> to vector<128x128xbf16>
    %206 = vector.broadcast %202 : vector<128x1xf32> to vector<128x128xf32>
    %207 = arith.mulf %199, %206 : vector<128x128xf32>
    %208 = arith.truncf %207 : vector<128x128xf32> to vector<128x128xbf16>
    %cst_104 = arith.constant dense<0.000000e+00> : vector<128x128xf32>
    %209 = tpu.matmul %208, %205, %cst_104 {dimension_numbers = #tpu.dot_dimension_numbers<[1], [0], [0], [1], [0, 0, 1, 1], [], []>} : vector<128x128xbf16>, vector<128x128xbf16>, vector<128x128xf32> -> vector<128x128xf32>
    %210 = arith.addf %188, %209 : vector<128x128xf32>
    %c0_105 = arith.constant 0 : index
    %c0_106 = arith.constant 0 : index
    %c0_107 = arith.constant 0 : index
    %211 = vector.load %arg1[%c0_105, %c0_106, %c0_107] : memref<1x128x128xf32, #tpu.memory_space<vmem>>, vector<1x128x128xf32>
    %212 = vector.shape_cast %211 : vector<1x128x128xf32> to vector<128x128xf32>
    %213 = arith.addf %212, %210 : vector<128x128xf32>
    %c0_108 = arith.constant 0 : index
    %c0_109 = arith.constant 0 : index
    %214 = vector.load %arg4[%c0_108, %c0_109] : memref<1x128xf32, #tpu.memory_space<vmem>>, vector<1x128xf32>
    %215 = vector.broadcast %214 : vector<1x128xf32> to vector<128x128xf32>
    %216 = arith.addf %213, %215 : vector<128x128xf32>
    %c0_110 = arith.constant 0 : index
    %c0_111 = arith.constant 0 : index
    %217 = vector.load %arg7[%c0_110, %c0_111] : memref<1x128xf32, #tpu.memory_space<vmem>>, vector<1x128xf32>
    %c0_112 = arith.constant 0 : index
    %c0_113 = arith.constant 0 : index
    %218 = vector.load %arg8[%c0_112, %c0_113] : memref<1x128xf32, #tpu.memory_space<vmem>>, vector<1x128xf32>
    %cst_114 = arith.constant dense<0.000000e+00> : vector<128xf32>
    %219 = vector.multi_reduction <add>, %216, %cst_114 [1] : vector<128x128xf32> to vector<128xf32>
    %220 = vector.shape_cast %219 : vector<128xf32> to vector<128x1xf32>
    %cst_115 = arith.constant 1.280000e+02 : f32
    %221 = vector.broadcast %cst_115 : f32 to vector<128x1xf32>
    %222 = arith.divf %220, %221 : vector<128x1xf32>
    %223 = arith.mulf %216, %216 : vector<128x128xf32>
    %cst_116 = arith.constant dense<0.000000e+00> : vector<128xf32>
    %224 = vector.multi_reduction <add>, %223, %cst_116 [1] : vector<128x128xf32> to vector<128xf32>
    %225 = vector.shape_cast %224 : vector<128xf32> to vector<128x1xf32>
    %cst_117 = arith.constant 1.280000e+02 : f32
    %226 = vector.broadcast %cst_117 : f32 to vector<128x1xf32>
    %227 = arith.divf %225, %226 : vector<128x1xf32>
    %228 = arith.mulf %222, %222 : vector<128x1xf32>
    %229 = arith.subf %227, %228 : vector<128x1xf32>
    %230 = vector.broadcast %222 : vector<128x1xf32> to vector<128x128xf32>
    %231 = arith.subf %216, %230 : vector<128x128xf32>
    %cst_118 = arith.constant 9.99999974E-6 : f32
    %232 = vector.broadcast %cst_118 : f32 to vector<128x1xf32>
    %233 = arith.addf %229, %232 : vector<128x1xf32>
    %234 = math.rsqrt %233 : vector<128x1xf32>
    %235 = vector.broadcast %234 : vector<128x1xf32> to vector<128x128xf32>
    %236 = arith.mulf %231, %235 : vector<128x128xf32>
    %237 = vector.broadcast %217 : vector<1x128xf32> to vector<128x128xf32>
    %238 = arith.mulf %236, %237 : vector<128x128xf32>
    %239 = vector.broadcast %218 : vector<1x128xf32> to vector<128x128xf32>
    %240 = arith.addf %238, %239 : vector<128x128xf32>
    %241 = arith.truncf %240 : vector<128x128xf32> to vector<128x128xbf16>
    %c0_119 = arith.constant 0 : index
    %c0_120 = arith.constant 0 : index
    %242 = vector.load %arg9[%c0_119, %c0_120] : memref<128x512xbf16, #tpu.memory_space<vmem>>, vector<128x512xbf16>
    %cst_121 = arith.constant dense<0.000000e+00> : vector<128x512xf32>
    %243 = tpu.matmul %241, %242, %cst_121 {dimension_numbers = #tpu.dot_dimension_numbers<[1], [0], [0], [1], [0, 0, 1, 1], [], []>} : vector<128x128xbf16>, vector<128x512xbf16>, vector<128x512xf32> -> vector<128x512xf32>
    %c0_122 = arith.constant 0 : index
    %c0_123 = arith.constant 0 : index
    %244 = vector.load %arg10[%c0_122, %c0_123] : memref<1x512xf32, #tpu.memory_space<vmem>>, vector<1x512xf32>
    %245 = vector.broadcast %244 : vector<1x512xf32> to vector<128x512xf32>
    %246 = arith.addf %243, %245 : vector<128x512xf32>
    %cst_124 = arith.constant 0.000000e+00 : f32
    %247 = vector.broadcast %cst_124 : f32 to vector<128x512xf32>
    %248 = arith.maximumf %246, %247 : vector<128x512xf32>
    %249 = arith.truncf %248 : vector<128x512xf32> to vector<128x512xbf16>
    %c0_125 = arith.constant 0 : index
    %c0_126 = arith.constant 0 : index
    %250 = vector.load %arg11[%c0_125, %c0_126] : memref<512x128xbf16, #tpu.memory_space<vmem>>, vector<512x128xbf16>
    %cst_127 = arith.constant dense<0.000000e+00> : vector<128x128xf32>
    %251 = tpu.matmul %249, %250, %cst_127 {dimension_numbers = #tpu.dot_dimension_numbers<[1], [0], [0], [1], [0, 0, 1, 1], [], []>} : vector<128x512xbf16>, vector<512x128xbf16>, vector<128x128xf32> -> vector<128x128xf32>
    %c0_128 = arith.constant 0 : index
    %c0_129 = arith.constant 0 : index
    %252 = vector.load %arg12[%c0_128, %c0_129] : memref<1x128xf32, #tpu.memory_space<vmem>>, vector<1x128xf32>
    %253 = vector.broadcast %252 : vector<1x128xf32> to vector<128x128xf32>
    %254 = arith.addf %251, %253 : vector<128x128xf32>
    %255 = arith.addf %216, %254 : vector<128x128xf32>
    %c0_130 = arith.constant 0 : index
    %c0_131 = arith.constant 0 : index
    %c0_132 = arith.constant 0 : index
    %256 = vector.load %arg13[%c0_130, %c0_131, %c0_132] : memref<1x128x128xf32, #tpu.memory_space<vmem>>, vector<1x128x128xf32>
    %257 = vector.shape_cast %256 : vector<1x128x128xf32> to vector<128x128xf32>
    %258 = vector.shape_cast %255 : vector<128x128xf32> to vector<1x128x128xf32>
    tpu.vector_store %arg13[%c0_130, %c0_131, %c0_132], %258 {strides = array<i32>} : memref<1x128x128xf32, #tpu.memory_space<vmem>>, vector<1x128x128xf32>,
    return
  }
  func.func @transform_0(%arg0: i32) -> (i32, i32, i32) {
    %c0_i32 = arith.constant 0 : i32
    %c0_i32_0 = arith.constant 0 : i32
    %c0_i32_1 = arith.constant 0 : i32
    return %arg0, %c0_i32, %c0_i32_0 : i32, i32, i32
  }
  func.func @transform_1(%arg0: i32) -> (i32, i32) {
    %c0_i32 = arith.constant 0 : i32
    %c0_i32_0 = arith.constant 0 : i32
    %c0_i32_1 = arith.constant 0 : i32
    return %c0_i32, %c0_i32_0 : i32, i32
  }
  func.func @transform_2(%arg0: i32) -> (i32, i32) {
    %c0_i32 = arith.constant 0 : i32
    %c0_i32_0 = arith.constant 0 : i32
    %c0_i32_1 = arith.constant 0 : i32
    return %c0_i32, %c0_i32_0 : i32, i32
  }
  func.func @transform_3(%arg0: i32) -> (i32, i32) {
    %c0_i32 = arith.constant 0 : i32
    %c0_i32_0 = arith.constant 0 : i32
    %c0_i32_1 = arith.constant 0 : i32
    return %c0_i32, %c0_i32_0 : i32, i32
  }
  func.func @transform_4(%arg0: i32) -> (i32, i32) {
    %c0_i32 = arith.constant 0 : i32
    %c0_i32_0 = arith.constant 0 : i32
    %c0_i32_1 = arith.constant 0 : i32
    return %c0_i32, %c0_i32_0 : i32, i32
  }
  func.func @transform_5(%arg0: i32) -> (i32, i32) {
    %c0_i32 = arith.constant 0 : i32
    %c0_i32_0 = arith.constant 0 : i32
    %c0_i32_1 = arith.constant 0 : i32
    return %c0_i32, %c0_i32_0 : i32, i32
  }
  func.func @transform_6(%arg0: i32) -> (i32, i32) {
    %c0_i32 = arith.constant 0 : i32
    %c0_i32_0 = arith.constant 0 : i32
    %c0_i32_1 = arith.constant 0 : i32
    return %c0_i32, %c0_i32_0 : i32, i32
  }
  func.func @transform_7(%arg0: i32) -> (i32, i32) {
    %c0_i32 = arith.constant 0 : i32
    %c0_i32_0 = arith.constant 0 : i32
    %c0_i32_1 = arith.constant 0 : i32
    return %c0_i32, %c0_i32_0 : i32, i32
  }
  func.func @transform_8(%arg0: i32) -> (i32, i32) {
    %c0_i32 = arith.constant 0 : i32
    %c0_i32_0 = arith.constant 0 : i32
    %c0_i32_1 = arith.constant 0 : i32
    return %c0_i32, %c0_i32_0 : i32, i32
  }
  func.func @transform_9(%arg0: i32) -> (i32, i32) {
    %c0_i32 = arith.constant 0 : i32
    %c0_i32_0 = arith.constant 0 : i32
    %c0_i32_1 = arith.constant 0 : i32
    return %c0_i32, %c0_i32_0 : i32, i32
  }
  func.func @transform_10(%arg0: i32) -> (i32, i32) {
    %c0_i32 = arith.constant 0 : i32
    %c0_i32_0 = arith.constant 0 : i32
    %c0_i32_1 = arith.constant 0 : i32
    return %c0_i32, %c0_i32_0 : i32, i32
  }
  func.func @transform_11(%arg0: i32) -> (i32, i32) {
    %c0_i32 = arith.constant 0 : i32
    %c0_i32_0 = arith.constant 0 : i32
    %c0_i32_1 = arith.constant 0 : i32
    return %c0_i32, %c0_i32_0 : i32, i32
  }
  func.func @transform_12(%arg0: i32) -> (i32, i32, i32) {
    %c0_i32 = arith.constant 0 : i32
    %c0_i32_0 = arith.constant 0 : i32
    %c0_i32_1 = arith.constant 0 : i32
    return %arg0, %c0_i32, %c0_i32_0 : i32, i32, i32
  }
}

</mosaic_0001>

<llo_original>
// kernel: tpu_custom_call.1
$region0: #{tpu_custom_call.1}
  #allocation0 [shape = 'u32[]', space=smem, size = 0x4, offset = 0x4, fixed_abs, tag = 'smem constant byte address 0x4 - core index']
  #allocation1 [shape = 'u32[144,128]{1,0:T(1,128)}', space=vmem, size = 0x12000, scoped, tag = 'internal scratch']
  #allocation2 [shape = 'bf16[128,384]{1,0:T(16,128)(2,1)}', space=vmem, size = 0x18000, scoped, tag = 'scratch operand']
  %s0 = inlined_call_operand.hbm [shape: f32[2,128,128], index: 0, kind: input, shape index: {}]
  %s1 = inlined_call_operand.hbm [shape: bf16[128,384], index: 1, kind: input, shape index: {}]
  %s2 = inlined_call_operand.hbm [shape: bf16[128,128], index: 2, kind: input, shape index: {}]
  %s3 = inlined_call_operand.vmem [shape: f32[1,128], index: 3, kind: input, shape index: {}]
  %s4 = inlined_call_operand.vmem [shape: f32[1,128], index: 4, kind: input, shape index: {}]
  %s5 = inlined_call_operand.vmem [shape: f32[1,128], index: 5, kind: input, shape index: {}]
  %s6 = inlined_call_operand.vmem [shape: f32[1,128], index: 6, kind: input, shape index: {}]
  %s7 = inlined_call_operand.vmem [shape: f32[1,128], index: 7, kind: input, shape index: {}]
  %s8 = inlined_call_operand.hbm [shape: bf16[128,512], index: 8, kind: input, shape index: {}]
  %s9 = inlined_call_operand.vmem [shape: f32[1,512], index: 9, kind: input, shape index: {}]
  %s10 = inlined_call_operand.hbm [shape: bf16[512,128], index: 10, kind: input, shape index: {}]
  %s11 = inlined_call_operand.vmem [shape: f32[1,128], index: 11, kind: input, shape index: {}]
  %s12 = inlined_call_operand.hbm [shape: f32[2,128,128], index: 12, kind: output, shape index: {}]
  %s13 = sld [smem:[#allocation0]]
  $region101: #{tpu_custom_call.1} parent=0
    _
  %s15 = ssub.s32 1, %s13
  %s16 = scalar_select 0, %s15, %s13
  $region1: #{tpu_custom_call.1} parent=0
    #allocation3 [shape = 'u8[131072]{0}', space=vmem, size = 0x20000, scoped, tag = 'input window, operand 0']
    #allocation4 [shape = 's32[2]{0}', space=sflag, size = 0x8, scoped, tag = 'scoped memory for tpu_custom_call.1']
    #allocation5 [shape = 's32[2]{0}', space=sflag, size = 0x8, scoped, tag = 'scoped memory for tpu_custom_call.1']
    #allocation6 [shape = 'u8[98304]{0}', space=vmem, size = 0x18000, scoped, tag = 'input window, operand 1, single buffered']
    #allocation7 [shape = 's32[1]{0}', space=sflag, size = 0x4, scoped, tag = 'scoped memory for tpu_custom_call.1']
    #allocation8 [shape = 'u8[32768]{0}', space=vmem, size = 0x8000, scoped, tag = 'input window, operand 2, single buffered']
    #allocation9 [shape = 'u8[131072]{0}', space=vmem, size = 0x20000, scoped, tag = 'input window, operand 8, single buffered']
    #allocation10 [shape = 's32[1]{0}', space=sflag, size = 0x4, scoped, tag = 'scoped memory for tpu_custom_call.1']
    #allocation11 [shape = 'u8[131072]{0}', space=vmem, size = 0x20000, scoped, tag = 'input window, operand 10, single buffered']
    #allocation12 [shape = 'u8[131072]{0}', space=vmem, size = 0x20000, scoped, tag = 'output window, operand 0']
    %17 = vsyncpa [#allocation4], 0
    %s18 = scalar_lea.sflag [#allocation4], 1
    %19 = vsyncpa %s18, 0
    %20 = vsyncpa [#allocation7], 0
    %21 = vsyncpa [#allocation10], 0
    %22 = vsyncpa [#allocation5], 0
    %s23 = scalar_lea.sflag [#allocation5], 1
    %24 = vsyncpa %s23, 0
    loop: start=0, step=1, limit=4
    $region2: #{tpu_custom_call.1} parent=1 // loop_pre_header
      _
    $region3: #{tpu_custom_call.1} parent=1 // loop_header
      %s26 = sphi 0, %s30
      %p27 = scmp.ge.s32.totalorder %s26, 4
      %s36 = sphi 0, %s38
      %s39 = sphi 0, %s36
      %s40 = sphi 0, %s39
      %s56 = sphi 0, %s40
      %s60 = sphi 0, %s60
      %s62 = sphi 0, %s60
      %s63 = sphi 0, %s62
      %s77 = sphi 0, %s63
      %s81 = sphi 0, %s81
      %s83 = sphi 0, %s81
      %s84 = sphi 0, %s83
      %s98 = sphi 0, %s84
      %s102 = sphi 0, %s102
      %s104 = sphi 0, %s102
      %s105 = sphi 0, %s104
      %s119 = sphi 0, %s105
      %s123 = sphi 0, %s123
      %s125 = sphi 0, %s123
      %s126 = sphi 0, %s125
      %s140 = sphi 0, %s126
      %s144 = sphi 0, %s144
      %s146 = sphi 0, %s144
      %s147 = sphi 0, %s146
      %s161 = sphi 0, %s147
      %s165 = sphi 0, %s165
      %s167 = sphi 0, %s165
      %s168 = sphi 0, %s167
      %s182 = sphi 0, %s168
      %s186 = sphi 0, %s186
      %s188 = sphi 0, %s186
      %s189 = sphi 0, %s188
      %s203 = sphi 0, %s189
      %s207 = sphi 0, %s207
      %s209 = sphi 0, %s207
      %s210 = sphi 0, %s209
      %s224 = sphi 0, %s210
      %s228 = sphi 0, %s228
      %s230 = sphi 0, %s228
      %s231 = sphi 0, %s230
      %s245 = sphi 0, %s231
      %s249 = sphi 0, %s249
      %s251 = sphi 0, %s249
      %s252 = sphi 0, %s251
      %s266 = sphi 0, %s252
      %s270 = sphi 0, %s270
      %s272 = sphi 0, %s270
      %s273 = sphi 0, %s272
      %s287 = sphi 0, %s273
      %s293 = sphi 0, %s295
      %s296 = sphi 0, %s293
      %s297 = sphi 0, %s296
      %s313 = sphi 0, %s297
    $region4: #{tpu_custom_call.1} parent=1 // loop_header_branch
      %29 = sbr.rel (%p27) target = $region8
    $region5: #{tpu_custom_call.1} parent=1 // loop_body
      %s31 = ssub.s32 %s26, 1
      %s32 = ssub.s32 %s26, 2
      %s33 = sadd.s32 %s26, 1
      %s34 = ssub.s32 %s26, %s33
      %p35 = scmp.eq.s32.totalorder %s34, 0
      %s37 = sadd.s32 %s36, 1
      %s38 = scalar_select %p35, %s36, %s37
      %p41 = pneg %p35
      %p42 = scmp.eq.s32.totalorder %s26, 1
      %p43 = por %p41, %p42
      %p44 = scmp.ne.s32.totalorder %s36, %s39
      %p45 = scmp.eq.s32.totalorder %s26, 0
      %p46 = por %p44, %p45
      %p47 = scmp.ne.s32.totalorder %s36, %s39
      %p48 = scmp.eq.s32.totalorder %s31, 1
      %p49 = por %p47, %p48
      %p50 = scmp.ne.s32.totalorder %s39, %s40
      %p51 = scmp.eq.s32.totalorder %s31, 0
      %p52 = por %p50, %p51
      %p53 = scmp.ne.s32.totalorder %s39, %s40
      %p54 = scmp.eq.s32.totalorder %s32, 1
      %p55 = por %p53, %p54
      %p57 = scmp.ne.s32.totalorder %s40, %s56
      %p58 = scmp.eq.s32.totalorder %s32, 0
      %p59 = por %p57, %p58
      %s61 = sadd.s32 %s60, 1
      %p64 = scmp.eq.s32.totalorder %s26, 1
      %p65 = scmp.ne.s32.totalorder %s60, %s62
      %p66 = scmp.eq.s32.totalorder %s26, 0
      %p67 = por %p65, %p66
      %p68 = scmp.ne.s32.totalorder %s60, %s62
      %p69 = scmp.eq.s32.totalorder %s31, 1
      %p70 = por %p68, %p69
      %p71 = scmp.ne.s32.totalorder %s62, %s63
      %p72 = scmp.eq.s32.totalorder %s31, 0
      %p73 = por %p71, %p72
      %p74 = scmp.ne.s32.totalorder %s62, %s63
      %p75 = scmp.eq.s32.totalorder %s32, 1
      %p76 = por %p74, %p75
      %p78 = scmp.ne.s32.totalorder %s63, %s77
      %p79 = scmp.eq.s32.totalorder %s32, 0
      %p80 = por %p78, %p79
      %s82 = sadd.s32 %s81, 1
      %p85 = scmp.eq.s32.totalorder %s26, 1
      %p86 = scmp.ne.s32.totalorder %s81, %s83
      %p87 = scmp.eq.s32.totalorder %s26, 0
      %p88 = por %p86, %p87
      %p89 = scmp.ne.s32.totalorder %s81, %s83
      %p90 = scmp.eq.s32.totalorder %s31, 1
      %p91 = por %p89, %p90
      %p92 = scmp.ne.s32.totalorder %s83, %s84
      %p93 = scmp.eq.s32.totalorder %s31, 0
      %p94 = por %p92, %p93
      %p95 = scmp.ne.s32.totalorder %s83, %s84
      %p96 = scmp.eq.s32.totalorder %s32, 1
      %p97 = por %p95, %p96
      %p99 = scmp.ne.s32.totalorder %s84, %s98
      %p100 = scmp.eq.s32.totalorder %s32, 0
      %p101 = por %p99, %p100
      %s103 = sadd.s32 %s102, 1
      %p106 = scmp.eq.s32.totalorder %s26, 1
      %p107 = scmp.ne.s32.totalorder %s102, %s104
      %p108 = scmp.eq.s32.totalorder %s26, 0
      %p109 = por %p107, %p108
      %p110 = scmp.ne.s32.totalorder %s102, %s104
      %p111 = scmp.eq.s32.totalorder %s31, 1
      %p112 = por %p110, %p111
      %p113 = scmp.ne.s32.totalorder %s104, %s105
      %p114 = scmp.eq.s32.totalorder %s31, 0
      %p115 = por %p113, %p114
      %p116 = scmp.ne.s32.totalorder %s104, %s105
      %p117 = scmp.eq.s32.totalorder %s32, 1
      %p118 = por %p116, %p117
      %p120 = scmp.ne.s32.totalorder %s105, %s119
      %p121 = scmp.eq.s32.totalorder %s32, 0
      %p122 = por %p120, %p121
      %s124 = sadd.s32 %s123, 1
      %p127 = scmp.eq.s32.totalorder %s26, 1
      %p128 = scmp.ne.s32.totalorder %s123, %s125
      %p129 = scmp.eq.s32.totalorder %s26, 0
      %p130 = por %p128, %p129
      %p131 = scmp.ne.s32.totalorder %s123, %s125
      %p132 = scmp.eq.s32.totalorder %s31, 1
      %p133 = por %p131, %p132
      %p134 = scmp.ne.s32.totalorder %s125, %s126
      %p135 = scmp.eq.s32.totalorder %s31, 0
      %p136 = por %p134, %p135
      %p137 = scmp.ne.s32.totalorder %s125, %s126
      %p138 = scmp.eq.s32.totalorder %s32, 1
      %p139 = por %p137, %p138
      %p141 = scmp.ne.s32.totalorder %s126, %s140
      %p142 = scmp.eq.s32.totalorder %s32, 0
      %p143 = por %p141, %p142
      %s145 = sadd.s32 %s144, 1
      %p148 = scmp.eq.s32.totalorder %s26, 1
      %p149 = scmp.ne.s32.totalorder %s144, %s146
      %p150 = scmp.eq.s32.totalorder %s26, 0
      %p151 = por %p149, %p150
      %p152 = scmp.ne.s32.totalorder %s144, %s146
      %p153 = scmp.eq.s32.totalorder %s31, 1
      %p154 = por %p152, %p153
      %p155 = scmp.ne.s32.totalorder %s146, %s147
      %p156 = scmp.eq.s32.totalorder %s31, 0
      %p157 = por %p155, %p156
      %p158 = scmp.ne.s32.totalorder %s146, %s147
      %p159 = scmp.eq.s32.totalorder %s32, 1
      %p160 = por %p158, %p159
      %p162 = scmp.ne.s32.totalorder %s147, %s161
      %p163 = scmp.eq.s32.totalorder %s32, 0
      %p164 = por %p162, %p163
      %s166 = sadd.s32 %s165, 1
      %p169 = scmp.eq.s32.totalorder %s26, 1
      %p170 = scmp.ne.s32.totalorder %s165, %s167
      %p171 = scmp.eq.s32.totalorder %s26, 0
      %p172 = por %p170, %p171
      %p173 = scmp.ne.s32.totalorder %s165, %s167
      %p174 = scmp.eq.s32.totalorder %s31, 1
      %p175 = por %p173, %p174
      %p176 = scmp.ne.s32.totalorder %s167, %s168
      %p177 = scmp.eq.s32.totalorder %s31, 0
      %p178 = por %p176, %p177
      %p179 = scmp.ne.s32.totalorder %s167, %s168
      %p180 = scmp.eq.s32.totalorder %s32, 1
      %p181 = por %p179, %p180
      %p183 = scmp.ne.s32.totalorder %s168, %s182
      %p184 = scmp.eq.s32.totalorder %s32, 0
      %p185 = por %p183, %p184
      %s187 = sadd.s32 %s186, 1
      %p190 = scmp.eq.s32.totalorder %s26, 1
      %p191 = scmp.ne.s32.totalorder %s186, %s188
      %p192 = scmp.eq.s32.totalorder %s26, 0
      %p193 = por %p191, %p192
      %p194 = scmp.ne.s32.totalorder %s186, %s188
      %p195 = scmp.eq.s32.totalorder %s31, 1
      %p196 = por %p194, %p195
      %p197 = scmp.ne.s32.totalorder %s188, %s189
      %p198 = scmp.eq.s32.totalorder %s31, 0
      %p199 = por %p197, %p198
      %p200 = scmp.ne.s32.totalorder %s188, %s189
      %p201 = scmp.eq.s32.totalorder %s32, 1
      %p202 = por %p200, %p201
      %p204 = scmp.ne.s32.totalorder %s189, %s203
      %p205 = scmp.eq.s32.totalorder %s32, 0
      %p206 = por %p204, %p205
      %s208 = sadd.s32 %s207, 1
      %p211 = scmp.eq.s32.totalorder %s26, 1
      %p212 = scmp.ne.s32.totalorder %s207, %s209
      %p213 = scmp.eq.s32.totalorder %s26, 0
      %p214 = por %p212, %p213
      %p215 = scmp.ne.s32.totalorder %s207, %s209
      %p216 = scmp.eq.s32.totalorder %s31, 1
      %p217 = por %p215, %p216
      %p218 = scmp.ne.s32.totalorder %s209, %s210
      %p219 = scmp.eq.s32.totalorder %s31, 0
      %p220 = por %p218, %p219
      %p221 = scmp.ne.s32.totalorder %s209, %s210
      %p222 = scmp.eq.s32.totalorder %s32, 1
      %p223 = por %p221, %p222
      %p225 = scmp.ne.s32.totalorder %s210, %s224
      %p226 = scmp.eq.s32.totalorder %s32, 0
      %p227 = por %p225, %p226
      %s229 = sadd.s32 %s228, 1
      %p232 = scmp.eq.s32.totalorder %s26, 1
      %p233 = scmp.ne.s32.totalorder %s228, %s230
      %p234 = scmp.eq.s32.totalorder %s26, 0
      %p235 = por %p233, %p234
      %p236 = scmp.ne.s32.totalorder %s228, %s230
      %p237 = scmp.eq.s32.totalorder %s31, 1
      %p238 = por %p236, %p237
      %p239 = scmp.ne.s32.totalorder %s230, %s231
      %p240 = scmp.eq.s32.totalorder %s31, 0
      %p241 = por %p239, %p240
      %p242 = scmp.ne.s32.totalorder %s230, %s231
      %p243 = scmp.eq.s32.totalorder %s32, 1
      %p244 = por %p242, %p243
      %p246 = scmp.ne.s32.totalorder %s231, %s245
      %p247 = scmp.eq.s32.totalorder %s32, 0
      %p248 = por %p246, %p247
      %s250 = sadd.s32 %s249, 1
      %p253 = scmp.eq.s32.totalorder %s26, 1
      %p254 = scmp.ne.s32.totalorder %s249, %s251
      %p255 = scmp.eq.s32.totalorder %s26, 0
      %p256 = por %p254, %p255
      %p257 = scmp.ne.s32.totalorder %s249, %s251
      %p258 = scmp.eq.s32.totalorder %s31, 1
      %p259 = por %p257, %p258
      %p260 = scmp.ne.s32.totalorder %s251, %s252
      %p261 = scmp.eq.s32.totalorder %s31, 0
      %p262 = por %p260, %p261
      %p263 = scmp.ne.s32.totalorder %s251, %s252
      %p264 = scmp.eq.s32.totalorder %s32, 1
      %p265 = por %p263, %p264
      %p267 = scmp.ne.s32.totalorder %s252, %s266
      %p268 = scmp.eq.s32.totalorder %s32, 0
      %p269 = por %p267, %p268
      %s271 = sadd.s32 %s270, 1
      %p274 = scmp.eq.s32.totalorder %s26, 1
      %p275 = scmp.ne.s32.totalorder %s270, %s272
      %p276 = scmp.eq.s32.totalorder %s26, 0
      %p277 = por %p275, %p276
      %p278 = scmp.ne.s32.totalorder %s270, %s272
      %p279 = scmp.eq.s32.totalorder %s31, 1
      %p280 = por %p278, %p279
      %p281 = scmp.ne.s32.totalorder %s272, %s273
      %p282 = scmp.eq.s32.totalorder %s31, 0
      %p283 = por %p281, %p282
      %p284 = scmp.ne.s32.totalorder %s272, %s273
      %p285 = scmp.eq.s32.totalorder %s32, 1
      %p286 = por %p284, %p285
      %p288 = scmp.ne.s32.totalorder %s273, %s287
      %p289 = scmp.eq.s32.totalorder %s32, 0
      %p290 = por %p288, %p289
      %s291 = ssub.s32 %s26, %s33
      %p292 = scmp.eq.s32.totalorder %s291, 0
      %s294 = sadd.s32 %s293, 1
      %s295 = scalar_select %p292, %s293, %s294
      %p298 = pneg %p292
      %p299 = scmp.eq.s32.totalorder %s26, 1
      %p300 = por %p298, %p299
      %p301 = scmp.ne.s32.totalorder %s293, %s296
      %p302 = scmp.eq.s32.totalorder %s26, 0
      %p303 = por %p301, %p302
      %p304 = scmp.ne.s32.totalorder %s293, %s296
      %p305 = scmp.eq.s32.totalorder %s31, 1
      %p306 = por %p304, %p305
      %p307 = scmp.ne.s32.totalorder %s296, %s297
      %p308 = scmp.eq.s32.totalorder %s31, 0
      %p309 = por %p307, %p308
      %p310 = scmp.ne.s32.totalorder %s296, %s297
      %p311 = scmp.eq.s32.totalorder %s32, 1
      %p312 = por %p310, %p311
      %p314 = scmp.ne.s32.totalorder %s297, %s313
      %p315 = scmp.eq.s32.totalorder %s32, 0
      %p316 = por %p314, %p315
      %p317 = scmp.le.s32.totalorder 1, %s26
      %p318 = scmp.lt.s32.totalorder %s26, 3
      %p319 = pnand %p317, %p318
      %p320 = pneg %p319
      // Predicated region
      $region9: #{tpu_custom_call.1} parent=5 // pred_check
        _
      $region10: #{tpu_custom_call.1} parent=5 // pred_check_branch
        %322 = sbr.rel (%p319) target = $region12
      $region11: #{tpu_custom_call.1} parent=5 // pred_region
        %s323 = ssub.s32 %s26, 1
        // Predicated region
        $region13: #{tpu_custom_call.1} parent=11 // pred_check
          %p324 = pneg %p73
        $region14: #{tpu_custom_call.1} parent=11 // pred_check_branch
          %326 = sbr.rel (%p324) target = $region16
        $region15: #{tpu_custom_call.1} parent=11 // pred_region
          %s328 = ssub.s32 3072, 3072
          %329 = vsyncadd [#allocation7], %s328
          %s330 = sshll.u32 [#allocation6], 4
          %s331 = int_to_ptr.vmem [resolvable:$true] %s330
          %336 = dma.hbm_to_vmem [thread:$0]  %s1, 3072, %s331, [#allocation7], 192, 192, 12
        $region16: #{tpu_custom_call.1} parent=11 // pred_fallthru
          _
        // Predicated region
        $region17: #{tpu_custom_call.1} parent=11 // pred_check
          %p337 = pneg %p94
        $region18: #{tpu_custom_call.1} parent=11 // pred_check_branch
          %339 = sbr.rel (%p337) target = $region20
        $region19: #{tpu_custom_call.1} parent=11 // pred_region
          %s341 = ssub.s32 1024, 1024
          %342 = vsyncadd [#allocation7], %s341
          %s343 = sshll.u32 [#allocation8], 4
          %s344 = int_to_ptr.vmem [resolvable:$true] %s343
          %349 = dma.hbm_to_vmem [thread:$0]  %s2, 1024, %s344, [#allocation7], 64, 64, 4
        $region20: #{tpu_custom_call.1} parent=11 // pred_fallthru
          _
        // Predicated region
        $region21: #{tpu_custom_call.1} parent=11 // pred_check
          %p350 = pneg %p115
        $region22: #{tpu_custom_call.1} parent=11 // pred_check_branch
          %352 = sbr.rel (%p350) target = $region24
        $region23: #{tpu_custom_call.1} parent=11 // pred_region
          _
        $region24: #{tpu_custom_call.1} parent=11 // pred_fallthru
          _
        // Predicated region
        $region25: #{tpu_custom_call.1} parent=11 // pred_check
          %p353 = pneg %p136
        $region26: #{tpu_custom_call.1} parent=11 // pred_check_branch
          %355 = sbr.rel (%p353) target = $region28
        $region27: #{tpu_custom_call.1} parent=11 // pred_region
          _
        $region28: #{tpu_custom_call.1} parent=11 // pred_fallthru
          _
        // Predicated region
        $region29: #{tpu_custom_call.1} parent=11 // pred_check
          %p356 = pneg %p157
        $region30: #{tpu_custom_call.1} parent=11 // pred_check_branch
          %358 = sbr.rel (%p356) target = $region32
        $region31: #{tpu_custom_call.1} parent=11 // pred_region
          _
        $region32: #{tpu_custom_call.1} parent=11 // pred_fallthru
          _
        // Predicated region
        $region33: #{tpu_custom_call.1} parent=11 // pred_check
          %p359 = pneg %p178
        $region34: #{tpu_custom_call.1} parent=11 // pred_check_branch
          %361 = sbr.rel (%p359) target = $region36
        $region35: #{tpu_custom_call.1} parent=11 // pred_region
          _
        $region36: #{tpu_custom_call.1} parent=11 // pred_fallthru
          _
        // Predicated region
        $region37: #{tpu_custom_call.1} parent=11 // pred_check
          %p362 = pneg %p199
        $region38: #{tpu_custom_call.1} parent=11 // pred_check_branch
          %364 = sbr.rel (%p362) target = $region40
        $region39: #{tpu_custom_call.1} parent=11 // pred_region
          _
        $region40: #{tpu_custom_call.1} parent=11 // pred_fallthru
          _
        // Predicated region
        $region41: #{tpu_custom_call.1} parent=11 // pred_check
          %p365 = pneg %p220
        $region42: #{tpu_custom_call.1} parent=11 // pred_check_branch
          %367 = sbr.rel (%p365) target = $region44
        $region43: #{tpu_custom_call.1} parent=11 // pred_region
          %s369 = ssub.s32 4096, 4096
          %370 = vsyncadd [#allocation10], %s369
          %s371 = sshll.u32 [#allocation9], 4
          %s372 = int_to_ptr.vmem [resolvable:$true] %s371
          %377 = dma.hbm_to_vmem [thread:$0]  %s8, 4096, %s372, [#allocation10], 256, 256, 16
        $region44: #{tpu_custom_call.1} parent=11 // pred_fallthru
          _
        // Predicated region
        $region45: #{tpu_custom_call.1} parent=11 // pred_check
          %p378 = pneg %p241
        $region46: #{tpu_custom_call.1} parent=11 // pred_check_branch
          %380 = sbr.rel (%p378) target = $region48
        $region47: #{tpu_custom_call.1} parent=11 // pred_region
          _
        $region48: #{tpu_custom_call.1} parent=11 // pred_fallthru
          _
        // Predicated region
        $region49: #{tpu_custom_call.1} parent=11 // pred_check
          %p381 = pneg %p262
        $region50: #{tpu_custom_call.1} parent=11 // pred_check_branch
          %383 = sbr.rel (%p381) target = $region52
        $region51: #{tpu_custom_call.1} parent=11 // pred_region
          %s385 = ssub.s32 4096, 4096
          %386 = vsyncadd [#allocation10], %s385
          %s387 = sshll.u32 [#allocation11], 4
          %s388 = int_to_ptr.vmem [resolvable:$true] %s387
          %393 = dma.hbm_to_vmem [thread:$0]  %s10, 4096, %s388, [#allocation10], 64, 64, 4
        $region52: #{tpu_custom_call.1} parent=11 // pred_fallthru
          _
        // Predicated region
        $region53: #{tpu_custom_call.1} parent=11 // pred_check
          %p394 = pneg %p283
        $region54: #{tpu_custom_call.1} parent=11 // pred_check_branch
          %396 = sbr.rel (%p394) target = $region56
        $region55: #{tpu_custom_call.1} parent=11 // pred_region
          _
        $region56: #{tpu_custom_call.1} parent=11 // pred_fallthru
          _
      $region12: #{tpu_custom_call.1} parent=5 // pred_fallthru
        _
      %p397 = scmp.lt.s32.totalorder %s26, 2
      // Predicated region
      $region57: #{tpu_custom_call.1} parent=5 // pred_check
        %p398 = pneg %p397
      $region58: #{tpu_custom_call.1} parent=5 // pred_check_branch
        %400 = sbr.rel (%p398) target = $region60
      $region59: #{tpu_custom_call.1} parent=5 // pred_region
        // Predicated region
        $region61: #{tpu_custom_call.1} parent=59 // pred_check
          %p401 = pneg %p46
        $region62: #{tpu_custom_call.1} parent=59 // pred_check_branch
          %403 = sbr.rel (%p401) target = $region64
        $region63: #{tpu_custom_call.1} parent=59 // pred_region
          %s404 = sand.u32 %s36, 1
          %s405 = scalar_lea.sflag [#allocation4], %s404
          %s406 = sand.u32 %s36, 1
          %s407 = smul.addr %s406, 128
          %s408 = scalar_lea.vmem [#allocation3], %s407
          %s410 = ssub.s32 2048, 2048
          %411 = vsyncadd %s405, %s410
          %s412 = smul.addr %s26, 16
          %s413 = smul.addr %s412, 128
          %s414 = scalar_lea.hbm %s0, %s413
          %s415 = sshll.u32 %s408, 4
          %s416 = int_to_ptr.vmem [resolvable:$true] %s415
          %421 = dma.hbm_to_vmem [thread:$0]  %s414, 2048, %s416, %s405, 128, 128, 8
        $region64: #{tpu_custom_call.1} parent=59 // pred_fallthru
          _
      $region60: #{tpu_custom_call.1} parent=5 // pred_fallthru
        _
      %p422 = scmp.le.s32.totalorder 1, %s26
      %p423 = scmp.lt.s32.totalorder %s26, 3
      %p424 = pnand %p422, %p423
      %p425 = pneg %p424
      // Predicated region
      $region65: #{tpu_custom_call.1} parent=5 // pred_check
        _
      $region66: #{tpu_custom_call.1} parent=5 // pred_check_branch
        %427 = sbr.rel (%p424) target = $region68
      $region67: #{tpu_custom_call.1} parent=5 // pred_region
        %s428 = ssub.s32 %s26, 1
        %s429 = sand.u32 %s39, 1
        %s430 = scalar_lea.sflag [#allocation4], %s429
        %s431 = sand.u32 %s39, 1
        %s432 = smul.addr %s431, 128
        %s433 = scalar_lea.vmem [#allocation3], %s432
        // Predicated region
        $region69: #{tpu_custom_call.1} parent=67 // pred_check
          %p434 = pneg %p52
        $region70: #{tpu_custom_call.1} parent=67 // pred_check_branch
          %436 = sbr.rel (%p434) target = $region72
        $region71: #{tpu_custom_call.1} parent=67 // pred_region
          %437 = dma.done %s430, 2048
        $region72: #{tpu_custom_call.1} parent=67 // pred_fallthru
          _
        // Predicated region
        $region73: #{tpu_custom_call.1} parent=67 // pred_check
          %p438 = pneg %p73
        $region74: #{tpu_custom_call.1} parent=67 // pred_check_branch
          %440 = sbr.rel (%p438) target = $region76
        $region75: #{tpu_custom_call.1} parent=67 // pred_region
          %441 = dma.done [#allocation7], 3072
        $region76: #{tpu_custom_call.1} parent=67 // pred_fallthru
          _
        // Predicated region
        $region77: #{tpu_custom_call.1} parent=67 // pred_check
          %p442 = pneg %p94
        $region78: #{tpu_custom_call.1} parent=67 // pred_check_branch
          %444 = sbr.rel (%p442) target = $region80
        $region79: #{tpu_custom_call.1} parent=67 // pred_region
          %445 = dma.done [#allocation7], 1024
        $region80: #{tpu_custom_call.1} parent=67 // pred_fallthru
          _
        // Predicated region
        $region81: #{tpu_custom_call.1} parent=67 // pred_check
          %p446 = pneg %p220
        $region82: #{tpu_custom_call.1} parent=67 // pred_check_branch
          %448 = sbr.rel (%p446) target = $region84
        $region83: #{tpu_custom_call.1} parent=67 // pred_region
          %449 = dma.done [#allocation10], 4096
        $region84: #{tpu_custom_call.1} parent=67 // pred_fallthru
          _
        // Predicated region
        $region85: #{tpu_custom_call.1} parent=67 // pred_check
          %p450 = pneg %p262
        $region86: #{tpu_custom_call.1} parent=67 // pred_check_branch
          %452 = sbr.rel (%p450) target = $region88
        $region87: #{tpu_custom_call.1} parent=67 // pred_region
          %453 = dma.done [#allocation10], 4096
        $region88: #{tpu_custom_call.1} parent=67 // pred_fallthru
          _
        %s454 = sand.u32 %s39, 1
        %s455 = scalar_lea.sflag [#allocation4], %s454
        %s456 = sand.u32 %s39, 1
        %s457 = smul.addr %s456, 128
        %s458 = scalar_lea.vmem [#allocation3], %s457
        %p459 = pneg %p52
        %p460 = pneg %p49
        %p461 = pneg %p73
        %p462 = pneg %p70
        %p463 = pneg %p94
        %p464 = pneg %p91
        %p465 = pneg %p115
        %p466 = pneg %p112
        %p467 = pneg %p136
        %p468 = pneg %p133
        %p469 = pneg %p157
        %p470 = pneg %p154
        %p471 = pneg %p178
        %p472 = pneg %p175
        %p473 = pneg %p199
        %p474 = pneg %p196
        %p475 = pneg %p220
        %p476 = pneg %p217
        %p477 = pneg %p241
        %p478 = pneg %p238
        %p479 = pneg %p262
        %p480 = pneg %p259
        %p481 = pneg %p283
        %p482 = pneg %p280
        %p483 = pneg %p309
        %p484 = pneg %p306
        %s485 = sand.u32 %s296, 1
        %s486 = scalar_lea.sflag [#allocation5], %s485
        %s487 = sand.u32 %s296, 1
        %s488 = smul.addr %s487, 128
        %s489 = scalar_lea.vmem [#allocation12], %s488
        %v491 = vld [vmem:[%s433] sm:$0xff]
        %v492 = vld [vmem:[%s433 + $0x8] sm:$0xff]
        %v493 = vld [vmem:[%s433 + $0x10] sm:$0xff]
        %v494 = vld [vmem:[%s433 + $0x18] sm:$0xff]
        %v495 = vld [vmem:[%s433 + $0x20] sm:$0xff]
        %v496 = vld [vmem:[%s433 + $0x28] sm:$0xff]
        %v497 = vld [vmem:[%s433 + $0x30] sm:$0xff]
        %v498 = vld [vmem:[%s433 + $0x38] sm:$0xff]
        %v499 = vld [vmem:[%s433 + $0x40] sm:$0xff]
        %v500 = vld [vmem:[%s433 + $0x48] sm:$0xff]
        %v501 = vld [vmem:[%s433 + $0x50] sm:$0xff]
        %v502 = vld [vmem:[%s433 + $0x58] sm:$0xff]
        %v503 = vld [vmem:[%s433 + $0x60] sm:$0xff]
        %v504 = vld [vmem:[%s433 + $0x68] sm:$0xff]
        %v505 = vld [vmem:[%s433 + $0x70] sm:$0xff]
        %v506 = vld [vmem:[%s433 + $0x78] sm:$0xff]
        %v507 = vld [vmem:[%s4] sm:$0x1]
        %v508 = vld [vmem:[%s5] sm:$0x1]
        %509 = vadd.xlane.f32.xlu0 %v491
        %v510 = vpop.xlane.xlu0 %509
        %511 = vadd.xlane.f32.xlu0 %v492
        %v512 = vpop.xlane.xlu0 %511
        %513 = vadd.xlane.f32.xlu0 %v493
        %v514 = vpop.xlane.xlu0 %513
        %515 = vadd.xlane.f32.xlu0 %v494
        %v516 = vpop.xlane.xlu0 %515
        %517 = vadd.xlane.f32.xlu0 %v495
        %v518 = vpop.xlane.xlu0 %517
        %519 = vadd.xlane.f32.xlu0 %v496
        %v520 = vpop.xlane.xlu0 %519
        %521 = vadd.xlane.f32.xlu0 %v497
        %v522 = vpop.xlane.xlu0 %521
        %523 = vadd.xlane.f32.xlu0 %v498
        %v524 = vpop.xlane.xlu0 %523
        %525 = vadd.xlane.f32.xlu0 %v499
        %v526 = vpop.xlane.xlu0 %525
        %527 = vadd.xlane.f32.xlu0 %v500
        %v528 = vpop.xlane.xlu0 %527
        %529 = vadd.xlane.f32.xlu0 %v501
        %v530 = vpop.xlane.xlu0 %529
        %531 = vadd.xlane.f32.xlu0 %v502
        %v532 = vpop.xlane.xlu0 %531
        %533 = vadd.xlane.f32.xlu0 %v503
        %v534 = vpop.xlane.xlu0 %533
        %535 = vadd.xlane.f32.xlu0 %v504
        %v536 = vpop.xlane.xlu0 %535
        %537 = vadd.xlane.f32.xlu0 %v505
        %v538 = vpop.xlane.xlu0 %537
        %539 = vadd.xlane.f32.xlu0 %v506
        %v540 = vpop.xlane.xlu0 %539
        %v541 = vrcp.pop 128.0
        %v542 = vmul.f32 %v510, %v541
        %v543 = vmul.f32 %v512, %v541
        %v544 = vmul.f32 %v514, %v541
        %v545 = vmul.f32 %v516, %v541
        %v546 = vmul.f32 %v518, %v541
        %v547 = vmul.f32 %v520, %v541
        %v548 = vmul.f32 %v522, %v541
        %v549 = vmul.f32 %v524, %v541
        %v550 = vmul.f32 %v526, %v541
        %v551 = vmul.f32 %v528, %v541
        %v552 = vmul.f32 %v530, %v541
        %v553 = vmul.f32 %v532, %v541
        %v554 = vmul.f32 %v534, %v541
        %v555 = vmul.f32 %v536, %v541
        %v556 = vmul.f32 %v538, %v541
        %v557 = vmul.f32 %v540, %v541
        %v558 = vmul.f32 %v491, %v491
        %v559 = vmul.f32 %v492, %v492
        %v560 = vmul.f32 %v493, %v493
        %v561 = vmul.f32 %v494, %v494
        %v562 = vmul.f32 %v495, %v495
        %v563 = vmul.f32 %v496, %v496
        %v564 = vmul.f32 %v497, %v497
        %v565 = vmul.f32 %v498, %v498
        %v566 = vmul.f32 %v499, %v499
        %v567 = vmul.f32 %v500, %v500
        %v568 = vmul.f32 %v501, %v501
        %v569 = vmul.f32 %v502, %v502
        %v570 = vmul.f32 %v503, %v503
        %v571 = vmul.f32 %v504, %v504
        %v572 = vmul.f32 %v505, %v505
        %v573 = vmul.f32 %v506, %v506
        %574 = vadd.xlane.f32.xlu0 %v558
        %v575 = vpop.xlane.xlu0 %574
        %576 = vadd.xlane.f32.xlu0 %v559
        %v577 = vpop.xlane.xlu0 %576
        %578 = vadd.xlane.f32.xlu0 %v560
        %v579 = vpop.xlane.xlu0 %578
        %580 = vadd.xlane.f32.xlu0 %v561
        %v581 = vpop.xlane.xlu0 %580
        %582 = vadd.xlane.f32.xlu0 %v562
        %v583 = vpop.xlane.xlu0 %582
        %584 = vadd.xlane.f32.xlu0 %v563
        %v585 = vpop.xlane.xlu0 %584
        %586 = vadd.xlane.f32.xlu0 %v564
        %v587 = vpop.xlane.xlu0 %586
        %588 = vadd.xlane.f32.xlu0 %v565
        %v589 = vpop.xlane.xlu0 %588
        %590 = vadd.xlane.f32.xlu0 %v566
        %v591 = vpop.xlane.xlu0 %590
        %592 = vadd.xlane.f32.xlu0 %v567
        %v593 = vpop.xlane.xlu0 %592
        %594 = vadd.xlane.f32.xlu0 %v568
        %v595 = vpop.xlane.xlu0 %594
        %596 = vadd.xlane.f32.xlu0 %v569
        %v597 = vpop.xlane.xlu0 %596
        %598 = vadd.xlane.f32.xlu0 %v570
        %v599 = vpop.xlane.xlu0 %598
        %600 = vadd.xlane.f32.xlu0 %v571
        %v601 = vpop.xlane.xlu0 %600
        %602 = vadd.xlane.f32.xlu0 %v572
        %v603 = vpop.xlane.xlu0 %602
        %604 = vadd.xlane.f32.xlu0 %v573
        %v605 = vpop.xlane.xlu0 %604
        %v606 = vmul.f32 %v575, %v541
        %v607 = vmul.f32 %v577, %v541
        %v608 = vmul.f32 %v579, %v541
        %v609 = vmul.f32 %v581, %v541
        %v610 = vmul.f32 %v583, %v541
        %v611 = vmul.f32 %v585, %v541
        %v612 = vmul.f32 %v587, %v541
        %v613 = vmul.f32 %v589, %v541
        %v614 = vmul.f32 %v591, %v541
        %v615 = vmul.f32 %v593, %v541
        %v616 = vmul.f32 %v595, %v541
        %v617 = vmul.f32 %v597, %v541
        %v618 = vmul.f32 %v599, %v541
        %v619 = vmul.f32 %v601, %v541
        %v620 = vmul.f32 %v603, %v541
        %v621 = vmul.f32 %v605, %v541
        %v622 = vmul.f32 %v542, %v542
        %v623 = vmul.f32 %v543, %v543
        %v624 = vmul.f32 %v544, %v544
        %v625 = vmul.f32 %v545, %v545
        %v626 = vmul.f32 %v546, %v546
        %v627 = vmul.f32 %v547, %v547
        %v628 = vmul.f32 %v548, %v548
        %v629 = vmul.f32 %v549, %v549
        %v630 = vmul.f32 %v550, %v550
        %v631 = vmul.f32 %v551, %v551
        %v632 = vmul.f32 %v552, %v552
        %v633 = vmul.f32 %v553, %v553
        %v634 = vmul.f32 %v554, %v554
        %v635 = vmul.f32 %v555, %v555
        %v636 = vmul.f32 %v556, %v556
        %v637 = vmul.f32 %v557, %v557
        %v638 = vsub.f32 %v606, %v622
        %v639 = vsub.f32 %v607, %v623
        %v640 = vsub.f32 %v608, %v624
        %v641 = vsub.f32 %v609, %v625
        %v642 = vsub.f32 %v610, %v626
        %v643 = vsub.f32 %v611, %v627
        %v644 = vsub.f32 %v612, %v628
        %v645 = vsub.f32 %v613, %v629
        %v646 = vsub.f32 %v614, %v630
        %v647 = vsub.f32 %v615, %v631
        %v648 = vsub.f32 %v616, %v632
        %v649 = vsub.f32 %v617, %v633
        %v650 = vsub.f32 %v618, %v634
        %v651 = vsub.f32 %v619, %v635
        %v652 = vsub.f32 %v620, %v636
        %v653 = vsub.f32 %v621, %v637
        %v654 = vsub.f32 %v491, %v542
        %v655 = vsub.f32 %v492, %v543
        %v656 = vsub.f32 %v493, %v544
        %v657 = vsub.f32 %v494, %v545
        %v658 = vsub.f32 %v495, %v546
        %v659 = vsub.f32 %v496, %v547
        %v660 = vsub.f32 %v497, %v548
        %v661 = vsub.f32 %v498, %v549
        %v662 = vsub.f32 %v499, %v550
        %v663 = vsub.f32 %v500, %v551
        %v664 = vsub.f32 %v501, %v552
        %v665 = vsub.f32 %v502, %v553
        %v666 = vsub.f32 %v503, %v554
        %v667 = vsub.f32 %v504, %v555
        %v668 = vsub.f32 %v505, %v556
        %v669 = vsub.f32 %v506, %v557
        %v670 = vadd.f32 %v638, 1e-05
        %v671 = vadd.f32 %v639, 1e-05
        %v672 = vadd.f32 %v640, 1e-05
        %v673 = vadd.f32 %v641, 1e-05
        %v674 = vadd.f32 %v642, 1e-05
        %v675 = vadd.f32 %v643, 1e-05
        %v676 = vadd.f32 %v644, 1e-05
        %v677 = vadd.f32 %v645, 1e-05
        %v678 = vadd.f32 %v646, 1e-05
        %v679 = vadd.f32 %v647, 1e-05
        %v680 = vadd.f32 %v648, 1e-05
        %v681 = vadd.f32 %v649, 1e-05
        %v682 = vadd.f32 %v650, 1e-05
        %v683 = vadd.f32 %v651, 1e-05
        %v684 = vadd.f32 %v652, 1e-05
        %v685 = vadd.f32 %v653, 1e-05
        %v686 = vrsqrt.pop %v670
        %v687 = vrsqrt.pop %v671
        %v688 = vrsqrt.pop %v672
        %v689 = vrsqrt.pop %v673
        %v690 = vrsqrt.pop %v674
        %v691 = vrsqrt.pop %v675
        %v692 = vrsqrt.pop %v676
        %v693 = vrsqrt.pop %v677
        %v694 = vrsqrt.pop %v678
        %v695 = vrsqrt.pop %v679
        %v696 = vrsqrt.pop %v680
        %v697 = vrsqrt.pop %v681
        %v698 = vrsqrt.pop %v682
        %v699 = vrsqrt.pop %v683
        %v700 = vrsqrt.pop %v684
        %v701 = vrsqrt.pop %v685
        %v702 = vmul.f32 %v654, %v686
        %v703 = vmul.f32 %v655, %v687
        %v704 = vmul.f32 %v656, %v688
        %v705 = vmul.f32 %v657, %v689
        %v706 = vmul.f32 %v658, %v690
        %v707 = vmul.f32 %v659, %v691
        %v708 = vmul.f32 %v660, %v692
        %v709 = vmul.f32 %v661, %v693
        %v710 = vmul.f32 %v662, %v694
        %v711 = vmul.f32 %v663, %v695
        %v712 = vmul.f32 %v664, %v696
        %v713 = vmul.f32 %v665, %v697
        %v714 = vmul.f32 %v666, %v698
        %v715 = vmul.f32 %v667, %v699
        %v716 = vmul.f32 %v668, %v700
        %v717 = vmul.f32 %v669, %v701
        %v719 = vlaneseq
        %v720 = vshrl.u32 %v719, 7
        %v721 = vsub.s32 0, %v720
        %v722 = vrot.slane %v507, %v721
        %v724 = vmul.f32 %v702, %v722
        %v725 = vmul.f32 %v703, %v722
        %v726 = vmul.f32 %v704, %v722
        %v727 = vmul.f32 %v705, %v722
        %v728 = vmul.f32 %v706, %v722
        %v729 = vmul.f32 %v707, %v722
        %v730 = vmul.f32 %v708, %v722
        %v731 = vmul.f32 %v709, %v722
        %v732 = vmul.f32 %v710, %v722
        %v733 = vmul.f32 %v711, %v722
        %v734 = vmul.f32 %v712, %v722
        %v735 = vmul.f32 %v713, %v722
        %v736 = vmul.f32 %v714, %v722
        %v737 = vmul.f32 %v715, %v722
        %v738 = vmul.f32 %v716, %v722
        %v739 = vmul.f32 %v717, %v722
        %v741 = vlaneseq
        %v742 = vshrl.u32 %v741, 7
        %v743 = vsub.s32 0, %v742
        %v744 = vrot.slane %v508, %v743
        %v746 = vadd.f32 %v724, %v744
        %v747 = vadd.f32 %v725, %v744
        %v748 = vadd.f32 %v726, %v744
        %v749 = vadd.f32 %v727, %v744
        %v750 = vadd.f32 %v728, %v744
        %v751 = vadd.f32 %v729, %v744
        %v752 = vadd.f32 %v730, %v744
        %v753 = vadd.f32 %v731, %v744
        %v754 = vadd.f32 %v732, %v744
        %v755 = vadd.f32 %v733, %v744
        %v756 = vadd.f32 %v734, %v744
        %v757 = vadd.f32 %v735, %v744
        %v758 = vadd.f32 %v736, %v744
        %v759 = vadd.f32 %v737, %v744
        %v760 = vadd.f32 %v738, %v744
        %v761 = vadd.f32 %v739, %v744
        %v762 = vpack.c.bf16 %v747, %v746
        %v763 = vpack.c.bf16 %v749, %v748
        %v764 = vpack.c.bf16 %v751, %v750
        %v765 = vpack.c.bf16 %v753, %v752
        %v766 = vpack.c.bf16 %v755, %v754
        %v767 = vpack.c.bf16 %v757, %v756
        %v768 = vpack.c.bf16 %v759, %v758
        %v769 = vpack.c.bf16 %v761, %v760
        %v770 = vld [vmem:[#allocation6] sm:$0xff]
        %v771 = vld [vmem:[#allocation6 + $0x8] sm:$0xf]
        %v772 = vld [vmem:[#allocation6 + $0xc] sm:$0xff]
        %v773 = vld [vmem:[#allocation6 + $0x14] sm:$0xf]
        %v774 = vld [vmem:[#allocation6 + $0x18] sm:$0xff]
        %v775 = vld [vmem:[#allocation6 + $0x20] sm:$0xf]
        %v776 = vld [vmem:[#allocation6 + $0x24] sm:$0xff]
        %v777 = vld [vmem:[#allocation6 + $0x2c] sm:$0xf]
        %v778 = vld [vmem:[#allocation6 + $0x30] sm:$0xff]
        %v779 = vld [vmem:[#allocation6 + $0x38] sm:$0xf]
        %v780 = vld [vmem:[#allocation6 + $0x3c] sm:$0xff]
        %v781 = vld [vmem:[#allocation6 + $0x44] sm:$0xf]
        %v782 = vld [vmem:[#allocation6 + $0x48] sm:$0xff]
        %v783 = vld [vmem:[#allocation6 + $0x50] sm:$0xf]
        %v784 = vld [vmem:[#allocation6 + $0x54] sm:$0xff]
        %v785 = vld [vmem:[#allocation6 + $0x5c] sm:$0xf]
        %v786 = vld [vmem:[#allocation6 + $0x60] sm:$0xff]
        %v787 = vld [vmem:[#allocation6 + $0x68] sm:$0xf]
        %v788 = vld [vmem:[#allocation6 + $0x6c] sm:$0xff]
        %v789 = vld [vmem:[#allocation6 + $0x74] sm:$0xf]
        %v790 = vld [vmem:[#allocation6 + $0x78] sm:$0xff]
        %v791 = vld [vmem:[#allocation6 + $0x80] sm:$0xf]
        %v792 = vld [vmem:[#allocation6 + $0x84] sm:$0xff]
        %v793 = vld [vmem:[#allocation6 + $0x8c] sm:$0xf]
        %v794 = vld [vmem:[#allocation6 + $0x90] sm:$0xff]
        %v795 = vld [vmem:[#allocation6 + $0x98] sm:$0xf]
        %v796 = vld [vmem:[#allocation6 + $0x9c] sm:$0xff]
        %v797 = vld [vmem:[#allocation6 + $0xa4] sm:$0xf]
        %v798 = vld [vmem:[#allocation6 + $0xa8] sm:$0xff]
        %v799 = vld [vmem:[#allocation6 + $0xb0] sm:$0xf]
        %v800 = vld [vmem:[#allocation6 + $0xb4] sm:$0xff]
        %v801 = vld [vmem:[#allocation6 + $0xbc] sm:$0xf]
        %v834 = vunpack.c.l.b16 %v770
        %v835 = vunpack.c.h.b16 %v770
        %v836 = vunpack.c.l.b16 %v771
        %v837 = vunpack.c.l.b16 %v772
        %v838 = vunpack.c.h.b16 %v772
        %v839 = vunpack.c.l.b16 %v773
        %v840 = vunpack.c.l.b16 %v774
        %v841 = vunpack.c.h.b16 %v774
        %v842 = vunpack.c.l.b16 %v775
        %v843 = vunpack.c.l.b16 %v776
        %v844 = vunpack.c.h.b16 %v776
        %v845 = vunpack.c.l.b16 %v777
        %v846 = vunpack.c.l.b16 %v778
        %v847 = vunpack.c.h.b16 %v778
        %v848 = vunpack.c.l.b16 %v779
        %v849 = vunpack.c.l.b16 %v780
        %v850 = vunpack.c.h.b16 %v780
        %v851 = vunpack.c.l.b16 %v781
        %v852 = vunpack.c.l.b16 %v782
        %v853 = vunpack.c.h.b16 %v782
        %v854 = vunpack.c.l.b16 %v783
        %v855 = vunpack.c.l.b16 %v784
        %v856 = vunpack.c.h.b16 %v784
        %v857 = vunpack.c.l.b16 %v785
        %v858 = vunpack.c.l.b16 %v786
        %v859 = vunpack.c.h.b16 %v786
        %v860 = vunpack.c.l.b16 %v787
        %v861 = vunpack.c.l.b16 %v788
        %v862 = vunpack.c.h.b16 %v788
        %v863 = vunpack.c.l.b16 %v789
        %v864 = vunpack.c.l.b16 %v790
        %v865 = vunpack.c.h.b16 %v790
        %v866 = vunpack.c.l.b16 %v791
        %v867 = vunpack.c.l.b16 %v792
        %v868 = vunpack.c.h.b16 %v792
        %v869 = vunpack.c.l.b16 %v793
        %v870 = vunpack.c.l.b16 %v794
        %v871 = vunpack.c.h.b16 %v794
        %v872 = vunpack.c.l.b16 %v795
        %v873 = vunpack.c.l.b16 %v796
        %v874 = vunpack.c.h.b16 %v796
        %v875 = vunpack.c.l.b16 %v797
        %v876 = vunpack.c.l.b16 %v798
        %v877 = vunpack.c.h.b16 %v798
        %v878 = vunpack.c.l.b16 %v799
        %v879 = vunpack.c.l.b16 %v800
        %v880 = vunpack.c.h.b16 %v800
        %v881 = vunpack.c.l.b16 %v801
        %v882 = vpack.c.b16 %v837, %v834
        %v883 = vpack.c.b16 %v838, %v835
        %v884 = vpack.c.b16 %v839, %v836
        %v885 = vpack.c.b16 %v843, %v840
        %v886 = vpack.c.b16 %v844, %v841
        %v887 = vpack.c.b16 %v845, %v842
        %v888 = vpack.c.b16 %v849, %v846
        %v889 = vpack.c.b16 %v850, %v847
        %v890 = vpack.c.b16 %v851, %v848
        %v891 = vpack.c.b16 %v855, %v852
        %v892 = vpack.c.b16 %v856, %v853
        %v893 = vpack.c.b16 %v857, %v854
        %v894 = vpack.c.b16 %v861, %v858
        %v895 = vpack.c.b16 %v862, %v859
        %v896 = vpack.c.b16 %v863, %v860
        %v897 = vpack.c.b16 %v867, %v864
        %v898 = vpack.c.b16 %v868, %v865
        %v899 = vpack.c.b16 %v869, %v866
        %v900 = vpack.c.b16 %v873, %v870
        %v901 = vpack.c.b16 %v874, %v871
        %v902 = vpack.c.b16 %v875, %v872
        %v903 = vpack.c.b16 %v879, %v876
        %v904 = vpack.c.b16 %v880, %v877
        %v905 = vpack.c.b16 %v881, %v878
        %930 = vmatprep.subr.bf16.mxu0 %v883
        %931 = vmatpush1.bf16.msra.mxu0 %v882
        %932 = vmatprep.subr.bf16.mxu0 %v886
        %933 = vmatpush1.bf16.msra.mxu0 %v885
        %934 = vmatprep.subr.bf16.mxu0 %v889
        %935 = vmatpush1.bf16.msra.mxu0 %v888
        %936 = vmatprep.subr.bf16.mxu0 %v892
        %937 = vmatpush1.bf16.msra.mxu0 %v891
        %938 = vmatprep.subr.bf16.mxu0 %v895
        %939 = vmatpush1.bf16.msra.mxu0 %v894
        %940 = vmatprep.subr.bf16.mxu0 %v898
        %941 = vmatpush1.bf16.msra.mxu0 %v897
        %942 = vmatprep.subr.bf16.mxu0 %v901
        %943 = vmatpush1.bf16.msra.mxu0 %v900
        %944 = vmatprep.subr.bf16.mxu0 %v904
        %945 = vmatpush1.bf16.msra.mxu0 %v903
        %946 = vmatprep.subr.bf16.mxu0 0
        %947 = vmatpush1.bf16.msra.mxu0 0
        %948 = vmatprep.subr.bf16.mxu0 0
        %949 = vmatpush1.bf16.msra.mxu0 0
        %950 = vmatprep.subr.bf16.mxu0 0
        %951 = vmatpush1.bf16.msra.mxu0 0
        %952 = vmatprep.subr.bf16.mxu0 0
        %953 = vmatpush1.bf16.msra.mxu0 0
        %954 = vmatprep.subr.bf16.mxu0 0
        %955 = vmatpush1.bf16.msra.mxu0 0
        %956 = vmatprep.subr.bf16.mxu0 0
        %957 = vmatpush1.bf16.msra.mxu0 0
        %958 = vmatprep.subr.bf16.mxu0 0
        %959 = vmatpush1.bf16.msra.mxu0 0
        %960 = vmatprep.subr.bf16.mxu0 0
        %961 = vmatpush1.bf16.msra.mxu0 0
        %962 = vmatprep.mubr.bf16.mxu0 0
        %963 = vmatmul.mubr.bf16.gmra.mrb[0].mxu0 %v762
        %v964 = vpop.f32.mrb[0].mxu0
        %v965 = vadd.f32 0.0, %v964
        %v966 = vpop.f32.mrb[0].mxu0
        %v967 = vadd.f32 0.0, %v966
        %v968 = vpop.f32.mrb[0].mxu0
        %v969 = vadd.f32 0.0, %v968
        %v970 = vpop.f32.mrb[0].mxu0
        %v971 = vadd.f32 0.0, %v970
        %972 = vmatprep.mubr.bf16.mxu0 0
        %973 = vmatmul.mubr.bf16.gmra.mrb[0].mxu0 %v763
        %v974 = vpop.f32.mrb[0].mxu0
        %v975 = vadd.f32 0.0, %v974
        %v976 = vpop.f32.mrb[0].mxu0
        %v977 = vadd.f32 0.0, %v976
        %v978 = vpop.f32.mrb[0].mxu0
        %v979 = vadd.f32 0.0, %v978
        %v980 = vpop.f32.mrb[0].mxu0
        %v981 = vadd.f32 0.0, %v980
        %982 = vmatprep.mubr.bf16.mxu0 0
        %983 = vmatmul.mubr.bf16.gmra.mrb[0].mxu0 %v764
        %v984 = vpop.f32.mrb[0].mxu0
        %v985 = vadd.f32 0.0, %v984
        %v986 = vpop.f32.mrb[0].mxu0
        %v987 = vadd.f32 0.0, %v986
        %v988 = vpop.f32.mrb[0].mxu0
        %v989 = vadd.f32 0.0, %v988
        %v990 = vpop.f32.mrb[0].mxu0
        %v991 = vadd.f32 0.0, %v990
        %992 = vmatprep.mubr.bf16.mxu0 0
        %993 = vmatmul.mubr.bf16.gmra.mrb[0].mxu0 %v765
        %v994 = vpop.f32.mrb[0].mxu0
        %v995 = vadd.f32 0.0, %v994
        %v996 = vpop.f32.mrb[0].mxu0
        %v997 = vadd.f32 0.0, %v996
        %v998 = vpop.f32.mrb[0].mxu0
        %v999 = vadd.f32 0.0, %v998
        %v1000 = vpop.f32.mrb[0].mxu0
        %v1001 = vadd.f32 0.0, %v1000
        %1002 = vmatprep.mubr.bf16.mxu0 0
        %1003 = vmatmul.mubr.bf16.gmra.mrb[0].mxu0 %v766
        %v1004 = vpop.f32.mrb[0].mxu0
        %v1005 = vadd.f32 0.0, %v1004
        %v1006 = vpop.f32.mrb[0].mxu0
        %v1007 = vadd.f32 0.0, %v1006
        %v1008 = vpop.f32.mrb[0].mxu0
        %v1009 = vadd.f32 0.0, %v1008
        %v1010 = vpop.f32.mrb[0].mxu0
        %v1011 = vadd.f32 0.0, %v1010
        %1012 = vmatprep.mubr.bf16.mxu0 0
        %1013 = vmatmul.mubr.bf16.gmra.mrb[0].mxu0 %v767
        %v1014 = vpop.f32.mrb[0].mxu0
        %v1015 = vadd.f32 0.0, %v1014
        %v1016 = vpop.f32.mrb[0].mxu0
        %v1017 = vadd.f32 0.0, %v1016
        %v1018 = vpop.f32.mrb[0].mxu0
        %v1019 = vadd.f32 0.0, %v1018
        %v1020 = vpop.f32.mrb[0].mxu0
        %v1021 = vadd.f32 0.0, %v1020
        %1022 = vmatprep.mubr.bf16.mxu0 0
        %1023 = vmatmul.mubr.bf16.gmra.mrb[0].mxu0 %v768
        %v1024 = vpop.f32.mrb[0].mxu0
        %v1025 = vadd.f32 0.0, %v1024
        %v1026 = vpop.f32.mrb[0].mxu0
        %v1027 = vadd.f32 0.0, %v1026
        %v1028 = vpop.f32.mrb[0].mxu0
        %v1029 = vadd.f32 0.0, %v1028
        %v1030 = vpop.f32.mrb[0].mxu0
        %v1031 = vadd.f32 0.0, %v1030
        %1032 = vmatprep.mubr.bf16.mxu0 0
        %1033 = vmatmul.mubr.bf16.gmra.mrb[0].mxu0 %v769
        %v1034 = vpop.f32.mrb[0].mxu0
        %v1035 = vadd.f32 0.0, %v1034
        %v1036 = vpop.f32.mrb[0].mxu0
        %v1037 = vadd.f32 0.0, %v1036
        %v1038 = vpop.f32.mrb[0].mxu0
        %v1039 = vadd.f32 0.0, %v1038
        %v1040 = vpop.f32.mrb[0].mxu0
        %v1041 = vadd.f32 0.0, %v1040
        %1042 = vdwg.mxu0
        %1043 = vmatprep.subr.bf16.mxu0 0
        %1044 = vmatpush1.bf16.msra.mxu0 %v884
        %1045 = vmatprep.subr.bf16.mxu0 0
        %1046 = vmatpush1.bf16.msra.mxu0 %v887
        %1047 = vmatprep.subr.bf16.mxu0 0
        %1048 = vmatpush1.bf16.msra.mxu0 %v890
        %1049 = vmatprep.subr.bf16.mxu0 0
        %1050 = vmatpush1.bf16.msra.mxu0 %v893
        %1051 = vmatprep.subr.bf16.mxu0 0
        %1052 = vmatpush1.bf16.msra.mxu0 %v896
        %1053 = vmatprep.subr.bf16.mxu0 0
        %1054 = vmatpush1.bf16.msra.mxu0 %v899
        %1055 = vmatprep.subr.bf16.mxu0 0
        %1056 = vmatpush1.bf16.msra.mxu0 %v902
        %1057 = vmatprep.subr.bf16.mxu0 0
        %1058 = vmatpush1.bf16.msra.mxu0 %v905
        %1059 = vmatprep.subr.bf16.mxu0 0
        %1060 = vmatpush1.bf16.msra.mxu0 0
        %1061 = vmatprep.subr.bf16.mxu0 0
        %1062 = vmatpush1.bf16.msra.mxu0 0
        %1063 = vmatprep.subr.bf16.mxu0 0
        %1064 = vmatpush1.bf16.msra.mxu0 0
        %1065 = vmatprep.subr.bf16.mxu0 0
        %1066 = vmatpush1.bf16.msra.mxu0 0
        %1067 = vmatprep.subr.bf16.mxu0 0
        %1068 = vmatpush1.bf16.msra.mxu0 0
        %1069 = vmatprep.subr.bf16.mxu0 0
        %1070 = vmatpush1.bf16.msra.mxu0 0
        %1071 = vmatprep.subr.bf16.mxu0 0
        %1072 = vmatpush1.bf16.msra.mxu0 0
        %1073 = vmatprep.subr.bf16.mxu0 0
        %1074 = vmatpush1.bf16.msra.mxu0 0
        %1075 = vmatprep.mubr.bf16.mxu0 0
        %1076 = vmatmul.mubr.bf16.gmra.mrb[0].mxu0 %v762
        %v1077 = vpop.f32.mrb[0].mxu0
        %v1078 = vadd.f32 0.0, %v1077
        %v1079 = vpop.f32.mrb[0].mxu0
        %v1080 = vpop.f32.mrb[0].mxu0
        %v1081 = vadd.f32 0.0, %v1080
        %v1082 = vpop.f32.mrb[0].mxu0
        %1083 = vmatprep.mubr.bf16.mxu0 0
        %1084 = vmatmul.mubr.bf16.gmra.mrb[0].mxu0 %v763
        %v1085 = vpop.f32.mrb[0].mxu0
        %v1086 = vadd.f32 0.0, %v1085
        %v1087 = vpop.f32.mrb[0].mxu0
        %v1088 = vpop.f32.mrb[0].mxu0
        %v1089 = vadd.f32 0.0, %v1088
        %v1090 = vpop.f32.mrb[0].mxu0
        %1091 = vmatprep.mubr.bf16.mxu0 0
        %1092 = vmatmul.mubr.bf16.gmra.mrb[0].mxu0 %v764
        %v1093 = vpop.f32.mrb[0].mxu0
        %v1094 = vadd.f32 0.0, %v1093
        %v1095 = vpop.f32.mrb[0].mxu0
        %v1096 = vpop.f32.mrb[0].mxu0
        %v1097 = vadd.f32 0.0, %v1096
        %v1098 = vpop.f32.mrb[0].mxu0
        %1099 = vmatprep.mubr.bf16.mxu0 0
        %1100 = vmatmul.mubr.bf16.gmra.mrb[0].mxu0 %v765
        %v1101 = vpop.f32.mrb[0].mxu0
        %v1102 = vadd.f32 0.0, %v1101
        %v1103 = vpop.f32.mrb[0].mxu0
        %v1104 = vpop.f32.mrb[0].mxu0
        %v1105 = vadd.f32 0.0, %v1104
        %v1106 = vpop.f32.mrb[0].mxu0
        %1107 = vmatprep.mubr.bf16.mxu0 0
        %1108 = vmatmul.mubr.bf16.gmra.mrb[0].mxu0 %v766
        %v1109 = vpop.f32.mrb[0].mxu0
        %v1110 = vadd.f32 0.0, %v1109
        %v1111 = vpop.f32.mrb[0].mxu0
        %v1112 = vpop.f32.mrb[0].mxu0
        %v1113 = vadd.f32 0.0, %v1112
        %v1114 = vpop.f32.mrb[0].mxu0
        %1115 = vmatprep.mubr.bf16.mxu0 0
        %1116 = vmatmul.mubr.bf16.gmra.mrb[0].mxu0 %v767
        %v1117 = vpop.f32.mrb[0].mxu0
        %v1118 = vadd.f32 0.0, %v1117
        %v1119 = vpop.f32.mrb[0].mxu0
        %v1120 = vpop.f32.mrb[0].mxu0
        %v1121 = vadd.f32 0.0, %v1120
        %v1122 = vpop.f32.mrb[0].mxu0
        %1123 = vmatprep.mubr.bf16.mxu0 0
        %1124 = vmatmul.mubr.bf16.gmra.mrb[0].mxu0 %v768
        %v1125 = vpop.f32.mrb[0].mxu0
        %v1126 = vadd.f32 0.0, %v1125
        %v1127 = vpop.f32.mrb[0].mxu0
        %v1128 = vpop.f32.mrb[0].mxu0
        %v1129 = vadd.f32 0.0, %v1128
        %v1130 = vpop.f32.mrb[0].mxu0
        %1131 = vmatprep.mubr.bf16.mxu0 0
        %1132 = vmatmul.mubr.bf16.gmra.mrb[0].mxu0 %v769
        %v1133 = vpop.f32.mrb[0].mxu0
        %v1134 = vadd.f32 0.0, %v1133
        %v1135 = vpop.f32.mrb[0].mxu0
        %v1136 = vpop.f32.mrb[0].mxu0
        %v1137 = vadd.f32 0.0, %v1136
        %v1138 = vpop.f32.mrb[0].mxu0
        %1139 = vdwg.mxu0
        %v1140 = vpack.c.bf16 %v969, %v965
        %v1141 = vpack.c.bf16 %v971, %v967
        %v1142 = vpack.c.bf16 %v1081, %v1078
        %v1143 = vpack.c.bf16 %v979, %v975
        %v1144 = vpack.c.bf16 %v981, %v977
        %v1145 = vpack.c.bf16 %v1089, %v1086
        %v1146 = vpack.c.bf16 %v989, %v985
        %v1147 = vpack.c.bf16 %v991, %v987
        %v1148 = vpack.c.bf16 %v1097, %v1094
        %v1149 = vpack.c.bf16 %v999, %v995
        %v1150 = vpack.c.bf16 %v1001, %v997
        %v1151 = vpack.c.bf16 %v1105, %v1102
        %v1152 = vpack.c.bf16 %v1009, %v1005
        %v1153 = vpack.c.bf16 %v1011, %v1007
        %v1154 = vpack.c.bf16 %v1113, %v1110
        %v1155 = vpack.c.bf16 %v1019, %v1015
        %v1156 = vpack.c.bf16 %v1021, %v1017
        %v1157 = vpack.c.bf16 %v1121, %v1118
        %v1158 = vpack.c.bf16 %v1029, %v1025
        %v1159 = vpack.c.bf16 %v1031, %v1027
        %v1160 = vpack.c.bf16 %v1129, %v1126
        %v1161 = vpack.c.bf16 %v1039, %v1035
        %v1162 = vpack.c.bf16 %v1041, %v1037
        %v1163 = vpack.c.bf16 %v1137, %v1134
        %1164 = vst [vmem:[#allocation2] sm:$0xff] %v1140
        %1165 = vst [vmem:[#allocation2 + $0x8] sm:$0xff] %v1141
        %1166 = vst [vmem:[#allocation2 + $0x10] sm:$0xff] %v1142
        %1167 = vst [vmem:[#allocation2 + $0x18] sm:$0xff] %v1143
        %1168 = vst [vmem:[#allocation2 + $0x20] sm:$0xff] %v1144
        %1169 = vst [vmem:[#allocation2 + $0x28] sm:$0xff] %v1145
        %1170 = vst [vmem:[#allocation2 + $0x30] sm:$0xff] %v1146
        %1171 = vst [vmem:[#allocation2 + $0x38] sm:$0xff] %v1147
        %1172 = vst [vmem:[#allocation2 + $0x40] sm:$0xff] %v1148
        %1173 = vst [vmem:[#allocation2 + $0x48] sm:$0xff] %v1149
        %1174 = vst [vmem:[#allocation2 + $0x50] sm:$0xff] %v1150
        %1175 = vst [vmem:[#allocation2 + $0x58] sm:$0xff] %v1151
        %1176 = vst [vmem:[#allocation2 + $0x60] sm:$0xff] %v1152
        %1177 = vst [vmem:[#allocation2 + $0x68] sm:$0xff] %v1153
        %1178 = vst [vmem:[#allocation2 + $0x70] sm:$0xff] %v1154
        %1179 = vst [vmem:[#allocation2 + $0x78] sm:$0xff] %v1155
        %1180 = vst [vmem:[#allocation2 + $0x80] sm:$0xff] %v1156
        %1181 = vst [vmem:[#allocation2 + $0x88] sm:$0xff] %v1157
        %1182 = vst [vmem:[#allocation2 + $0x90] sm:$0xff] %v1158
        %1183 = vst [vmem:[#allocation2 + $0x98] sm:$0xff] %v1159
        %1184 = vst [vmem:[#allocation2 + $0xa0] sm:$0xff] %v1160
        %1185 = vst [vmem:[#allocation2 + $0xa8] sm:$0xff] %v1161
        %1186 = vst [vmem:[#allocation2 + $0xb0] sm:$0xff] %v1162
        %1187 = vst [vmem:[#allocation2 + $0xb8] sm:$0xff] %v1163
        %v1188 = vlaneseq
        %v1189 = vshrl.u32 %v1188, 7
        %v1190 = vadd.s32 %v1189, 8
        %v1191 = vadd.s32 %v1189, 16
        %v1192 = vadd.s32 %v1189, 24
        %v1193 = vadd.s32 %v1189, 32
        %v1194 = vadd.s32 %v1189, 40
        %v1195 = vadd.s32 %v1189, 48
        %v1196 = vadd.s32 %v1189, 56
        %v1197 = vadd.s32 %v1189, 64
        %v1198 = vadd.s32 %v1189, 72
        %v1199 = vadd.s32 %v1189, 80
        %v1200 = vadd.s32 %v1189, 88
        %v1201 = vadd.s32 %v1189, 96
        %v1202 = vadd.s32 %v1189, 104
        %v1203 = vadd.s32 %v1189, 112
        %v1204 = vadd.s32 %v1189, 120
        %v1205 = vlaneseq
        %v1206 = vand.u32 %v1205, 127
        %vm1207 = vcmp.le.s32.totalorder %v1206, %v1189
        %vm1208 = vcmp.le.s32.totalorder %v1206, %v1190
        %vm1209 = vcmp.le.s32.totalorder %v1206, %v1191
        %vm1210 = vcmp.le.s32.totalorder %v1206, %v1192
        %vm1211 = vcmp.le.s32.totalorder %v1206, %v1193
        %vm1212 = vcmp.le.s32.totalorder %v1206, %v1194
        %vm1213 = vcmp.le.s32.totalorder %v1206, %v1195
        %vm1214 = vcmp.le.s32.totalorder %v1206, %v1196
        %vm1215 = vcmp.le.s32.totalorder %v1206, %v1197
        %vm1216 = vcmp.le.s32.totalorder %v1206, %v1198
        %vm1217 = vcmp.le.s32.totalorder %v1206, %v1199
        %vm1218 = vcmp.le.s32.totalorder %v1206, %v1200
        %vm1219 = vcmp.le.s32.totalorder %v1206, %v1201
        %vm1220 = vcmp.le.s32.totalorder %v1206, %v1202
        %vm1221 = vcmp.le.s32.totalorder %v1206, %v1203
        %vm1222 = vcmp.le.s32.totalorder %v1206, %v1204
        %v1223 = vld [vmem:[#allocation2] sm:$0xff]
        %v1224 = vld [vmem:[#allocation2 + $0x18] sm:$0xff]
        %v1225 = vld [vmem:[#allocation2 + $0x30] sm:$0xff]
        %v1226 = vld [vmem:[#allocation2 + $0x48] sm:$0xff]
        %v1227 = vld [vmem:[#allocation2 + $0x60] sm:$0xff]
        %v1228 = vld [vmem:[#allocation2 + $0x78] sm:$0xff]
        %v1229 = vld [vmem:[#allocation2 + $0x90] sm:$0xff]
        %v1230 = vld [vmem:[#allocation2 + $0xa8] sm:$0xff]
        %v1231 = vld [vmem:[#allocation2 + $0x8] sm:$0xff]
        %v1232 = vld [vmem:[#allocation2 + $0x20] sm:$0xff]
        %v1233 = vld [vmem:[#allocation2 + $0x38] sm:$0xff]
        %v1234 = vld [vmem:[#allocation2 + $0x50] sm:$0xff]
        %v1235 = vld [vmem:[#allocation2 + $0x68] sm:$0xff]
        %v1236 = vld [vmem:[#allocation2 + $0x80] sm:$0xff]
        %v1237 = vld [vmem:[#allocation2 + $0x98] sm:$0xff]
        %v1238 = vld [vmem:[#allocation2 + $0xb0] sm:$0xff]
        %v1239 = vld [vmem:[#allocation2 + $0x10] sm:$0xff]
        %v1240 = vld [vmem:[#allocation2 + $0x28] sm:$0xff]
        %v1241 = vld [vmem:[#allocation2 + $0x40] sm:$0xff]
        %v1242 = vld [vmem:[#allocation2 + $0x58] sm:$0xff]
        %v1243 = vld [vmem:[#allocation2 + $0x70] sm:$0xff]
        %v1244 = vld [vmem:[#allocation2 + $0x88] sm:$0xff]
        %v1245 = vld [vmem:[#allocation2 + $0xa0] sm:$0xff]
        %v1246 = vld [vmem:[#allocation2 + $0xb8] sm:$0xff]
        %vm1247 = vcmask 130048
        %v1249 = vsel %vm1247, %v1223, 0
        %v1252 = vsel %vm1247, %v1224, 0
        %v1255 = vsel %vm1247, %v1225, 0
        %v1258 = vsel %vm1247, %v1226, 0
        %v1261 = vsel %vm1247, %v1227, 0
        %v1264 = vsel %vm1247, %v1228, 0
        %v1267 = vsel %vm1247, %v1229, 0
        %v1270 = vsel %vm1247, %v1230, 0
        %v1273 = vsel %vm1247, %v1231, 0
        %v1276 = vsel %vm1247, %v1232, 0
        %v1279 = vsel %vm1247, %v1233, 0
        %v1282 = vsel %vm1247, %v1234, 0
        %v1285 = vsel %vm1247, %v1235, 0
        %v1288 = vsel %vm1247, %v1236, 0
        %v1291 = vsel %vm1247, %v1237, 0
        %v1294 = vsel %vm1247, %v1238, 0
        %1296 = vmatprep.subr.bf16.mxu0 0
        %1297 = vmatpush1.bf16.xpose.msra.mxu0 %v1273
        %1298 = vmatprep.subr.bf16.mxu0 0
        %1299 = vmatpush1.bf16.xpose.msra.mxu0 %v1276
        %1300 = vmatprep.subr.bf16.mxu0 0
        %1301 = vmatpush1.bf16.xpose.msra.mxu0 %v1279
        %1302 = vmatprep.subr.bf16.mxu0 0
        %1303 = vmatpush1.bf16.xpose.msra.mxu0 %v1282
        %1304 = vmatprep.subr.bf16.mxu0 0
        %1305 = vmatpush1.bf16.xpose.msra.mxu0 %v1285
        %1306 = vmatprep.subr.bf16.mxu0 0
        %1307 = vmatpush1.bf16.xpose.msra.mxu0 %v1288
        %1308 = vmatprep.subr.bf16.mxu0 0
        %1309 = vmatpush1.bf16.xpose.msra.mxu0 %v1291
        %1310 = vmatprep.subr.bf16.mxu0 0
        %1311 = vmatpush1.bf16.xpose.msra.mxu0 %v1294
        %1312 = vmatprep.subr.bf16.mxu0 0
        %1313 = vmatpush1.bf16.xpose.msra.mxu0 0
        %1314 = vmatprep.subr.bf16.mxu0 0
        %1315 = vmatpush1.bf16.xpose.msra.mxu0 0
        %1316 = vmatprep.subr.bf16.mxu0 0
        %1317 = vmatpush1.bf16.xpose.msra.mxu0 0
        %1318 = vmatprep.subr.bf16.mxu0 0
        %1319 = vmatpush1.bf16.xpose.msra.mxu0 0
        %1320 = vmatprep.subr.bf16.mxu0 0
        %1321 = vmatpush1.bf16.xpose.msra.mxu0 0
        %1322 = vmatprep.subr.bf16.mxu0 0
        %1323 = vmatpush1.bf16.xpose.msra.mxu0 0
        %1324 = vmatprep.subr.bf16.mxu0 0
        %1325 = vmatpush1.bf16.xpose.msra.mxu0 0
        %1326 = vmatprep.subr.bf16.mxu0 0
        %1327 = vmatpush1.bf16.xpose.msra.mxu0 0
        %1328 = vmatprep.mubr.bf16.mxu0 0
        %1329 = vmatmul.mubr.bf16.gmra.mrb[0].mxu0 %v1249
        %v1330 = vpop.f32.mrb[0].mxu0
        %v1331 = vadd.f32 0.0, %v1330
        %v1332 = vpop.f32.mrb[0].mxu0
        %v1333 = vpop.f32.mrb[0].mxu0
        %v1334 = vadd.f32 0.0, %v1333
        %v1335 = vpop.f32.mrb[0].mxu0
        %1336 = vmatprep.mubr.bf16.mxu0 0
        %1337 = vmatmul.mubr.bf16.gmra.mrb[0].mxu0 %v1252
        %v1338 = vpop.f32.mrb[0].mxu0
        %v1339 = vadd.f32 0.0, %v1338
        %v1340 = vpop.f32.mrb[0].mxu0
        %v1341 = vpop.f32.mrb[0].mxu0
        %v1342 = vadd.f32 0.0, %v1341
        %v1343 = vpop.f32.mrb[0].mxu0
        %1344 = vmatprep.mubr.bf16.mxu0 0
        %1345 = vmatmul.mubr.bf16.gmra.mrb[0].mxu0 %v1255
        %v1346 = vpop.f32.mrb[0].mxu0
        %v1347 = vadd.f32 0.0, %v1346
        %v1348 = vpop.f32.mrb[0].mxu0
        %v1349 = vpop.f32.mrb[0].mxu0
        %v1350 = vadd.f32 0.0, %v1349
        %v1351 = vpop.f32.mrb[0].mxu0
        %1352 = vmatprep.mubr.bf16.mxu0 0
        %1353 = vmatmul.mubr.bf16.gmra.mrb[0].mxu0 %v1258
        %v1354 = vpop.f32.mrb[0].mxu0
        %v1355 = vadd.f32 0.0, %v1354
        %v1356 = vpop.f32.mrb[0].mxu0
        %v1357 = vpop.f32.mrb[0].mxu0
        %v1358 = vadd.f32 0.0, %v1357
        %v1359 = vpop.f32.mrb[0].mxu0
        %1360 = vmatprep.mubr.bf16.mxu0 0
        %1361 = vmatmul.mubr.bf16.gmra.mrb[0].mxu0 %v1261
        %v1362 = vpop.f32.mrb[0].mxu0
        %v1363 = vadd.f32 0.0, %v1362
        %v1364 = vpop.f32.mrb[0].mxu0
        %v1365 = vpop.f32.mrb[0].mxu0
        %v1366 = vadd.f32 0.0, %v1365
        %v1367 = vpop.f32.mrb[0].mxu0
        %1368 = vmatprep.mubr.bf16.mxu0 0
        %1369 = vmatmul.mubr.bf16.gmra.mrb[0].mxu0 %v1264
        %v1370 = vpop.f32.mrb[0].mxu0
        %v1371 = vadd.f32 0.0, %v1370
        %v1372 = vpop.f32.mrb[0].mxu0
        %v1373 = vpop.f32.mrb[0].mxu0
        %v1374 = vadd.f32 0.0, %v1373
        %v1375 = vpop.f32.mrb[0].mxu0
        %1376 = vmatprep.mubr.bf16.mxu0 0
        %1377 = vmatmul.mubr.bf16.gmra.mrb[0].mxu0 %v1267
        %v1378 = vpop.f32.mrb[0].mxu0
        %v1379 = vadd.f32 0.0, %v1378
        %v1380 = vpop.f32.mrb[0].mxu0
        %v1381 = vpop.f32.mrb[0].mxu0
        %v1382 = vadd.f32 0.0, %v1381
        %v1383 = vpop.f32.mrb[0].mxu0
        %1384 = vmatprep.mubr.bf16.mxu0 0
        %1385 = vmatmul.mubr.bf16.gmra.mrb[0].mxu0 %v1270
        %v1386 = vpop.f32.mrb[0].mxu0
        %v1387 = vadd.f32 0.0, %v1386
        %v1388 = vpop.f32.mrb[0].mxu0
        %v1389 = vpop.f32.mrb[0].mxu0
        %v1390 = vadd.f32 0.0, %v1389
        %v1391 = vpop.f32.mrb[0].mxu0
        %1392 = vdwg.mxu0
        %v1393 = vsel %vm1207, %v1331, -inf
        %v1394 = vsel %vm1208, %v1334, -inf
        %v1395 = vsel %vm1209, %v1339, -inf
        %v1396 = vsel %vm1210, %v1342, -inf
        %v1397 = vsel %vm1211, %v1347, -inf
        %v1398 = vsel %vm1212, %v1350, -inf
        %v1399 = vsel %vm1213, %v1355, -inf
        %v1400 = vsel %vm1214, %v1358, -inf
        %v1401 = vsel %vm1215, %v1363, -inf
        %v1402 = vsel %vm1216, %v1366, -inf
        %v1403 = vsel %vm1217, %v1371, -inf
        %v1404 = vsel %vm1218, %v1374, -inf
        %v1405 = vsel %vm1219, %v1379, -inf
        %v1406 = vsel %vm1220, %v1382, -inf
        %v1407 = vsel %vm1221, %v1387, -inf
        %v1408 = vsel %vm1222, %v1390, -inf
        %1409 = vmax.xlane.f32.xlu0 %v1393
        %v1410 = vpop.xlane.xlu0 %1409
        %1411 = vmax.xlane.f32.xlu0 %v1394
        %v1412 = vpop.xlane.xlu0 %1411
        %1413 = vmax.xlane.f32.xlu0 %v1395
        %v1414 = vpop.xlane.xlu0 %1413
        %1415 = vmax.xlane.f32.xlu0 %v1396
        %v1416 = vpop.xlane.xlu0 %1415
        %1417 = vmax.xlane.f32.xlu0 %v1397
        %v1418 = vpop.xlane.xlu0 %1417
        %1419 = vmax.xlane.f32.xlu0 %v1398
        %v1420 = vpop.xlane.xlu0 %1419
        %1421 = vmax.xlane.f32.xlu0 %v1399
        %v1422 = vpop.xlane.xlu0 %1421
        %1423 = vmax.xlane.f32.xlu0 %v1400
        %v1424 = vpop.xlane.xlu0 %1423
        %1425 = vmax.xlane.f32.xlu0 %v1401
        %v1426 = vpop.xlane.xlu0 %1425
        %1427 = vmax.xlane.f32.xlu0 %v1402
        %v1428 = vpop.xlane.xlu0 %1427
        %1429 = vmax.xlane.f32.xlu0 %v1403
        %v1430 = vpop.xlane.xlu0 %1429
        %1431 = vmax.xlane.f32.xlu0 %v1404
        %v1432 = vpop.xlane.xlu0 %1431
        %1433 = vmax.xlane.f32.xlu0 %v1405
        %v1434 = vpop.xlane.xlu0 %1433
        %1435 = vmax.xlane.f32.xlu0 %v1406
        %v1436 = vpop.xlane.xlu0 %1435
        %1437 = vmax.xlane.f32.xlu0 %v1407
        %v1438 = vpop.xlane.xlu0 %1437
        %1439 = vmax.xlane.f32.xlu0 %v1408
        %v1440 = vpop.xlane.xlu0 %1439
        %v1441 = vsub.f32 %v1393, %v1410
        %v1442 = vsub.f32 %v1394, %v1412
        %v1443 = vsub.f32 %v1395, %v1414
        %v1444 = vsub.f32 %v1396, %v1416
        %v1445 = vsub.f32 %v1397, %v1418
        %v1446 = vsub.f32 %v1398, %v1420
        %v1447 = vsub.f32 %v1399, %v1422
        %v1448 = vsub.f32 %v1400, %v1424
        %v1449 = vsub.f32 %v1401, %v1426
        %v1450 = vsub.f32 %v1402, %v1428
        %v1451 = vsub.f32 %v1403, %v1430
        %v1452 = vsub.f32 %v1404, %v1432
        %v1453 = vsub.f32 %v1405, %v1434
        %v1454 = vsub.f32 %v1406, %v1436
        %v1455 = vsub.f32 %v1407, %v1438
        %v1456 = vsub.f32 %v1408, %v1440
        %v1457 = vmul.f32 %v1441, 1.442695
        %v1458 = vpow.pop %v1457
        %v1459 = vmul.f32 %v1442, 1.442695
        %v1460 = vpow.pop %v1459
        %v1461 = vmul.f32 %v1443, 1.442695
        %v1462 = vpow.pop %v1461
        %v1463 = vmul.f32 %v1444, 1.442695
        %v1464 = vpow.pop %v1463
        %v1465 = vmul.f32 %v1445, 1.442695
        %v1466 = vpow.pop %v1465
        %v1467 = vmul.f32 %v1446, 1.442695
        %v1468 = vpow.pop %v1467
        %v1469 = vmul.f32 %v1447, 1.442695
        %v1470 = vpow.pop %v1469
        %v1471 = vmul.f32 %v1448, 1.442695
        %v1472 = vpow.pop %v1471
        %v1473 = vmul.f32 %v1449, 1.442695
        %v1474 = vpow.pop %v1473
        %v1475 = vmul.f32 %v1450, 1.442695
        %v1476 = vpow.pop %v1475
        %v1477 = vmul.f32 %v1451, 1.442695
        %v1478 = vpow.pop %v1477
        %v1479 = vmul.f32 %v1452, 1.442695
        %v1480 = vpow.pop %v1479
        %v1481 = vmul.f32 %v1453, 1.442695
        %v1482 = vpow.pop %v1481
        %v1483 = vmul.f32 %v1454, 1.442695
        %v1484 = vpow.pop %v1483
        %v1485 = vmul.f32 %v1455, 1.442695
        %v1486 = vpow.pop %v1485
        %v1487 = vmul.f32 %v1456, 1.442695
        %v1488 = vpow.pop %v1487
        %1489 = vadd.xlane.f32.xlu0 %v1458
        %v1490 = vpop.xlane.xlu0 %1489
        %1491 = vadd.xlane.f32.xlu0 %v1460
        %v1492 = vpop.xlane.xlu0 %1491
        %1493 = vadd.xlane.f32.xlu0 %v1462
        %v1494 = vpop.xlane.xlu0 %1493
        %1495 = vadd.xlane.f32.xlu0 %v1464
        %v1496 = vpop.xlane.xlu0 %1495
        %1497 = vadd.xlane.f32.xlu0 %v1466
        %v1498 = vpop.xlane.xlu0 %1497
        %1499 = vadd.xlane.f32.xlu0 %v1468
        %v1500 = vpop.xlane.xlu0 %1499
        %1501 = vadd.xlane.f32.xlu0 %v1470
        %v1502 = vpop.xlane.xlu0 %1501
        %1503 = vadd.xlane.f32.xlu0 %v1472
        %v1504 = vpop.xlane.xlu0 %1503
        %1505 = vadd.xlane.f32.xlu0 %v1474
        %v1506 = vpop.xlane.xlu0 %1505
        %1507 = vadd.xlane.f32.xlu0 %v1476
        %v1508 = vpop.xlane.xlu0 %1507
        %1509 = vadd.xlane.f32.xlu0 %v1478
        %v1510 = vpop.xlane.xlu0 %1509
        %1511 = vadd.xlane.f32.xlu0 %v1480
        %v1512 = vpop.xlane.xlu0 %1511
        %1513 = vadd.xlane.f32.xlu0 %v1482
        %v1514 = vpop.xlane.xlu0 %1513
        %1515 = vadd.xlane.f32.xlu0 %v1484
        %v1516 = vpop.xlane.xlu0 %1515
        %1517 = vadd.xlane.f32.xlu0 %v1486
        %v1518 = vpop.xlane.xlu0 %1517
        %1519 = vadd.xlane.f32.xlu0 %v1488
        %v1520 = vpop.xlane.xlu0 %1519
        %v1521 = vrcp.pop %v1490
        %v1522 = vrcp.pop %v1492
        %v1523 = vrcp.pop %v1494
        %v1524 = vrcp.pop %v1496
        %v1525 = vrcp.pop %v1498
        %v1526 = vrcp.pop %v1500
        %v1527 = vrcp.pop %v1502
        %v1528 = vrcp.pop %v1504
        %v1529 = vrcp.pop %v1506
        %v1530 = vrcp.pop %v1508
        %v1531 = vrcp.pop %v1510
        %v1532 = vrcp.pop %v1512
        %v1533 = vrcp.pop %v1514
        %v1534 = vrcp.pop %v1516
        %v1535 = vrcp.pop %v1518
        %v1536 = vrcp.pop %v1520
        %v1537 = vld [vmem:[#allocation8] sm:$0xf]
        %v1538 = vld [vmem:[#allocation8 + $0x4] sm:$0xf]
        %v1541 = vunpack.c.l.b16 %v1537
        %v1542 = vunpack.c.l.b16 %v1538
        %v1543 = vpack.c.b16 %v1542, %v1541
        %v1546 = vsel %vm1247, %v1239, 0
        %v1549 = vsel %vm1247, %v1240, 0
        %v1552 = vsel %vm1247, %v1241, 0
        %v1555 = vsel %vm1247, %v1242, 0
        %v1558 = vsel %vm1247, %v1243, 0
        %v1561 = vsel %vm1247, %v1244, 0
        %v1564 = vsel %vm1247, %v1245, 0
        %v1567 = vsel %vm1247, %v1246, 0
        %1569 = vmatprep.subr.bf16.mxu0 0
        %1570 = vmatpush1.bf16.msra.mxu0 %v1543
        %1571 = vmatprep.subr.bf16.mxu0 0
        %1572 = vmatpush1.bf16.msra.mxu0 0
        %1573 = vmatprep.subr.bf16.mxu0 0
        %1574 = vmatpush1.bf16.msra.mxu0 0
        %1575 = vmatprep.subr.bf16.mxu0 0
        %1576 = vmatpush1.bf16.msra.mxu0 0
        %1577 = vmatprep.subr.bf16.mxu0 0
        %1578 = vmatpush1.bf16.msra.mxu0 0
        %1579 = vmatprep.subr.bf16.mxu0 0
        %1580 = vmatpush1.bf16.msra.mxu0 0
        %1581 = vmatprep.subr.bf16.mxu0 0
        %1582 = vmatpush1.bf16.msra.mxu0 0
        %1583 = vmatprep.subr.bf16.mxu0 0
        %1584 = vmatpush1.bf16.msra.mxu0 0
        %1585 = vmatprep.subr.bf16.mxu0 0
        %1586 = vmatpush1.bf16.msra.mxu0 0
        %1587 = vmatprep.subr.bf16.mxu0 0
        %1588 = vmatpush1.bf16.msra.mxu0 0
        %1589 = vmatprep.subr.bf16.mxu0 0
        %1590 = vmatpush1.bf16.msra.mxu0 0
        %1591 = vmatprep.subr.bf16.mxu0 0
        %1592 = vmatpush1.bf16.msra.mxu0 0
        %1593 = vmatprep.subr.bf16.mxu0 0
        %1594 = vmatpush1.bf16.msra.mxu0 0
        %1595 = vmatprep.subr.bf16.mxu0 0
        %1596 = vmatpush1.bf16.msra.mxu0 0
        %1597 = vmatprep.subr.bf16.mxu0 0
        %1598 = vmatpush1.bf16.msra.mxu0 0
        %1599 = vmatprep.subr.bf16.mxu0 0
        %1600 = vmatpush1.bf16.msra.mxu0 0
        %1601 = vmatprep.mubr.bf16.mxu0 0
        %1602 = vmatmul.mubr.bf16.gmra.mrb[0].mxu0 %v1546
        %v1603 = vpop.f32.mrb[0].mxu0
        %v1604 = vadd.f32 0.0, %v1603
        %v1605 = vpop.f32.mrb[0].mxu0
        %v1606 = vpop.f32.mrb[0].mxu0
        %v1607 = vadd.f32 0.0, %v1606
        %v1608 = vpop.f32.mrb[0].mxu0
        %1609 = vmatprep.mubr.bf16.mxu0 0
        %1610 = vmatmul.mubr.bf16.gmra.mrb[0].mxu0 %v1549
        %v1611 = vpop.f32.mrb[0].mxu0
        %v1612 = vadd.f32 0.0, %v1611
        %v1613 = vpop.f32.mrb[0].mxu0
        %v1614 = vpop.f32.mrb[0].mxu0
        %v1615 = vadd.f32 0.0, %v1614
        %v1616 = vpop.f32.mrb[0].mxu0
        %1617 = vmatprep.mubr.bf16.mxu0 0
        %1618 = vmatmul.mubr.bf16.gmra.mrb[0].mxu0 %v1552
        %v1619 = vpop.f32.mrb[0].mxu0
        %v1620 = vadd.f32 0.0, %v1619
        %v1621 = vpop.f32.mrb[0].mxu0
        %v1622 = vpop.f32.mrb[0].mxu0
        %v1623 = vadd.f32 0.0, %v1622
        %v1624 = vpop.f32.mrb[0].mxu0
        %1625 = vmatprep.mubr.bf16.mxu0 0
        %1626 = vmatmul.mubr.bf16.gmra.mrb[0].mxu0 %v1555
        %v1627 = vpop.f32.mrb[0].mxu0
        %v1628 = vadd.f32 0.0, %v1627
        %v1629 = vpop.f32.mrb[0].mxu0
        %v1630 = vpop.f32.mrb[0].mxu0
        %v1631 = vadd.f32 0.0, %v1630
        %v1632 = vpop.f32.mrb[0].mxu0
        %1633 = vmatprep.mubr.bf16.mxu0 0
        %1634 = vmatmul.mubr.bf16.gmra.mrb[0].mxu0 %v1558
        %v1635 = vpop.f32.mrb[0].mxu0
        %v1636 = vadd.f32 0.0, %v1635
        %v1637 = vpop.f32.mrb[0].mxu0
        %v1638 = vpop.f32.mrb[0].mxu0
        %v1639 = vadd.f32 0.0, %v1638
        %v1640 = vpop.f32.mrb[0].mxu0
        %1641 = vmatprep.mubr.bf16.mxu0 0
        %1642 = vmatmul.mubr.bf16.gmra.mrb[0].mxu0 %v1561
        %v1643 = vpop.f32.mrb[0].mxu0
        %v1644 = vadd.f32 0.0, %v1643
        %v1645 = vpop.f32.mrb[0].mxu0
        %v1646 = vpop.f32.mrb[0].mxu0
        %v1647 = vadd.f32 0.0, %v1646
        %v1648 = vpop.f32.mrb[0].mxu0
        %1649 = vmatprep.mubr.bf16.mxu0 0
        %1650 = vmatmul.mubr.bf16.gmra.mrb[0].mxu0 %v1564
        %v1651 = vpop.f32.mrb[0].mxu0
        %v1652 = vadd.f32 0.0, %v1651
        %v1653 = vpop.f32.mrb[0].mxu0
        %v1654 = vpop.f32.mrb[0].mxu0
        %v1655 = vadd.f32 0.0, %v1654
        %v1656 = vpop.f32.mrb[0].mxu0
        %1657 = vmatprep.mubr.bf16.mxu0 0
        %1658 = vmatmul.mubr.bf16.gmra.mrb[0].mxu0 %v1567
        %v1659 = vpop.f32.mrb[0].mxu0
        %v1660 = vadd.f32 0.0, %v1659
        %v1661 = vpop.f32.mrb[0].mxu0
        %v1662 = vpop.f32.mrb[0].mxu0
        %v1663 = vadd.f32 0.0, %v1662
        %v1664 = vpop.f32.mrb[0].mxu0
        %1665 = vdwg.mxu0
        %v1666 = vpack.c.bf16 %v1607, %v1604
        %v1667 = vpack.c.bf16 %v1615, %v1612
        %v1668 = vpack.c.bf16 %v1623, %v1620
        %v1669 = vpack.c.bf16 %v1631, %v1628
        %v1670 = vpack.c.bf16 %v1639, %v1636
        %v1671 = vpack.c.bf16 %v1647, %v1644
        %v1672 = vpack.c.bf16 %v1655, %v1652
        %v1673 = vpack.c.bf16 %v1663, %v1660
        %v1674 = vmul.f32 %v1458, %v1521
        %v1675 = vmul.f32 %v1460, %v1522
        %v1676 = vmul.f32 %v1462, %v1523
        %v1677 = vmul.f32 %v1464, %v1524
        %v1678 = vmul.f32 %v1466, %v1525
        %v1679 = vmul.f32 %v1468, %v1526
        %v1680 = vmul.f32 %v1470, %v1527
        %v1681 = vmul.f32 %v1472, %v1528
        %v1682 = vmul.f32 %v1474, %v1529
        %v1683 = vmul.f32 %v1476, %v1530
        %v1684 = vmul.f32 %v1478, %v1531
        %v1685 = vmul.f32 %v1480, %v1532
        %v1686 = vmul.f32 %v1482, %v1533
        %v1687 = vmul.f32 %v1484, %v1534
        %v1688 = vmul.f32 %v1486, %v1535
        %v1689 = vmul.f32 %v1488, %v1536
        %v1690 = vpack.c.bf16 %v1675, %v1674
        %v1691 = vpack.c.bf16 %v1677, %v1676
        %v1692 = vpack.c.bf16 %v1679, %v1678
        %v1693 = vpack.c.bf16 %v1681, %v1680
        %v1694 = vpack.c.bf16 %v1683, %v1682
        %v1695 = vpack.c.bf16 %v1685, %v1684
        %v1696 = vpack.c.bf16 %v1687, %v1686
        %v1697 = vpack.c.bf16 %v1689, %v1688
        %1706 = vrot.lane.b32.xlu0 %v1223, 112
        %v1707 = vpop.permute.xlu0 %1706
        %1708 = vrot.lane.b32.xlu0 %v1224, 112
        %v1709 = vpop.permute.xlu0 %1708
        %1710 = vrot.lane.b32.xlu0 %v1225, 112
        %v1711 = vpop.permute.xlu0 %1710
        %1712 = vrot.lane.b32.xlu0 %v1226, 112
        %v1713 = vpop.permute.xlu0 %1712
        %1714 = vrot.lane.b32.xlu0 %v1227, 112
        %v1715 = vpop.permute.xlu0 %1714
        %1716 = vrot.lane.b32.xlu0 %v1228, 112
        %v1717 = vpop.permute.xlu0 %1716
        %1718 = vrot.lane.b32.xlu0 %v1229, 112
        %v1719 = vpop.permute.xlu0 %1718
        %1720 = vrot.lane.b32.xlu0 %v1230, 112
        %v1721 = vpop.permute.xlu0 %1720
        %1730 = vrot.lane.b32.xlu0 %v1231, 112
        %v1731 = vpop.permute.xlu0 %1730
        %1732 = vrot.lane.b32.xlu0 %v1232, 112
        %v1733 = vpop.permute.xlu0 %1732
        %1734 = vrot.lane.b32.xlu0 %v1233, 112
        %v1735 = vpop.permute.xlu0 %1734
        %1736 = vrot.lane.b32.xlu0 %v1234, 112
        %v1737 = vpop.permute.xlu0 %1736
        %1738 = vrot.lane.b32.xlu0 %v1235, 112
        %v1739 = vpop.permute.xlu0 %1738
        %1740 = vrot.lane.b32.xlu0 %v1236, 112
        %v1741 = vpop.permute.xlu0 %1740
        %1742 = vrot.lane.b32.xlu0 %v1237, 112
        %v1743 = vpop.permute.xlu0 %1742
        %1744 = vrot.lane.b32.xlu0 %v1238, 112
        %v1745 = vpop.permute.xlu0 %1744
        %v1747 = vsel %vm1247, %v1707, 0
        %v1750 = vsel %vm1247, %v1709, 0
        %v1753 = vsel %vm1247, %v1711, 0
        %v1756 = vsel %vm1247, %v1713, 0
        %v1759 = vsel %vm1247, %v1715, 0
        %v1762 = vsel %vm1247, %v1717, 0
        %v1765 = vsel %vm1247, %v1719, 0
        %v1768 = vsel %vm1247, %v1721, 0
        %v1771 = vsel %vm1247, %v1731, 0
        %v1774 = vsel %vm1247, %v1733, 0
        %v1777 = vsel %vm1247, %v1735, 0
        %v1780 = vsel %vm1247, %v1737, 0
        %v1783 = vsel %vm1247, %v1739, 0
        %v1786 = vsel %vm1247, %v1741, 0
        %v1789 = vsel %vm1247, %v1743, 0
        %v1792 = vsel %vm1247, %v1745, 0
        %1794 = vmatprep.subr.bf16.mxu0 0
        %1795 = vmatpush1.bf16.xpose.msra.mxu0 %v1771
        %1796 = vmatprep.subr.bf16.mxu0 0
        %1797 = vmatpush1.bf16.xpose.msra.mxu0 %v1774
        %1798 = vmatprep.subr.bf16.mxu0 0
        %1799 = vmatpush1.bf16.xpose.msra.mxu0 %v1777
        %1800 = vmatprep.subr.bf16.mxu0 0
        %1801 = vmatpush1.bf16.xpose.msra.mxu0 %v1780
        %1802 = vmatprep.subr.bf16.mxu0 0
        %1803 = vmatpush1.bf16.xpose.msra.mxu0 %v1783
        %1804 = vmatprep.subr.bf16.mxu0 0
        %1805 = vmatpush1.bf16.xpose.msra.mxu0 %v1786
        %1806 = vmatprep.subr.bf16.mxu0 0
        %1807 = vmatpush1.bf16.xpose.msra.mxu0 %v1789
        %1808 = vmatprep.subr.bf16.mxu0 0
        %1809 = vmatpush1.bf16.xpose.msra.mxu0 %v1792
        %1810 = vmatprep.subr.bf16.mxu0 0
        %1811 = vmatpush1.bf16.xpose.msra.mxu0 0
        %1812 = vmatprep.subr.bf16.mxu0 0
        %1813 = vmatpush1.bf16.xpose.msra.mxu0 0
        %1814 = vmatprep.subr.bf16.mxu0 0
        %1815 = vmatpush1.bf16.xpose.msra.mxu0 0
        %1816 = vmatprep.subr.bf16.mxu0 0
        %1817 = vmatpush1.bf16.xpose.msra.mxu0 0
        %1818 = vmatprep.subr.bf16.mxu0 0
        %1819 = vmatpush1.bf16.xpose.msra.mxu0 0
        %1820 = vmatprep.subr.bf16.mxu0 0
        %1821 = vmatpush1.bf16.xpose.msra.mxu0 0
        %1822 = vmatprep.subr.bf16.mxu0 0
        %1823 = vmatpush1.bf16.xpose.msra.mxu0 0
        %1824 = vmatprep.subr.bf16.mxu0 0
        %1825 = vmatpush1.bf16.xpose.msra.mxu0 0
        %1826 = vmatprep.mubr.bf16.mxu0 0
        %1827 = vmatmul.mubr.bf16.gmra.mrb[0].mxu0 %v1747
        %v1828 = vpop.f32.mrb[0].mxu0
        %v1829 = vadd.f32 0.0, %v1828
        %v1830 = vpop.f32.mrb[0].mxu0
        %v1831 = vpop.f32.mrb[0].mxu0
        %v1832 = vadd.f32 0.0, %v1831
        %v1833 = vpop.f32.mrb[0].mxu0
        %1834 = vmatprep.mubr.bf16.mxu0 0
        %1835 = vmatmul.mubr.bf16.gmra.mrb[0].mxu0 %v1750
        %v1836 = vpop.f32.mrb[0].mxu0
        %v1837 = vadd.f32 0.0, %v1836
        %v1838 = vpop.f32.mrb[0].mxu0
        %v1839 = vpop.f32.mrb[0].mxu0
        %v1840 = vadd.f32 0.0, %v1839
        %v1841 = vpop.f32.mrb[0].mxu0
        %1842 = vmatprep.mubr.bf16.mxu0 0
        %1843 = vmatmul.mubr.bf16.gmra.mrb[0].mxu0 %v1753
        %v1844 = vpop.f32.mrb[0].mxu0
        %v1845 = vadd.f32 0.0, %v1844
        %v1846 = vpop.f32.mrb[0].mxu0
        %v1847 = vpop.f32.mrb[0].mxu0
        %v1848 = vadd.f32 0.0, %v1847
        %v1849 = vpop.f32.mrb[0].mxu0
        %1850 = vmatprep.mubr.bf16.mxu0 0
        %1851 = vmatmul.mubr.bf16.gmra.mrb[0].mxu0 %v1756
        %v1852 = vpop.f32.mrb[0].mxu0
        %v1853 = vadd.f32 0.0, %v1852
        %v1854 = vpop.f32.mrb[0].mxu0
        %v1855 = vpop.f32.mrb[0].mxu0
        %v1856 = vadd.f32 0.0, %v1855
        %v1857 = vpop.f32.mrb[0].mxu0
        %1858 = vmatprep.mubr.bf16.mxu0 0
        %1859 = vmatmul.mubr.bf16.gmra.mrb[0].mxu0 %v1759
        %v1860 = vpop.f32.mrb[0].mxu0
        %v1861 = vadd.f32 0.0, %v1860
        %v1862 = vpop.f32.mrb[0].mxu0
        %v1863 = vpop.f32.mrb[0].mxu0
        %v1864 = vadd.f32 0.0, %v1863
        %v1865 = vpop.f32.mrb[0].mxu0
        %1866 = vmatprep.mubr.bf16.mxu0 0
        %1867 = vmatmul.mubr.bf16.gmra.mrb[0].mxu0 %v1762
        %v1868 = vpop.f32.mrb[0].mxu0
        %v1869 = vadd.f32 0.0, %v1868
        %v1870 = vpop.f32.mrb[0].mxu0
        %v1871 = vpop.f32.mrb[0].mxu0
        %v1872 = vadd.f32 0.0, %v1871
        %v1873 = vpop.f32.mrb[0].mxu0
        %1874 = vmatprep.mubr.bf16.mxu0 0
        %1875 = vmatmul.mubr.bf16.gmra.mrb[0].mxu0 %v1765
        %v1876 = vpop.f32.mrb[0].mxu0
        %v1877 = vadd.f32 0.0, %v1876
        %v1878 = vpop.f32.mrb[0].mxu0
        %v1879 = vpop.f32.mrb[0].mxu0
        %v1880 = vadd.f32 0.0, %v1879
        %v1881 = vpop.f32.mrb[0].mxu0
        %1882 = vmatprep.mubr.bf16.mxu0 0
        %1883 = vmatmul.mubr.bf16.gmra.mrb[0].mxu0 %v1768
        %v1884 = vpop.f32.mrb[0].mxu0
        %v1885 = vadd.f32 0.0, %v1884
        %v1886 = vpop.f32.mrb[0].mxu0
        %v1887 = vpop.f32.mrb[0].mxu0
        %v1888 = vadd.f32 0.0, %v1887
        %v1889 = vpop.f32.mrb[0].mxu0
        %1890 = vdwg.mxu0
        %v1891 = vsel %vm1207, %v1829, -inf
        %v1892 = vsel %vm1208, %v1832, -inf
        %v1893 = vsel %vm1209, %v1837, -inf
        %v1894 = vsel %vm1210, %v1840, -inf
        %v1895 = vsel %vm1211, %v1845, -inf
        %v1896 = vsel %vm1212, %v1848, -inf
        %v1897 = vsel %vm1213, %v1853, -inf
        %v1898 = vsel %vm1214, %v1856, -inf
        %v1899 = vsel %vm1215, %v1861, -inf
        %v1900 = vsel %vm1216, %v1864, -inf
        %v1901 = vsel %vm1217, %v1869, -inf
        %v1902 = vsel %vm1218, %v1872, -inf
        %v1903 = vsel %vm1219, %v1877, -inf
        %v1904 = vsel %vm1220, %v1880, -inf
        %v1905 = vsel %vm1221, %v1885, -inf
        %v1906 = vsel %vm1222, %v1888, -inf
        %1907 = vmax.xlane.f32.xlu0 %v1891
        %v1908 = vpop.xlane.xlu0 %1907
        %1909 = vmax.xlane.f32.xlu0 %v1892
        %v1910 = vpop.xlane.xlu0 %1909
        %1911 = vmax.xlane.f32.xlu0 %v1893
        %v1912 = vpop.xlane.xlu0 %1911
        %1913 = vmax.xlane.f32.xlu0 %v1894
        %v1914 = vpop.xlane.xlu0 %1913
        %1915 = vmax.xlane.f32.xlu0 %v1895
        %v1916 = vpop.xlane.xlu0 %1915
        %1917 = vmax.xlane.f32.xlu0 %v1896
        %v1918 = vpop.xlane.xlu0 %1917
        %1919 = vmax.xlane.f32.xlu0 %v1897
        %v1920 = vpop.xlane.xlu0 %1919
        %1921 = vmax.xlane.f32.xlu0 %v1898
        %v1922 = vpop.xlane.xlu0 %1921
        %1923 = vmax.xlane.f32.xlu0 %v1899
        %v1924 = vpop.xlane.xlu0 %1923
        %1925 = vmax.xlane.f32.xlu0 %v1900
        %v1926 = vpop.xlane.xlu0 %1925
        %1927 = vmax.xlane.f32.xlu0 %v1901
        %v1928 = vpop.xlane.xlu0 %1927
        %1929 = vmax.xlane.f32.xlu0 %v1902
        %v1930 = vpop.xlane.xlu0 %1929
        %1931 = vmax.xlane.f32.xlu0 %v1903
        %v1932 = vpop.xlane.xlu0 %1931
        %1933 = vmax.xlane.f32.xlu0 %v1904
        %v1934 = vpop.xlane.xlu0 %1933
        %1935 = vmax.xlane.f32.xlu0 %v1905
        %v1936 = vpop.xlane.xlu0 %1935
        %1937 = vmax.xlane.f32.xlu0 %v1906
        %v1938 = vpop.xlane.xlu0 %1937
        %v1939 = vsub.f32 %v1891, %v1908
        %v1940 = vsub.f32 %v1892, %v1910
        %v1941 = vsub.f32 %v1893, %v1912
        %v1942 = vsub.f32 %v1894, %v1914
        %v1943 = vsub.f32 %v1895, %v1916
        %v1944 = vsub.f32 %v1896, %v1918
        %v1945 = vsub.f32 %v1897, %v1920
        %v1946 = vsub.f32 %v1898, %v1922
        %v1947 = vsub.f32 %v1899, %v1924
        %v1948 = vsub.f32 %v1900, %v1926
        %v1949 = vsub.f32 %v1901, %v1928
        %v1950 = vsub.f32 %v1902, %v1930
        %v1951 = vsub.f32 %v1903, %v1932
        %v1952 = vsub.f32 %v1904, %v1934
        %v1953 = vsub.f32 %v1905, %v1936
        %v1954 = vsub.f32 %v1906, %v1938
        %v1955 = vmul.f32 %v1939, 1.442695
        %v1956 = vpow.pop %v1955
        %v1957 = vmul.f32 %v1940, 1.442695
        %v1958 = vpow.pop %v1957
        %v1959 = vmul.f32 %v1941, 1.442695
        %v1960 = vpow.pop %v1959
        %v1961 = vmul.f32 %v1942, 1.442695
        %v1962 = vpow.pop %v1961
        %v1963 = vmul.f32 %v1943, 1.442695
        %v1964 = vpow.pop %v1963
        %v1965 = vmul.f32 %v1944, 1.442695
        %v1966 = vpow.pop %v1965
        %v1967 = vmul.f32 %v1945, 1.442695
        %v1968 = vpow.pop %v1967
        %v1969 = vmul.f32 %v1946, 1.442695
        %v1970 = vpow.pop %v1969
        %v1971 = vmul.f32 %v1947, 1.442695
        %v1972 = vpow.pop %v1971
        %v1973 = vmul.f32 %v1948, 1.442695
        %v1974 = vpow.pop %v1973
        %v1975 = vmul.f32 %v1949, 1.442695
        %v1976 = vpow.pop %v1975
        %v1977 = vmul.f32 %v1950, 1.442695
        %v1978 = vpow.pop %v1977
        %v1979 = vmul.f32 %v1951, 1.442695
        %v1980 = vpow.pop %v1979
        %v1981 = vmul.f32 %v1952, 1.442695
        %v1982 = vpow.pop %v1981
        %v1983 = vmul.f32 %v1953, 1.442695
        %v1984 = vpow.pop %v1983
        %v1985 = vmul.f32 %v1954, 1.442695
        %v1986 = vpow.pop %v1985
        %1987 = vadd.xlane.f32.xlu0 %v1956
        %v1988 = vpop.xlane.xlu0 %1987
        %1989 = vadd.xlane.f32.xlu0 %v1958
        %v1990 = vpop.xlane.xlu0 %1989
        %1991 = vadd.xlane.f32.xlu0 %v1960
        %v1992 = vpop.xlane.xlu0 %1991
        %1993 = vadd.xlane.f32.xlu0 %v1962
        %v1994 = vpop.xlane.xlu0 %1993
        %1995 = vadd.xlane.f32.xlu0 %v1964
        %v1996 = vpop.xlane.xlu0 %1995
        %1997 = vadd.xlane.f32.xlu0 %v1966
        %v1998 = vpop.xlane.xlu0 %1997
        %1999 = vadd.xlane.f32.xlu0 %v1968
        %v2000 = vpop.xlane.xlu0 %1999
        %2001 = vadd.xlane.f32.xlu0 %v1970
        %v2002 = vpop.xlane.xlu0 %2001
        %2003 = vadd.xlane.f32.xlu0 %v1972
        %v2004 = vpop.xlane.xlu0 %2003
        %2005 = vadd.xlane.f32.xlu0 %v1974
        %v2006 = vpop.xlane.xlu0 %2005
        %2007 = vadd.xlane.f32.xlu0 %v1976
        %v2008 = vpop.xlane.xlu0 %2007
        %2009 = vadd.xlane.f32.xlu0 %v1978
        %v2010 = vpop.xlane.xlu0 %2009
        %2011 = vadd.xlane.f32.xlu0 %v1980
        %v2012 = vpop.xlane.xlu0 %2011
        %2013 = vadd.xlane.f32.xlu0 %v1982
        %v2014 = vpop.xlane.xlu0 %2013
        %2015 = vadd.xlane.f32.xlu0 %v1984
        %v2016 = vpop.xlane.xlu0 %2015
        %2017 = vadd.xlane.f32.xlu0 %v1986
        %v2018 = vpop.xlane.xlu0 %2017
        %v2019 = vrcp.pop %v1988
        %v2020 = vrcp.pop %v1990
        %v2021 = vrcp.pop %v1992
        %v2022 = vrcp.pop %v1994
        %v2023 = vrcp.pop %v1996
        %v2024 = vrcp.pop %v1998
        %v2025 = vrcp.pop %v2000
        %v2026 = vrcp.pop %v2002
        %v2027 = vrcp.pop %v2004
        %v2028 = vrcp.pop %v2006
        %v2029 = vrcp.pop %v2008
        %v2030 = vrcp.pop %v2010
        %v2031 = vrcp.pop %v2012
        %v2032 = vrcp.pop %v2014
        %v2033 = vrcp.pop %v2016
        %v2034 = vrcp.pop %v2018
        %v2035 = vld [vmem:[#allocation8 + $0x8] sm:$0xf]
        %v2036 = vld [vmem:[#allocation8 + $0xc] sm:$0xf]
        %2045 = vrot.lane.b32.xlu0 %v1239, 112
        %v2046 = vpop.permute.xlu0 %2045
        %2047 = vrot.lane.b32.xlu0 %v1240, 112
        %v2048 = vpop.permute.xlu0 %2047
        %2049 = vrot.lane.b32.xlu0 %v1241, 112
        %v2050 = vpop.permute.xlu0 %2049
        %2051 = vrot.lane.b32.xlu0 %v1242, 112
        %v2052 = vpop.permute.xlu0 %2051
        %2053 = vrot.lane.b32.xlu0 %v1243, 112
        %v2054 = vpop.permute.xlu0 %2053
        %2055 = vrot.lane.b32.xlu0 %v1244, 112
        %v2056 = vpop.permute.xlu0 %2055
        %2057 = vrot.lane.b32.xlu0 %v1245, 112
        %v2058 = vpop.permute.xlu0 %2057
        %2059 = vrot.lane.b32.xlu0 %v1246, 112
        %v2060 = vpop.permute.xlu0 %2059
        %v2063 = vunpack.c.l.b16 %v2035
        %v2064 = vunpack.c.l.b16 %v2036
        %v2065 = vpack.c.b16 %v2064, %v2063
        %v2068 = vsel %vm1247, %v2046, 0
        %v2071 = vsel %vm1247, %v2048, 0
        %v2074 = vsel %vm1247, %v2050, 0
        %v2077 = vsel %vm1247, %v2052, 0
        %v2080 = vsel %vm1247, %v2054, 0
        %v2083 = vsel %vm1247, %v2056, 0
        %v2086 = vsel %vm1247, %v2058, 0
        %v2089 = vsel %vm1247, %v2060, 0
        %2091 = vmatprep.subr.bf16.mxu0 0
        %2092 = vmatpush1.bf16.msra.mxu0 %v2065
        %2093 = vmatprep.subr.bf16.mxu0 0
        %2094 = vmatpush1.bf16.msra.mxu0 0
        %2095 = vmatprep.subr.bf16.mxu0 0
        %2096 = vmatpush1.bf16.msra.mxu0 0
        %2097 = vmatprep.subr.bf16.mxu0 0
        %2098 = vmatpush1.bf16.msra.mxu0 0
        %2099 = vmatprep.subr.bf16.mxu0 0
        %2100 = vmatpush1.bf16.msra.mxu0 0
        %2101 = vmatprep.subr.bf16.mxu0 0
        %2102 = vmatpush1.bf16.msra.mxu0 0
        %2103 = vmatprep.subr.bf16.mxu0 0
        %2104 = vmatpush1.bf16.msra.mxu0 0
        %2105 = vmatprep.subr.bf16.mxu0 0
        %2106 = vmatpush1.bf16.msra.mxu0 0
        %2107 = vmatprep.subr.bf16.mxu0 0
        %2108 = vmatpush1.bf16.msra.mxu0 0
        %2109 = vmatprep.subr.bf16.mxu0 0
        %2110 = vmatpush1.bf16.msra.mxu0 0
        %2111 = vmatprep.subr.bf16.mxu0 0
        %2112 = vmatpush1.bf16.msra.mxu0 0
        %2113 = vmatprep.subr.bf16.mxu0 0
        %2114 = vmatpush1.bf16.msra.mxu0 0
        %2115 = vmatprep.subr.bf16.mxu0 0
        %2116 = vmatpush1.bf16.msra.mxu0 0
        %2117 = vmatprep.subr.bf16.mxu0 0
        %2118 = vmatpush1.bf16.msra.mxu0 0
        %2119 = vmatprep.subr.bf16.mxu0 0
        %2120 = vmatpush1.bf16.msra.mxu0 0
        %2121 = vmatprep.subr.bf16.mxu0 0
        %2122 = vmatpush1.bf16.msra.mxu0 0
        %2123 = vmatprep.mubr.bf16.mxu0 0
        %2124 = vmatmul.mubr.bf16.gmra.mrb[0].mxu0 %v2068
        %v2125 = vpop.f32.mrb[0].mxu0
        %v2126 = vadd.f32 0.0, %v2125
        %v2127 = vpop.f32.mrb[0].mxu0
        %v2128 = vpop.f32.mrb[0].mxu0
        %v2129 = vadd.f32 0.0, %v2128
        %v2130 = vpop.f32.mrb[0].mxu0
        %2131 = vmatprep.mubr.bf16.mxu0 0
        %2132 = vmatmul.mubr.bf16.gmra.mrb[0].mxu0 %v2071
        %v2133 = vpop.f32.mrb[0].mxu0
        %v2134 = vadd.f32 0.0, %v2133
        %v2135 = vpop.f32.mrb[0].mxu0
        %v2136 = vpop.f32.mrb[0].mxu0
        %v2137 = vadd.f32 0.0, %v2136
        %v2138 = vpop.f32.mrb[0].mxu0
        %2139 = vmatprep.mubr.bf16.mxu0 0
        %2140 = vmatmul.mubr.bf16.gmra.mrb[0].mxu0 %v2074
        %v2141 = vpop.f32.mrb[0].mxu0
        %v2142 = vadd.f32 0.0, %v2141
        %v2143 = vpop.f32.mrb[0].mxu0
        %v2144 = vpop.f32.mrb[0].mxu0
        %v2145 = vadd.f32 0.0, %v2144
        %v2146 = vpop.f32.mrb[0].mxu0
        %2147 = vmatprep.mubr.bf16.mxu0 0
        %2148 = vmatmul.mubr.bf16.gmra.mrb[0].mxu0 %v2077
        %v2149 = vpop.f32.mrb[0].mxu0
        %v2150 = vadd.f32 0.0, %v2149
        %v2151 = vpop.f32.mrb[0].mxu0
        %v2152 = vpop.f32.mrb[0].mxu0
        %v2153 = vadd.f32 0.0, %v2152
        %v2154 = vpop.f32.mrb[0].mxu0
        %2155 = vmatprep.mubr.bf16.mxu0 0
        %2156 = vmatmul.mubr.bf16.gmra.mrb[0].mxu0 %v2080
        %v2157 = vpop.f32.mrb[0].mxu0
        %v2158 = vadd.f32 0.0, %v2157
        %v2159 = vpop.f32.mrb[0].mxu0
        %v2160 = vpop.f32.mrb[0].mxu0
        %v2161 = vadd.f32 0.0, %v2160
        %v2162 = vpop.f32.mrb[0].mxu0
        %2163 = vmatprep.mubr.bf16.mxu0 0
        %2164 = vmatmul.mubr.bf16.gmra.mrb[0].mxu0 %v2083
        %v2165 = vpop.f32.mrb[0].mxu0
        %v2166 = vadd.f32 0.0, %v2165
        %v2167 = vpop.f32.mrb[0].mxu0
        %v2168 = vpop.f32.mrb[0].mxu0
        %v2169 = vadd.f32 0.0, %v2168
        %v2170 = vpop.f32.mrb[0].mxu0
        %2171 = vmatprep.mubr.bf16.mxu0 0
        %2172 = vmatmul.mubr.bf16.gmra.mrb[0].mxu0 %v2086
        %v2173 = vpop.f32.mrb[0].mxu0
        %v2174 = vadd.f32 0.0, %v2173
        %v2175 = vpop.f32.mrb[0].mxu0
        %v2176 = vpop.f32.mrb[0].mxu0
        %v2177 = vadd.f32 0.0, %v2176
        %v2178 = vpop.f32.mrb[0].mxu0
        %2179 = vmatprep.mubr.bf16.mxu0 0
        %2180 = vmatmul.mubr.bf16.gmra.mrb[0].mxu0 %v2089
        %v2181 = vpop.f32.mrb[0].mxu0
        %v2182 = vadd.f32 0.0, %v2181
        %v2183 = vpop.f32.mrb[0].mxu0
        %v2184 = vpop.f32.mrb[0].mxu0
        %v2185 = vadd.f32 0.0, %v2184
        %v2186 = vpop.f32.mrb[0].mxu0
        %2187 = vdwg.mxu0
        %v2188 = vpack.c.bf16 %v2129, %v2126
        %v2189 = vpack.c.bf16 %v2137, %v2134
        %v2190 = vpack.c.bf16 %v2145, %v2142
        %v2191 = vpack.c.bf16 %v2153, %v2150
        %v2192 = vpack.c.bf16 %v2161, %v2158
        %v2193 = vpack.c.bf16 %v2169, %v2166
        %v2194 = vpack.c.bf16 %v2177, %v2174
        %v2195 = vpack.c.bf16 %v2185, %v2182
        %v2196 = vmul.f32 %v1956, %v2019
        %v2197 = vmul.f32 %v1958, %v2020
        %v2198 = vmul.f32 %v1960, %v2021
        %v2199 = vmul.f32 %v1962, %v2022
        %v2200 = vmul.f32 %v1964, %v2023
        %v2201 = vmul.f32 %v1966, %v2024
        %v2202 = vmul.f32 %v1968, %v2025
        %v2203 = vmul.f32 %v1970, %v2026
        %v2204 = vmul.f32 %v1972, %v2027
        %v2205 = vmul.f32 %v1974, %v2028
        %v2206 = vmul.f32 %v1976, %v2029
        %v2207 = vmul.f32 %v1978, %v2030
        %v2208 = vmul.f32 %v1980, %v2031
        %v2209 = vmul.f32 %v1982, %v2032
        %v2210 = vmul.f32 %v1984, %v2033
        %v2211 = vmul.f32 %v1986, %v2034
        %v2212 = vpack.c.bf16 %v2197, %v2196
        %v2213 = vpack.c.bf16 %v2199, %v2198
        %v2214 = vpack.c.bf16 %v2201, %v2200
        %v2215 = vpack.c.bf16 %v2203, %v2202
        %v2216 = vpack.c.bf16 %v2205, %v2204
        %v2217 = vpack.c.bf16 %v2207, %v2206
        %v2218 = vpack.c.bf16 %v2209, %v2208
        %v2219 = vpack.c.bf16 %v2211, %v2210
        %2220 = vmatprep.subr.bf16.mxu0 0
        %2221 = vmatpush1.bf16.msra.mxu0 %v2188
        %2222 = vmatprep.subr.bf16.mxu0 0
        %2223 = vmatpush1.bf16.msra.mxu0 %v2189
        %2224 = vmatprep.subr.bf16.mxu0 0
        %2225 = vmatpush1.bf16.msra.mxu0 %v2190
        %2226 = vmatprep.subr.bf16.mxu0 0
        %2227 = vmatpush1.bf16.msra.mxu0 %v2191
        %2228 = vmatprep.subr.bf16.mxu0 0
        %2229 = vmatpush1.bf16.msra.mxu0 %v2192
        %2230 = vmatprep.subr.bf16.mxu0 0
        %2231 = vmatpush1.bf16.msra.mxu0 %v2193
        %2232 = vmatprep.subr.bf16.mxu0 0
        %2233 = vmatpush1.bf16.msra.mxu0 %v2194
        %2234 = vmatprep.subr.bf16.mxu0 0
        %2235 = vmatpush1.bf16.msra.mxu0 %v2195
        %2236 = vmatprep.subr.bf16.mxu0 0
        %2237 = vmatpush1.bf16.msra.mxu0 0
        %2238 = vmatprep.subr.bf16.mxu0 0
        %2239 = vmatpush1.bf16.msra.mxu0 0
        %2240 = vmatprep.subr.bf16.mxu0 0
        %2241 = vmatpush1.bf16.msra.mxu0 0
        %2242 = vmatprep.subr.bf16.mxu0 0
        %2243 = vmatpush1.bf16.msra.mxu0 0
        %2244 = vmatprep.subr.bf16.mxu0 0
        %2245 = vmatpush1.bf16.msra.mxu0 0
        %2246 = vmatprep.subr.bf16.mxu0 0
        %2247 = vmatpush1.bf16.msra.mxu0 0
        %2248 = vmatprep.subr.bf16.mxu0 0
        %2249 = vmatpush1.bf16.msra.mxu0 0
        %2250 = vmatprep.subr.bf16.mxu0 0
        %2251 = vmatpush1.bf16.msra.mxu0 0
        %2252 = vmatprep.mubr.bf16.mxu0 0
        %2253 = vmatmul.mubr.bf16.gmra.mrb[0].mxu0 %v2212
        %v2254 = vpop.f32.mrb[0].mxu0
        %v2255 = vadd.f32 0.0, %v2254
        %v2256 = vpop.f32.mrb[0].mxu0
        %v2257 = vpop.f32.mrb[0].mxu0
        %v2258 = vadd.f32 0.0, %v2257
        %v2259 = vpop.f32.mrb[0].mxu0
        %2260 = vmatprep.mubr.bf16.mxu0 0
        %2261 = vmatmul.mubr.bf16.gmra.mrb[0].mxu0 %v2213
        %v2262 = vpop.f32.mrb[0].mxu0
        %v2263 = vadd.f32 0.0, %v2262
        %v2264 = vpop.f32.mrb[0].mxu0
        %v2265 = vpop.f32.mrb[0].mxu0
        %v2266 = vadd.f32 0.0, %v2265
        %v2267 = vpop.f32.mrb[0].mxu0
        %2268 = vmatprep.mubr.bf16.mxu0 0
        %2269 = vmatmul.mubr.bf16.gmra.mrb[0].mxu0 %v2214
        %v2270 = vpop.f32.mrb[0].mxu0
        %v2271 = vadd.f32 0.0, %v2270
        %v2272 = vpop.f32.mrb[0].mxu0
        %v2273 = vpop.f32.mrb[0].mxu0
        %v2274 = vadd.f32 0.0, %v2273
        %v2275 = vpop.f32.mrb[0].mxu0
        %2276 = vmatprep.mubr.bf16.mxu0 0
        %2277 = vmatmul.mubr.bf16.gmra.mrb[0].mxu0 %v2215
        %v2278 = vpop.f32.mrb[0].mxu0
        %v2279 = vadd.f32 0.0, %v2278
        %v2280 = vpop.f32.mrb[0].mxu0
        %v2281 = vpop.f32.mrb[0].mxu0
        %v2282 = vadd.f32 0.0, %v2281
        %v2283 = vpop.f32.mrb[0].mxu0
        %2284 = vmatprep.mubr.bf16.mxu0 0
        %2285 = vmatmul.mubr.bf16.gmra.mrb[0].mxu0 %v2216
        %v2286 = vpop.f32.mrb[0].mxu0
        %v2287 = vadd.f32 0.0, %v2286
        %v2288 = vpop.f32.mrb[0].mxu0
        %v2289 = vpop.f32.mrb[0].mxu0
        %v2290 = vadd.f32 0.0, %v2289
        %v2291 = vpop.f32.mrb[0].mxu0
        %2292 = vmatprep.mubr.bf16.mxu0 0
        %2293 = vmatmul.mubr.bf16.gmra.mrb[0].mxu0 %v2217
        %v2294 = vpop.f32.mrb[0].mxu0
        %v2295 = vadd.f32 0.0, %v2294
        %v2296 = vpop.f32.mrb[0].mxu0
        %v2297 = vpop.f32.mrb[0].mxu0
        %v2298 = vadd.f32 0.0, %v2297
        %v2299 = vpop.f32.mrb[0].mxu0
        %2300 = vmatprep.mubr.bf16.mxu0 0
        %2301 = vmatmul.mubr.bf16.gmra.mrb[0].mxu0 %v2218
        %v2302 = vpop.f32.mrb[0].mxu0
        %v2303 = vadd.f32 0.0, %v2302
        %v2304 = vpop.f32.mrb[0].mxu0
        %v2305 = vpop.f32.mrb[0].mxu0
        %v2306 = vadd.f32 0.0, %v2305
        %v2307 = vpop.f32.mrb[0].mxu0
        %2308 = vmatprep.mubr.bf16.mxu0 0
        %2309 = vmatmul.mubr.bf16.gmra.mrb[0].mxu0 %v2219
        %v2310 = vpop.f32.mrb[0].mxu0
        %v2311 = vadd.f32 0.0, %v2310
        %v2312 = vpop.f32.mrb[0].mxu0
        %v2313 = vpop.f32.mrb[0].mxu0
        %v2314 = vadd.f32 0.0, %v2313
        %v2315 = vpop.f32.mrb[0].mxu0
        %2316 = vdwg.mxu0
        %2317 = vmatprep.subr.bf16.mxu0 0
        %2318 = vmatpush1.bf16.msra.mxu0 %v1666
        %2319 = vmatprep.subr.bf16.mxu0 0
        %2320 = vmatpush1.bf16.msra.mxu0 %v1667
        %2321 = vmatprep.subr.bf16.mxu0 0
        %2322 = vmatpush1.bf16.msra.mxu0 %v1668
        %2323 = vmatprep.subr.bf16.mxu0 0
        %2324 = vmatpush1.bf16.msra.mxu0 %v1669
        %2325 = vmatprep.subr.bf16.mxu0 0
        %2326 = vmatpush1.bf16.msra.mxu0 %v1670
        %2327 = vmatprep.subr.bf16.mxu0 0
        %2328 = vmatpush1.bf16.msra.mxu0 %v1671
        %2329 = vmatprep.subr.bf16.mxu0 0
        %2330 = vmatpush1.bf16.msra.mxu0 %v1672
        %2331 = vmatprep.subr.bf16.mxu0 0
        %2332 = vmatpush1.bf16.msra.mxu0 %v1673
        %2333 = vmatprep.subr.bf16.mxu0 0
        %2334 = vmatpush1.bf16.msra.mxu0 0
        %2335 = vmatprep.subr.bf16.mxu0 0
        %2336 = vmatpush1.bf16.msra.mxu0 0
        %2337 = vmatprep.subr.bf16.mxu0 0
        %2338 = vmatpush1.bf16.msra.mxu0 0
        %2339 = vmatprep.subr.bf16.mxu0 0
        %2340 = vmatpush1.bf16.msra.mxu0 0
        %2341 = vmatprep.subr.bf16.mxu0 0
        %2342 = vmatpush1.bf16.msra.mxu0 0
        %2343 = vmatprep.subr.bf16.mxu0 0
        %2344 = vmatpush1.bf16.msra.mxu0 0
        %2345 = vmatprep.subr.bf16.mxu0 0
        %2346 = vmatpush1.bf16.msra.mxu0 0
        %2347 = vmatprep.subr.bf16.mxu0 0
        %2348 = vmatpush1.bf16.msra.mxu0 0
        %2349 = vmatprep.mubr.bf16.mxu0 0
        %2350 = vmatmul.mubr.bf16.gmra.mrb[0].mxu0 %v1690
        %v2351 = vpop.f32.mrb[0].mxu0
        %v2352 = vadd.f32 %v2255, %v2351
        %v2353 = vpop.f32.mrb[0].mxu0
        %v2354 = vpop.f32.mrb[0].mxu0
        %v2355 = vadd.f32 %v2258, %v2354
        %v2356 = vpop.f32.mrb[0].mxu0
        %2357 = vmatprep.mubr.bf16.mxu0 0
        %2358 = vmatmul.mubr.bf16.gmra.mrb[0].mxu0 %v1691
        %v2359 = vpop.f32.mrb[0].mxu0
        %v2360 = vadd.f32 %v2263, %v2359
        %v2361 = vpop.f32.mrb[0].mxu0
        %v2362 = vpop.f32.mrb[0].mxu0
        %v2363 = vadd.f32 %v2266, %v2362
        %v2364 = vpop.f32.mrb[0].mxu0
        %2365 = vmatprep.mubr.bf16.mxu0 0
        %2366 = vmatmul.mubr.bf16.gmra.mrb[0].mxu0 %v1692
        %v2367 = vpop.f32.mrb[0].mxu0
        %v2368 = vadd.f32 %v2271, %v2367
        %v2369 = vpop.f32.mrb[0].mxu0
        %v2370 = vpop.f32.mrb[0].mxu0
        %v2371 = vadd.f32 %v2274, %v2370
        %v2372 = vpop.f32.mrb[0].mxu0
        %2373 = vmatprep.mubr.bf16.mxu0 0
        %2374 = vmatmul.mubr.bf16.gmra.mrb[0].mxu0 %v1693
        %v2375 = vpop.f32.mrb[0].mxu0
        %v2376 = vadd.f32 %v2279, %v2375
        %v2377 = vpop.f32.mrb[0].mxu0
        %v2378 = vpop.f32.mrb[0].mxu0
        %v2379 = vadd.f32 %v2282, %v2378
        %v2380 = vpop.f32.mrb[0].mxu0
        %2381 = vmatprep.mubr.bf16.mxu0 0
        %2382 = vmatmul.mubr.bf16.gmra.mrb[0].mxu0 %v1694
        %v2383 = vpop.f32.mrb[0].mxu0
        %v2384 = vadd.f32 %v2287, %v2383
        %v2385 = vpop.f32.mrb[0].mxu0
        %v2386 = vpop.f32.mrb[0].mxu0
        %v2387 = vadd.f32 %v2290, %v2386
        %v2388 = vpop.f32.mrb[0].mxu0
        %2389 = vmatprep.mubr.bf16.mxu0 0
        %2390 = vmatmul.mubr.bf16.gmra.mrb[0].mxu0 %v1695
        %v2391 = vpop.f32.mrb[0].mxu0
        %v2392 = vadd.f32 %v2295, %v2391
        %v2393 = vpop.f32.mrb[0].mxu0
        %v2394 = vpop.f32.mrb[0].mxu0
        %v2395 = vadd.f32 %v2298, %v2394
        %v2396 = vpop.f32.mrb[0].mxu0
        %2397 = vmatprep.mubr.bf16.mxu0 0
        %2398 = vmatmul.mubr.bf16.gmra.mrb[0].mxu0 %v1696
        %v2399 = vpop.f32.mrb[0].mxu0
        %v2400 = vadd.f32 %v2303, %v2399
        %v2401 = vpop.f32.mrb[0].mxu0
        %v2402 = vpop.f32.mrb[0].mxu0
        %v2403 = vadd.f32 %v2306, %v2402
        %v2404 = vpop.f32.mrb[0].mxu0
        %2405 = vmatprep.mubr.bf16.mxu0 0
        %2406 = vmatmul.mubr.bf16.gmra.mrb[0].mxu0 %v1697
        %v2407 = vpop.f32.mrb[0].mxu0
        %v2408 = vadd.f32 %v2311, %v2407
        %v2409 = vpop.f32.mrb[0].mxu0
        %v2410 = vpop.f32.mrb[0].mxu0
        %v2411 = vadd.f32 %v2314, %v2410
        %v2412 = vpop.f32.mrb[0].mxu0
        %2413 = vdwg.mxu0
        %2414 = vrot.lane.b32.xlu0 %v1223, 96
        %v2415 = vpop.permute.xlu0 %2414
        %2416 = vrot.lane.b32.xlu0 %v1224, 96
        %v2417 = vpop.permute.xlu0 %2416
        %2418 = vrot.lane.b32.xlu0 %v1225, 96
        %v2419 = vpop.permute.xlu0 %2418
        %2420 = vrot.lane.b32.xlu0 %v1226, 96
        %v2421 = vpop.permute.xlu0 %2420
        %2422 = vrot.lane.b32.xlu0 %v1227, 96
        %v2423 = vpop.permute.xlu0 %2422
        %2424 = vrot.lane.b32.xlu0 %v1228, 96
        %v2425 = vpop.permute.xlu0 %2424
        %2426 = vrot.lane.b32.xlu0 %v1229, 96
        %v2427 = vpop.permute.xlu0 %2426
        %2428 = vrot.lane.b32.xlu0 %v1230, 96
        %v2429 = vpop.permute.xlu0 %2428
        %2430 = vrot.lane.b32.xlu0 %v1231, 96
        %v2431 = vpop.permute.xlu0 %2430
        %2432 = vrot.lane.b32.xlu0 %v1232, 96
        %v2433 = vpop.permute.xlu0 %2432
        %2434 = vrot.lane.b32.xlu0 %v1233, 96
        %v2435 = vpop.permute.xlu0 %2434
        %2436 = vrot.lane.b32.xlu0 %v1234, 96
        %v2437 = vpop.permute.xlu0 %2436
        %2438 = vrot.lane.b32.xlu0 %v1235, 96
        %v2439 = vpop.permute.xlu0 %2438
        %2440 = vrot.lane.b32.xlu0 %v1236, 96
        %v2441 = vpop.permute.xlu0 %2440
        %2442 = vrot.lane.b32.xlu0 %v1237, 96
        %v2443 = vpop.permute.xlu0 %2442
        %2444 = vrot.lane.b32.xlu0 %v1238, 96
        %v2445 = vpop.permute.xlu0 %2444
        %v2447 = vsel %vm1247, %v2415, 0
        %v2450 = vsel %vm1247, %v2417, 0
        %v2453 = vsel %vm1247, %v2419, 0
        %v2456 = vsel %vm1247, %v2421, 0
        %v2459 = vsel %vm1247, %v2423, 0
        %v2462 = vsel %vm1247, %v2425, 0
        %v2465 = vsel %vm1247, %v2427, 0
        %v2468 = vsel %vm1247, %v2429, 0
        %v2471 = vsel %vm1247, %v2431, 0
        %v2474 = vsel %vm1247, %v2433, 0
        %v2477 = vsel %vm1247, %v2435, 0
        %v2480 = vsel %vm1247, %v2437, 0
        %v2483 = vsel %vm1247, %v2439, 0
        %v2486 = vsel %vm1247, %v2441, 0
        %v2489 = vsel %vm1247, %v2443, 0
        %v2492 = vsel %vm1247, %v2445, 0
        %2494 = vmatprep.subr.bf16.mxu0 0
        %2495 = vmatpush1.bf16.xpose.msra.mxu0 %v2471
        %2496 = vmatprep.subr.bf16.mxu0 0
        %2497 = vmatpush1.bf16.xpose.msra.mxu0 %v2474
        %2498 = vmatprep.subr.bf16.mxu0 0
        %2499 = vmatpush1.bf16.xpose.msra.mxu0 %v2477
        %2500 = vmatprep.subr.bf16.mxu0 0
        %2501 = vmatpush1.bf16.xpose.msra.mxu0 %v2480
        %2502 = vmatprep.subr.bf16.mxu0 0
        %2503 = vmatpush1.bf16.xpose.msra.mxu0 %v2483
        %2504 = vmatprep.subr.bf16.mxu0 0
        %2505 = vmatpush1.bf16.xpose.msra.mxu0 %v2486
        %2506 = vmatprep.subr.bf16.mxu0 0
        %2507 = vmatpush1.bf16.xpose.msra.mxu0 %v2489
        %2508 = vmatprep.subr.bf16.mxu0 0
        %2509 = vmatpush1.bf16.xpose.msra.mxu0 %v2492
        %2510 = vmatprep.subr.bf16.mxu0 0
        %2511 = vmatpush1.bf16.xpose.msra.mxu0 0
        %2512 = vmatprep.subr.bf16.mxu0 0
        %2513 = vmatpush1.bf16.xpose.msra.mxu0 0
        %2514 = vmatprep.subr.bf16.mxu0 0
        %2515 = vmatpush1.bf16.xpose.msra.mxu0 0
        %2516 = vmatprep.subr.bf16.mxu0 0
        %2517 = vmatpush1.bf16.xpose.msra.mxu0 0
        %2518 = vmatprep.subr.bf16.mxu0 0
        %2519 = vmatpush1.bf16.xpose.msra.mxu0 0
        %2520 = vmatprep.subr.bf16.mxu0 0
        %2521 = vmatpush1.bf16.xpose.msra.mxu0 0
        %2522 = vmatprep.subr.bf16.mxu0 0
        %2523 = vmatpush1.bf16.xpose.msra.mxu0 0
        %2524 = vmatprep.subr.bf16.mxu0 0
        %2525 = vmatpush1.bf16.xpose.msra.mxu0 0
        %2526 = vmatprep.mubr.bf16.mxu0 0
        %2527 = vmatmul.mubr.bf16.gmra.mrb[0].mxu0 %v2447
        %v2528 = vpop.f32.mrb[0].mxu0
        %v2529 = vadd.f32 0.0, %v2528
        %v2530 = vpop.f32.mrb[0].mxu0
        %v2531 = vpop.f32.mrb[0].mxu0
        %v2532 = vadd.f32 0.0, %v2531
        %v2533 = vpop.f32.mrb[0].mxu0
        %2534 = vmatprep.mubr.bf16.mxu0 0
        %2535 = vmatmul.mubr.bf16.gmra.mrb[0].mxu0 %v2450
        %v2536 = vpop.f32.mrb[0].mxu0
        %v2537 = vadd.f32 0.0, %v2536
        %v2538 = vpop.f32.mrb[0].mxu0
        %v2539 = vpop.f32.mrb[0].mxu0
        %v2540 = vadd.f32 0.0, %v2539
        %v2541 = vpop.f32.mrb[0].mxu0
        %2542 = vmatprep.mubr.bf16.mxu0 0
        %2543 = vmatmul.mubr.bf16.gmra.mrb[0].mxu0 %v2453
        %v2544 = vpop.f32.mrb[0].mxu0
        %v2545 = vadd.f32 0.0, %v2544
        %v2546 = vpop.f32.mrb[0].mxu0
        %v2547 = vpop.f32.mrb[0].mxu0
        %v2548 = vadd.f32 0.0, %v2547
        %v2549 = vpop.f32.mrb[0].mxu0
        %2550 = vmatprep.mubr.bf16.mxu0 0
        %2551 = vmatmul.mubr.bf16.gmra.mrb[0].mxu0 %v2456
        %v2552 = vpop.f32.mrb[0].mxu0
        %v2553 = vadd.f32 0.0, %v2552
        %v2554 = vpop.f32.mrb[0].mxu0
        %v2555 = vpop.f32.mrb[0].mxu0
        %v2556 = vadd.f32 0.0, %v2555
        %v2557 = vpop.f32.mrb[0].mxu0
        %2558 = vmatprep.mubr.bf16.mxu0 0
        %2559 = vmatmul.mubr.bf16.gmra.mrb[0].mxu0 %v2459
        %v2560 = vpop.f32.mrb[0].mxu0
        %v2561 = vadd.f32 0.0, %v2560
        %v2562 = vpop.f32.mrb[0].mxu0
        %v2563 = vpop.f32.mrb[0].mxu0
        %v2564 = vadd.f32 0.0, %v2563
        %v2565 = vpop.f32.mrb[0].mxu0
        %2566 = vmatprep.mubr.bf16.mxu0 0
        %2567 = vmatmul.mubr.bf16.gmra.mrb[0].mxu0 %v2462
        %v2568 = vpop.f32.mrb[0].mxu0
        %v2569 = vadd.f32 0.0, %v2568
        %v2570 = vpop.f32.mrb[0].mxu0
        %v2571 = vpop.f32.mrb[0].mxu0
        %v2572 = vadd.f32 0.0, %v2571
        %v2573 = vpop.f32.mrb[0].mxu0
        %2574 = vmatprep.mubr.bf16.mxu0 0
        %2575 = vmatmul.mubr.bf16.gmra.mrb[0].mxu0 %v2465
        %v2576 = vpop.f32.mrb[0].mxu0
        %v2577 = vadd.f32 0.0, %v2576
        %v2578 = vpop.f32.mrb[0].mxu0
        %v2579 = vpop.f32.mrb[0].mxu0
        %v2580 = vadd.f32 0.0, %v2579
        %v2581 = vpop.f32.mrb[0].mxu0
        %2582 = vmatprep.mubr.bf16.mxu0 0
        %2583 = vmatmul.mubr.bf16.gmra.mrb[0].mxu0 %v2468
        %v2584 = vpop.f32.mrb[0].mxu0
        %v2585 = vadd.f32 0.0, %v2584
        %v2586 = vpop.f32.mrb[0].mxu0
        %v2587 = vpop.f32.mrb[0].mxu0
        %v2588 = vadd.f32 0.0, %v2587
        %v2589 = vpop.f32.mrb[0].mxu0
        %2590 = vdwg.mxu0
        %v2591 = vsel %vm1207, %v2529, -inf
        %v2592 = vsel %vm1208, %v2532, -inf
        %v2593 = vsel %vm1209, %v2537, -inf
        %v2594 = vsel %vm1210, %v2540, -inf
        %v2595 = vsel %vm1211, %v2545, -inf
        %v2596 = vsel %vm1212, %v2548, -inf
        %v2597 = vsel %vm1213, %v2553, -inf
        %v2598 = vsel %vm1214, %v2556, -inf
        %v2599 = vsel %vm1215, %v2561, -inf
        %v2600 = vsel %vm1216, %v2564, -inf
        %v2601 = vsel %vm1217, %v2569, -inf
        %v2602 = vsel %vm1218, %v2572, -inf
        %v2603 = vsel %vm1219, %v2577, -inf
        %v2604 = vsel %vm1220, %v2580, -inf
        %v2605 = vsel %vm1221, %v2585, -inf
        %v2606 = vsel %vm1222, %v2588, -inf
        %2607 = vmax.xlane.f32.xlu0 %v2591
        %v2608 = vpop.xlane.xlu0 %2607
        %2609 = vmax.xlane.f32.xlu0 %v2592
        %v2610 = vpop.xlane.xlu0 %2609
        %2611 = vmax.xlane.f32.xlu0 %v2593
        %v2612 = vpop.xlane.xlu0 %2611
        %2613 = vmax.xlane.f32.xlu0 %v2594
        %v2614 = vpop.xlane.xlu0 %2613
        %2615 = vmax.xlane.f32.xlu0 %v2595
        %v2616 = vpop.xlane.xlu0 %2615
        %2617 = vmax.xlane.f32.xlu0 %v2596
        %v2618 = vpop.xlane.xlu0 %2617
        %2619 = vmax.xlane.f32.xlu0 %v2597
        %v2620 = vpop.xlane.xlu0 %2619
        %2621 = vmax.xlane.f32.xlu0 %v2598
        %v2622 = vpop.xlane.xlu0 %2621
        %2623 = vmax.xlane.f32.xlu0 %v2599
        %v2624 = vpop.xlane.xlu0 %2623
        %2625 = vmax.xlane.f32.xlu0 %v2600
        %v2626 = vpop.xlane.xlu0 %2625
        %2627 = vmax.xlane.f32.xlu0 %v2601
        %v2628 = vpop.xlane.xlu0 %2627
        %2629 = vmax.xlane.f32.xlu0 %v2602
        %v2630 = vpop.xlane.xlu0 %2629
        %2631 = vmax.xlane.f32.xlu0 %v2603
        %v2632 = vpop.xlane.xlu0 %2631
        %2633 = vmax.xlane.f32.xlu0 %v2604
        %v2634 = vpop.xlane.xlu0 %2633
        %2635 = vmax.xlane.f32.xlu0 %v2605
        %v2636 = vpop.xlane.xlu0 %2635
        %2637 = vmax.xlane.f32.xlu0 %v2606
        %v2638 = vpop.xlane.xlu0 %2637
        %v2639 = vsub.f32 %v2591, %v2608
        %v2640 = vsub.f32 %v2592, %v2610
        %v2641 = vsub.f32 %v2593, %v2612
        %v2642 = vsub.f32 %v2594, %v2614
        %v2643 = vsub.f32 %v2595, %v2616
        %v2644 = vsub.f32 %v2596, %v2618
        %v2645 = vsub.f32 %v2597, %v2620
        %v2646 = vsub.f32 %v2598, %v2622
        %v2647 = vsub.f32 %v2599, %v2624
        %v2648 = vsub.f32 %v2600, %v2626
        %v2649 = vsub.f32 %v2601, %v2628
        %v2650 = vsub.f32 %v2602, %v2630
        %v2651 = vsub.f32 %v2603, %v2632
        %v2652 = vsub.f32 %v2604, %v2634
        %v2653 = vsub.f32 %v2605, %v2636
        %v2654 = vsub.f32 %v2606, %v2638
        %v2655 = vmul.f32 %v2639, 1.442695
        %v2656 = vpow.pop %v2655
        %v2657 = vmul.f32 %v2640, 1.442695
        %v2658 = vpow.pop %v2657
        %v2659 = vmul.f32 %v2641, 1.442695
        %v2660 = vpow.pop %v2659
        %v2661 = vmul.f32 %v2642, 1.442695
        %v2662 = vpow.pop %v2661
        %v2663 = vmul.f32 %v2643, 1.442695
        %v2664 = vpow.pop %v2663
        %v2665 = vmul.f32 %v2644, 1.442695
        %v2666 = vpow.pop %v2665
        %v2667 = vmul.f32 %v2645, 1.442695
        %v2668 = vpow.pop %v2667
        %v2669 = vmul.f32 %v2646, 1.442695
        %v2670 = vpow.pop %v2669
        %v2671 = vmul.f32 %v2647, 1.442695
        %v2672 = vpow.pop %v2671
        %v2673 = vmul.f32 %v2648, 1.442695
        %v2674 = vpow.pop %v2673
        %v2675 = vmul.f32 %v2649, 1.442695
        %v2676 = vpow.pop %v2675
        %v2677 = vmul.f32 %v2650, 1.442695
        %v2678 = vpow.pop %v2677
        %v2679 = vmul.f32 %v2651, 1.442695
        %v2680 = vpow.pop %v2679
        %v2681 = vmul.f32 %v2652, 1.442695
        %v2682 = vpow.pop %v2681
        %v2683 = vmul.f32 %v2653, 1.442695
        %v2684 = vpow.pop %v2683
        %v2685 = vmul.f32 %v2654, 1.442695
        %v2686 = vpow.pop %v2685
        %2687 = vadd.xlane.f32.xlu0 %v2656
        %v2688 = vpop.xlane.xlu0 %2687
        %2689 = vadd.xlane.f32.xlu0 %v2658
        %v2690 = vpop.xlane.xlu0 %2689
        %2691 = vadd.xlane.f32.xlu0 %v2660
        %v2692 = vpop.xlane.xlu0 %2691
        %2693 = vadd.xlane.f32.xlu0 %v2662
        %v2694 = vpop.xlane.xlu0 %2693
        %2695 = vadd.xlane.f32.xlu0 %v2664
        %v2696 = vpop.xlane.xlu0 %2695
        %2697 = vadd.xlane.f32.xlu0 %v2666
        %v2698 = vpop.xlane.xlu0 %2697
        %2699 = vadd.xlane.f32.xlu0 %v2668
        %v2700 = vpop.xlane.xlu0 %2699
        %2701 = vadd.xlane.f32.xlu0 %v2670
        %v2702 = vpop.xlane.xlu0 %2701
        %2703 = vadd.xlane.f32.xlu0 %v2672
        %v2704 = vpop.xlane.xlu0 %2703
        %2705 = vadd.xlane.f32.xlu0 %v2674
        %v2706 = vpop.xlane.xlu0 %2705
        %2707 = vadd.xlane.f32.xlu0 %v2676
        %v2708 = vpop.xlane.xlu0 %2707
        %2709 = vadd.xlane.f32.xlu0 %v2678
        %v2710 = vpop.xlane.xlu0 %2709
        %2711 = vadd.xlane.f32.xlu0 %v2680
        %v2712 = vpop.xlane.xlu0 %2711
        %2713 = vadd.xlane.f32.xlu0 %v2682
        %v2714 = vpop.xlane.xlu0 %2713
        %2715 = vadd.xlane.f32.xlu0 %v2684
        %v2716 = vpop.xlane.xlu0 %2715
        %2717 = vadd.xlane.f32.xlu0 %v2686
        %v2718 = vpop.xlane.xlu0 %2717
        %v2719 = vrcp.pop %v2688
        %v2720 = vrcp.pop %v2690
        %v2721 = vrcp.pop %v2692
        %v2722 = vrcp.pop %v2694
        %v2723 = vrcp.pop %v2696
        %v2724 = vrcp.pop %v2698
        %v2725 = vrcp.pop %v2700
        %v2726 = vrcp.pop %v2702
        %v2727 = vrcp.pop %v2704
        %v2728 = vrcp.pop %v2706
        %v2729 = vrcp.pop %v2708
        %v2730 = vrcp.pop %v2710
        %v2731 = vrcp.pop %v2712
        %v2732 = vrcp.pop %v2714
        %v2733 = vrcp.pop %v2716
        %v2734 = vrcp.pop %v2718
        %v2735 = vld [vmem:[#allocation8 + $0x10] sm:$0xf]
        %v2736 = vld [vmem:[#allocation8 + $0x14] sm:$0xf]
        %2737 = vrot.lane.b32.xlu0 %v1239, 96
        %v2738 = vpop.permute.xlu0 %2737
        %2739 = vrot.lane.b32.xlu0 %v1240, 96
        %v2740 = vpop.permute.xlu0 %2739
        %2741 = vrot.lane.b32.xlu0 %v1241, 96
        %v2742 = vpop.permute.xlu0 %2741
        %2743 = vrot.lane.b32.xlu0 %v1242, 96
        %v2744 = vpop.permute.xlu0 %2743
        %2745 = vrot.lane.b32.xlu0 %v1243, 96
        %v2746 = vpop.permute.xlu0 %2745
        %2747 = vrot.lane.b32.xlu0 %v1244, 96
        %v2748 = vpop.permute.xlu0 %2747
        %2749 = vrot.lane.b32.xlu0 %v1245, 96
        %v2750 = vpop.permute.xlu0 %2749
        %2751 = vrot.lane.b32.xlu0 %v1246, 96
        %v2752 = vpop.permute.xlu0 %2751
        %v2755 = vunpack.c.l.b16 %v2735
        %v2756 = vunpack.c.l.b16 %v2736
        %v2757 = vpack.c.b16 %v2756, %v2755
        %v2760 = vsel %vm1247, %v2738, 0
        %v2763 = vsel %vm1247, %v2740, 0
        %v2766 = vsel %vm1247, %v2742, 0
        %v2769 = vsel %vm1247, %v2744, 0
        %v2772 = vsel %vm1247, %v2746, 0
        %v2775 = vsel %vm1247, %v2748, 0
        %v2778 = vsel %vm1247, %v2750, 0
        %v2781 = vsel %vm1247, %v2752, 0
        %2783 = vmatprep.subr.bf16.mxu0 0
        %2784 = vmatpush1.bf16.msra.mxu0 %v2757
        %2785 = vmatprep.subr.bf16.mxu0 0
        %2786 = vmatpush1.bf16.msra.mxu0 0
        %2787 = vmatprep.subr.bf16.mxu0 0
        %2788 = vmatpush1.bf16.msra.mxu0 0
        %2789 = vmatprep.subr.bf16.mxu0 0
        %2790 = vmatpush1.bf16.msra.mxu0 0
        %2791 = vmatprep.subr.bf16.mxu0 0
        %2792 = vmatpush1.bf16.msra.mxu0 0
        %2793 = vmatprep.subr.bf16.mxu0 0
        %2794 = vmatpush1.bf16.msra.mxu0 0
        %2795 = vmatprep.subr.bf16.mxu0 0
        %2796 = vmatpush1.bf16.msra.mxu0 0
        %2797 = vmatprep.subr.bf16.mxu0 0
        %2798 = vmatpush1.bf16.msra.mxu0 0
        %2799 = vmatprep.subr.bf16.mxu0 0
        %2800 = vmatpush1.bf16.msra.mxu0 0
        %2801 = vmatprep.subr.bf16.mxu0 0
        %2802 = vmatpush1.bf16.msra.mxu0 0
        %2803 = vmatprep.subr.bf16.mxu0 0
        %2804 = vmatpush1.bf16.msra.mxu0 0
        %2805 = vmatprep.subr.bf16.mxu0 0
        %2806 = vmatpush1.bf16.msra.mxu0 0
        %2807 = vmatprep.subr.bf16.mxu0 0
        %2808 = vmatpush1.bf16.msra.mxu0 0
        %2809 = vmatprep.subr.bf16.mxu0 0
        %2810 = vmatpush1.bf16.msra.mxu0 0
        %2811 = vmatprep.subr.bf16.mxu0 0
        %2812 = vmatpush1.bf16.msra.mxu0 0
        %2813 = vmatprep.subr.bf16.mxu0 0
        %2814 = vmatpush1.bf16.msra.mxu0 0
        %2815 = vmatprep.mubr.bf16.mxu0 0
        %2816 = vmatmul.mubr.bf16.gmra.mrb[0].mxu0 %v2760
        %v2817 = vpop.f32.mrb[0].mxu0
        %v2818 = vadd.f32 0.0, %v2817
        %v2819 = vpop.f32.mrb[0].mxu0
        %v2820 = vpop.f32.mrb[0].mxu0
        %v2821 = vadd.f32 0.0, %v2820
        %v2822 = vpop.f32.mrb[0].mxu0
        %2823 = vmatprep.mubr.bf16.mxu0 0
        %2824 = vmatmul.mubr.bf16.gmra.mrb[0].mxu0 %v2763
        %v2825 = vpop.f32.mrb[0].mxu0
        %v2826 = vadd.f32 0.0, %v2825
        %v2827 = vpop.f32.mrb[0].mxu0
        %v2828 = vpop.f32.mrb[0].mxu0
        %v2829 = vadd.f32 0.0, %v2828
        %v2830 = vpop.f32.mrb[0].mxu0
        %2831 = vmatprep.mubr.bf16.mxu0 0
        %2832 = vmatmul.mubr.bf16.gmra.mrb[0].mxu0 %v2766
        %v2833 = vpop.f32.mrb[0].mxu0
        %v2834 = vadd.f32 0.0, %v2833
        %v2835 = vpop.f32.mrb[0].mxu0
        %v2836 = vpop.f32.mrb[0].mxu0
        %v2837 = vadd.f32 0.0, %v2836
        %v2838 = vpop.f32.mrb[0].mxu0
        %2839 = vmatprep.mubr.bf16.mxu0 0
        %2840 = vmatmul.mubr.bf16.gmra.mrb[0].mxu0 %v2769
        %v2841 = vpop.f32.mrb[0].mxu0
        %v2842 = vadd.f32 0.0, %v2841
        %v2843 = vpop.f32.mrb[0].mxu0
        %v2844 = vpop.f32.mrb[0].mxu0
        %v2845 = vadd.f32 0.0, %v2844
        %v2846 = vpop.f32.mrb[0].mxu0
        %2847 = vmatprep.mubr.bf16.mxu0 0
        %2848 = vmatmul.mubr.bf16.gmra.mrb[0].mxu0 %v2772
        %v2849 = vpop.f32.mrb[0].mxu0
        %v2850 = vadd.f32 0.0, %v2849
        %v2851 = vpop.f32.mrb[0].mxu0
        %v2852 = vpop.f32.mrb[0].mxu0
        %v2853 = vadd.f32 0.0, %v2852
        %v2854 = vpop.f32.mrb[0].mxu0
        %2855 = vmatprep.mubr.bf16.mxu0 0
        %2856 = vmatmul.mubr.bf16.gmra.mrb[0].mxu0 %v2775
        %v2857 = vpop.f32.mrb[0].mxu0
        %v2858 = vadd.f32 0.0, %v2857
        %v2859 = vpop.f32.mrb[0].mxu0
        %v2860 = vpop.f32.mrb[0].mxu0
        %v2861 = vadd.f32 0.0, %v2860
        %v2862 = vpop.f32.mrb[0].mxu0
        %2863 = vmatprep.mubr.bf16.mxu0 0
        %2864 = vmatmul.mubr.bf16.gmra.mrb[0].mxu0 %v2778
        %v2865 = vpop.f32.mrb[0].mxu0
        %v2866 = vadd.f32 0.0, %v2865
        %v2867 = vpop.f32.mrb[0].mxu0
        %v2868 = vpop.f32.mrb[0].mxu0
        %v2869 = vadd.f32 0.0, %v2868
        %v2870 = vpop.f32.mrb[0].mxu0
        %2871 = vmatprep.mubr.bf16.mxu0 0
        %2872 = vmatmul.mubr.bf16.gmra.mrb[0].mxu0 %v2781
        %v2873 = vpop.f32.mrb[0].mxu0
        %v2874 = vadd.f32 0.0, %v2873
        %v2875 = vpop.f32.mrb[0].mxu0
        %v2876 = vpop.f32.mrb[0].mxu0
        %v2877 = vadd.f32 0.0, %v2876
        %v2878 = vpop.f32.mrb[0].mxu0
        %2879 = vdwg.mxu0
        %v2880 = vpack.c.bf16 %v2821, %v2818
        %v2881 = vpack.c.bf16 %v2829, %v2826
        %v2882 = vpack.c.bf16 %v2837, %v2834
        %v2883 = vpack.c.bf16 %v2845, %v2842
        %v2884 = vpack.c.bf16 %v2853, %v2850
        %v2885 = vpack.c.bf16 %v2861, %v2858
        %v2886 = vpack.c.bf16 %v2869, %v2866
        %v2887 = vpack.c.bf16 %v2877, %v2874
        %v2888 = vmul.f32 %v2656, %v2719
        %v2889 = vmul.f32 %v2658, %v2720
        %v2890 = vmul.f32 %v2660, %v2721
        %v2891 = vmul.f32 %v2662, %v2722
        %v2892 = vmul.f32 %v2664, %v2723
        %v2893 = vmul.f32 %v2666, %v2724
        %v2894 = vmul.f32 %v2668, %v2725
        %v2895 = vmul.f32 %v2670, %v2726
        %v2896 = vmul.f32 %v2672, %v2727
        %v2897 = vmul.f32 %v2674, %v2728
        %v2898 = vmul.f32 %v2676, %v2729
        %v2899 = vmul.f32 %v2678, %v2730
        %v2900 = vmul.f32 %v2680, %v2731
        %v2901 = vmul.f32 %v2682, %v2732
        %v2902 = vmul.f32 %v2684, %v2733
        %v2903 = vmul.f32 %v2686, %v2734
        %v2904 = vpack.c.bf16 %v2889, %v2888
        %v2905 = vpack.c.bf16 %v2891, %v2890
        %v2906 = vpack.c.bf16 %v2893, %v2892
        %v2907 = vpack.c.bf16 %v2895, %v2894
        %v2908 = vpack.c.bf16 %v2897, %v2896
        %v2909 = vpack.c.bf16 %v2899, %v2898
        %v2910 = vpack.c.bf16 %v2901, %v2900
        %v2911 = vpack.c.bf16 %v2903, %v2902
        %2912 = vmatprep.subr.bf16.mxu0 0
        %2913 = vmatpush1.bf16.msra.mxu0 %v2880
        %2914 = vmatprep.subr.bf16.mxu0 0
        %2915 = vmatpush1.bf16.msra.mxu0 %v2881
        %2916 = vmatprep.subr.bf16.mxu0 0
        %2917 = vmatpush1.bf16.msra.mxu0 %v2882
        %2918 = vmatprep.subr.bf16.mxu0 0
        %2919 = vmatpush1.bf16.msra.mxu0 %v2883
        %2920 = vmatprep.subr.bf16.mxu0 0
        %2921 = vmatpush1.bf16.msra.mxu0 %v2884
        %2922 = vmatprep.subr.bf16.mxu0 0
        %2923 = vmatpush1.bf16.msra.mxu0 %v2885
        %2924 = vmatprep.subr.bf16.mxu0 0
        %2925 = vmatpush1.bf16.msra.mxu0 %v2886
        %2926 = vmatprep.subr.bf16.mxu0 0
        %2927 = vmatpush1.bf16.msra.mxu0 %v2887
        %2928 = vmatprep.subr.bf16.mxu0 0
        %2929 = vmatpush1.bf16.msra.mxu0 0
        %2930 = vmatprep.subr.bf16.mxu0 0
        %2931 = vmatpush1.bf16.msra.mxu0 0
        %2932 = vmatprep.subr.bf16.mxu0 0
        %2933 = vmatpush1.bf16.msra.mxu0 0
        %2934 = vmatprep.subr.bf16.mxu0 0
        %2935 = vmatpush1.bf16.msra.mxu0 0
        %2936 = vmatprep.subr.bf16.mxu0 0
        %2937 = vmatpush1.bf16.msra.mxu0 0
        %2938 = vmatprep.subr.bf16.mxu0 0
        %2939 = vmatpush1.bf16.msra.mxu0 0
        %2940 = vmatprep.subr.bf16.mxu0 0
        %2941 = vmatpush1.bf16.msra.mxu0 0
        %2942 = vmatprep.subr.bf16.mxu0 0
        %2943 = vmatpush1.bf16.msra.mxu0 0
        %2944 = vmatprep.mubr.bf16.mxu0 0
        %2945 = vmatmul.mubr.bf16.gmra.mrb[0].mxu0 %v2904
        %v2946 = vpop.f32.mrb[0].mxu0
        %v2947 = vadd.f32 0.0, %v2946
        %v2948 = vpop.f32.mrb[0].mxu0
        %v2949 = vpop.f32.mrb[0].mxu0
        %v2950 = vadd.f32 0.0, %v2949
        %v2951 = vpop.f32.mrb[0].mxu0
        %2952 = vmatprep.mubr.bf16.mxu0 0
        %2953 = vmatmul.mubr.bf16.gmra.mrb[0].mxu0 %v2905
        %v2954 = vpop.f32.mrb[0].mxu0
        %v2955 = vadd.f32 0.0, %v2954
        %v2956 = vpop.f32.mrb[0].mxu0
        %v2957 = vpop.f32.mrb[0].mxu0
        %v2958 = vadd.f32 0.0, %v2957
        %v2959 = vpop.f32.mrb[0].mxu0
        %2960 = vmatprep.mubr.bf16.mxu0 0
        %2961 = vmatmul.mubr.bf16.gmra.mrb[0].mxu0 %v2906
        %v2962 = vpop.f32.mrb[0].mxu0
        %v2963 = vadd.f32 0.0, %v2962
        %v2964 = vpop.f32.mrb[0].mxu0
        %v2965 = vpop.f32.mrb[0].mxu0
        %v2966 = vadd.f32 0.0, %v2965
        %v2967 = vpop.f32.mrb[0].mxu0
        %2968 = vmatprep.mubr.bf16.mxu0 0
        %2969 = vmatmul.mubr.bf16.gmra.mrb[0].mxu0 %v2907
        %v2970 = vpop.f32.mrb[0].mxu0
        %v2971 = vadd.f32 0.0, %v2970
        %v2972 = vpop.f32.mrb[0].mxu0
        %v2973 = vpop.f32.mrb[0].mxu0
        %v2974 = vadd.f32 0.0, %v2973
        %v2975 = vpop.f32.mrb[0].mxu0
        %2976 = vmatprep.mubr.bf16.mxu0 0
        %2977 = vmatmul.mubr.bf16.gmra.mrb[0].mxu0 %v2908
        %v2978 = vpop.f32.mrb[0].mxu0
        %v2979 = vadd.f32 0.0, %v2978
        %v2980 = vpop.f32.mrb[0].mxu0
        %v2981 = vpop.f32.mrb[0].mxu0
        %v2982 = vadd.f32 0.0, %v2981
        %v2983 = vpop.f32.mrb[0].mxu0
        %2984 = vmatprep.mubr.bf16.mxu0 0
        %2985 = vmatmul.mubr.bf16.gmra.mrb[0].mxu0 %v2909
        %v2986 = vpop.f32.mrb[0].mxu0
        %v2987 = vadd.f32 0.0, %v2986
        %v2988 = vpop.f32.mrb[0].mxu0
        %v2989 = vpop.f32.mrb[0].mxu0
        %v2990 = vadd.f32 0.0, %v2989
        %v2991 = vpop.f32.mrb[0].mxu0
        %2992 = vmatprep.mubr.bf16.mxu0 0
        %2993 = vmatmul.mubr.bf16.gmra.mrb[0].mxu0 %v2910
        %v2994 = vpop.f32.mrb[0].mxu0
        %v2995 = vadd.f32 0.0, %v2994
        %v2996 = vpop.f32.mrb[0].mxu0
        %v2997 = vpop.f32.mrb[0].mxu0
        %v2998 = vadd.f32 0.0, %v2997
        %v2999 = vpop.f32.mrb[0].mxu0
        %3000 = vmatprep.mubr.bf16.mxu0 0
        %3001 = vmatmul.mubr.bf16.gmra.mrb[0].mxu0 %v2911
        %v3002 = vpop.f32.mrb[0].mxu0
        %v3003 = vadd.f32 0.0, %v3002
        %v3004 = vpop.f32.mrb[0].mxu0
        %v3005 = vpop.f32.mrb[0].mxu0
        %v3006 = vadd.f32 0.0, %v3005
        %v3007 = vpop.f32.mrb[0].mxu0
        %3008 = vdwg.mxu0
        %v3009 = vadd.f32 %v2352, %v2947
        %v3010 = vadd.f32 %v2355, %v2950
        %v3011 = vadd.f32 %v2360, %v2955
        %v3012 = vadd.f32 %v2363, %v2958
        %v3013 = vadd.f32 %v2368, %v2963
        %v3014 = vadd.f32 %v2371, %v2966
        %v3015 = vadd.f32 %v2376, %v2971
        %v3016 = vadd.f32 %v2379, %v2974
        %v3017 = vadd.f32 %v2384, %v2979
        %v3018 = vadd.f32 %v2387, %v2982
        %v3019 = vadd.f32 %v2392, %v2987
        %v3020 = vadd.f32 %v2395, %v2990
        %v3021 = vadd.f32 %v2400, %v2995
        %v3022 = vadd.f32 %v2403, %v2998
        %v3023 = vadd.f32 %v2408, %v3003
        %v3024 = vadd.f32 %v2411, %v3006
        %3025 = vrot.lane.b32.xlu0 %v1223, 80
        %v3026 = vpop.permute.xlu0 %3025
        %3027 = vrot.lane.b32.xlu0 %v1224, 80
        %v3028 = vpop.permute.xlu0 %3027
        %3029 = vrot.lane.b32.xlu0 %v1225, 80
        %v3030 = vpop.permute.xlu0 %3029
        %3031 = vrot.lane.b32.xlu0 %v1226, 80
        %v3032 = vpop.permute.xlu0 %3031
        %3033 = vrot.lane.b32.xlu0 %v1227, 80
        %v3034 = vpop.permute.xlu0 %3033
        %3035 = vrot.lane.b32.xlu0 %v1228, 80
        %v3036 = vpop.permute.xlu0 %3035
        %3037 = vrot.lane.b32.xlu0 %v1229, 80
        %v3038 = vpop.permute.xlu0 %3037
        %3039 = vrot.lane.b32.xlu0 %v1230, 80
        %v3040 = vpop.permute.xlu0 %3039
        %3041 = vrot.lane.b32.xlu0 %v1231, 80
        %v3042 = vpop.permute.xlu0 %3041
        %3043 = vrot.lane.b32.xlu0 %v1232, 80
        %v3044 = vpop.permute.xlu0 %3043
        %3045 = vrot.lane.b32.xlu0 %v1233, 80
        %v3046 = vpop.permute.xlu0 %3045
        %3047 = vrot.lane.b32.xlu0 %v1234, 80
        %v3048 = vpop.permute.xlu0 %3047
        %3049 = vrot.lane.b32.xlu0 %v1235, 80
        %v3050 = vpop.permute.xlu0 %3049
        %3051 = vrot.lane.b32.xlu0 %v1236, 80
        %v3052 = vpop.permute.xlu0 %3051
        %3053 = vrot.lane.b32.xlu0 %v1237, 80
        %v3054 = vpop.permute.xlu0 %3053
        %3055 = vrot.lane.b32.xlu0 %v1238, 80
        %v3056 = vpop.permute.xlu0 %3055
        %v3058 = vsel %vm1247, %v3026, 0
        %v3061 = vsel %vm1247, %v3028, 0
        %v3064 = vsel %vm1247, %v3030, 0
        %v3067 = vsel %vm1247, %v3032, 0
        %v3070 = vsel %vm1247, %v3034, 0
        %v3073 = vsel %vm1247, %v3036, 0
        %v3076 = vsel %vm1247, %v3038, 0
        %v3079 = vsel %vm1247, %v3040, 0
        %v3082 = vsel %vm1247, %v3042, 0
        %v3085 = vsel %vm1247, %v3044, 0
        %v3088 = vsel %vm1247, %v3046, 0
        %v3091 = vsel %vm1247, %v3048, 0
        %v3094 = vsel %vm1247, %v3050, 0
        %v3097 = vsel %vm1247, %v3052, 0
        %v3100 = vsel %vm1247, %v3054, 0
        %v3103 = vsel %vm1247, %v3056, 0
        %3105 = vmatprep.subr.bf16.mxu0 0
        %3106 = vmatpush1.bf16.xpose.msra.mxu0 %v3082
        %3107 = vmatprep.subr.bf16.mxu0 0
        %3108 = vmatpush1.bf16.xpose.msra.mxu0 %v3085
        %3109 = vmatprep.subr.bf16.mxu0 0
        %3110 = vmatpush1.bf16.xpose.msra.mxu0 %v3088
        %3111 = vmatprep.subr.bf16.mxu0 0
        %3112 = vmatpush1.bf16.xpose.msra.mxu0 %v3091
        %3113 = vmatprep.subr.bf16.mxu0 0
        %3114 = vmatpush1.bf16.xpose.msra.mxu0 %v3094
        %3115 = vmatprep.subr.bf16.mxu0 0
        %3116 = vmatpush1.bf16.xpose.msra.mxu0 %v3097
        %3117 = vmatprep.subr.bf16.mxu0 0
        %3118 = vmatpush1.bf16.xpose.msra.mxu0 %v3100
        %3119 = vmatprep.subr.bf16.mxu0 0
        %3120 = vmatpush1.bf16.xpose.msra.mxu0 %v3103
        %3121 = vmatprep.subr.bf16.mxu0 0
        %3122 = vmatpush1.bf16.xpose.msra.mxu0 0
        %3123 = vmatprep.subr.bf16.mxu0 0
        %3124 = vmatpush1.bf16.xpose.msra.mxu0 0
        %3125 = vmatprep.subr.bf16.mxu0 0
        %3126 = vmatpush1.bf16.xpose.msra.mxu0 0
        %3127 = vmatprep.subr.bf16.mxu0 0
        %3128 = vmatpush1.bf16.xpose.msra.mxu0 0
        %3129 = vmatprep.subr.bf16.mxu0 0
        %3130 = vmatpush1.bf16.xpose.msra.mxu0 0
        %3131 = vmatprep.subr.bf16.mxu0 0
        %3132 = vmatpush1.bf16.xpose.msra.mxu0 0
        %3133 = vmatprep.subr.bf16.mxu0 0
        %3134 = vmatpush1.bf16.xpose.msra.mxu0 0
        %3135 = vmatprep.subr.bf16.mxu0 0
        %3136 = vmatpush1.bf16.xpose.msra.mxu0 0
        %3137 = vmatprep.mubr.bf16.mxu0 0
        %3138 = vmatmul.mubr.bf16.gmra.mrb[0].mxu0 %v3058
        %v3139 = vpop.f32.mrb[0].mxu0
        %v3140 = vadd.f32 0.0, %v3139
        %v3141 = vpop.f32.mrb[0].mxu0
        %v3142 = vpop.f32.mrb[0].mxu0
        %v3143 = vadd.f32 0.0, %v3142
        %v3144 = vpop.f32.mrb[0].mxu0
        %3145 = vmatprep.mubr.bf16.mxu0 0
        %3146 = vmatmul.mubr.bf16.gmra.mrb[0].mxu0 %v3061
        %v3147 = vpop.f32.mrb[0].mxu0
        %v3148 = vadd.f32 0.0, %v3147
        %v3149 = vpop.f32.mrb[0].mxu0
        %v3150 = vpop.f32.mrb[0].mxu0
        %v3151 = vadd.f32 0.0, %v3150
        %v3152 = vpop.f32.mrb[0].mxu0
        %3153 = vmatprep.mubr.bf16.mxu0 0
        %3154 = vmatmul.mubr.bf16.gmra.mrb[0].mxu0 %v3064
        %v3155 = vpop.f32.mrb[0].mxu0
        %v3156 = vadd.f32 0.0, %v3155
        %v3157 = vpop.f32.mrb[0].mxu0
        %v3158 = vpop.f32.mrb[0].mxu0
        %v3159 = vadd.f32 0.0, %v3158
        %v3160 = vpop.f32.mrb[0].mxu0
        %3161 = vmatprep.mubr.bf16.mxu0 0
        %3162 = vmatmul.mubr.bf16.gmra.mrb[0].mxu0 %v3067
        %v3163 = vpop.f32.mrb[0].mxu0
        %v3164 = vadd.f32 0.0, %v3163
        %v3165 = vpop.f32.mrb[0].mxu0
        %v3166 = vpop.f32.mrb[0].mxu0
        %v3167 = vadd.f32 0.0, %v3166
        %v3168 = vpop.f32.mrb[0].mxu0
        %3169 = vmatprep.mubr.bf16.mxu0 0
        %3170 = vmatmul.mubr.bf16.gmra.mrb[0].mxu0 %v3070
        %v3171 = vpop.f32.mrb[0].mxu0
        %v3172 = vadd.f32 0.0, %v3171
        %v3173 = vpop.f32.mrb[0].mxu0
        %v3174 = vpop.f32.mrb[0].mxu0
        %v3175 = vadd.f32 0.0, %v3174
        %v3176 = vpop.f32.mrb[0].mxu0
        %3177 = vmatprep.mubr.bf16.mxu0 0
        %3178 = vmatmul.mubr.bf16.gmra.mrb[0].mxu0 %v3073
        %v3179 = vpop.f32.mrb[0].mxu0
        %v3180 = vadd.f32 0.0, %v3179
        %v3181 = vpop.f32.mrb[0].mxu0
        %v3182 = vpop.f32.mrb[0].mxu0
        %v3183 = vadd.f32 0.0, %v3182
        %v3184 = vpop.f32.mrb[0].mxu0
        %3185 = vmatprep.mubr.bf16.mxu0 0
        %3186 = vmatmul.mubr.bf16.gmra.mrb[0].mxu0 %v3076
        %v3187 = vpop.f32.mrb[0].mxu0
        %v3188 = vadd.f32 0.0, %v3187
        %v3189 = vpop.f32.mrb[0].mxu0
        %v3190 = vpop.f32.mrb[0].mxu0
        %v3191 = vadd.f32 0.0, %v3190
        %v3192 = vpop.f32.mrb[0].mxu0
        %3193 = vmatprep.mubr.bf16.mxu0 0
        %3194 = vmatmul.mubr.bf16.gmra.mrb[0].mxu0 %v3079
        %v3195 = vpop.f32.mrb[0].mxu0
        %v3196 = vadd.f32 0.0, %v3195
        %v3197 = vpop.f32.mrb[0].mxu0
        %v3198 = vpop.f32.mrb[0].mxu0
        %v3199 = vadd.f32 0.0, %v3198
        %v3200 = vpop.f32.mrb[0].mxu0
        %3201 = vdwg.mxu0
        %v3202 = vsel %vm1207, %v3140, -inf
        %v3203 = vsel %vm1208, %v3143, -inf
        %v3204 = vsel %vm1209, %v3148, -inf
        %v3205 = vsel %vm1210, %v3151, -inf
        %v3206 = vsel %vm1211, %v3156, -inf
        %v3207 = vsel %vm1212, %v3159, -inf
        %v3208 = vsel %vm1213, %v3164, -inf
        %v3209 = vsel %vm1214, %v3167, -inf
        %v3210 = vsel %vm1215, %v3172, -inf
        %v3211 = vsel %vm1216, %v3175, -inf
        %v3212 = vsel %vm1217, %v3180, -inf
        %v3213 = vsel %vm1218, %v3183, -inf
        %v3214 = vsel %vm1219, %v3188, -inf
        %v3215 = vsel %vm1220, %v3191, -inf
        %v3216 = vsel %vm1221, %v3196, -inf
        %v3217 = vsel %vm1222, %v3199, -inf
        %3218 = vmax.xlane.f32.xlu0 %v3202
        %v3219 = vpop.xlane.xlu0 %3218
        %3220 = vmax.xlane.f32.xlu0 %v3203
        %v3221 = vpop.xlane.xlu0 %3220
        %3222 = vmax.xlane.f32.xlu0 %v3204
        %v3223 = vpop.xlane.xlu0 %3222
        %3224 = vmax.xlane.f32.xlu0 %v3205
        %v3225 = vpop.xlane.xlu0 %3224
        %3226 = vmax.xlane.f32.xlu0 %v3206
        %v3227 = vpop.xlane.xlu0 %3226
        %3228 = vmax.xlane.f32.xlu0 %v3207
        %v3229 = vpop.xlane.xlu0 %3228
        %3230 = vmax.xlane.f32.xlu0 %v3208
        %v3231 = vpop.xlane.xlu0 %3230
        %3232 = vmax.xlane.f32.xlu0 %v3209
        %v3233 = vpop.xlane.xlu0 %3232
        %3234 = vmax.xlane.f32.xlu0 %v3210
        %v3235 = vpop.xlane.xlu0 %3234
        %3236 = vmax.xlane.f32.xlu0 %v3211
        %v3237 = vpop.xlane.xlu0 %3236
        %3238 = vmax.xlane.f32.xlu0 %v3212
        %v3239 = vpop.xlane.xlu0 %3238
        %3240 = vmax.xlane.f32.xlu0 %v3213
        %v3241 = vpop.xlane.xlu0 %3240
        %3242 = vmax.xlane.f32.xlu0 %v3214
        %v3243 = vpop.xlane.xlu0 %3242
        %3244 = vmax.xlane.f32.xlu0 %v3215
        %v3245 = vpop.xlane.xlu0 %3244
        %3246 = vmax.xlane.f32.xlu0 %v3216
        %v3247 = vpop.xlane.xlu0 %3246
        %3248 = vmax.xlane.f32.xlu0 %v3217
        %v3249 = vpop.xlane.xlu0 %3248
        %v3250 = vsub.f32 %v3202, %v3219
        %v3251 = vsub.f32 %v3203, %v3221
        %v3252 = vsub.f32 %v3204, %v3223
        %v3253 = vsub.f32 %v3205, %v3225
        %v3254 = vsub.f32 %v3206, %v3227
        %v3255 = vsub.f32 %v3207, %v3229
        %v3256 = vsub.f32 %v3208, %v3231
        %v3257 = vsub.f32 %v3209, %v3233
        %v3258 = vsub.f32 %v3210, %v3235
        %v3259 = vsub.f32 %v3211, %v3237
        %v3260 = vsub.f32 %v3212, %v3239
        %v3261 = vsub.f32 %v3213, %v3241
        %v3262 = vsub.f32 %v3214, %v3243
        %v3263 = vsub.f32 %v3215, %v3245
        %v3264 = vsub.f32 %v3216, %v3247
        %v3265 = vsub.f32 %v3217, %v3249
        %v3266 = vmul.f32 %v3250, 1.442695
        %v3267 = vpow.pop %v3266
        %v3268 = vmul.f32 %v3251, 1.442695
        %v3269 = vpow.pop %v3268
        %v3270 = vmul.f32 %v3252, 1.442695
        %v3271 = vpow.pop %v3270
        %v3272 = vmul.f32 %v3253, 1.442695
        %v3273 = vpow.pop %v3272
        %v3274 = vmul.f32 %v3254, 1.442695
        %v3275 = vpow.pop %v3274
        %v3276 = vmul.f32 %v3255, 1.442695
        %v3277 = vpow.pop %v3276
        %v3278 = vmul.f32 %v3256, 1.442695
        %v3279 = vpow.pop %v3278
        %v3280 = vmul.f32 %v3257, 1.442695
        %v3281 = vpow.pop %v3280
        %v3282 = vmul.f32 %v3258, 1.442695
        %v3283 = vpow.pop %v3282
        %v3284 = vmul.f32 %v3259, 1.442695
        %v3285 = vpow.pop %v3284
        %v3286 = vmul.f32 %v3260, 1.442695
        %v3287 = vpow.pop %v3286
        %v3288 = vmul.f32 %v3261, 1.442695
        %v3289 = vpow.pop %v3288
        %v3290 = vmul.f32 %v3262, 1.442695
        %v3291 = vpow.pop %v3290
        %v3292 = vmul.f32 %v3263, 1.442695
        %v3293 = vpow.pop %v3292
        %v3294 = vmul.f32 %v3264, 1.442695
        %v3295 = vpow.pop %v3294
        %v3296 = vmul.f32 %v3265, 1.442695
        %v3297 = vpow.pop %v3296
        %3298 = vadd.xlane.f32.xlu0 %v3267
        %v3299 = vpop.xlane.xlu0 %3298
        %3300 = vadd.xlane.f32.xlu0 %v3269
        %v3301 = vpop.xlane.xlu0 %3300
        %3302 = vadd.xlane.f32.xlu0 %v3271
        %v3303 = vpop.xlane.xlu0 %3302
        %3304 = vadd.xlane.f32.xlu0 %v3273
        %v3305 = vpop.xlane.xlu0 %3304
        %3306 = vadd.xlane.f32.xlu0 %v3275
        %v3307 = vpop.xlane.xlu0 %3306
        %3308 = vadd.xlane.f32.xlu0 %v3277
        %v3309 = vpop.xlane.xlu0 %3308
        %3310 = vadd.xlane.f32.xlu0 %v3279
        %v3311 = vpop.xlane.xlu0 %3310
        %3312 = vadd.xlane.f32.xlu0 %v3281
        %v3313 = vpop.xlane.xlu0 %3312
        %3314 = vadd.xlane.f32.xlu0 %v3283
        %v3315 = vpop.xlane.xlu0 %3314
        %3316 = vadd.xlane.f32.xlu0 %v3285
        %v3317 = vpop.xlane.xlu0 %3316
        %3318 = vadd.xlane.f32.xlu0 %v3287
        %v3319 = vpop.xlane.xlu0 %3318
        %3320 = vadd.xlane.f32.xlu0 %v3289
        %v3321 = vpop.xlane.xlu0 %3320
        %3322 = vadd.xlane.f32.xlu0 %v3291
        %v3323 = vpop.xlane.xlu0 %3322
        %3324 = vadd.xlane.f32.xlu0 %v3293
        %v3325 = vpop.xlane.xlu0 %3324
        %3326 = vadd.xlane.f32.xlu0 %v3295
        %v3327 = vpop.xlane.xlu0 %3326
        %3328 = vadd.xlane.f32.xlu0 %v3297
        %v3329 = vpop.xlane.xlu0 %3328
        %v3330 = vrcp.pop %v3299
        %v3331 = vrcp.pop %v3301
        %v3332 = vrcp.pop %v3303
        %v3333 = vrcp.pop %v3305
        %v3334 = vrcp.pop %v3307
        %v3335 = vrcp.pop %v3309
        %v3336 = vrcp.pop %v3311
        %v3337 = vrcp.pop %v3313
        %v3338 = vrcp.pop %v3315
        %v3339 = vrcp.pop %v3317
        %v3340 = vrcp.pop %v3319
        %v3341 = vrcp.pop %v3321
        %v3342 = vrcp.pop %v3323
        %v3343 = vrcp.pop %v3325
        %v3344 = vrcp.pop %v3327
        %v3345 = vrcp.pop %v3329
        %v3346 = vld [vmem:[#allocation8 + $0x18] sm:$0xf]
        %v3347 = vld [vmem:[#allocation8 + $0x1c] sm:$0xf]
        %3348 = vrot.lane.b32.xlu0 %v1239, 80
        %v3349 = vpop.permute.xlu0 %3348
        %3350 = vrot.lane.b32.xlu0 %v1240, 80
        %v3351 = vpop.permute.xlu0 %3350
        %3352 = vrot.lane.b32.xlu0 %v1241, 80
        %v3353 = vpop.permute.xlu0 %3352
        %3354 = vrot.lane.b32.xlu0 %v1242, 80
        %v3355 = vpop.permute.xlu0 %3354
        %3356 = vrot.lane.b32.xlu0 %v1243, 80
        %v3357 = vpop.permute.xlu0 %3356
        %3358 = vrot.lane.b32.xlu0 %v1244, 80
        %v3359 = vpop.permute.xlu0 %3358
        %3360 = vrot.lane.b32.xlu0 %v1245, 80
        %v3361 = vpop.permute.xlu0 %3360
        %3362 = vrot.lane.b32.xlu0 %v1246, 80
        %v3363 = vpop.permute.xlu0 %3362
        %v3366 = vunpack.c.l.b16 %v3346
        %v3367 = vunpack.c.l.b16 %v3347
        %v3368 = vpack.c.b16 %v3367, %v3366
        %v3371 = vsel %vm1247, %v3349, 0
        %v3374 = vsel %vm1247, %v3351, 0
        %v3377 = vsel %vm1247, %v3353, 0
        %v3380 = vsel %vm1247, %v3355, 0
        %v3383 = vsel %vm1247, %v3357, 0
        %v3386 = vsel %vm1247, %v3359, 0
        %v3389 = vsel %vm1247, %v3361, 0
        %v3392 = vsel %vm1247, %v3363, 0
        %3394 = vmatprep.subr.bf16.mxu0 0
        %3395 = vmatpush1.bf16.msra.mxu0 %v3368
        %3396 = vmatprep.subr.bf16.mxu0 0
        %3397 = vmatpush1.bf16.msra.mxu0 0
        %3398 = vmatprep.subr.bf16.mxu0 0
        %3399 = vmatpush1.bf16.msra.mxu0 0
        %3400 = vmatprep.subr.bf16.mxu0 0
        %3401 = vmatpush1.bf16.msra.mxu0 0
        %3402 = vmatprep.subr.bf16.mxu0 0
        %3403 = vmatpush1.bf16.msra.mxu0 0
        %3404 = vmatprep.subr.bf16.mxu0 0
        %3405 = vmatpush1.bf16.msra.mxu0 0
        %3406 = vmatprep.subr.bf16.mxu0 0
        %3407 = vmatpush1.bf16.msra.mxu0 0
        %3408 = vmatprep.subr.bf16.mxu0 0
        %3409 = vmatpush1.bf16.msra.mxu0 0
        %3410 = vmatprep.subr.bf16.mxu0 0
        %3411 = vmatpush1.bf16.msra.mxu0 0
        %3412 = vmatprep.subr.bf16.mxu0 0
        %3413 = vmatpush1.bf16.msra.mxu0 0
        %3414 = vmatprep.subr.bf16.mxu0 0
        %3415 = vmatpush1.bf16.msra.mxu0 0
        %3416 = vmatprep.subr.bf16.mxu0 0
        %3417 = vmatpush1.bf16.msra.mxu0 0
        %3418 = vmatprep.subr.bf16.mxu0 0
        %3419 = vmatpush1.bf16.msra.mxu0 0
        %3420 = vmatprep.subr.bf16.mxu0 0
        %3421 = vmatpush1.bf16.msra.mxu0 0
        %3422 = vmatprep.subr.bf16.mxu0 0
        %3423 = vmatpush1.bf16.msra.mxu0 0
        %3424 = vmatprep.subr.bf16.mxu0 0
        %3425 = vmatpush1.bf16.msra.mxu0 0
        %3426 = vmatprep.mubr.bf16.mxu0 0
        %3427 = vmatmul.mubr.bf16.gmra.mrb[0].mxu0 %v3371
        %v3428 = vpop.f32.mrb[0].mxu0
        %v3429 = vadd.f32 0.0, %v3428
        %v3430 = vpop.f32.mrb[0].mxu0
        %v3431 = vpop.f32.mrb[0].mxu0
        %v3432 = vadd.f32 0.0, %v3431
        %v3433 = vpop.f32.mrb[0].mxu0
        %3434 = vmatprep.mubr.bf16.mxu0 0
        %3435 = vmatmul.mubr.bf16.gmra.mrb[0].mxu0 %v3374
        %v3436 = vpop.f32.mrb[0].mxu0
        %v3437 = vadd.f32 0.0, %v3436
        %v3438 = vpop.f32.mrb[0].mxu0
        %v3439 = vpop.f32.mrb[0].mxu0
        %v3440 = vadd.f32 0.0, %v3439
        %v3441 = vpop.f32.mrb[0].mxu0
        %3442 = vmatprep.mubr.bf16.mxu0 0
        %3443 = vmatmul.mubr.bf16.gmra.mrb[0].mxu0 %v3377
        %v3444 = vpop.f32.mrb[0].mxu0
        %v3445 = vadd.f32 0.0, %v3444
        %v3446 = vpop.f32.mrb[0].mxu0
        %v3447 = vpop.f32.mrb[0].mxu0
        %v3448 = vadd.f32 0.0, %v3447
        %v3449 = vpop.f32.mrb[0].mxu0
        %3450 = vmatprep.mubr.bf16.mxu0 0
        %3451 = vmatmul.mubr.bf16.gmra.mrb[0].mxu0 %v3380
        %v3452 = vpop.f32.mrb[0].mxu0
        %v3453 = vadd.f32 0.0, %v3452
        %v3454 = vpop.f32.mrb[0].mxu0
        %v3455 = vpop.f32.mrb[0].mxu0
        %v3456 = vadd.f32 0.0, %v3455
        %v3457 = vpop.f32.mrb[0].mxu0
        %3458 = vmatprep.mubr.bf16.mxu0 0
        %3459 = vmatmul.mubr.bf16.gmra.mrb[0].mxu0 %v3383
        %v3460 = vpop.f32.mrb[0].mxu0
        %v3461 = vadd.f32 0.0, %v3460
        %v3462 = vpop.f32.mrb[0].mxu0
        %v3463 = vpop.f32.mrb[0].mxu0
        %v3464 = vadd.f32 0.0, %v3463
        %v3465 = vpop.f32.mrb[0].mxu0
        %3466 = vmatprep.mubr.bf16.mxu0 0
        %3467 = vmatmul.mubr.bf16.gmra.mrb[0].mxu0 %v3386
        %v3468 = vpop.f32.mrb[0].mxu0
        %v3469 = vadd.f32 0.0, %v3468
        %v3470 = vpop.f32.mrb[0].mxu0
        %v3471 = vpop.f32.mrb[0].mxu0
        %v3472 = vadd.f32 0.0, %v3471
        %v3473 = vpop.f32.mrb[0].mxu0
        %3474 = vmatprep.mubr.bf16.mxu0 0
        %3475 = vmatmul.mubr.bf16.gmra.mrb[0].mxu0 %v3389
        %v3476 = vpop.f32.mrb[0].mxu0
        %v3477 = vadd.f32 0.0, %v3476
        %v3478 = vpop.f32.mrb[0].mxu0
        %v3479 = vpop.f32.mrb[0].mxu0
        %v3480 = vadd.f32 0.0, %v3479
        %v3481 = vpop.f32.mrb[0].mxu0
        %3482 = vmatprep.mubr.bf16.mxu0 0
        %3483 = vmatmul.mubr.bf16.gmra.mrb[0].mxu0 %v3392
        %v3484 = vpop.f32.mrb[0].mxu0
        %v3485 = vadd.f32 0.0, %v3484
        %v3486 = vpop.f32.mrb[0].mxu0
        %v3487 = vpop.f32.mrb[0].mxu0
        %v3488 = vadd.f32 0.0, %v3487
        %v3489 = vpop.f32.mrb[0].mxu0
        %3490 = vdwg.mxu0
        %v3491 = vpack.c.bf16 %v3432, %v3429
        %v3492 = vpack.c.bf16 %v3440, %v3437
        %v3493 = vpack.c.bf16 %v3448, %v3445
        %v3494 = vpack.c.bf16 %v3456, %v3453
        %v3495 = vpack.c.bf16 %v3464, %v3461
        %v3496 = vpack.c.bf16 %v3472, %v3469
        %v3497 = vpack.c.bf16 %v3480, %v3477
        %v3498 = vpack.c.bf16 %v3488, %v3485
        %v3499 = vmul.f32 %v3267, %v3330
        %v3500 = vmul.f32 %v3269, %v3331
        %v3501 = vmul.f32 %v3271, %v3332
        %v3502 = vmul.f32 %v3273, %v3333
        %v3503 = vmul.f32 %v3275, %v3334
        %v3504 = vmul.f32 %v3277, %v3335
        %v3505 = vmul.f32 %v3279, %v3336
        %v3506 = vmul.f32 %v3281, %v3337
        %v3507 = vmul.f32 %v3283, %v3338
        %v3508 = vmul.f32 %v3285, %v3339
        %v3509 = vmul.f32 %v3287, %v3340
        %v3510 = vmul.f32 %v3289, %v3341
        %v3511 = vmul.f32 %v3291, %v3342
        %v3512 = vmul.f32 %v3293, %v3343
        %v3513 = vmul.f32 %v3295, %v3344
        %v3514 = vmul.f32 %v3297, %v3345
        %v3515 = vpack.c.bf16 %v3500, %v3499
        %v3516 = vpack.c.bf16 %v3502, %v3501
        %v3517 = vpack.c.bf16 %v3504, %v3503
        %v3518 = vpack.c.bf16 %v3506, %v3505
        %v3519 = vpack.c.bf16 %v3508, %v3507
        %v3520 = vpack.c.bf16 %v3510, %v3509
        %v3521 = vpack.c.bf16 %v3512, %v3511
        %v3522 = vpack.c.bf16 %v3514, %v3513
        %3523 = vmatprep.subr.bf16.mxu0 0
        %3524 = vmatpush1.bf16.msra.mxu0 %v3491
        %3525 = vmatprep.subr.bf16.mxu0 0
        %3526 = vmatpush1.bf16.msra.mxu0 %v3492
        %3527 = vmatprep.subr.bf16.mxu0 0
        %3528 = vmatpush1.bf16.msra.mxu0 %v3493
        %3529 = vmatprep.subr.bf16.mxu0 0
        %3530 = vmatpush1.bf16.msra.mxu0 %v3494
        %3531 = vmatprep.subr.bf16.mxu0 0
        %3532 = vmatpush1.bf16.msra.mxu0 %v3495
        %3533 = vmatprep.subr.bf16.mxu0 0
        %3534 = vmatpush1.bf16.msra.mxu0 %v3496
        %3535 = vmatprep.subr.bf16.mxu0 0
        %3536 = vmatpush1.bf16.msra.mxu0 %v3497
        %3537 = vmatprep.subr.bf16.mxu0 0
        %3538 = vmatpush1.bf16.msra.mxu0 %v3498
        %3539 = vmatprep.subr.bf16.mxu0 0
        %3540 = vmatpush1.bf16.msra.mxu0 0
        %3541 = vmatprep.subr.bf16.mxu0 0
        %3542 = vmatpush1.bf16.msra.mxu0 0
        %3543 = vmatprep.subr.bf16.mxu0 0
        %3544 = vmatpush1.bf16.msra.mxu0 0
        %3545 = vmatprep.subr.bf16.mxu0 0
        %3546 = vmatpush1.bf16.msra.mxu0 0
        %3547 = vmatprep.subr.bf16.mxu0 0
        %3548 = vmatpush1.bf16.msra.mxu0 0
        %3549 = vmatprep.subr.bf16.mxu0 0
        %3550 = vmatpush1.bf16.msra.mxu0 0
        %3551 = vmatprep.subr.bf16.mxu0 0
        %3552 = vmatpush1.bf16.msra.mxu0 0
        %3553 = vmatprep.subr.bf16.mxu0 0
        %3554 = vmatpush1.bf16.msra.mxu0 0
        %3555 = vmatprep.mubr.bf16.mxu0 0
        %3556 = vmatmul.mubr.bf16.gmra.mrb[0].mxu0 %v3515
        %v3557 = vpop.f32.mrb[0].mxu0
        %v3558 = vadd.f32 0.0, %v3557
        %v3559 = vpop.f32.mrb[0].mxu0
        %v3560 = vpop.f32.mrb[0].mxu0
        %v3561 = vadd.f32 0.0, %v3560
        %v3562 = vpop.f32.mrb[0].mxu0
        %3563 = vmatprep.mubr.bf16.mxu0 0
        %3564 = vmatmul.mubr.bf16.gmra.mrb[0].mxu0 %v3516
        %v3565 = vpop.f32.mrb[0].mxu0
        %v3566 = vadd.f32 0.0, %v3565
        %v3567 = vpop.f32.mrb[0].mxu0
        %v3568 = vpop.f32.mrb[0].mxu0
        %v3569 = vadd.f32 0.0, %v3568
        %v3570 = vpop.f32.mrb[0].mxu0
        %3571 = vmatprep.mubr.bf16.mxu0 0
        %3572 = vmatmul.mubr.bf16.gmra.mrb[0].mxu0 %v3517
        %v3573 = vpop.f32.mrb[0].mxu0
        %v3574 = vadd.f32 0.0, %v3573
        %v3575 = vpop.f32.mrb[0].mxu0
        %v3576 = vpop.f32.mrb[0].mxu0
        %v3577 = vadd.f32 0.0, %v3576
        %v3578 = vpop.f32.mrb[0].mxu0
        %3579 = vmatprep.mubr.bf16.mxu0 0
        %3580 = vmatmul.mubr.bf16.gmra.mrb[0].mxu0 %v3518
        %v3581 = vpop.f32.mrb[0].mxu0
        %v3582 = vadd.f32 0.0, %v3581
        %v3583 = vpop.f32.mrb[0].mxu0
        %v3584 = vpop.f32.mrb[0].mxu0
        %v3585 = vadd.f32 0.0, %v3584
        %v3586 = vpop.f32.mrb[0].mxu0
        %3587 = vmatprep.mubr.bf16.mxu0 0
        %3588 = vmatmul.mubr.bf16.gmra.mrb[0].mxu0 %v3519
        %v3589 = vpop.f32.mrb[0].mxu0
        %v3590 = vadd.f32 0.0, %v3589
        %v3591 = vpop.f32.mrb[0].mxu0
        %v3592 = vpop.f32.mrb[0].mxu0
        %v3593 = vadd.f32 0.0, %v3592
        %v3594 = vpop.f32.mrb[0].mxu0
        %3595 = vmatprep.mubr.bf16.mxu0 0
        %3596 = vmatmul.mubr.bf16.gmra.mrb[0].mxu0 %v3520
        %v3597 = vpop.f32.mrb[0].mxu0
        %v3598 = vadd.f32 0.0, %v3597
        %v3599 = vpop.f32.mrb[0].mxu0
        %v3600 = vpop.f32.mrb[0].mxu0
        %v3601 = vadd.f32 0.0, %v3600
        %v3602 = vpop.f32.mrb[0].mxu0
        %3603 = vmatprep.mubr.bf16.mxu0 0
        %3604 = vmatmul.mubr.bf16.gmra.mrb[0].mxu0 %v3521
        %v3605 = vpop.f32.mrb[0].mxu0
        %v3606 = vadd.f32 0.0, %v3605
        %v3607 = vpop.f32.mrb[0].mxu0
        %v3608 = vpop.f32.mrb[0].mxu0
        %v3609 = vadd.f32 0.0, %v3608
        %v3610 = vpop.f32.mrb[0].mxu0
        %3611 = vmatprep.mubr.bf16.mxu0 0
        %3612 = vmatmul.mubr.bf16.gmra.mrb[0].mxu0 %v3522
        %v3613 = vpop.f32.mrb[0].mxu0
        %v3614 = vadd.f32 0.0, %v3613
        %v3615 = vpop.f32.mrb[0].mxu0
        %v3616 = vpop.f32.mrb[0].mxu0
        %v3617 = vadd.f32 0.0, %v3616
        %v3618 = vpop.f32.mrb[0].mxu0
        %3619 = vdwg.mxu0
        %v3620 = vadd.f32 %v3009, %v3558
        %v3621 = vadd.f32 %v3010, %v3561
        %v3622 = vadd.f32 %v3011, %v3566
        %v3623 = vadd.f32 %v3012, %v3569
        %v3624 = vadd.f32 %v3013, %v3574
        %v3625 = vadd.f32 %v3014, %v3577
        %v3626 = vadd.f32 %v3015, %v3582
        %v3627 = vadd.f32 %v3016, %v3585
        %v3628 = vadd.f32 %v3017, %v3590
        %v3629 = vadd.f32 %v3018, %v3593
        %v3630 = vadd.f32 %v3019, %v3598
        %v3631 = vadd.f32 %v3020, %v3601
        %v3632 = vadd.f32 %v3021, %v3606
        %v3633 = vadd.f32 %v3022, %v3609
        %v3634 = vadd.f32 %v3023, %v3614
        %v3635 = vadd.f32 %v3024, %v3617
        %3636 = vrot.lane.b32.xlu0 %v1223, 64
        %v3637 = vpop.permute.xlu0 %3636
        %3638 = vrot.lane.b32.xlu0 %v1224, 64
        %v3639 = vpop.permute.xlu0 %3638
        %3640 = vrot.lane.b32.xlu0 %v1225, 64
        %v3641 = vpop.permute.xlu0 %3640
        %3642 = vrot.lane.b32.xlu0 %v1226, 64
        %v3643 = vpop.permute.xlu0 %3642
        %3644 = vrot.lane.b32.xlu0 %v1227, 64
        %v3645 = vpop.permute.xlu0 %3644
        %3646 = vrot.lane.b32.xlu0 %v1228, 64
        %v3647 = vpop.permute.xlu0 %3646
        %3648 = vrot.lane.b32.xlu0 %v1229, 64
        %v3649 = vpop.permute.xlu0 %3648
        %3650 = vrot.lane.b32.xlu0 %v1230, 64
        %v3651 = vpop.permute.xlu0 %3650
        %3652 = vrot.lane.b32.xlu0 %v1231, 64
        %v3653 = vpop.permute.xlu0 %3652
        %3654 = vrot.lane.b32.xlu0 %v1232, 64
        %v3655 = vpop.permute.xlu0 %3654
        %3656 = vrot.lane.b32.xlu0 %v1233, 64
        %v3657 = vpop.permute.xlu0 %3656
        %3658 = vrot.lane.b32.xlu0 %v1234, 64
        %v3659 = vpop.permute.xlu0 %3658
        %3660 = vrot.lane.b32.xlu0 %v1235, 64
        %v3661 = vpop.permute.xlu0 %3660
        %3662 = vrot.lane.b32.xlu0 %v1236, 64
        %v3663 = vpop.permute.xlu0 %3662
        %3664 = vrot.lane.b32.xlu0 %v1237, 64
        %v3665 = vpop.permute.xlu0 %3664
        %3666 = vrot.lane.b32.xlu0 %v1238, 64
        %v3667 = vpop.permute.xlu0 %3666
        %v3669 = vsel %vm1247, %v3637, 0
        %v3672 = vsel %vm1247, %v3639, 0
        %v3675 = vsel %vm1247, %v3641, 0
        %v3678 = vsel %vm1247, %v3643, 0
        %v3681 = vsel %vm1247, %v3645, 0
        %v3684 = vsel %vm1247, %v3647, 0
        %v3687 = vsel %vm1247, %v3649, 0
        %v3690 = vsel %vm1247, %v3651, 0
        %v3693 = vsel %vm1247, %v3653, 0
        %v3696 = vsel %vm1247, %v3655, 0
        %v3699 = vsel %vm1247, %v3657, 0
        %v3702 = vsel %vm1247, %v3659, 0
        %v3705 = vsel %vm1247, %v3661, 0
        %v3708 = vsel %vm1247, %v3663, 0
        %v3711 = vsel %vm1247, %v3665, 0
        %v3714 = vsel %vm1247, %v3667, 0
        %3716 = vmatprep.subr.bf16.mxu0 0
        %3717 = vmatpush1.bf16.xpose.msra.mxu0 %v3693
        %3718 = vmatprep.subr.bf16.mxu0 0
        %3719 = vmatpush1.bf16.xpose.msra.mxu0 %v3696
        %3720 = vmatprep.subr.bf16.mxu0 0
        %3721 = vmatpush1.bf16.xpose.msra.mxu0 %v3699
        %3722 = vmatprep.subr.bf16.mxu0 0
        %3723 = vmatpush1.bf16.xpose.msra.mxu0 %v3702
        %3724 = vmatprep.subr.bf16.mxu0 0
        %3725 = vmatpush1.bf16.xpose.msra.mxu0 %v3705
        %3726 = vmatprep.subr.bf16.mxu0 0
        %3727 = vmatpush1.bf16.xpose.msra.mxu0 %v3708
        %3728 = vmatprep.subr.bf16.mxu0 0
        %3729 = vmatpush1.bf16.xpose.msra.mxu0 %v3711
        %3730 = vmatprep.subr.bf16.mxu0 0
        %3731 = vmatpush1.bf16.xpose.msra.mxu0 %v3714
        %3732 = vmatprep.subr.bf16.mxu0 0
        %3733 = vmatpush1.bf16.xpose.msra.mxu0 0
        %3734 = vmatprep.subr.bf16.mxu0 0
        %3735 = vmatpush1.bf16.xpose.msra.mxu0 0
        %3736 = vmatprep.subr.bf16.mxu0 0
        %3737 = vmatpush1.bf16.xpose.msra.mxu0 0
        %3738 = vmatprep.subr.bf16.mxu0 0
        %3739 = vmatpush1.bf16.xpose.msra.mxu0 0
        %3740 = vmatprep.subr.bf16.mxu0 0
        %3741 = vmatpush1.bf16.xpose.msra.mxu0 0
        %3742 = vmatprep.subr.bf16.mxu0 0
        %3743 = vmatpush1.bf16.xpose.msra.mxu0 0
        %3744 = vmatprep.subr.bf16.mxu0 0
        %3745 = vmatpush1.bf16.xpose.msra.mxu0 0
        %3746 = vmatprep.subr.bf16.mxu0 0
        %3747 = vmatpush1.bf16.xpose.msra.mxu0 0
        %3748 = vmatprep.mubr.bf16.mxu0 0
        %3749 = vmatmul.mubr.bf16.gmra.mrb[0].mxu0 %v3669
        %v3750 = vpop.f32.mrb[0].mxu0
        %v3751 = vadd.f32 0.0, %v3750
        %v3752 = vpop.f32.mrb[0].mxu0
        %v3753 = vpop.f32.mrb[0].mxu0
        %v3754 = vadd.f32 0.0, %v3753
        %v3755 = vpop.f32.mrb[0].mxu0
        %3756 = vmatprep.mubr.bf16.mxu0 0
        %3757 = vmatmul.mubr.bf16.gmra.mrb[0].mxu0 %v3672
        %v3758 = vpop.f32.mrb[0].mxu0
        %v3759 = vadd.f32 0.0, %v3758
        %v3760 = vpop.f32.mrb[0].mxu0
        %v3761 = vpop.f32.mrb[0].mxu0
        %v3762 = vadd.f32 0.0, %v3761
        %v3763 = vpop.f32.mrb[0].mxu0
        %3764 = vmatprep.mubr.bf16.mxu0 0
        %3765 = vmatmul.mubr.bf16.gmra.mrb[0].mxu0 %v3675
        %v3766 = vpop.f32.mrb[0].mxu0
        %v3767 = vadd.f32 0.0, %v3766
        %v3768 = vpop.f32.mrb[0].mxu0
        %v3769 = vpop.f32.mrb[0].mxu0
        %v3770 = vadd.f32 0.0, %v3769
        %v3771 = vpop.f32.mrb[0].mxu0
        %3772 = vmatprep.mubr.bf16.mxu0 0
        %3773 = vmatmul.mubr.bf16.gmra.mrb[0].mxu0 %v3678
        %v3774 = vpop.f32.mrb[0].mxu0
        %v3775 = vadd.f32 0.0, %v3774
        %v3776 = vpop.f32.mrb[0].mxu0
        %v3777 = vpop.f32.mrb[0].mxu0
        %v3778 = vadd.f32 0.0, %v3777
        %v3779 = vpop.f32.mrb[0].mxu0
        %3780 = vmatprep.mubr.bf16.mxu0 0
        %3781 = vmatmul.mubr.bf16.gmra.mrb[0].mxu0 %v3681
        %v3782 = vpop.f32.mrb[0].mxu0
        %v3783 = vadd.f32 0.0, %v3782
        %v3784 = vpop.f32.mrb[0].mxu0
        %v3785 = vpop.f32.mrb[0].mxu0
        %v3786 = vadd.f32 0.0, %v3785
        %v3787 = vpop.f32.mrb[0].mxu0
        %3788 = vmatprep.mubr.bf16.mxu0 0
        %3789 = vmatmul.mubr.bf16.gmra.mrb[0].mxu0 %v3684
        %v3790 = vpop.f32.mrb[0].mxu0
        %v3791 = vadd.f32 0.0, %v3790
        %v3792 = vpop.f32.mrb[0].mxu0
        %v3793 = vpop.f32.mrb[0].mxu0
        %v3794 = vadd.f32 0.0, %v3793
        %v3795 = vpop.f32.mrb[0].mxu0
        %3796 = vmatprep.mubr.bf16.mxu0 0
        %3797 = vmatmul.mubr.bf16.gmra.mrb[0].mxu0 %v3687
        %v3798 = vpop.f32.mrb[0].mxu0
        %v3799 = vadd.f32 0.0, %v3798
        %v3800 = vpop.f32.mrb[0].mxu0
        %v3801 = vpop.f32.mrb[0].mxu0
        %v3802 = vadd.f32 0.0, %v3801
        %v3803 = vpop.f32.mrb[0].mxu0
        %3804 = vmatprep.mubr.bf16.mxu0 0
        %3805 = vmatmul.mubr.bf16.gmra.mrb[0].mxu0 %v3690
        %v3806 = vpop.f32.mrb[0].mxu0
        %v3807 = vadd.f32 0.0, %v3806
        %v3808 = vpop.f32.mrb[0].mxu0
        %v3809 = vpop.f32.mrb[0].mxu0
        %v3810 = vadd.f32 0.0, %v3809
        %v3811 = vpop.f32.mrb[0].mxu0
        %3812 = vdwg.mxu0
        %v3813 = vsel %vm1207, %v3751, -inf
        %v3814 = vsel %vm1208, %v3754, -inf
        %v3815 = vsel %vm1209, %v3759, -inf
        %v3816 = vsel %vm1210, %v3762, -inf
        %v3817 = vsel %vm1211, %v3767, -inf
        %v3818 = vsel %vm1212, %v3770, -inf
        %v3819 = vsel %vm1213, %v3775, -inf
        %v3820 = vsel %vm1214, %v3778, -inf
        %v3821 = vsel %vm1215, %v3783, -inf
        %v3822 = vsel %vm1216, %v3786, -inf
        %v3823 = vsel %vm1217, %v3791, -inf
        %v3824 = vsel %vm1218, %v3794, -inf
        %v3825 = vsel %vm1219, %v3799, -inf
        %v3826 = vsel %vm1220, %v3802, -inf
        %v3827 = vsel %vm1221, %v3807, -inf
        %v3828 = vsel %vm1222, %v3810, -inf
        %3829 = vmax.xlane.f32.xlu0 %v3813
        %v3830 = vpop.xlane.xlu0 %3829
        %3831 = vmax.xlane.f32.xlu0 %v3814
        %v3832 = vpop.xlane.xlu0 %3831
        %3833 = vmax.xlane.f32.xlu0 %v3815
        %v3834 = vpop.xlane.xlu0 %3833
        %3835 = vmax.xlane.f32.xlu0 %v3816
        %v3836 = vpop.xlane.xlu0 %3835
        %3837 = vmax.xlane.f32.xlu0 %v3817
        %v3838 = vpop.xlane.xlu0 %3837
        %3839 = vmax.xlane.f32.xlu0 %v3818
        %v3840 = vpop.xlane.xlu0 %3839
        %3841 = vmax.xlane.f32.xlu0 %v3819
        %v3842 = vpop.xlane.xlu0 %3841
        %3843 = vmax.xlane.f32.xlu0 %v3820
        %v3844 = vpop.xlane.xlu0 %3843
        %3845 = vmax.xlane.f32.xlu0 %v3821
        %v3846 = vpop.xlane.xlu0 %3845
        %3847 = vmax.xlane.f32.xlu0 %v3822
        %v3848 = vpop.xlane.xlu0 %3847
        %3849 = vmax.xlane.f32.xlu0 %v3823
        %v3850 = vpop.xlane.xlu0 %3849
        %3851 = vmax.xlane.f32.xlu0 %v3824
        %v3852 = vpop.xlane.xlu0 %3851
        %3853 = vmax.xlane.f32.xlu0 %v3825
        %v3854 = vpop.xlane.xlu0 %3853
        %3855 = vmax.xlane.f32.xlu0 %v3826
        %v3856 = vpop.xlane.xlu0 %3855
        %3857 = vmax.xlane.f32.xlu0 %v3827
        %v3858 = vpop.xlane.xlu0 %3857
        %3859 = vmax.xlane.f32.xlu0 %v3828
        %v3860 = vpop.xlane.xlu0 %3859
        %v3861 = vsub.f32 %v3813, %v3830
        %v3862 = vsub.f32 %v3814, %v3832
        %v3863 = vsub.f32 %v3815, %v3834
        %v3864 = vsub.f32 %v3816, %v3836
        %v3865 = vsub.f32 %v3817, %v3838
        %v3866 = vsub.f32 %v3818, %v3840
        %v3867 = vsub.f32 %v3819, %v3842
        %v3868 = vsub.f32 %v3820, %v3844
        %v3869 = vsub.f32 %v3821, %v3846
        %v3870 = vsub.f32 %v3822, %v3848
        %v3871 = vsub.f32 %v3823, %v3850
        %v3872 = vsub.f32 %v3824, %v3852
        %v3873 = vsub.f32 %v3825, %v3854
        %v3874 = vsub.f32 %v3826, %v3856
        %v3875 = vsub.f32 %v3827, %v3858
        %v3876 = vsub.f32 %v3828, %v3860
        %v3877 = vmul.f32 %v3861, 1.442695
        %v3878 = vpow.pop %v3877
        %v3879 = vmul.f32 %v3862, 1.442695
        %v3880 = vpow.pop %v3879
        %v3881 = vmul.f32 %v3863, 1.442695
        %v3882 = vpow.pop %v3881
        %v3883 = vmul.f32 %v3864, 1.442695
        %v3884 = vpow.pop %v3883
        %v3885 = vmul.f32 %v3865, 1.442695
        %v3886 = vpow.pop %v3885
        %v3887 = vmul.f32 %v3866, 1.442695
        %v3888 = vpow.pop %v3887
        %v3889 = vmul.f32 %v3867, 1.442695
        %v3890 = vpow.pop %v3889
        %v3891 = vmul.f32 %v3868, 1.442695
        %v3892 = vpow.pop %v3891
        %v3893 = vmul.f32 %v3869, 1.442695
        %v3894 = vpow.pop %v3893
        %v3895 = vmul.f32 %v3870, 1.442695
        %v3896 = vpow.pop %v3895
        %v3897 = vmul.f32 %v3871, 1.442695
        %v3898 = vpow.pop %v3897
        %v3899 = vmul.f32 %v3872, 1.442695
        %v3900 = vpow.pop %v3899
        %v3901 = vmul.f32 %v3873, 1.442695
        %v3902 = vpow.pop %v3901
        %v3903 = vmul.f32 %v3874, 1.442695
        %v3904 = vpow.pop %v3903
        %v3905 = vmul.f32 %v3875, 1.442695
        %v3906 = vpow.pop %v3905
        %v3907 = vmul.f32 %v3876, 1.442695
        %v3908 = vpow.pop %v3907
        %3909 = vadd.xlane.f32.xlu0 %v3878
        %v3910 = vpop.xlane.xlu0 %3909
        %3911 = vadd.xlane.f32.xlu0 %v3880
        %v3912 = vpop.xlane.xlu0 %3911
        %3913 = vadd.xlane.f32.xlu0 %v3882
        %v3914 = vpop.xlane.xlu0 %3913
        %3915 = vadd.xlane.f32.xlu0 %v3884
        %v3916 = vpop.xlane.xlu0 %3915
        %3917 = vadd.xlane.f32.xlu0 %v3886
        %v3918 = vpop.xlane.xlu0 %3917
        %3919 = vadd.xlane.f32.xlu0 %v3888
        %v3920 = vpop.xlane.xlu0 %3919
        %3921 = vadd.xlane.f32.xlu0 %v3890
        %v3922 = vpop.xlane.xlu0 %3921
        %3923 = vadd.xlane.f32.xlu0 %v3892
        %v3924 = vpop.xlane.xlu0 %3923
        %3925 = vadd.xlane.f32.xlu0 %v3894
        %v3926 = vpop.xlane.xlu0 %3925
        %3927 = vadd.xlane.f32.xlu0 %v3896
        %v3928 = vpop.xlane.xlu0 %3927
        %3929 = vadd.xlane.f32.xlu0 %v3898
        %v3930 = vpop.xlane.xlu0 %3929
        %3931 = vadd.xlane.f32.xlu0 %v3900
        %v3932 = vpop.xlane.xlu0 %3931
        %3933 = vadd.xlane.f32.xlu0 %v3902
        %v3934 = vpop.xlane.xlu0 %3933
        %3935 = vadd.xlane.f32.xlu0 %v3904
        %v3936 = vpop.xlane.xlu0 %3935
        %3937 = vadd.xlane.f32.xlu0 %v3906
        %v3938 = vpop.xlane.xlu0 %3937
        %3939 = vadd.xlane.f32.xlu0 %v3908
        %v3940 = vpop.xlane.xlu0 %3939
        %v3941 = vrcp.pop %v3910
        %v3942 = vrcp.pop %v3912
        %v3943 = vrcp.pop %v3914
        %v3944 = vrcp.pop %v3916
        %v3945 = vrcp.pop %v3918
        %v3946 = vrcp.pop %v3920
        %v3947 = vrcp.pop %v3922
        %v3948 = vrcp.pop %v3924
        %v3949 = vrcp.pop %v3926
        %v3950 = vrcp.pop %v3928
        %v3951 = vrcp.pop %v3930
        %v3952 = vrcp.pop %v3932
        %v3953 = vrcp.pop %v3934
        %v3954 = vrcp.pop %v3936
        %v3955 = vrcp.pop %v3938
        %v3956 = vrcp.pop %v3940
        %v3957 = vld [vmem:[#allocation8 + $0x20] sm:$0xf]
        %v3958 = vld [vmem:[#allocation8 + $0x24] sm:$0xf]
        %3959 = vrot.lane.b32.xlu0 %v1239, 64
        %v3960 = vpop.permute.xlu0 %3959
        %3961 = vrot.lane.b32.xlu0 %v1240, 64
        %v3962 = vpop.permute.xlu0 %3961
        %3963 = vrot.lane.b32.xlu0 %v1241, 64
        %v3964 = vpop.permute.xlu0 %3963
        %3965 = vrot.lane.b32.xlu0 %v1242, 64
        %v3966 = vpop.permute.xlu0 %3965
        %3967 = vrot.lane.b32.xlu0 %v1243, 64
        %v3968 = vpop.permute.xlu0 %3967
        %3969 = vrot.lane.b32.xlu0 %v1244, 64
        %v3970 = vpop.permute.xlu0 %3969
        %3971 = vrot.lane.b32.xlu0 %v1245, 64
        %v3972 = vpop.permute.xlu0 %3971
        %3973 = vrot.lane.b32.xlu0 %v1246, 64
        %v3974 = vpop.permute.xlu0 %3973
        %v3977 = vunpack.c.l.b16 %v3957
        %v3978 = vunpack.c.l.b16 %v3958
        %v3979 = vpack.c.b16 %v3978, %v3977
        %v3982 = vsel %vm1247, %v3960, 0
        %v3985 = vsel %vm1247, %v3962, 0
        %v3988 = vsel %vm1247, %v3964, 0
        %v3991 = vsel %vm1247, %v3966, 0
        %v3994 = vsel %vm1247, %v3968, 0
        %v3997 = vsel %vm1247, %v3970, 0
        %v4000 = vsel %vm1247, %v3972, 0
        %v4003 = vsel %vm1247, %v3974, 0
        %4005 = vmatprep.subr.bf16.mxu0 0
        %4006 = vmatpush1.bf16.msra.mxu0 %v3979
        %4007 = vmatprep.subr.bf16.mxu0 0
        %4008 = vmatpush1.bf16.msra.mxu0 0
        %4009 = vmatprep.subr.bf16.mxu0 0
        %4010 = vmatpush1.bf16.msra.mxu0 0
        %4011 = vmatprep.subr.bf16.mxu0 0
        %4012 = vmatpush1.bf16.msra.mxu0 0
        %4013 = vmatprep.subr.bf16.mxu0 0
        %4014 = vmatpush1.bf16.msra.mxu0 0
        %4015 = vmatprep.subr.bf16.mxu0 0
        %4016 = vmatpush1.bf16.msra.mxu0 0
        %4017 = vmatprep.subr.bf16.mxu0 0
        %4018 = vmatpush1.bf16.msra.mxu0 0
        %4019 = vmatprep.subr.bf16.mxu0 0
        %4020 = vmatpush1.bf16.msra.mxu0 0
        %4021 = vmatprep.subr.bf16.mxu0 0
        %4022 = vmatpush1.bf16.msra.mxu0 0
        %4023 = vmatprep.subr.bf16.mxu0 0
        %4024 = vmatpush1.bf16.msra.mxu0 0
        %4025 = vmatprep.subr.bf16.mxu0 0
        %4026 = vmatpush1.bf16.msra.mxu0 0
        %4027 = vmatprep.subr.bf16.mxu0 0
        %4028 = vmatpush1.bf16.msra.mxu0 0
        %4029 = vmatprep.subr.bf16.mxu0 0
        %4030 = vmatpush1.bf16.msra.mxu0 0
        %4031 = vmatprep.subr.bf16.mxu0 0
        %4032 = vmatpush1.bf16.msra.mxu0 0
        %4033 = vmatprep.subr.bf16.mxu0 0
        %4034 = vmatpush1.bf16.msra.mxu0 0
        %4035 = vmatprep.subr.bf16.mxu0 0
        %4036 = vmatpush1.bf16.msra.mxu0 0
        %4037 = vmatprep.mubr.bf16.mxu0 0
        %4038 = vmatmul.mubr.bf16.gmra.mrb[0].mxu0 %v3982
        %v4039 = vpop.f32.mrb[0].mxu0
        %v4040 = vadd.f32 0.0, %v4039
        %v4041 = vpop.f32.mrb[0].mxu0
        %v4042 = vpop.f32.mrb[0].mxu0
        %v4043 = vadd.f32 0.0, %v4042
        %v4044 = vpop.f32.mrb[0].mxu0
        %4045 = vmatprep.mubr.bf16.mxu0 0
        %4046 = vmatmul.mubr.bf16.gmra.mrb[0].mxu0 %v3985
        %v4047 = vpop.f32.mrb[0].mxu0
        %v4048 = vadd.f32 0.0, %v4047
        %v4049 = vpop.f32.mrb[0].mxu0
        %v4050 = vpop.f32.mrb[0].mxu0
        %v4051 = vadd.f32 0.0, %v4050
        %v4052 = vpop.f32.mrb[0].mxu0
        %4053 = vmatprep.mubr.bf16.mxu0 0
        %4054 = vmatmul.mubr.bf16.gmra.mrb[0].mxu0 %v3988
        %v4055 = vpop.f32.mrb[0].mxu0
        %v4056 = vadd.f32 0.0, %v4055
        %v4057 = vpop.f32.mrb[0].mxu0
        %v4058 = vpop.f32.mrb[0].mxu0
        %v4059 = vadd.f32 0.0, %v4058
        %v4060 = vpop.f32.mrb[0].mxu0
        %4061 = vmatprep.mubr.bf16.mxu0 0
        %4062 = vmatmul.mubr.bf16.gmra.mrb[0].mxu0 %v3991
        %v4063 = vpop.f32.mrb[0].mxu0
        %v4064 = vadd.f32 0.0, %v4063
        %v4065 = vpop.f32.mrb[0].mxu0
        %v4066 = vpop.f32.mrb[0].mxu0
        %v4067 = vadd.f32 0.0, %v4066
        %v4068 = vpop.f32.mrb[0].mxu0
        %4069 = vmatprep.mubr.bf16.mxu0 0
        %4070 = vmatmul.mubr.bf16.gmra.mrb[0].mxu0 %v3994
        %v4071 = vpop.f32.mrb[0].mxu0
        %v4072 = vadd.f32 0.0, %v4071
        %v4073 = vpop.f32.mrb[0].mxu0
        %v4074 = vpop.f32.mrb[0].mxu0
        %v4075 = vadd.f32 0.0, %v4074
        %v4076 = vpop.f32.mrb[0].mxu0
        %4077 = vmatprep.mubr.bf16.mxu0 0
        %4078 = vmatmul.mubr.bf16.gmra.mrb[0].mxu0 %v3997
        %v4079 = vpop.f32.mrb[0].mxu0
        %v4080 = vadd.f32 0.0, %v4079
        %v4081 = vpop.f32.mrb[0].mxu0
        %v4082 = vpop.f32.mrb[0].mxu0
        %v4083 = vadd.f32 0.0, %v4082
        %v4084 = vpop.f32.mrb[0].mxu0
        %4085 = vmatprep.mubr.bf16.mxu0 0
        %4086 = vmatmul.mubr.bf16.gmra.mrb[0].mxu0 %v4000
        %v4087 = vpop.f32.mrb[0].mxu0
        %v4088 = vadd.f32 0.0, %v4087
        %v4089 = vpop.f32.mrb[0].mxu0
        %v4090 = vpop.f32.mrb[0].mxu0
        %v4091 = vadd.f32 0.0, %v4090
        %v4092 = vpop.f32.mrb[0].mxu0
        %4093 = vmatprep.mubr.bf16.mxu0 0
        %4094 = vmatmul.mubr.bf16.gmra.mrb[0].mxu0 %v4003
        %v4095 = vpop.f32.mrb[0].mxu0
        %v4096 = vadd.f32 0.0, %v4095
        %v4097 = vpop.f32.mrb[0].mxu0
        %v4098 = vpop.f32.mrb[0].mxu0
        %v4099 = vadd.f32 0.0, %v4098
        %v4100 = vpop.f32.mrb[0].mxu0
        %4101 = vdwg.mxu0
        %v4102 = vpack.c.bf16 %v4043, %v4040
        %v4103 = vpack.c.bf16 %v4051, %v4048
        %v4104 = vpack.c.bf16 %v4059, %v4056
        %v4105 = vpack.c.bf16 %v4067, %v4064
        %v4106 = vpack.c.bf16 %v4075, %v4072
        %v4107 = vpack.c.bf16 %v4083, %v4080
        %v4108 = vpack.c.bf16 %v4091, %v4088
        %v4109 = vpack.c.bf16 %v4099, %v4096
        %v4110 = vmul.f32 %v3878, %v3941
        %v4111 = vmul.f32 %v3880, %v3942
        %v4112 = vmul.f32 %v3882, %v3943
        %v4113 = vmul.f32 %v3884, %v3944
        %v4114 = vmul.f32 %v3886, %v3945
        %v4115 = vmul.f32 %v3888, %v3946
        %v4116 = vmul.f32 %v3890, %v3947
        %v4117 = vmul.f32 %v3892, %v3948
        %v4118 = vmul.f32 %v3894, %v3949
        %v4119 = vmul.f32 %v3896, %v3950
        %v4120 = vmul.f32 %v3898, %v3951
        %v4121 = vmul.f32 %v3900, %v3952
        %v4122 = vmul.f32 %v3902, %v3953
        %v4123 = vmul.f32 %v3904, %v3954
        %v4124 = vmul.f32 %v3906, %v3955
        %v4125 = vmul.f32 %v3908, %v3956
        %v4126 = vpack.c.bf16 %v4111, %v4110
        %v4127 = vpack.c.bf16 %v4113, %v4112
        %v4128 = vpack.c.bf16 %v4115, %v4114
        %v4129 = vpack.c.bf16 %v4117, %v4116
        %v4130 = vpack.c.bf16 %v4119, %v4118
        %v4131 = vpack.c.bf16 %v4121, %v4120
        %v4132 = vpack.c.bf16 %v4123, %v4122
        %v4133 = vpack.c.bf16 %v4125, %v4124
        %4134 = vmatprep.subr.bf16.mxu0 0
        %4135 = vmatpush1.bf16.msra.mxu0 %v4102
        %4136 = vmatprep.subr.bf16.mxu0 0
        %4137 = vmatpush1.bf16.msra.mxu0 %v4103
        %4138 = vmatprep.subr.bf16.mxu0 0
        %4139 = vmatpush1.bf16.msra.mxu0 %v4104
        %4140 = vmatprep.subr.bf16.mxu0 0
        %4141 = vmatpush1.bf16.msra.mxu0 %v4105
        %4142 = vmatprep.subr.bf16.mxu0 0
        %4143 = vmatpush1.bf16.msra.mxu0 %v4106
        %4144 = vmatprep.subr.bf16.mxu0 0
        %4145 = vmatpush1.bf16.msra.mxu0 %v4107
        %4146 = vmatprep.subr.bf16.mxu0 0
        %4147 = vmatpush1.bf16.msra.mxu0 %v4108
        %4148 = vmatprep.subr.bf16.mxu0 0
        %4149 = vmatpush1.bf16.msra.mxu0 %v4109
        %4150 = vmatprep.subr.bf16.mxu0 0
        %4151 = vmatpush1.bf16.msra.mxu0 0
        %4152 = vmatprep.subr.bf16.mxu0 0
        %4153 = vmatpush1.bf16.msra.mxu0 0
        %4154 = vmatprep.subr.bf16.mxu0 0
        %4155 = vmatpush1.bf16.msra.mxu0 0
        %4156 = vmatprep.subr.bf16.mxu0 0
        %4157 = vmatpush1.bf16.msra.mxu0 0
        %4158 = vmatprep.subr.bf16.mxu0 0
        %4159 = vmatpush1.bf16.msra.mxu0 0
        %4160 = vmatprep.subr.bf16.mxu0 0
        %4161 = vmatpush1.bf16.msra.mxu0 0
        %4162 = vmatprep.subr.bf16.mxu0 0
        %4163 = vmatpush1.bf16.msra.mxu0 0
        %4164 = vmatprep.subr.bf16.mxu0 0
        %4165 = vmatpush1.bf16.msra.mxu0 0
        %4166 = vmatprep.mubr.bf16.mxu0 0
        %4167 = vmatmul.mubr.bf16.gmra.mrb[0].mxu0 %v4126
        %v4168 = vpop.f32.mrb[0].mxu0
        %v4169 = vadd.f32 0.0, %v4168
        %v4170 = vpop.f32.mrb[0].mxu0
        %v4171 = vpop.f32.mrb[0].mxu0
        %v4172 = vadd.f32 0.0, %v4171
        %v4173 = vpop.f32.mrb[0].mxu0
        %4174 = vmatprep.mubr.bf16.mxu0 0
        %4175 = vmatmul.mubr.bf16.gmra.mrb[0].mxu0 %v4127
        %v4176 = vpop.f32.mrb[0].mxu0
        %v4177 = vadd.f32 0.0, %v4176
        %v4178 = vpop.f32.mrb[0].mxu0
        %v4179 = vpop.f32.mrb[0].mxu0
        %v4180 = vadd.f32 0.0, %v4179
        %v4181 = vpop.f32.mrb[0].mxu0
        %4182 = vmatprep.mubr.bf16.mxu0 0
        %4183 = vmatmul.mubr.bf16.gmra.mrb[0].mxu0 %v4128
        %v4184 = vpop.f32.mrb[0].mxu0
        %v4185 = vadd.f32 0.0, %v4184
        %v4186 = vpop.f32.mrb[0].mxu0
        %v4187 = vpop.f32.mrb[0].mxu0
        %v4188 = vadd.f32 0.0, %v4187
        %v4189 = vpop.f32.mrb[0].mxu0
        %4190 = vmatprep.mubr.bf16.mxu0 0
        %4191 = vmatmul.mubr.bf16.gmra.mrb[0].mxu0 %v4129
        %v4192 = vpop.f32.mrb[0].mxu0
        %v4193 = vadd.f32 0.0, %v4192
        %v4194 = vpop.f32.mrb[0].mxu0
        %v4195 = vpop.f32.mrb[0].mxu0
        %v4196 = vadd.f32 0.0, %v4195
        %v4197 = vpop.f32.mrb[0].mxu0
        %4198 = vmatprep.mubr.bf16.mxu0 0
        %4199 = vmatmul.mubr.bf16.gmra.mrb[0].mxu0 %v4130
        %v4200 = vpop.f32.mrb[0].mxu0
        %v4201 = vadd.f32 0.0, %v4200
        %v4202 = vpop.f32.mrb[0].mxu0
        %v4203 = vpop.f32.mrb[0].mxu0
        %v4204 = vadd.f32 0.0, %v4203
        %v4205 = vpop.f32.mrb[0].mxu0
        %4206 = vmatprep.mubr.bf16.mxu0 0
        %4207 = vmatmul.mubr.bf16.gmra.mrb[0].mxu0 %v4131
        %v4208 = vpop.f32.mrb[0].mxu0
        %v4209 = vadd.f32 0.0, %v4208
        %v4210 = vpop.f32.mrb[0].mxu0
        %v4211 = vpop.f32.mrb[0].mxu0
        %v4212 = vadd.f32 0.0, %v4211
        %v4213 = vpop.f32.mrb[0].mxu0
        %4214 = vmatprep.mubr.bf16.mxu0 0
        %4215 = vmatmul.mubr.bf16.gmra.mrb[0].mxu0 %v4132
        %v4216 = vpop.f32.mrb[0].mxu0
        %v4217 = vadd.f32 0.0, %v4216
        %v4218 = vpop.f32.mrb[0].mxu0
        %v4219 = vpop.f32.mrb[0].mxu0
        %v4220 = vadd.f32 0.0, %v4219
        %v4221 = vpop.f32.mrb[0].mxu0
        %4222 = vmatprep.mubr.bf16.mxu0 0
        %4223 = vmatmul.mubr.bf16.gmra.mrb[0].mxu0 %v4133
        %v4224 = vpop.f32.mrb[0].mxu0
        %v4225 = vadd.f32 0.0, %v4224
        %v4226 = vpop.f32.mrb[0].mxu0
        %v4227 = vpop.f32.mrb[0].mxu0
        %v4228 = vadd.f32 0.0, %v4227
        %v4229 = vpop.f32.mrb[0].mxu0
        %4230 = vdwg.mxu0
        %v4231 = vadd.f32 %v3620, %v4169
        %v4232 = vadd.f32 %v3621, %v4172
        %v4233 = vadd.f32 %v3622, %v4177
        %v4234 = vadd.f32 %v3623, %v4180
        %v4235 = vadd.f32 %v3624, %v4185
        %v4236 = vadd.f32 %v3625, %v4188
        %v4237 = vadd.f32 %v3626, %v4193
        %v4238 = vadd.f32 %v3627, %v4196
        %v4239 = vadd.f32 %v3628, %v4201
        %v4240 = vadd.f32 %v3629, %v4204
        %v4241 = vadd.f32 %v3630, %v4209
        %v4242 = vadd.f32 %v3631, %v4212
        %v4243 = vadd.f32 %v3632, %v4217
        %v4244 = vadd.f32 %v3633, %v4220
        %v4245 = vadd.f32 %v3634, %v4225
        %v4246 = vadd.f32 %v3635, %v4228
        %4247 = vrot.lane.b32.xlu0 %v1223, 48
        %v4248 = vpop.permute.xlu0 %4247
        %4249 = vrot.lane.b32.xlu0 %v1224, 48
        %v4250 = vpop.permute.xlu0 %4249
        %4251 = vrot.lane.b32.xlu0 %v1225, 48
        %v4252 = vpop.permute.xlu0 %4251
        %4253 = vrot.lane.b32.xlu0 %v1226, 48
        %v4254 = vpop.permute.xlu0 %4253
        %4255 = vrot.lane.b32.xlu0 %v1227, 48
        %v4256 = vpop.permute.xlu0 %4255
        %4257 = vrot.lane.b32.xlu0 %v1228, 48
        %v4258 = vpop.permute.xlu0 %4257
        %4259 = vrot.lane.b32.xlu0 %v1229, 48
        %v4260 = vpop.permute.xlu0 %4259
        %4261 = vrot.lane.b32.xlu0 %v1230, 48
        %v4262 = vpop.permute.xlu0 %4261
        %4263 = vrot.lane.b32.xlu0 %v1231, 48
        %v4264 = vpop.permute.xlu0 %4263
        %4265 = vrot.lane.b32.xlu0 %v1232, 48
        %v4266 = vpop.permute.xlu0 %4265
        %4267 = vrot.lane.b32.xlu0 %v1233, 48
        %v4268 = vpop.permute.xlu0 %4267
        %4269 = vrot.lane.b32.xlu0 %v1234, 48
        %v4270 = vpop.permute.xlu0 %4269
        %4271 = vrot.lane.b32.xlu0 %v1235, 48
        %v4272 = vpop.permute.xlu0 %4271
        %4273 = vrot.lane.b32.xlu0 %v1236, 48
        %v4274 = vpop.permute.xlu0 %4273
        %4275 = vrot.lane.b32.xlu0 %v1237, 48
        %v4276 = vpop.permute.xlu0 %4275
        %4277 = vrot.lane.b32.xlu0 %v1238, 48
        %v4278 = vpop.permute.xlu0 %4277
        %v4280 = vsel %vm1247, %v4248, 0
        %v4283 = vsel %vm1247, %v4250, 0
        %v4286 = vsel %vm1247, %v4252, 0
        %v4289 = vsel %vm1247, %v4254, 0
        %v4292 = vsel %vm1247, %v4256, 0
        %v4295 = vsel %vm1247, %v4258, 0
        %v4298 = vsel %vm1247, %v4260, 0
        %v4301 = vsel %vm1247, %v4262, 0
        %v4304 = vsel %vm1247, %v4264, 0
        %v4307 = vsel %vm1247, %v4266, 0
        %v4310 = vsel %vm1247, %v4268, 0
        %v4313 = vsel %vm1247, %v4270, 0
        %v4316 = vsel %vm1247, %v4272, 0
        %v4319 = vsel %vm1247, %v4274, 0
        %v4322 = vsel %vm1247, %v4276, 0
        %v4325 = vsel %vm1247, %v4278, 0
        %4327 = vmatprep.subr.bf16.mxu0 0
        %4328 = vmatpush1.bf16.xpose.msra.mxu0 %v4304
        %4329 = vmatprep.subr.bf16.mxu0 0
        %4330 = vmatpush1.bf16.xpose.msra.mxu0 %v4307
        %4331 = vmatprep.subr.bf16.mxu0 0
        %4332 = vmatpush1.bf16.xpose.msra.mxu0 %v4310
        %4333 = vmatprep.subr.bf16.mxu0 0
        %4334 = vmatpush1.bf16.xpose.msra.mxu0 %v4313
        %4335 = vmatprep.subr.bf16.mxu0 0
        %4336 = vmatpush1.bf16.xpose.msra.mxu0 %v4316
        %4337 = vmatprep.subr.bf16.mxu0 0
        %4338 = vmatpush1.bf16.xpose.msra.mxu0 %v4319
        %4339 = vmatprep.subr.bf16.mxu0 0
        %4340 = vmatpush1.bf16.xpose.msra.mxu0 %v4322
        %4341 = vmatprep.subr.bf16.mxu0 0
        %4342 = vmatpush1.bf16.xpose.msra.mxu0 %v4325
        %4343 = vmatprep.subr.bf16.mxu0 0
        %4344 = vmatpush1.bf16.xpose.msra.mxu0 0
        %4345 = vmatprep.subr.bf16.mxu0 0
        %4346 = vmatpush1.bf16.xpose.msra.mxu0 0
        %4347 = vmatprep.subr.bf16.mxu0 0
        %4348 = vmatpush1.bf16.xpose.msra.mxu0 0
        %4349 = vmatprep.subr.bf16.mxu0 0
        %4350 = vmatpush1.bf16.xpose.msra.mxu0 0
        %4351 = vmatprep.subr.bf16.mxu0 0
        %4352 = vmatpush1.bf16.xpose.msra.mxu0 0
        %4353 = vmatprep.subr.bf16.mxu0 0
        %4354 = vmatpush1.bf16.xpose.msra.mxu0 0
        %4355 = vmatprep.subr.bf16.mxu0 0
        %4356 = vmatpush1.bf16.xpose.msra.mxu0 0
        %4357 = vmatprep.subr.bf16.mxu0 0
        %4358 = vmatpush1.bf16.xpose.msra.mxu0 0
        %4359 = vmatprep.mubr.bf16.mxu0 0
        %4360 = vmatmul.mubr.bf16.gmra.mrb[0].mxu0 %v4280
        %v4361 = vpop.f32.mrb[0].mxu0
        %v4362 = vadd.f32 0.0, %v4361
        %v4363 = vpop.f32.mrb[0].mxu0
        %v4364 = vpop.f32.mrb[0].mxu0
        %v4365 = vadd.f32 0.0, %v4364
        %v4366 = vpop.f32.mrb[0].mxu0
        %4367 = vmatprep.mubr.bf16.mxu0 0
        %4368 = vmatmul.mubr.bf16.gmra.mrb[0].mxu0 %v4283
        %v4369 = vpop.f32.mrb[0].mxu0
        %v4370 = vadd.f32 0.0, %v4369
        %v4371 = vpop.f32.mrb[0].mxu0
        %v4372 = vpop.f32.mrb[0].mxu0
        %v4373 = vadd.f32 0.0, %v4372
        %v4374 = vpop.f32.mrb[0].mxu0
        %4375 = vmatprep.mubr.bf16.mxu0 0
        %4376 = vmatmul.mubr.bf16.gmra.mrb[0].mxu0 %v4286
        %v4377 = vpop.f32.mrb[0].mxu0
        %v4378 = vadd.f32 0.0, %v4377
        %v4379 = vpop.f32.mrb[0].mxu0
        %v4380 = vpop.f32.mrb[0].mxu0
        %v4381 = vadd.f32 0.0, %v4380
        %v4382 = vpop.f32.mrb[0].mxu0
        %4383 = vmatprep.mubr.bf16.mxu0 0
        %4384 = vmatmul.mubr.bf16.gmra.mrb[0].mxu0 %v4289
        %v4385 = vpop.f32.mrb[0].mxu0
        %v4386 = vadd.f32 0.0, %v4385
        %v4387 = vpop.f32.mrb[0].mxu0
        %v4388 = vpop.f32.mrb[0].mxu0
        %v4389 = vadd.f32 0.0, %v4388
        %v4390 = vpop.f32.mrb[0].mxu0
        %4391 = vmatprep.mubr.bf16.mxu0 0
        %4392 = vmatmul.mubr.bf16.gmra.mrb[0].mxu0 %v4292
        %v4393 = vpop.f32.mrb[0].mxu0
        %v4394 = vadd.f32 0.0, %v4393
        %v4395 = vpop.f32.mrb[0].mxu0
        %v4396 = vpop.f32.mrb[0].mxu0
        %v4397 = vadd.f32 0.0, %v4396
        %v4398 = vpop.f32.mrb[0].mxu0
        %4399 = vmatprep.mubr.bf16.mxu0 0
        %4400 = vmatmul.mubr.bf16.gmra.mrb[0].mxu0 %v4295
        %v4401 = vpop.f32.mrb[0].mxu0
        %v4402 = vadd.f32 0.0, %v4401
        %v4403 = vpop.f32.mrb[0].mxu0
        %v4404 = vpop.f32.mrb[0].mxu0
        %v4405 = vadd.f32 0.0, %v4404
        %v4406 = vpop.f32.mrb[0].mxu0
        %4407 = vmatprep.mubr.bf16.mxu0 0
        %4408 = vmatmul.mubr.bf16.gmra.mrb[0].mxu0 %v4298
        %v4409 = vpop.f32.mrb[0].mxu0
        %v4410 = vadd.f32 0.0, %v4409
        %v4411 = vpop.f32.mrb[0].mxu0
        %v4412 = vpop.f32.mrb[0].mxu0
        %v4413 = vadd.f32 0.0, %v4412
        %v4414 = vpop.f32.mrb[0].mxu0
        %4415 = vmatprep.mubr.bf16.mxu0 0
        %4416 = vmatmul.mubr.bf16.gmra.mrb[0].mxu0 %v4301
        %v4417 = vpop.f32.mrb[0].mxu0
        %v4418 = vadd.f32 0.0, %v4417
        %v4419 = vpop.f32.mrb[0].mxu0
        %v4420 = vpop.f32.mrb[0].mxu0
        %v4421 = vadd.f32 0.0, %v4420
        %v4422 = vpop.f32.mrb[0].mxu0
        %4423 = vdwg.mxu0
        %v4424 = vsel %vm1207, %v4362, -inf
        %v4425 = vsel %vm1208, %v4365, -inf
        %v4426 = vsel %vm1209, %v4370, -inf
        %v4427 = vsel %vm1210, %v4373, -inf
        %v4428 = vsel %vm1211, %v4378, -inf
        %v4429 = vsel %vm1212, %v4381, -inf
        %v4430 = vsel %vm1213, %v4386, -inf
        %v4431 = vsel %vm1214, %v4389, -inf
        %v4432 = vsel %vm1215, %v4394, -inf
        %v4433 = vsel %vm1216, %v4397, -inf
        %v4434 = vsel %vm1217, %v4402, -inf
        %v4435 = vsel %vm1218, %v4405, -inf
        %v4436 = vsel %vm1219, %v4410, -inf
        %v4437 = vsel %vm1220, %v4413, -inf
        %v4438 = vsel %vm1221, %v4418, -inf
        %v4439 = vsel %vm1222, %v4421, -inf
        %4440 = vmax.xlane.f32.xlu0 %v4424
        %v4441 = vpop.xlane.xlu0 %4440
        %4442 = vmax.xlane.f32.xlu0 %v4425
        %v4443 = vpop.xlane.xlu0 %4442
        %4444 = vmax.xlane.f32.xlu0 %v4426
        %v4445 = vpop.xlane.xlu0 %4444
        %4446 = vmax.xlane.f32.xlu0 %v4427
        %v4447 = vpop.xlane.xlu0 %4446
        %4448 = vmax.xlane.f32.xlu0 %v4428
        %v4449 = vpop.xlane.xlu0 %4448
        %4450 = vmax.xlane.f32.xlu0 %v4429
        %v4451 = vpop.xlane.xlu0 %4450
        %4452 = vmax.xlane.f32.xlu0 %v4430
        %v4453 = vpop.xlane.xlu0 %4452
        %4454 = vmax.xlane.f32.xlu0 %v4431
        %v4455 = vpop.xlane.xlu0 %4454
        %4456 = vmax.xlane.f32.xlu0 %v4432
        %v4457 = vpop.xlane.xlu0 %4456
        %4458 = vmax.xlane.f32.xlu0 %v4433
        %v4459 = vpop.xlane.xlu0 %4458
        %4460 = vmax.xlane.f32.xlu0 %v4434
        %v4461 = vpop.xlane.xlu0 %4460
        %4462 = vmax.xlane.f32.xlu0 %v4435
        %v4463 = vpop.xlane.xlu0 %4462
        %4464 = vmax.xlane.f32.xlu0 %v4436
        %v4465 = vpop.xlane.xlu0 %4464
        %4466 = vmax.xlane.f32.xlu0 %v4437
        %v4467 = vpop.xlane.xlu0 %4466
        %4468 = vmax.xlane.f32.xlu0 %v4438
        %v4469 = vpop.xlane.xlu0 %4468
        %4470 = vmax.xlane.f32.xlu0 %v4439
        %v4471 = vpop.xlane.xlu0 %4470
        %v4472 = vsub.f32 %v4424, %v4441
        %v4473 = vsub.f32 %v4425, %v4443
        %v4474 = vsub.f32 %v4426, %v4445
        %v4475 = vsub.f32 %v4427, %v4447
        %v4476 = vsub.f32 %v4428, %v4449
        %v4477 = vsub.f32 %v4429, %v4451
        %v4478 = vsub.f32 %v4430, %v4453
        %v4479 = vsub.f32 %v4431, %v4455
        %v4480 = vsub.f32 %v4432, %v4457
        %v4481 = vsub.f32 %v4433, %v4459
        %v4482 = vsub.f32 %v4434, %v4461
        %v4483 = vsub.f32 %v4435, %v4463
        %v4484 = vsub.f32 %v4436, %v4465
        %v4485 = vsub.f32 %v4437, %v4467
        %v4486 = vsub.f32 %v4438, %v4469
        %v4487 = vsub.f32 %v4439, %v4471
        %v4488 = vmul.f32 %v4472, 1.442695
        %v4489 = vpow.pop %v4488
        %v4490 = vmul.f32 %v4473, 1.442695
        %v4491 = vpow.pop %v4490
        %v4492 = vmul.f32 %v4474, 1.442695
        %v4493 = vpow.pop %v4492
        %v4494 = vmul.f32 %v4475, 1.442695
        %v4495 = vpow.pop %v4494
        %v4496 = vmul.f32 %v4476, 1.442695
        %v4497 = vpow.pop %v4496
        %v4498 = vmul.f32 %v4477, 1.442695
        %v4499 = vpow.pop %v4498
        %v4500 = vmul.f32 %v4478, 1.442695
        %v4501 = vpow.pop %v4500
        %v4502 = vmul.f32 %v4479, 1.442695
        %v4503 = vpow.pop %v4502
        %v4504 = vmul.f32 %v4480, 1.442695
        %v4505 = vpow.pop %v4504
        %v4506 = vmul.f32 %v4481, 1.442695
        %v4507 = vpow.pop %v4506
        %v4508 = vmul.f32 %v4482, 1.442695
        %v4509 = vpow.pop %v4508
        %v4510 = vmul.f32 %v4483, 1.442695
        %v4511 = vpow.pop %v4510
        %v4512 = vmul.f32 %v4484, 1.442695
        %v4513 = vpow.pop %v4512
        %v4514 = vmul.f32 %v4485, 1.442695
        %v4515 = vpow.pop %v4514
        %v4516 = vmul.f32 %v4486, 1.442695
        %v4517 = vpow.pop %v4516
        %v4518 = vmul.f32 %v4487, 1.442695
        %v4519 = vpow.pop %v4518
        %4520 = vadd.xlane.f32.xlu0 %v4489
        %v4521 = vpop.xlane.xlu0 %4520
        %4522 = vadd.xlane.f32.xlu0 %v4491
        %v4523 = vpop.xlane.xlu0 %4522
        %4524 = vadd.xlane.f32.xlu0 %v4493
        %v4525 = vpop.xlane.xlu0 %4524
        %4526 = vadd.xlane.f32.xlu0 %v4495
        %v4527 = vpop.xlane.xlu0 %4526
        %4528 = vadd.xlane.f32.xlu0 %v4497
        %v4529 = vpop.xlane.xlu0 %4528
        %4530 = vadd.xlane.f32.xlu0 %v4499
        %v4531 = vpop.xlane.xlu0 %4530
        %4532 = vadd.xlane.f32.xlu0 %v4501
        %v4533 = vpop.xlane.xlu0 %4532
        %4534 = vadd.xlane.f32.xlu0 %v4503
        %v4535 = vpop.xlane.xlu0 %4534
        %4536 = vadd.xlane.f32.xlu0 %v4505
        %v4537 = vpop.xlane.xlu0 %4536
        %4538 = vadd.xlane.f32.xlu0 %v4507
        %v4539 = vpop.xlane.xlu0 %4538
        %4540 = vadd.xlane.f32.xlu0 %v4509
        %v4541 = vpop.xlane.xlu0 %4540
        %4542 = vadd.xlane.f32.xlu0 %v4511
        %v4543 = vpop.xlane.xlu0 %4542
        %4544 = vadd.xlane.f32.xlu0 %v4513
        %v4545 = vpop.xlane.xlu0 %4544
        %4546 = vadd.xlane.f32.xlu0 %v4515
        %v4547 = vpop.xlane.xlu0 %4546
        %4548 = vadd.xlane.f32.xlu0 %v4517
        %v4549 = vpop.xlane.xlu0 %4548
        %4550 = vadd.xlane.f32.xlu0 %v4519
        %v4551 = vpop.xlane.xlu0 %4550
        %v4552 = vrcp.pop %v4521
        %v4553 = vrcp.pop %v4523
        %v4554 = vrcp.pop %v4525
        %v4555 = vrcp.pop %v4527
        %v4556 = vrcp.pop %v4529
        %v4557 = vrcp.pop %v4531
        %v4558 = vrcp.pop %v4533
        %v4559 = vrcp.pop %v4535
        %v4560 = vrcp.pop %v4537
        %v4561 = vrcp.pop %v4539
        %v4562 = vrcp.pop %v4541
        %v4563 = vrcp.pop %v4543
        %v4564 = vrcp.pop %v4545
        %v4565 = vrcp.pop %v4547
        %v4566 = vrcp.pop %v4549
        %v4567 = vrcp.pop %v4551
        %v4568 = vld [vmem:[#allocation8 + $0x28] sm:$0xf]
        %v4569 = vld [vmem:[#allocation8 + $0x2c] sm:$0xf]
        %4570 = vrot.lane.b32.xlu0 %v1239, 48
        %v4571 = vpop.permute.xlu0 %4570
        %4572 = vrot.lane.b32.xlu0 %v1240, 48
        %v4573 = vpop.permute.xlu0 %4572
        %4574 = vrot.lane.b32.xlu0 %v1241, 48
        %v4575 = vpop.permute.xlu0 %4574
        %4576 = vrot.lane.b32.xlu0 %v1242, 48
        %v4577 = vpop.permute.xlu0 %4576
        %4578 = vrot.lane.b32.xlu0 %v1243, 48
        %v4579 = vpop.permute.xlu0 %4578
        %4580 = vrot.lane.b32.xlu0 %v1244, 48
        %v4581 = vpop.permute.xlu0 %4580
        %4582 = vrot.lane.b32.xlu0 %v1245, 48
        %v4583 = vpop.permute.xlu0 %4582
        %4584 = vrot.lane.b32.xlu0 %v1246, 48
        %v4585 = vpop.permute.xlu0 %4584
        %v4588 = vunpack.c.l.b16 %v4568
        %v4589 = vunpack.c.l.b16 %v4569
        %v4590 = vpack.c.b16 %v4589, %v4588
        %v4593 = vsel %vm1247, %v4571, 0
        %v4596 = vsel %vm1247, %v4573, 0
        %v4599 = vsel %vm1247, %v4575, 0
        %v4602 = vsel %vm1247, %v4577, 0
        %v4605 = vsel %vm1247, %v4579, 0
        %v4608 = vsel %vm1247, %v4581, 0
        %v4611 = vsel %vm1247, %v4583, 0
        %v4614 = vsel %vm1247, %v4585, 0
        %4616 = vmatprep.subr.bf16.mxu0 0
        %4617 = vmatpush1.bf16.msra.mxu0 %v4590
        %4618 = vmatprep.subr.bf16.mxu0 0
        %4619 = vmatpush1.bf16.msra.mxu0 0
        %4620 = vmatprep.subr.bf16.mxu0 0
        %4621 = vmatpush1.bf16.msra.mxu0 0
        %4622 = vmatprep.subr.bf16.mxu0 0
        %4623 = vmatpush1.bf16.msra.mxu0 0
        %4624 = vmatprep.subr.bf16.mxu0 0
        %4625 = vmatpush1.bf16.msra.mxu0 0
        %4626 = vmatprep.subr.bf16.mxu0 0
        %4627 = vmatpush1.bf16.msra.mxu0 0
        %4628 = vmatprep.subr.bf16.mxu0 0
        %4629 = vmatpush1.bf16.msra.mxu0 0
        %4630 = vmatprep.subr.bf16.mxu0 0
        %4631 = vmatpush1.bf16.msra.mxu0 0
        %4632 = vmatprep.subr.bf16.mxu0 0
        %4633 = vmatpush1.bf16.msra.mxu0 0
        %4634 = vmatprep.subr.bf16.mxu0 0
        %4635 = vmatpush1.bf16.msra.mxu0 0
        %4636 = vmatprep.subr.bf16.mxu0 0
        %4637 = vmatpush1.bf16.msra.mxu0 0
        %4638 = vmatprep.subr.bf16.mxu0 0
        %4639 = vmatpush1.bf16.msra.mxu0 0
        %4640 = vmatprep.subr.bf16.mxu0 0
        %4641 = vmatpush1.bf16.msra.mxu0 0
        %4642 = vmatprep.subr.bf16.mxu0 0
        %4643 = vmatpush1.bf16.msra.mxu0 0
        %4644 = vmatprep.subr.bf16.mxu0 0
        %4645 = vmatpush1.bf16.msra.mxu0 0
        %4646 = vmatprep.subr.bf16.mxu0 0
        %4647 = vmatpush1.bf16.msra.mxu0 0
        %4648 = vmatprep.mubr.bf16.mxu0 0
        %4649 = vmatmul.mubr.bf16.gmra.mrb[0].mxu0 %v4593
        %v4650 = vpop.f32.mrb[0].mxu0
        %v4651 = vadd.f32 0.0, %v4650
        %v4652 = vpop.f32.mrb[0].mxu0
        %v4653 = vpop.f32.mrb[0].mxu0
        %v4654 = vadd.f32 0.0, %v4653
        %v4655 = vpop.f32.mrb[0].mxu0
        %4656 = vmatprep.mubr.bf16.mxu0 0
        %4657 = vmatmul.mubr.bf16.gmra.mrb[0].mxu0 %v4596
        %v4658 = vpop.f32.mrb[0].mxu0
        %v4659 = vadd.f32 0.0, %v4658
        %v4660 = vpop.f32.mrb[0].mxu0
        %v4661 = vpop.f32.mrb[0].mxu0
        %v4662 = vadd.f32 0.0, %v4661
        %v4663 = vpop.f32.mrb[0].mxu0
        %4664 = vmatprep.mubr.bf16.mxu0 0
        %4665 = vmatmul.mubr.bf16.gmra.mrb[0].mxu0 %v4599
        %v4666 = vpop.f32.mrb[0].mxu0
        %v4667 = vadd.f32 0.0, %v4666
        %v4668 = vpop.f32.mrb[0].mxu0
        %v4669 = vpop.f32.mrb[0].mxu0
        %v4670 = vadd.f32 0.0, %v4669
        %v4671 = vpop.f32.mrb[0].mxu0
        %4672 = vmatprep.mubr.bf16.mxu0 0
        %4673 = vmatmul.mubr.bf16.gmra.mrb[0].mxu0 %v4602
        %v4674 = vpop.f32.mrb[0].mxu0
        %v4675 = vadd.f32 0.0, %v4674
        %v4676 = vpop.f32.mrb[0].mxu0
        %v4677 = vpop.f32.mrb[0].mxu0
        %v4678 = vadd.f32 0.0, %v4677
        %v4679 = vpop.f32.mrb[0].mxu0
        %4680 = vmatprep.mubr.bf16.mxu0 0
        %4681 = vmatmul.mubr.bf16.gmra.mrb[0].mxu0 %v4605
        %v4682 = vpop.f32.mrb[0].mxu0
        %v4683 = vadd.f32 0.0, %v4682
        %v4684 = vpop.f32.mrb[0].mxu0
        %v4685 = vpop.f32.mrb[0].mxu0
        %v4686 = vadd.f32 0.0, %v4685
        %v4687 = vpop.f32.mrb[0].mxu0
        %4688 = vmatprep.mubr.bf16.mxu0 0
        %4689 = vmatmul.mubr.bf16.gmra.mrb[0].mxu0 %v4608
        %v4690 = vpop.f32.mrb[0].mxu0
        %v4691 = vadd.f32 0.0, %v4690
        %v4692 = vpop.f32.mrb[0].mxu0
        %v4693 = vpop.f32.mrb[0].mxu0
        %v4694 = vadd.f32 0.0, %v4693
        %v4695 = vpop.f32.mrb[0].mxu0
        %4696 = vmatprep.mubr.bf16.mxu0 0
        %4697 = vmatmul.mubr.bf16.gmra.mrb[0].mxu0 %v4611
        %v4698 = vpop.f32.mrb[0].mxu0
        %v4699 = vadd.f32 0.0, %v4698
        %v4700 = vpop.f32.mrb[0].mxu0
        %v4701 = vpop.f32.mrb[0].mxu0
        %v4702 = vadd.f32 0.0, %v4701
        %v4703 = vpop.f32.mrb[0].mxu0
        %4704 = vmatprep.mubr.bf16.mxu0 0
        %4705 = vmatmul.mubr.bf16.gmra.mrb[0].mxu0 %v4614
        %v4706 = vpop.f32.mrb[0].mxu0
        %v4707 = vadd.f32 0.0, %v4706
        %v4708 = vpop.f32.mrb[0].mxu0
        %v4709 = vpop.f32.mrb[0].mxu0
        %v4710 = vadd.f32 0.0, %v4709
        %v4711 = vpop.f32.mrb[0].mxu0
        %4712 = vdwg.mxu0
        %v4713 = vpack.c.bf16 %v4654, %v4651
        %v4714 = vpack.c.bf16 %v4662, %v4659
        %v4715 = vpack.c.bf16 %v4670, %v4667
        %v4716 = vpack.c.bf16 %v4678, %v4675
        %v4717 = vpack.c.bf16 %v4686, %v4683
        %v4718 = vpack.c.bf16 %v4694, %v4691
        %v4719 = vpack.c.bf16 %v4702, %v4699
        %v4720 = vpack.c.bf16 %v4710, %v4707
        %v4721 = vmul.f32 %v4489, %v4552
        %v4722 = vmul.f32 %v4491, %v4553
        %v4723 = vmul.f32 %v4493, %v4554
        %v4724 = vmul.f32 %v4495, %v4555
        %v4725 = vmul.f32 %v4497, %v4556
        %v4726 = vmul.f32 %v4499, %v4557
        %v4727 = vmul.f32 %v4501, %v4558
        %v4728 = vmul.f32 %v4503, %v4559
        %v4729 = vmul.f32 %v4505, %v4560
        %v4730 = vmul.f32 %v4507, %v4561
        %v4731 = vmul.f32 %v4509, %v4562
        %v4732 = vmul.f32 %v4511, %v4563
        %v4733 = vmul.f32 %v4513, %v4564
        %v4734 = vmul.f32 %v4515, %v4565
        %v4735 = vmul.f32 %v4517, %v4566
        %v4736 = vmul.f32 %v4519, %v4567
        %v4737 = vpack.c.bf16 %v4722, %v4721
        %v4738 = vpack.c.bf16 %v4724, %v4723
        %v4739 = vpack.c.bf16 %v4726, %v4725
        %v4740 = vpack.c.bf16 %v4728, %v4727
        %v4741 = vpack.c.bf16 %v4730, %v4729
        %v4742 = vpack.c.bf16 %v4732, %v4731
        %v4743 = vpack.c.bf16 %v4734, %v4733
        %v4744 = vpack.c.bf16 %v4736, %v4735
        %4745 = vmatprep.subr.bf16.mxu0 0
        %4746 = vmatpush1.bf16.msra.mxu0 %v4713
        %4747 = vmatprep.subr.bf16.mxu0 0
        %4748 = vmatpush1.bf16.msra.mxu0 %v4714
        %4749 = vmatprep.subr.bf16.mxu0 0
        %4750 = vmatpush1.bf16.msra.mxu0 %v4715
        %4751 = vmatprep.subr.bf16.mxu0 0
        %4752 = vmatpush1.bf16.msra.mxu0 %v4716
        %4753 = vmatprep.subr.bf16.mxu0 0
        %4754 = vmatpush1.bf16.msra.mxu0 %v4717
        %4755 = vmatprep.subr.bf16.mxu0 0
        %4756 = vmatpush1.bf16.msra.mxu0 %v4718
        %4757 = vmatprep.subr.bf16.mxu0 0
        %4758 = vmatpush1.bf16.msra.mxu0 %v4719
        %4759 = vmatprep.subr.bf16.mxu0 0
        %4760 = vmatpush1.bf16.msra.mxu0 %v4720
        %4761 = vmatprep.subr.bf16.mxu0 0
        %4762 = vmatpush1.bf16.msra.mxu0 0
        %4763 = vmatprep.subr.bf16.mxu0 0
        %4764 = vmatpush1.bf16.msra.mxu0 0
        %4765 = vmatprep.subr.bf16.mxu0 0
        %4766 = vmatpush1.bf16.msra.mxu0 0
        %4767 = vmatprep.subr.bf16.mxu0 0
        %4768 = vmatpush1.bf16.msra.mxu0 0
        %4769 = vmatprep.subr.bf16.mxu0 0
        %4770 = vmatpush1.bf16.msra.mxu0 0
        %4771 = vmatprep.subr.bf16.mxu0 0
        %4772 = vmatpush1.bf16.msra.mxu0 0
        %4773 = vmatprep.subr.bf16.mxu0 0
        %4774 = vmatpush1.bf16.msra.mxu0 0
        %4775 = vmatprep.subr.bf16.mxu0 0
        %4776 = vmatpush1.bf16.msra.mxu0 0
        %4777 = vmatprep.mubr.bf16.mxu0 0
        %4778 = vmatmul.mubr.bf16.gmra.mrb[0].mxu0 %v4737
        %v4779 = vpop.f32.mrb[0].mxu0
        %v4780 = vadd.f32 0.0, %v4779
        %v4781 = vpop.f32.mrb[0].mxu0
        %v4782 = vpop.f32.mrb[0].mxu0
        %v4783 = vadd.f32 0.0, %v4782
        %v4784 = vpop.f32.mrb[0].mxu0
        %4785 = vmatprep.mubr.bf16.mxu0 0
        %4786 = vmatmul.mubr.bf16.gmra.mrb[0].mxu0 %v4738
        %v4787 = vpop.f32.mrb[0].mxu0
        %v4788 = vadd.f32 0.0, %v4787
        %v4789 = vpop.f32.mrb[0].mxu0
        %v4790 = vpop.f32.mrb[0].mxu0
        %v4791 = vadd.f32 0.0, %v4790
        %v4792 = vpop.f32.mrb[0].mxu0
        %4793 = vmatprep.mubr.bf16.mxu0 0
        %4794 = vmatmul.mubr.bf16.gmra.mrb[0].mxu0 %v4739
        %v4795 = vpop.f32.mrb[0].mxu0
        %v4796 = vadd.f32 0.0, %v4795
        %v4797 = vpop.f32.mrb[0].mxu0
        %v4798 = vpop.f32.mrb[0].mxu0
        %v4799 = vadd.f32 0.0, %v4798
        %v4800 = vpop.f32.mrb[0].mxu0
        %4801 = vmatprep.mubr.bf16.mxu0 0
        %4802 = vmatmul.mubr.bf16.gmra.mrb[0].mxu0 %v4740
        %v4803 = vpop.f32.mrb[0].mxu0
        %v4804 = vadd.f32 0.0, %v4803
        %v4805 = vpop.f32.mrb[0].mxu0
        %v4806 = vpop.f32.mrb[0].mxu0
        %v4807 = vadd.f32 0.0, %v4806
        %v4808 = vpop.f32.mrb[0].mxu0
        %4809 = vmatprep.mubr.bf16.mxu0 0
        %4810 = vmatmul.mubr.bf16.gmra.mrb[0].mxu0 %v4741
        %v4811 = vpop.f32.mrb[0].mxu0
        %v4812 = vadd.f32 0.0, %v4811
        %v4813 = vpop.f32.mrb[0].mxu0
        %v4814 = vpop.f32.mrb[0].mxu0
        %v4815 = vadd.f32 0.0, %v4814
        %v4816 = vpop.f32.mrb[0].mxu0
        %4817 = vmatprep.mubr.bf16.mxu0 0
        %4818 = vmatmul.mubr.bf16.gmra.mrb[0].mxu0 %v4742
        %v4819 = vpop.f32.mrb[0].mxu0
        %v4820 = vadd.f32 0.0, %v4819
        %v4821 = vpop.f32.mrb[0].mxu0
        %v4822 = vpop.f32.mrb[0].mxu0
        %v4823 = vadd.f32 0.0, %v4822
        %v4824 = vpop.f32.mrb[0].mxu0
        %4825 = vmatprep.mubr.bf16.mxu0 0
        %4826 = vmatmul.mubr.bf16.gmra.mrb[0].mxu0 %v4743
        %v4827 = vpop.f32.mrb[0].mxu0
        %v4828 = vadd.f32 0.0, %v4827
        %v4829 = vpop.f32.mrb[0].mxu0
        %v4830 = vpop.f32.mrb[0].mxu0
        %v4831 = vadd.f32 0.0, %v4830
        %v4832 = vpop.f32.mrb[0].mxu0
        %4833 = vmatprep.mubr.bf16.mxu0 0
        %4834 = vmatmul.mubr.bf16.gmra.mrb[0].mxu0 %v4744
        %v4835 = vpop.f32.mrb[0].mxu0
        %v4836 = vadd.f32 0.0, %v4835
        %v4837 = vpop.f32.mrb[0].mxu0
        %v4838 = vpop.f32.mrb[0].mxu0
        %v4839 = vadd.f32 0.0, %v4838
        %v4840 = vpop.f32.mrb[0].mxu0
        %4841 = vdwg.mxu0
        %v4842 = vadd.f32 %v4231, %v4780
        %v4843 = vadd.f32 %v4232, %v4783
        %v4844 = vadd.f32 %v4233, %v4788
        %v4845 = vadd.f32 %v4234, %v4791
        %v4846 = vadd.f32 %v4235, %v4796
        %v4847 = vadd.f32 %v4236, %v4799
        %v4848 = vadd.f32 %v4237, %v4804
        %v4849 = vadd.f32 %v4238, %v4807
        %v4850 = vadd.f32 %v4239, %v4812
        %v4851 = vadd.f32 %v4240, %v4815
        %v4852 = vadd.f32 %v4241, %v4820
        %v4853 = vadd.f32 %v4242, %v4823
        %v4854 = vadd.f32 %v4243, %v4828
        %v4855 = vadd.f32 %v4244, %v4831
        %v4856 = vadd.f32 %v4245, %v4836
        %v4857 = vadd.f32 %v4246, %v4839
        %4858 = vrot.lane.b32.xlu0 %v1223, 32
        %v4859 = vpop.permute.xlu0 %4858
        %4860 = vrot.lane.b32.xlu0 %v1224, 32
        %v4861 = vpop.permute.xlu0 %4860
        %4862 = vrot.lane.b32.xlu0 %v1225, 32
        %v4863 = vpop.permute.xlu0 %4862
        %4864 = vrot.lane.b32.xlu0 %v1226, 32
        %v4865 = vpop.permute.xlu0 %4864
        %4866 = vrot.lane.b32.xlu0 %v1227, 32
        %v4867 = vpop.permute.xlu0 %4866
        %4868 = vrot.lane.b32.xlu0 %v1228, 32
        %v4869 = vpop.permute.xlu0 %4868
        %4870 = vrot.lane.b32.xlu0 %v1229, 32
        %v4871 = vpop.permute.xlu0 %4870
        %4872 = vrot.lane.b32.xlu0 %v1230, 32
        %v4873 = vpop.permute.xlu0 %4872
        %4874 = vrot.lane.b32.xlu0 %v1231, 32
        %v4875 = vpop.permute.xlu0 %4874
        %4876 = vrot.lane.b32.xlu0 %v1232, 32
        %v4877 = vpop.permute.xlu0 %4876
        %4878 = vrot.lane.b32.xlu0 %v1233, 32
        %v4879 = vpop.permute.xlu0 %4878
        %4880 = vrot.lane.b32.xlu0 %v1234, 32
        %v4881 = vpop.permute.xlu0 %4880
        %4882 = vrot.lane.b32.xlu0 %v1235, 32
        %v4883 = vpop.permute.xlu0 %4882
        %4884 = vrot.lane.b32.xlu0 %v1236, 32
        %v4885 = vpop.permute.xlu0 %4884
        %4886 = vrot.lane.b32.xlu0 %v1237, 32
        %v4887 = vpop.permute.xlu0 %4886
        %4888 = vrot.lane.b32.xlu0 %v1238, 32
        %v4889 = vpop.permute.xlu0 %4888
        %v4891 = vsel %vm1247, %v4859, 0
        %v4894 = vsel %vm1247, %v4861, 0
        %v4897 = vsel %vm1247, %v4863, 0
        %v4900 = vsel %vm1247, %v4865, 0
        %v4903 = vsel %vm1247, %v4867, 0
        %v4906 = vsel %vm1247, %v4869, 0
        %v4909 = vsel %vm1247, %v4871, 0
        %v4912 = vsel %vm1247, %v4873, 0
        %v4915 = vsel %vm1247, %v4875, 0
        %v4918 = vsel %vm1247, %v4877, 0
        %v4921 = vsel %vm1247, %v4879, 0
        %v4924 = vsel %vm1247, %v4881, 0
        %v4927 = vsel %vm1247, %v4883, 0
        %v4930 = vsel %vm1247, %v4885, 0
        %v4933 = vsel %vm1247, %v4887, 0
        %v4936 = vsel %vm1247, %v4889, 0
        %4938 = vmatprep.subr.bf16.mxu0 0
        %4939 = vmatpush1.bf16.xpose.msra.mxu0 %v4915
        %4940 = vmatprep.subr.bf16.mxu0 0
        %4941 = vmatpush1.bf16.xpose.msra.mxu0 %v4918
        %4942 = vmatprep.subr.bf16.mxu0 0
        %4943 = vmatpush1.bf16.xpose.msra.mxu0 %v4921
        %4944 = vmatprep.subr.bf16.mxu0 0
        %4945 = vmatpush1.bf16.xpose.msra.mxu0 %v4924
        %4946 = vmatprep.subr.bf16.mxu0 0
        %4947 = vmatpush1.bf16.xpose.msra.mxu0 %v4927
        %4948 = vmatprep.subr.bf16.mxu0 0
        %4949 = vmatpush1.bf16.xpose.msra.mxu0 %v4930
        %4950 = vmatprep.subr.bf16.mxu0 0
        %4951 = vmatpush1.bf16.xpose.msra.mxu0 %v4933
        %4952 = vmatprep.subr.bf16.mxu0 0
        %4953 = vmatpush1.bf16.xpose.msra.mxu0 %v4936
        %4954 = vmatprep.subr.bf16.mxu0 0
        %4955 = vmatpush1.bf16.xpose.msra.mxu0 0
        %4956 = vmatprep.subr.bf16.mxu0 0
        %4957 = vmatpush1.bf16.xpose.msra.mxu0 0
        %4958 = vmatprep.subr.bf16.mxu0 0
        %4959 = vmatpush1.bf16.xpose.msra.mxu0 0
        %4960 = vmatprep.subr.bf16.mxu0 0
        %4961 = vmatpush1.bf16.xpose.msra.mxu0 0
        %4962 = vmatprep.subr.bf16.mxu0 0
        %4963 = vmatpush1.bf16.xpose.msra.mxu0 0
        %4964 = vmatprep.subr.bf16.mxu0 0
        %4965 = vmatpush1.bf16.xpose.msra.mxu0 0
        %4966 = vmatprep.subr.bf16.mxu0 0
        %4967 = vmatpush1.bf16.xpose.msra.mxu0 0
        %4968 = vmatprep.subr.bf16.mxu0 0
        %4969 = vmatpush1.bf16.xpose.msra.mxu0 0
        %4970 = vmatprep.mubr.bf16.mxu0 0
        %4971 = vmatmul.mubr.bf16.gmra.mrb[0].mxu0 %v4891
        %v4972 = vpop.f32.mrb[0].mxu0
        %v4973 = vadd.f32 0.0, %v4972
        %v4974 = vpop.f32.mrb[0].mxu0
        %v4975 = vpop.f32.mrb[0].mxu0
        %v4976 = vadd.f32 0.0, %v4975
        %v4977 = vpop.f32.mrb[0].mxu0
        %4978 = vmatprep.mubr.bf16.mxu0 0
        %4979 = vmatmul.mubr.bf16.gmra.mrb[0].mxu0 %v4894
        %v4980 = vpop.f32.mrb[0].mxu0
        %v4981 = vadd.f32 0.0, %v4980
        %v4982 = vpop.f32.mrb[0].mxu0
        %v4983 = vpop.f32.mrb[0].mxu0
        %v4984 = vadd.f32 0.0, %v4983
        %v4985 = vpop.f32.mrb[0].mxu0
        %4986 = vmatprep.mubr.bf16.mxu0 0
        %4987 = vmatmul.mubr.bf16.gmra.mrb[0].mxu0 %v4897
        %v4988 = vpop.f32.mrb[0].mxu0
        %v4989 = vadd.f32 0.0, %v4988
        %v4990 = vpop.f32.mrb[0].mxu0
        %v4991 = vpop.f32.mrb[0].mxu0
        %v4992 = vadd.f32 0.0, %v4991
        %v4993 = vpop.f32.mrb[0].mxu0
        %4994 = vmatprep.mubr.bf16.mxu0 0
        %4995 = vmatmul.mubr.bf16.gmra.mrb[0].mxu0 %v4900
        %v4996 = vpop.f32.mrb[0].mxu0
        %v4997 = vadd.f32 0.0, %v4996
        %v4998 = vpop.f32.mrb[0].mxu0
        %v4999 = vpop.f32.mrb[0].mxu0
        %v5000 = vadd.f32 0.0, %v4999
        %v5001 = vpop.f32.mrb[0].mxu0
        %5002 = vmatprep.mubr.bf16.mxu0 0
        %5003 = vmatmul.mubr.bf16.gmra.mrb[0].mxu0 %v4903
        %v5004 = vpop.f32.mrb[0].mxu0
        %v5005 = vadd.f32 0.0, %v5004
        %v5006 = vpop.f32.mrb[0].mxu0
        %v5007 = vpop.f32.mrb[0].mxu0
        %v5008 = vadd.f32 0.0, %v5007
        %v5009 = vpop.f32.mrb[0].mxu0
        %5010 = vmatprep.mubr.bf16.mxu0 0
        %5011 = vmatmul.mubr.bf16.gmra.mrb[0].mxu0 %v4906
        %v5012 = vpop.f32.mrb[0].mxu0
        %v5013 = vadd.f32 0.0, %v5012
        %v5014 = vpop.f32.mrb[0].mxu0
        %v5015 = vpop.f32.mrb[0].mxu0
        %v5016 = vadd.f32 0.0, %v5015
        %v5017 = vpop.f32.mrb[0].mxu0
        %5018 = vmatprep.mubr.bf16.mxu0 0
        %5019 = vmatmul.mubr.bf16.gmra.mrb[0].mxu0 %v4909
        %v5020 = vpop.f32.mrb[0].mxu0
        %v5021 = vadd.f32 0.0, %v5020
        %v5022 = vpop.f32.mrb[0].mxu0
        %v5023 = vpop.f32.mrb[0].mxu0
        %v5024 = vadd.f32 0.0, %v5023
        %v5025 = vpop.f32.mrb[0].mxu0
        %5026 = vmatprep.mubr.bf16.mxu0 0
        %5027 = vmatmul.mubr.bf16.gmra.mrb[0].mxu0 %v4912
        %v5028 = vpop.f32.mrb[0].mxu0
        %v5029 = vadd.f32 0.0, %v5028
        %v5030 = vpop.f32.mrb[0].mxu0
        %v5031 = vpop.f32.mrb[0].mxu0
        %v5032 = vadd.f32 0.0, %v5031
        %v5033 = vpop.f32.mrb[0].mxu0
        %5034 = vdwg.mxu0
        %v5035 = vsel %vm1207, %v4973, -inf
        %v5036 = vsel %vm1208, %v4976, -inf
        %v5037 = vsel %vm1209, %v4981, -inf
        %v5038 = vsel %vm1210, %v4984, -inf
        %v5039 = vsel %vm1211, %v4989, -inf
        %v5040 = vsel %vm1212, %v4992, -inf
        %v5041 = vsel %vm1213, %v4997, -inf
        %v5042 = vsel %vm1214, %v5000, -inf
        %v5043 = vsel %vm1215, %v5005, -inf
        %v5044 = vsel %vm1216, %v5008, -inf
        %v5045 = vsel %vm1217, %v5013, -inf
        %v5046 = vsel %vm1218, %v5016, -inf
        %v5047 = vsel %vm1219, %v5021, -inf
        %v5048 = vsel %vm1220, %v5024, -inf
        %v5049 = vsel %vm1221, %v5029, -inf
        %v5050 = vsel %vm1222, %v5032, -inf
        %5051 = vmax.xlane.f32.xlu0 %v5035
        %v5052 = vpop.xlane.xlu0 %5051
        %5053 = vmax.xlane.f32.xlu0 %v5036
        %v5054 = vpop.xlane.xlu0 %5053
        %5055 = vmax.xlane.f32.xlu0 %v5037
        %v5056 = vpop.xlane.xlu0 %5055
        %5057 = vmax.xlane.f32.xlu0 %v5038
        %v5058 = vpop.xlane.xlu0 %5057
        %5059 = vmax.xlane.f32.xlu0 %v5039
        %v5060 = vpop.xlane.xlu0 %5059
        %5061 = vmax.xlane.f32.xlu0 %v5040
        %v5062 = vpop.xlane.xlu0 %5061
        %5063 = vmax.xlane.f32.xlu0 %v5041
        %v5064 = vpop.xlane.xlu0 %5063
        %5065 = vmax.xlane.f32.xlu0 %v5042
        %v5066 = vpop.xlane.xlu0 %5065
        %5067 = vmax.xlane.f32.xlu0 %v5043
        %v5068 = vpop.xlane.xlu0 %5067
        %5069 = vmax.xlane.f32.xlu0 %v5044
        %v5070 = vpop.xlane.xlu0 %5069
        %5071 = vmax.xlane.f32.xlu0 %v5045
        %v5072 = vpop.xlane.xlu0 %5071
        %5073 = vmax.xlane.f32.xlu0 %v5046
        %v5074 = vpop.xlane.xlu0 %5073
        %5075 = vmax.xlane.f32.xlu0 %v5047
        %v5076 = vpop.xlane.xlu0 %5075
        %5077 = vmax.xlane.f32.xlu0 %v5048
        %v5078 = vpop.xlane.xlu0 %5077
        %5079 = vmax.xlane.f32.xlu0 %v5049
        %v5080 = vpop.xlane.xlu0 %5079
        %5081 = vmax.xlane.f32.xlu0 %v5050
        %v5082 = vpop.xlane.xlu0 %5081
        %v5083 = vsub.f32 %v5035, %v5052
        %v5084 = vsub.f32 %v5036, %v5054
        %v5085 = vsub.f32 %v5037, %v5056
        %v5086 = vsub.f32 %v5038, %v5058
        %v5087 = vsub.f32 %v5039, %v5060
        %v5088 = vsub.f32 %v5040, %v5062
        %v5089 = vsub.f32 %v5041, %v5064
        %v5090 = vsub.f32 %v5042, %v5066
        %v5091 = vsub.f32 %v5043, %v5068
        %v5092 = vsub.f32 %v5044, %v5070
        %v5093 = vsub.f32 %v5045, %v5072
        %v5094 = vsub.f32 %v5046, %v5074
        %v5095 = vsub.f32 %v5047, %v5076
        %v5096 = vsub.f32 %v5048, %v5078
        %v5097 = vsub.f32 %v5049, %v5080
        %v5098 = vsub.f32 %v5050, %v5082
        %v5099 = vmul.f32 %v5083, 1.442695
        %v5100 = vpow.pop %v5099
        %v5101 = vmul.f32 %v5084, 1.442695
        %v5102 = vpow.pop %v5101
        %v5103 = vmul.f32 %v5085, 1.442695
        %v5104 = vpow.pop %v5103
        %v5105 = vmul.f32 %v5086, 1.442695
        %v5106 = vpow.pop %v5105
        %v5107 = vmul.f32 %v5087, 1.442695
        %v5108 = vpow.pop %v5107
        %v5109 = vmul.f32 %v5088, 1.442695
        %v5110 = vpow.pop %v5109
        %v5111 = vmul.f32 %v5089, 1.442695
        %v5112 = vpow.pop %v5111
        %v5113 = vmul.f32 %v5090, 1.442695
        %v5114 = vpow.pop %v5113
        %v5115 = vmul.f32 %v5091, 1.442695
        %v5116 = vpow.pop %v5115
        %v5117 = vmul.f32 %v5092, 1.442695
        %v5118 = vpow.pop %v5117
        %v5119 = vmul.f32 %v5093, 1.442695
        %v5120 = vpow.pop %v5119
        %v5121 = vmul.f32 %v5094, 1.442695
        %v5122 = vpow.pop %v5121
        %v5123 = vmul.f32 %v5095, 1.442695
        %v5124 = vpow.pop %v5123
        %v5125 = vmul.f32 %v5096, 1.442695
        %v5126 = vpow.pop %v5125
        %v5127 = vmul.f32 %v5097, 1.442695
        %v5128 = vpow.pop %v5127
        %v5129 = vmul.f32 %v5098, 1.442695
        %v5130 = vpow.pop %v5129
        %5131 = vadd.xlane.f32.xlu0 %v5100
        %v5132 = vpop.xlane.xlu0 %5131
        %5133 = vadd.xlane.f32.xlu0 %v5102
        %v5134 = vpop.xlane.xlu0 %5133
        %5135 = vadd.xlane.f32.xlu0 %v5104
        %v5136 = vpop.xlane.xlu0 %5135
        %5137 = vadd.xlane.f32.xlu0 %v5106
        %v5138 = vpop.xlane.xlu0 %5137
        %5139 = vadd.xlane.f32.xlu0 %v5108
        %v5140 = vpop.xlane.xlu0 %5139
        %5141 = vadd.xlane.f32.xlu0 %v5110
        %v5142 = vpop.xlane.xlu0 %5141
        %5143 = vadd.xlane.f32.xlu0 %v5112
        %v5144 = vpop.xlane.xlu0 %5143
        %5145 = vadd.xlane.f32.xlu0 %v5114
        %v5146 = vpop.xlane.xlu0 %5145
        %5147 = vadd.xlane.f32.xlu0 %v5116
        %v5148 = vpop.xlane.xlu0 %5147
        %5149 = vadd.xlane.f32.xlu0 %v5118
        %v5150 = vpop.xlane.xlu0 %5149
        %5151 = vadd.xlane.f32.xlu0 %v5120
        %v5152 = vpop.xlane.xlu0 %5151
        %5153 = vadd.xlane.f32.xlu0 %v5122
        %v5154 = vpop.xlane.xlu0 %5153
        %5155 = vadd.xlane.f32.xlu0 %v5124
        %v5156 = vpop.xlane.xlu0 %5155
        %5157 = vadd.xlane.f32.xlu0 %v5126
        %v5158 = vpop.xlane.xlu0 %5157
        %5159 = vadd.xlane.f32.xlu0 %v5128
        %v5160 = vpop.xlane.xlu0 %5159
        %5161 = vadd.xlane.f32.xlu0 %v5130
        %v5162 = vpop.xlane.xlu0 %5161
        %v5163 = vrcp.pop %v5132
        %v5164 = vrcp.pop %v5134
        %v5165 = vrcp.pop %v5136
        %v5166 = vrcp.pop %v5138
        %v5167 = vrcp.pop %v5140
        %v5168 = vrcp.pop %v5142
        %v5169 = vrcp.pop %v5144
        %v5170 = vrcp.pop %v5146
        %v5171 = vrcp.pop %v5148
        %v5172 = vrcp.pop %v5150
        %v5173 = vrcp.pop %v5152
        %v5174 = vrcp.pop %v5154
        %v5175 = vrcp.pop %v5156
        %v5176 = vrcp.pop %v5158
        %v5177 = vrcp.pop %v5160
        %v5178 = vrcp.pop %v5162
        %v5179 = vld [vmem:[#allocation8 + $0x30] sm:$0xf]
        %v5180 = vld [vmem:[#allocation8 + $0x34] sm:$0xf]
        %5181 = vrot.lane.b32.xlu0 %v1239, 32
        %v5182 = vpop.permute.xlu0 %5181
        %5183 = vrot.lane.b32.xlu0 %v1240, 32
        %v5184 = vpop.permute.xlu0 %5183
        %5185 = vrot.lane.b32.xlu0 %v1241, 32
        %v5186 = vpop.permute.xlu0 %5185
        %5187 = vrot.lane.b32.xlu0 %v1242, 32
        %v5188 = vpop.permute.xlu0 %5187
        %5189 = vrot.lane.b32.xlu0 %v1243, 32
        %v5190 = vpop.permute.xlu0 %5189
        %5191 = vrot.lane.b32.xlu0 %v1244, 32
        %v5192 = vpop.permute.xlu0 %5191
        %5193 = vrot.lane.b32.xlu0 %v1245, 32
        %v5194 = vpop.permute.xlu0 %5193
        %5195 = vrot.lane.b32.xlu0 %v1246, 32
        %v5196 = vpop.permute.xlu0 %5195
        %v5199 = vunpack.c.l.b16 %v5179
        %v5200 = vunpack.c.l.b16 %v5180
        %v5201 = vpack.c.b16 %v5200, %v5199
        %v5204 = vsel %vm1247, %v5182, 0
        %v5207 = vsel %vm1247, %v5184, 0
        %v5210 = vsel %vm1247, %v5186, 0
        %v5213 = vsel %vm1247, %v5188, 0
        %v5216 = vsel %vm1247, %v5190, 0
        %v5219 = vsel %vm1247, %v5192, 0
        %v5222 = vsel %vm1247, %v5194, 0
        %v5225 = vsel %vm1247, %v5196, 0
        %5227 = vmatprep.subr.bf16.mxu0 0
        %5228 = vmatpush1.bf16.msra.mxu0 %v5201
        %5229 = vmatprep.subr.bf16.mxu0 0
        %5230 = vmatpush1.bf16.msra.mxu0 0
        %5231 = vmatprep.subr.bf16.mxu0 0
        %5232 = vmatpush1.bf16.msra.mxu0 0
        %5233 = vmatprep.subr.bf16.mxu0 0
        %5234 = vmatpush1.bf16.msra.mxu0 0
        %5235 = vmatprep.subr.bf16.mxu0 0
        %5236 = vmatpush1.bf16.msra.mxu0 0
        %5237 = vmatprep.subr.bf16.mxu0 0
        %5238 = vmatpush1.bf16.msra.mxu0 0
        %5239 = vmatprep.subr.bf16.mxu0 0
        %5240 = vmatpush1.bf16.msra.mxu0 0
        %5241 = vmatprep.subr.bf16.mxu0 0
        %5242 = vmatpush1.bf16.msra.mxu0 0
        %5243 = vmatprep.subr.bf16.mxu0 0
        %5244 = vmatpush1.bf16.msra.mxu0 0
        %5245 = vmatprep.subr.bf16.mxu0 0
        %5246 = vmatpush1.bf16.msra.mxu0 0
        %5247 = vmatprep.subr.bf16.mxu0 0
        %5248 = vmatpush1.bf16.msra.mxu0 0
        %5249 = vmatprep.subr.bf16.mxu0 0
        %5250 = vmatpush1.bf16.msra.mxu0 0
        %5251 = vmatprep.subr.bf16.mxu0 0
        %5252 = vmatpush1.bf16.msra.mxu0 0
        %5253 = vmatprep.subr.bf16.mxu0 0
        %5254 = vmatpush1.bf16.msra.mxu0 0
        %5255 = vmatprep.subr.bf16.mxu0 0
        %5256 = vmatpush1.bf16.msra.mxu0 0
        %5257 = vmatprep.subr.bf16.mxu0 0
        %5258 = vmatpush1.bf16.msra.mxu0 0
        %5259 = vmatprep.mubr.bf16.mxu0 0
        %5260 = vmatmul.mubr.bf16.gmra.mrb[0].mxu0 %v5204
        %v5261 = vpop.f32.mrb[0].mxu0
        %v5262 = vadd.f32 0.0, %v5261
        %v5263 = vpop.f32.mrb[0].mxu0
        %v5264 = vpop.f32.mrb[0].mxu0
        %v5265 = vadd.f32 0.0, %v5264
        %v5266 = vpop.f32.mrb[0].mxu0
        %5267 = vmatprep.mubr.bf16.mxu0 0
        %5268 = vmatmul.mubr.bf16.gmra.mrb[0].mxu0 %v5207
        %v5269 = vpop.f32.mrb[0].mxu0
        %v5270 = vadd.f32 0.0, %v5269
        %v5271 = vpop.f32.mrb[0].mxu0
        %v5272 = vpop.f32.mrb[0].mxu0
        %v5273 = vadd.f32 0.0, %v5272
        %v5274 = vpop.f32.mrb[0].mxu0
        %5275 = vmatprep.mubr.bf16.mxu0 0
        %5276 = vmatmul.mubr.bf16.gmra.mrb[0].mxu0 %v5210
        %v5277 = vpop.f32.mrb[0].mxu0
        %v5278 = vadd.f32 0.0, %v5277
        %v5279 = vpop.f32.mrb[0].mxu0
        %v5280 = vpop.f32.mrb[0].mxu0
        %v5281 = vadd.f32 0.0, %v5280
        %v5282 = vpop.f32.mrb[0].mxu0
        %5283 = vmatprep.mubr.bf16.mxu0 0
        %5284 = vmatmul.mubr.bf16.gmra.mrb[0].mxu0 %v5213
        %v5285 = vpop.f32.mrb[0].mxu0
        %v5286 = vadd.f32 0.0, %v5285
        %v5287 = vpop.f32.mrb[0].mxu0
        %v5288 = vpop.f32.mrb[0].mxu0
        %v5289 = vadd.f32 0.0, %v5288
        %v5290 = vpop.f32.mrb[0].mxu0
        %5291 = vmatprep.mubr.bf16.mxu0 0
        %5292 = vmatmul.mubr.bf16.gmra.mrb[0].mxu0 %v5216
        %v5293 = vpop.f32.mrb[0].mxu0
        %v5294 = vadd.f32 0.0, %v5293
        %v5295 = vpop.f32.mrb[0].mxu0
        %v5296 = vpop.f32.mrb[0].mxu0
        %v5297 = vadd.f32 0.0, %v5296
        %v5298 = vpop.f32.mrb[0].mxu0
        %5299 = vmatprep.mubr.bf16.mxu0 0
        %5300 = vmatmul.mubr.bf16.gmra.mrb[0].mxu0 %v5219
        %v5301 = vpop.f32.mrb[0].mxu0
        %v5302 = vadd.f32 0.0, %v5301
        %v5303 = vpop.f32.mrb[0].mxu0
        %v5304 = vpop.f32.mrb[0].mxu0
        %v5305 = vadd.f32 0.0, %v5304
        %v5306 = vpop.f32.mrb[0].mxu0
        %5307 = vmatprep.mubr.bf16.mxu0 0
        %5308 = vmatmul.mubr.bf16.gmra.mrb[0].mxu0 %v5222
        %v5309 = vpop.f32.mrb[0].mxu0
        %v5310 = vadd.f32 0.0, %v5309
        %v5311 = vpop.f32.mrb[0].mxu0
        %v5312 = vpop.f32.mrb[0].mxu0
        %v5313 = vadd.f32 0.0, %v5312
        %v5314 = vpop.f32.mrb[0].mxu0
        %5315 = vmatprep.mubr.bf16.mxu0 0
        %5316 = vmatmul.mubr.bf16.gmra.mrb[0].mxu0 %v5225
        %v5317 = vpop.f32.mrb[0].mxu0
        %v5318 = vadd.f32 0.0, %v5317
        %v5319 = vpop.f32.mrb[0].mxu0
        %v5320 = vpop.f32.mrb[0].mxu0
        %v5321 = vadd.f32 0.0, %v5320
        %v5322 = vpop.f32.mrb[0].mxu0
        %5323 = vdwg.mxu0
        %v5324 = vpack.c.bf16 %v5265, %v5262
        %v5325 = vpack.c.bf16 %v5273, %v5270
        %v5326 = vpack.c.bf16 %v5281, %v5278
        %v5327 = vpack.c.bf16 %v5289, %v5286
        %v5328 = vpack.c.bf16 %v5297, %v5294
        %v5329 = vpack.c.bf16 %v5305, %v5302
        %v5330 = vpack.c.bf16 %v5313, %v5310
        %v5331 = vpack.c.bf16 %v5321, %v5318
        %v5332 = vmul.f32 %v5100, %v5163
        %v5333 = vmul.f32 %v5102, %v5164
        %v5334 = vmul.f32 %v5104, %v5165
        %v5335 = vmul.f32 %v5106, %v5166
        %v5336 = vmul.f32 %v5108, %v5167
        %v5337 = vmul.f32 %v5110, %v5168
        %v5338 = vmul.f32 %v5112, %v5169
        %v5339 = vmul.f32 %v5114, %v5170
        %v5340 = vmul.f32 %v5116, %v5171
        %v5341 = vmul.f32 %v5118, %v5172
        %v5342 = vmul.f32 %v5120, %v5173
        %v5343 = vmul.f32 %v5122, %v5174
        %v5344 = vmul.f32 %v5124, %v5175
        %v5345 = vmul.f32 %v5126, %v5176
        %v5346 = vmul.f32 %v5128, %v5177
        %v5347 = vmul.f32 %v5130, %v5178
        %v5348 = vpack.c.bf16 %v5333, %v5332
        %v5349 = vpack.c.bf16 %v5335, %v5334
        %v5350 = vpack.c.bf16 %v5337, %v5336
        %v5351 = vpack.c.bf16 %v5339, %v5338
        %v5352 = vpack.c.bf16 %v5341, %v5340
        %v5353 = vpack.c.bf16 %v5343, %v5342
        %v5354 = vpack.c.bf16 %v5345, %v5344
        %v5355 = vpack.c.bf16 %v5347, %v5346
        %5356 = vmatprep.subr.bf16.mxu0 0
        %5357 = vmatpush1.bf16.msra.mxu0 %v5324
        %5358 = vmatprep.subr.bf16.mxu0 0
        %5359 = vmatpush1.bf16.msra.mxu0 %v5325
        %5360 = vmatprep.subr.bf16.mxu0 0
        %5361 = vmatpush1.bf16.msra.mxu0 %v5326
        %5362 = vmatprep.subr.bf16.mxu0 0
        %5363 = vmatpush1.bf16.msra.mxu0 %v5327
        %5364 = vmatprep.subr.bf16.mxu0 0
        %5365 = vmatpush1.bf16.msra.mxu0 %v5328
        %5366 = vmatprep.subr.bf16.mxu0 0
        %5367 = vmatpush1.bf16.msra.mxu0 %v5329
        %5368 = vmatprep.subr.bf16.mxu0 0
        %5369 = vmatpush1.bf16.msra.mxu0 %v5330
        %5370 = vmatprep.subr.bf16.mxu0 0
        %5371 = vmatpush1.bf16.msra.mxu0 %v5331
        %5372 = vmatprep.subr.bf16.mxu0 0
        %5373 = vmatpush1.bf16.msra.mxu0 0
        %5374 = vmatprep.subr.bf16.mxu0 0
        %5375 = vmatpush1.bf16.msra.mxu0 0
        %5376 = vmatprep.subr.bf16.mxu0 0
        %5377 = vmatpush1.bf16.msra.mxu0 0
        %5378 = vmatprep.subr.bf16.mxu0 0
        %5379 = vmatpush1.bf16.msra.mxu0 0
        %5380 = vmatprep.subr.bf16.mxu0 0
        %5381 = vmatpush1.bf16.msra.mxu0 0
        %5382 = vmatprep.subr.bf16.mxu0 0
        %5383 = vmatpush1.bf16.msra.mxu0 0
        %5384 = vmatprep.subr.bf16.mxu0 0
        %5385 = vmatpush1.bf16.msra.mxu0 0
        %5386 = vmatprep.subr.bf16.mxu0 0
        %5387 = vmatpush1.bf16.msra.mxu0 0
        %5388 = vmatprep.mubr.bf16.mxu0 0
        %5389 = vmatmul.mubr.bf16.gmra.mrb[0].mxu0 %v5348
        %v5390 = vpop.f32.mrb[0].mxu0
        %v5391 = vadd.f32 0.0, %v5390
        %v5392 = vpop.f32.mrb[0].mxu0
        %v5393 = vpop.f32.mrb[0].mxu0
        %v5394 = vadd.f32 0.0, %v5393
        %v5395 = vpop.f32.mrb[0].mxu0
        %5396 = vmatprep.mubr.bf16.mxu0 0
        %5397 = vmatmul.mubr.bf16.gmra.mrb[0].mxu0 %v5349
        %v5398 = vpop.f32.mrb[0].mxu0
        %v5399 = vadd.f32 0.0, %v5398
        %v5400 = vpop.f32.mrb[0].mxu0
        %v5401 = vpop.f32.mrb[0].mxu0
        %v5402 = vadd.f32 0.0, %v5401
        %v5403 = vpop.f32.mrb[0].mxu0
        %5404 = vmatprep.mubr.bf16.mxu0 0
        %5405 = vmatmul.mubr.bf16.gmra.mrb[0].mxu0 %v5350
        %v5406 = vpop.f32.mrb[0].mxu0
        %v5407 = vadd.f32 0.0, %v5406
        %v5408 = vpop.f32.mrb[0].mxu0
        %v5409 = vpop.f32.mrb[0].mxu0
        %v5410 = vadd.f32 0.0, %v5409
        %v5411 = vpop.f32.mrb[0].mxu0
        %5412 = vmatprep.mubr.bf16.mxu0 0
        %5413 = vmatmul.mubr.bf16.gmra.mrb[0].mxu0 %v5351
        %v5414 = vpop.f32.mrb[0].mxu0
        %v5415 = vadd.f32 0.0, %v5414
        %v5416 = vpop.f32.mrb[0].mxu0
        %v5417 = vpop.f32.mrb[0].mxu0
        %v5418 = vadd.f32 0.0, %v5417
        %v5419 = vpop.f32.mrb[0].mxu0
        %5420 = vmatprep.mubr.bf16.mxu0 0
        %5421 = vmatmul.mubr.bf16.gmra.mrb[0].mxu0 %v5352
        %v5422 = vpop.f32.mrb[0].mxu0
        %v5423 = vadd.f32 0.0, %v5422
        %v5424 = vpop.f32.mrb[0].mxu0
        %v5425 = vpop.f32.mrb[0].mxu0
        %v5426 = vadd.f32 0.0, %v5425
        %v5427 = vpop.f32.mrb[0].mxu0
        %5428 = vmatprep.mubr.bf16.mxu0 0
        %5429 = vmatmul.mubr.bf16.gmra.mrb[0].mxu0 %v5353
        %v5430 = vpop.f32.mrb[0].mxu0
        %v5431 = vadd.f32 0.0, %v5430
        %v5432 = vpop.f32.mrb[0].mxu0
        %v5433 = vpop.f32.mrb[0].mxu0
        %v5434 = vadd.f32 0.0, %v5433
        %v5435 = vpop.f32.mrb[0].mxu0
        %5436 = vmatprep.mubr.bf16.mxu0 0
        %5437 = vmatmul.mubr.bf16.gmra.mrb[0].mxu0 %v5354
        %v5438 = vpop.f32.mrb[0].mxu0
        %v5439 = vadd.f32 0.0, %v5438
        %v5440 = vpop.f32.mrb[0].mxu0
        %v5441 = vpop.f32.mrb[0].mxu0
        %v5442 = vadd.f32 0.0, %v5441
        %v5443 = vpop.f32.mrb[0].mxu0
        %5444 = vmatprep.mubr.bf16.mxu0 0
        %5445 = vmatmul.mubr.bf16.gmra.mrb[0].mxu0 %v5355
        %v5446 = vpop.f32.mrb[0].mxu0
        %v5447 = vadd.f32 0.0, %v5446
        %v5448 = vpop.f32.mrb[0].mxu0
        %v5449 = vpop.f32.mrb[0].mxu0
        %v5450 = vadd.f32 0.0, %v5449
        %v5451 = vpop.f32.mrb[0].mxu0
        %5452 = vdwg.mxu0
        %v5453 = vadd.f32 %v4842, %v5391
        %v5454 = vadd.f32 %v4843, %v5394
        %v5455 = vadd.f32 %v4844, %v5399
        %v5456 = vadd.f32 %v4845, %v5402
        %v5457 = vadd.f32 %v4846, %v5407
        %v5458 = vadd.f32 %v4847, %v5410
        %v5459 = vadd.f32 %v4848, %v5415
        %v5460 = vadd.f32 %v4849, %v5418
        %v5461 = vadd.f32 %v4850, %v5423
        %v5462 = vadd.f32 %v4851, %v5426
        %v5463 = vadd.f32 %v4852, %v5431
        %v5464 = vadd.f32 %v4853, %v5434
        %v5465 = vadd.f32 %v4854, %v5439
        %v5466 = vadd.f32 %v4855, %v5442
        %v5467 = vadd.f32 %v4856, %v5447
        %v5468 = vadd.f32 %v4857, %v5450
        %5469 = vrot.lane.b32.xlu0 %v1223, 16
        %v5470 = vpop.permute.xlu0 %5469
        %5471 = vrot.lane.b32.xlu0 %v1224, 16
        %v5472 = vpop.permute.xlu0 %5471
        %5473 = vrot.lane.b32.xlu0 %v1225, 16
        %v5474 = vpop.permute.xlu0 %5473
        %5475 = vrot.lane.b32.xlu0 %v1226, 16
        %v5476 = vpop.permute.xlu0 %5475
        %5477 = vrot.lane.b32.xlu0 %v1227, 16
        %v5478 = vpop.permute.xlu0 %5477
        %5479 = vrot.lane.b32.xlu0 %v1228, 16
        %v5480 = vpop.permute.xlu0 %5479
        %5481 = vrot.lane.b32.xlu0 %v1229, 16
        %v5482 = vpop.permute.xlu0 %5481
        %5483 = vrot.lane.b32.xlu0 %v1230, 16
        %v5484 = vpop.permute.xlu0 %5483
        %5485 = vrot.lane.b32.xlu0 %v1231, 16
        %v5486 = vpop.permute.xlu0 %5485
        %5487 = vrot.lane.b32.xlu0 %v1232, 16
        %v5488 = vpop.permute.xlu0 %5487
        %5489 = vrot.lane.b32.xlu0 %v1233, 16
        %v5490 = vpop.permute.xlu0 %5489
        %5491 = vrot.lane.b32.xlu0 %v1234, 16
        %v5492 = vpop.permute.xlu0 %5491
        %5493 = vrot.lane.b32.xlu0 %v1235, 16
        %v5494 = vpop.permute.xlu0 %5493
        %5495 = vrot.lane.b32.xlu0 %v1236, 16
        %v5496 = vpop.permute.xlu0 %5495
        %5497 = vrot.lane.b32.xlu0 %v1237, 16
        %v5498 = vpop.permute.xlu0 %5497
        %5499 = vrot.lane.b32.xlu0 %v1238, 16
        %v5500 = vpop.permute.xlu0 %5499
        %v5502 = vsel %vm1247, %v5470, 0
        %v5505 = vsel %vm1247, %v5472, 0
        %v5508 = vsel %vm1247, %v5474, 0
        %v5511 = vsel %vm1247, %v5476, 0
        %v5514 = vsel %vm1247, %v5478, 0
        %v5517 = vsel %vm1247, %v5480, 0
        %v5520 = vsel %vm1247, %v5482, 0
        %v5523 = vsel %vm1247, %v5484, 0
        %v5526 = vsel %vm1247, %v5486, 0
        %v5529 = vsel %vm1247, %v5488, 0
        %v5532 = vsel %vm1247, %v5490, 0
        %v5535 = vsel %vm1247, %v5492, 0
        %v5538 = vsel %vm1247, %v5494, 0
        %v5541 = vsel %vm1247, %v5496, 0
        %v5544 = vsel %vm1247, %v5498, 0
        %v5547 = vsel %vm1247, %v5500, 0
        %5549 = vmatprep.subr.bf16.mxu0 0
        %5550 = vmatpush1.bf16.xpose.msra.mxu0 %v5526
        %5551 = vmatprep.subr.bf16.mxu0 0
        %5552 = vmatpush1.bf16.xpose.msra.mxu0 %v5529
        %5553 = vmatprep.subr.bf16.mxu0 0
        %5554 = vmatpush1.bf16.xpose.msra.mxu0 %v5532
        %5555 = vmatprep.subr.bf16.mxu0 0
        %5556 = vmatpush1.bf16.xpose.msra.mxu0 %v5535
        %5557 = vmatprep.subr.bf16.mxu0 0
        %5558 = vmatpush1.bf16.xpose.msra.mxu0 %v5538
        %5559 = vmatprep.subr.bf16.mxu0 0
        %5560 = vmatpush1.bf16.xpose.msra.mxu0 %v5541
        %5561 = vmatprep.subr.bf16.mxu0 0
        %5562 = vmatpush1.bf16.xpose.msra.mxu0 %v5544
        %5563 = vmatprep.subr.bf16.mxu0 0
        %5564 = vmatpush1.bf16.xpose.msra.mxu0 %v5547
        %5565 = vmatprep.subr.bf16.mxu0 0
        %5566 = vmatpush1.bf16.xpose.msra.mxu0 0
        %5567 = vmatprep.subr.bf16.mxu0 0
        %5568 = vmatpush1.bf16.xpose.msra.mxu0 0
        %5569 = vmatprep.subr.bf16.mxu0 0
        %5570 = vmatpush1.bf16.xpose.msra.mxu0 0
        %5571 = vmatprep.subr.bf16.mxu0 0
        %5572 = vmatpush1.bf16.xpose.msra.mxu0 0
        %5573 = vmatprep.subr.bf16.mxu0 0
        %5574 = vmatpush1.bf16.xpose.msra.mxu0 0
        %5575 = vmatprep.subr.bf16.mxu0 0
        %5576 = vmatpush1.bf16.xpose.msra.mxu0 0
        %5577 = vmatprep.subr.bf16.mxu0 0
        %5578 = vmatpush1.bf16.xpose.msra.mxu0 0
        %5579 = vmatprep.subr.bf16.mxu0 0
        %5580 = vmatpush1.bf16.xpose.msra.mxu0 0
        %5581 = vmatprep.mubr.bf16.mxu0 0
        %5582 = vmatmul.mubr.bf16.gmra.mrb[0].mxu0 %v5502
        %v5583 = vpop.f32.mrb[0].mxu0
        %v5584 = vadd.f32 0.0, %v5583
        %v5585 = vpop.f32.mrb[0].mxu0
        %v5586 = vpop.f32.mrb[0].mxu0
        %v5587 = vadd.f32 0.0, %v5586
        %v5588 = vpop.f32.mrb[0].mxu0
        %5589 = vmatprep.mubr.bf16.mxu0 0
        %5590 = vmatmul.mubr.bf16.gmra.mrb[0].mxu0 %v5505
        %v5591 = vpop.f32.mrb[0].mxu0
        %v5592 = vadd.f32 0.0, %v5591
        %v5593 = vpop.f32.mrb[0].mxu0
        %v5594 = vpop.f32.mrb[0].mxu0
        %v5595 = vadd.f32 0.0, %v5594
        %v5596 = vpop.f32.mrb[0].mxu0
        %5597 = vmatprep.mubr.bf16.mxu0 0
        %5598 = vmatmul.mubr.bf16.gmra.mrb[0].mxu0 %v5508
        %v5599 = vpop.f32.mrb[0].mxu0
        %v5600 = vadd.f32 0.0, %v5599
        %v5601 = vpop.f32.mrb[0].mxu0
        %v5602 = vpop.f32.mrb[0].mxu0
        %v5603 = vadd.f32 0.0, %v5602
        %v5604 = vpop.f32.mrb[0].mxu0
        %5605 = vmatprep.mubr.bf16.mxu0 0
        %5606 = vmatmul.mubr.bf16.gmra.mrb[0].mxu0 %v5511
        %v5607 = vpop.f32.mrb[0].mxu0
        %v5608 = vadd.f32 0.0, %v5607
        %v5609 = vpop.f32.mrb[0].mxu0
        %v5610 = vpop.f32.mrb[0].mxu0
        %v5611 = vadd.f32 0.0, %v5610
        %v5612 = vpop.f32.mrb[0].mxu0
        %5613 = vmatprep.mubr.bf16.mxu0 0
        %5614 = vmatmul.mubr.bf16.gmra.mrb[0].mxu0 %v5514
        %v5615 = vpop.f32.mrb[0].mxu0
        %v5616 = vadd.f32 0.0, %v5615
        %v5617 = vpop.f32.mrb[0].mxu0
        %v5618 = vpop.f32.mrb[0].mxu0
        %v5619 = vadd.f32 0.0, %v5618
        %v5620 = vpop.f32.mrb[0].mxu0
        %5621 = vmatprep.mubr.bf16.mxu0 0
        %5622 = vmatmul.mubr.bf16.gmra.mrb[0].mxu0 %v5517
        %v5623 = vpop.f32.mrb[0].mxu0
        %v5624 = vadd.f32 0.0, %v5623
        %v5625 = vpop.f32.mrb[0].mxu0
        %v5626 = vpop.f32.mrb[0].mxu0
        %v5627 = vadd.f32 0.0, %v5626
        %v5628 = vpop.f32.mrb[0].mxu0
        %5629 = vmatprep.mubr.bf16.mxu0 0
        %5630 = vmatmul.mubr.bf16.gmra.mrb[0].mxu0 %v5520
        %v5631 = vpop.f32.mrb[0].mxu0
        %v5632 = vadd.f32 0.0, %v5631
        %v5633 = vpop.f32.mrb[0].mxu0
        %v5634 = vpop.f32.mrb[0].mxu0
        %v5635 = vadd.f32 0.0, %v5634
        %v5636 = vpop.f32.mrb[0].mxu0
        %5637 = vmatprep.mubr.bf16.mxu0 0
        %5638 = vmatmul.mubr.bf16.gmra.mrb[0].mxu0 %v5523
        %v5639 = vpop.f32.mrb[0].mxu0
        %v5640 = vadd.f32 0.0, %v5639
        %v5641 = vpop.f32.mrb[0].mxu0
        %v5642 = vpop.f32.mrb[0].mxu0
        %v5643 = vadd.f32 0.0, %v5642
        %v5644 = vpop.f32.mrb[0].mxu0
        %5645 = vdwg.mxu0
        %v5646 = vsel %vm1207, %v5584, -inf
        %v5647 = vsel %vm1208, %v5587, -inf
        %v5648 = vsel %vm1209, %v5592, -inf
        %v5649 = vsel %vm1210, %v5595, -inf
        %v5650 = vsel %vm1211, %v5600, -inf
        %v5651 = vsel %vm1212, %v5603, -inf
        %v5652 = vsel %vm1213, %v5608, -inf
        %v5653 = vsel %vm1214, %v5611, -inf
        %v5654 = vsel %vm1215, %v5616, -inf
        %v5655 = vsel %vm1216, %v5619, -inf
        %v5656 = vsel %vm1217, %v5624, -inf
        %v5657 = vsel %vm1218, %v5627, -inf
        %v5658 = vsel %vm1219, %v5632, -inf
        %v5659 = vsel %vm1220, %v5635, -inf
        %v5660 = vsel %vm1221, %v5640, -inf
        %v5661 = vsel %vm1222, %v5643, -inf
        %5662 = vmax.xlane.f32.xlu0 %v5646
        %v5663 = vpop.xlane.xlu0 %5662
        %5664 = vmax.xlane.f32.xlu0 %v5647
        %v5665 = vpop.xlane.xlu0 %5664
        %5666 = vmax.xlane.f32.xlu0 %v5648
        %v5667 = vpop.xlane.xlu0 %5666
        %5668 = vmax.xlane.f32.xlu0 %v5649
        %v5669 = vpop.xlane.xlu0 %5668
        %5670 = vmax.xlane.f32.xlu0 %v5650
        %v5671 = vpop.xlane.xlu0 %5670
        %5672 = vmax.xlane.f32.xlu0 %v5651
        %v5673 = vpop.xlane.xlu0 %5672
        %5674 = vmax.xlane.f32.xlu0 %v5652
        %v5675 = vpop.xlane.xlu0 %5674
        %5676 = vmax.xlane.f32.xlu0 %v5653
        %v5677 = vpop.xlane.xlu0 %5676
        %5678 = vmax.xlane.f32.xlu0 %v5654
        %v5679 = vpop.xlane.xlu0 %5678
        %5680 = vmax.xlane.f32.xlu0 %v5655
        %v5681 = vpop.xlane.xlu0 %5680
        %5682 = vmax.xlane.f32.xlu0 %v5656
        %v5683 = vpop.xlane.xlu0 %5682
        %5684 = vmax.xlane.f32.xlu0 %v5657
        %v5685 = vpop.xlane.xlu0 %5684
        %5686 = vmax.xlane.f32.xlu0 %v5658
        %v5687 = vpop.xlane.xlu0 %5686
        %5688 = vmax.xlane.f32.xlu0 %v5659
        %v5689 = vpop.xlane.xlu0 %5688
        %5690 = vmax.xlane.f32.xlu0 %v5660
        %v5691 = vpop.xlane.xlu0 %5690
        %5692 = vmax.xlane.f32.xlu0 %v5661
        %v5693 = vpop.xlane.xlu0 %5692
        %v5694 = vsub.f32 %v5646, %v5663
        %v5695 = vsub.f32 %v5647, %v5665
        %v5696 = vsub.f32 %v5648, %v5667
        %v5697 = vsub.f32 %v5649, %v5669
        %v5698 = vsub.f32 %v5650, %v5671
        %v5699 = vsub.f32 %v5651, %v5673
        %v5700 = vsub.f32 %v5652, %v5675
        %v5701 = vsub.f32 %v5653, %v5677
        %v5702 = vsub.f32 %v5654, %v5679
        %v5703 = vsub.f32 %v5655, %v5681
        %v5704 = vsub.f32 %v5656, %v5683
        %v5705 = vsub.f32 %v5657, %v5685
        %v5706 = vsub.f32 %v5658, %v5687
        %v5707 = vsub.f32 %v5659, %v5689
        %v5708 = vsub.f32 %v5660, %v5691
        %v5709 = vsub.f32 %v5661, %v5693
        %v5710 = vmul.f32 %v5694, 1.442695
        %v5711 = vpow.pop %v5710
        %v5712 = vmul.f32 %v5695, 1.442695
        %v5713 = vpow.pop %v5712
        %v5714 = vmul.f32 %v5696, 1.442695
        %v5715 = vpow.pop %v5714
        %v5716 = vmul.f32 %v5697, 1.442695
        %v5717 = vpow.pop %v5716
        %v5718 = vmul.f32 %v5698, 1.442695
        %v5719 = vpow.pop %v5718
        %v5720 = vmul.f32 %v5699, 1.442695
        %v5721 = vpow.pop %v5720
        %v5722 = vmul.f32 %v5700, 1.442695
        %v5723 = vpow.pop %v5722
        %v5724 = vmul.f32 %v5701, 1.442695
        %v5725 = vpow.pop %v5724
        %v5726 = vmul.f32 %v5702, 1.442695
        %v5727 = vpow.pop %v5726
        %v5728 = vmul.f32 %v5703, 1.442695
        %v5729 = vpow.pop %v5728
        %v5730 = vmul.f32 %v5704, 1.442695
        %v5731 = vpow.pop %v5730
        %v5732 = vmul.f32 %v5705, 1.442695
        %v5733 = vpow.pop %v5732
        %v5734 = vmul.f32 %v5706, 1.442695
        %v5735 = vpow.pop %v5734
        %v5736 = vmul.f32 %v5707, 1.442695
        %v5737 = vpow.pop %v5736
        %v5738 = vmul.f32 %v5708, 1.442695
        %v5739 = vpow.pop %v5738
        %v5740 = vmul.f32 %v5709, 1.442695
        %v5741 = vpow.pop %v5740
        %5742 = vadd.xlane.f32.xlu0 %v5711
        %v5743 = vpop.xlane.xlu0 %5742
        %5744 = vadd.xlane.f32.xlu0 %v5713
        %v5745 = vpop.xlane.xlu0 %5744
        %5746 = vadd.xlane.f32.xlu0 %v5715
        %v5747 = vpop.xlane.xlu0 %5746
        %5748 = vadd.xlane.f32.xlu0 %v5717
        %v5749 = vpop.xlane.xlu0 %5748
        %5750 = vadd.xlane.f32.xlu0 %v5719
        %v5751 = vpop.xlane.xlu0 %5750
        %5752 = vadd.xlane.f32.xlu0 %v5721
        %v5753 = vpop.xlane.xlu0 %5752
        %5754 = vadd.xlane.f32.xlu0 %v5723
        %v5755 = vpop.xlane.xlu0 %5754
        %5756 = vadd.xlane.f32.xlu0 %v5725
        %v5757 = vpop.xlane.xlu0 %5756
        %5758 = vadd.xlane.f32.xlu0 %v5727
        %v5759 = vpop.xlane.xlu0 %5758
        %5760 = vadd.xlane.f32.xlu0 %v5729
        %v5761 = vpop.xlane.xlu0 %5760
        %5762 = vadd.xlane.f32.xlu0 %v5731
        %v5763 = vpop.xlane.xlu0 %5762
        %5764 = vadd.xlane.f32.xlu0 %v5733
        %v5765 = vpop.xlane.xlu0 %5764
        %5766 = vadd.xlane.f32.xlu0 %v5735
        %v5767 = vpop.xlane.xlu0 %5766
        %5768 = vadd.xlane.f32.xlu0 %v5737
        %v5769 = vpop.xlane.xlu0 %5768
        %5770 = vadd.xlane.f32.xlu0 %v5739
        %v5771 = vpop.xlane.xlu0 %5770
        %5772 = vadd.xlane.f32.xlu0 %v5741
        %v5773 = vpop.xlane.xlu0 %5772
        %v5774 = vrcp.pop %v5743
        %v5775 = vrcp.pop %v5745
        %v5776 = vrcp.pop %v5747
        %v5777 = vrcp.pop %v5749
        %v5778 = vrcp.pop %v5751
        %v5779 = vrcp.pop %v5753
        %v5780 = vrcp.pop %v5755
        %v5781 = vrcp.pop %v5757
        %v5782 = vrcp.pop %v5759
        %v5783 = vrcp.pop %v5761
        %v5784 = vrcp.pop %v5763
        %v5785 = vrcp.pop %v5765
        %v5786 = vrcp.pop %v5767
        %v5787 = vrcp.pop %v5769
        %v5788 = vrcp.pop %v5771
        %v5789 = vrcp.pop %v5773
        %v5790 = vld [vmem:[#allocation8 + $0x38] sm:$0xf]
        %v5791 = vld [vmem:[#allocation8 + $0x3c] sm:$0xf]
        %5792 = vrot.lane.b32.xlu0 %v1239, 16
        %v5793 = vpop.permute.xlu0 %5792
        %5794 = vrot.lane.b32.xlu0 %v1240, 16
        %v5795 = vpop.permute.xlu0 %5794
        %5796 = vrot.lane.b32.xlu0 %v1241, 16
        %v5797 = vpop.permute.xlu0 %5796
        %5798 = vrot.lane.b32.xlu0 %v1242, 16
        %v5799 = vpop.permute.xlu0 %5798
        %5800 = vrot.lane.b32.xlu0 %v1243, 16
        %v5801 = vpop.permute.xlu0 %5800
        %5802 = vrot.lane.b32.xlu0 %v1244, 16
        %v5803 = vpop.permute.xlu0 %5802
        %5804 = vrot.lane.b32.xlu0 %v1245, 16
        %v5805 = vpop.permute.xlu0 %5804
        %5806 = vrot.lane.b32.xlu0 %v1246, 16
        %v5807 = vpop.permute.xlu0 %5806
        %v5810 = vunpack.c.l.b16 %v5790
        %v5811 = vunpack.c.l.b16 %v5791
        %v5812 = vpack.c.b16 %v5811, %v5810
        %v5815 = vsel %vm1247, %v5793, 0
        %v5818 = vsel %vm1247, %v5795, 0
        %v5821 = vsel %vm1247, %v5797, 0
        %v5824 = vsel %vm1247, %v5799, 0
        %v5827 = vsel %vm1247, %v5801, 0
        %v5830 = vsel %vm1247, %v5803, 0
        %v5833 = vsel %vm1247, %v5805, 0
        %v5836 = vsel %vm1247, %v5807, 0
        %5838 = vmatprep.subr.bf16.mxu0 0
        %5839 = vmatpush1.bf16.msra.mxu0 %v5812
        %5840 = vmatprep.subr.bf16.mxu0 0
        %5841 = vmatpush1.bf16.msra.mxu0 0
        %5842 = vmatprep.subr.bf16.mxu0 0
        %5843 = vmatpush1.bf16.msra.mxu0 0
        %5844 = vmatprep.subr.bf16.mxu0 0
        %5845 = vmatpush1.bf16.msra.mxu0 0
        %5846 = vmatprep.subr.bf16.mxu0 0
        %5847 = vmatpush1.bf16.msra.mxu0 0
        %5848 = vmatprep.subr.bf16.mxu0 0
        %5849 = vmatpush1.bf16.msra.mxu0 0
        %5850 = vmatprep.subr.bf16.mxu0 0
        %5851 = vmatpush1.bf16.msra.mxu0 0
        %5852 = vmatprep.subr.bf16.mxu0 0
        %5853 = vmatpush1.bf16.msra.mxu0 0
        %5854 = vmatprep.subr.bf16.mxu0 0
        %5855 = vmatpush1.bf16.msra.mxu0 0
        %5856 = vmatprep.subr.bf16.mxu0 0
        %5857 = vmatpush1.bf16.msra.mxu0 0
        %5858 = vmatprep.subr.bf16.mxu0 0
        %5859 = vmatpush1.bf16.msra.mxu0 0
        %5860 = vmatprep.subr.bf16.mxu0 0
        %5861 = vmatpush1.bf16.msra.mxu0 0
        %5862 = vmatprep.subr.bf16.mxu0 0
        %5863 = vmatpush1.bf16.msra.mxu0 0
        %5864 = vmatprep.subr.bf16.mxu0 0
        %5865 = vmatpush1.bf16.msra.mxu0 0
        %5866 = vmatprep.subr.bf16.mxu0 0
        %5867 = vmatpush1.bf16.msra.mxu0 0
        %5868 = vmatprep.subr.bf16.mxu0 0
        %5869 = vmatpush1.bf16.msra.mxu0 0
        %5870 = vmatprep.mubr.bf16.mxu0 0
        %5871 = vmatmul.mubr.bf16.gmra.mrb[0].mxu0 %v5815
        %v5872 = vpop.f32.mrb[0].mxu0
        %v5873 = vadd.f32 0.0, %v5872
        %v5874 = vpop.f32.mrb[0].mxu0
        %v5875 = vpop.f32.mrb[0].mxu0
        %v5876 = vadd.f32 0.0, %v5875
        %v5877 = vpop.f32.mrb[0].mxu0
        %5878 = vmatprep.mubr.bf16.mxu0 0
        %5879 = vmatmul.mubr.bf16.gmra.mrb[0].mxu0 %v5818
        %v5880 = vpop.f32.mrb[0].mxu0
        %v5881 = vadd.f32 0.0, %v5880
        %v5882 = vpop.f32.mrb[0].mxu0
        %v5883 = vpop.f32.mrb[0].mxu0
        %v5884 = vadd.f32 0.0, %v5883
        %v5885 = vpop.f32.mrb[0].mxu0
        %5886 = vmatprep.mubr.bf16.mxu0 0
        %5887 = vmatmul.mubr.bf16.gmra.mrb[0].mxu0 %v5821
        %v5888 = vpop.f32.mrb[0].mxu0
        %v5889 = vadd.f32 0.0, %v5888
        %v5890 = vpop.f32.mrb[0].mxu0
        %v5891 = vpop.f32.mrb[0].mxu0
        %v5892 = vadd.f32 0.0, %v5891
        %v5893 = vpop.f32.mrb[0].mxu0
        %5894 = vmatprep.mubr.bf16.mxu0 0
        %5895 = vmatmul.mubr.bf16.gmra.mrb[0].mxu0 %v5824
        %v5896 = vpop.f32.mrb[0].mxu0
        %v5897 = vadd.f32 0.0, %v5896
        %v5898 = vpop.f32.mrb[0].mxu0
        %v5899 = vpop.f32.mrb[0].mxu0
        %v5900 = vadd.f32 0.0, %v5899
        %v5901 = vpop.f32.mrb[0].mxu0
        %5902 = vmatprep.mubr.bf16.mxu0 0
        %5903 = vmatmul.mubr.bf16.gmra.mrb[0].mxu0 %v5827
        %v5904 = vpop.f32.mrb[0].mxu0
        %v5905 = vadd.f32 0.0, %v5904
        %v5906 = vpop.f32.mrb[0].mxu0
        %v5907 = vpop.f32.mrb[0].mxu0
        %v5908 = vadd.f32 0.0, %v5907
        %v5909 = vpop.f32.mrb[0].mxu0
        %5910 = vmatprep.mubr.bf16.mxu0 0
        %5911 = vmatmul.mubr.bf16.gmra.mrb[0].mxu0 %v5830
        %v5912 = vpop.f32.mrb[0].mxu0
        %v5913 = vadd.f32 0.0, %v5912
        %v5914 = vpop.f32.mrb[0].mxu0
        %v5915 = vpop.f32.mrb[0].mxu0
        %v5916 = vadd.f32 0.0, %v5915
        %v5917 = vpop.f32.mrb[0].mxu0
        %5918 = vmatprep.mubr.bf16.mxu0 0
        %5919 = vmatmul.mubr.bf16.gmra.mrb[0].mxu0 %v5833
        %v5920 = vpop.f32.mrb[0].mxu0
        %v5921 = vadd.f32 0.0, %v5920
        %v5922 = vpop.f32.mrb[0].mxu0
        %v5923 = vpop.f32.mrb[0].mxu0
        %v5924 = vadd.f32 0.0, %v5923
        %v5925 = vpop.f32.mrb[0].mxu0
        %5926 = vmatprep.mubr.bf16.mxu0 0
        %5927 = vmatmul.mubr.bf16.gmra.mrb[0].mxu0 %v5836
        %v5928 = vpop.f32.mrb[0].mxu0
        %v5929 = vadd.f32 0.0, %v5928
        %v5930 = vpop.f32.mrb[0].mxu0
        %v5931 = vpop.f32.mrb[0].mxu0
        %v5932 = vadd.f32 0.0, %v5931
        %v5933 = vpop.f32.mrb[0].mxu0
        %5934 = vdwg.mxu0
        %v5935 = vpack.c.bf16 %v5876, %v5873
        %v5936 = vpack.c.bf16 %v5884, %v5881
        %v5937 = vpack.c.bf16 %v5892, %v5889
        %v5938 = vpack.c.bf16 %v5900, %v5897
        %v5939 = vpack.c.bf16 %v5908, %v5905
        %v5940 = vpack.c.bf16 %v5916, %v5913
        %v5941 = vpack.c.bf16 %v5924, %v5921
        %v5942 = vpack.c.bf16 %v5932, %v5929
        %v5943 = vmul.f32 %v5711, %v5774
        %v5944 = vmul.f32 %v5713, %v5775
        %v5945 = vmul.f32 %v5715, %v5776
        %v5946 = vmul.f32 %v5717, %v5777
        %v5947 = vmul.f32 %v5719, %v5778
        %v5948 = vmul.f32 %v5721, %v5779
        %v5949 = vmul.f32 %v5723, %v5780
        %v5950 = vmul.f32 %v5725, %v5781
        %v5951 = vmul.f32 %v5727, %v5782
        %v5952 = vmul.f32 %v5729, %v5783
        %v5953 = vmul.f32 %v5731, %v5784
        %v5954 = vmul.f32 %v5733, %v5785
        %v5955 = vmul.f32 %v5735, %v5786
        %v5956 = vmul.f32 %v5737, %v5787
        %v5957 = vmul.f32 %v5739, %v5788
        %v5958 = vmul.f32 %v5741, %v5789
        %v5959 = vpack.c.bf16 %v5944, %v5943
        %v5960 = vpack.c.bf16 %v5946, %v5945
        %v5961 = vpack.c.bf16 %v5948, %v5947
        %v5962 = vpack.c.bf16 %v5950, %v5949
        %v5963 = vpack.c.bf16 %v5952, %v5951
        %v5964 = vpack.c.bf16 %v5954, %v5953
        %v5965 = vpack.c.bf16 %v5956, %v5955
        %v5966 = vpack.c.bf16 %v5958, %v5957
        %5967 = vmatprep.subr.bf16.mxu0 0
        %5968 = vmatpush1.bf16.msra.mxu0 %v5935
        %5969 = vmatprep.subr.bf16.mxu0 0
        %5970 = vmatpush1.bf16.msra.mxu0 %v5936
        %5971 = vmatprep.subr.bf16.mxu0 0
        %5972 = vmatpush1.bf16.msra.mxu0 %v5937
        %5973 = vmatprep.subr.bf16.mxu0 0
        %5974 = vmatpush1.bf16.msra.mxu0 %v5938
        %5975 = vmatprep.subr.bf16.mxu0 0
        %5976 = vmatpush1.bf16.msra.mxu0 %v5939
        %5977 = vmatprep.subr.bf16.mxu0 0
        %5978 = vmatpush1.bf16.msra.mxu0 %v5940
        %5979 = vmatprep.subr.bf16.mxu0 0
        %5980 = vmatpush1.bf16.msra.mxu0 %v5941
        %5981 = vmatprep.subr.bf16.mxu0 0
        %5982 = vmatpush1.bf16.msra.mxu0 %v5942
        %5983 = vmatprep.subr.bf16.mxu0 0
        %5984 = vmatpush1.bf16.msra.mxu0 0
        %5985 = vmatprep.subr.bf16.mxu0 0
        %5986 = vmatpush1.bf16.msra.mxu0 0
        %5987 = vmatprep.subr.bf16.mxu0 0
        %5988 = vmatpush1.bf16.msra.mxu0 0
        %5989 = vmatprep.subr.bf16.mxu0 0
        %5990 = vmatpush1.bf16.msra.mxu0 0
        %5991 = vmatprep.subr.bf16.mxu0 0
        %5992 = vmatpush1.bf16.msra.mxu0 0
        %5993 = vmatprep.subr.bf16.mxu0 0
        %5994 = vmatpush1.bf16.msra.mxu0 0
        %5995 = vmatprep.subr.bf16.mxu0 0
        %5996 = vmatpush1.bf16.msra.mxu0 0
        %5997 = vmatprep.subr.bf16.mxu0 0
        %5998 = vmatpush1.bf16.msra.mxu0 0
        %5999 = vmatprep.mubr.bf16.mxu0 0
        %6000 = vmatmul.mubr.bf16.gmra.mrb[0].mxu0 %v5959
        %v6001 = vpop.f32.mrb[0].mxu0
        %v6002 = vadd.f32 0.0, %v6001
        %v6003 = vpop.f32.mrb[0].mxu0
        %v6004 = vpop.f32.mrb[0].mxu0
        %v6005 = vadd.f32 0.0, %v6004
        %v6006 = vpop.f32.mrb[0].mxu0
        %6007 = vmatprep.mubr.bf16.mxu0 0
        %6008 = vmatmul.mubr.bf16.gmra.mrb[0].mxu0 %v5960
        %v6009 = vpop.f32.mrb[0].mxu0
        %v6010 = vadd.f32 0.0, %v6009
        %v6011 = vpop.f32.mrb[0].mxu0
        %v6012 = vpop.f32.mrb[0].mxu0
        %v6013 = vadd.f32 0.0, %v6012
        %v6014 = vpop.f32.mrb[0].mxu0
        %6015 = vmatprep.mubr.bf16.mxu0 0
        %6016 = vmatmul.mubr.bf16.gmra.mrb[0].mxu0 %v5961
        %v6017 = vpop.f32.mrb[0].mxu0
        %v6018 = vadd.f32 0.0, %v6017
        %v6019 = vpop.f32.mrb[0].mxu0
        %v6020 = vpop.f32.mrb[0].mxu0
        %v6021 = vadd.f32 0.0, %v6020
        %v6022 = vpop.f32.mrb[0].mxu0
        %6023 = vmatprep.mubr.bf16.mxu0 0
        %6024 = vmatmul.mubr.bf16.gmra.mrb[0].mxu0 %v5962
        %v6025 = vpop.f32.mrb[0].mxu0
        %v6026 = vadd.f32 0.0, %v6025
        %v6027 = vpop.f32.mrb[0].mxu0
        %v6028 = vpop.f32.mrb[0].mxu0
        %v6029 = vadd.f32 0.0, %v6028
        %v6030 = vpop.f32.mrb[0].mxu0
        %6031 = vmatprep.mubr.bf16.mxu0 0
        %6032 = vmatmul.mubr.bf16.gmra.mrb[0].mxu0 %v5963
        %v6033 = vpop.f32.mrb[0].mxu0
        %v6034 = vadd.f32 0.0, %v6033
        %v6035 = vpop.f32.mrb[0].mxu0
        %v6036 = vpop.f32.mrb[0].mxu0
        %v6037 = vadd.f32 0.0, %v6036
        %v6038 = vpop.f32.mrb[0].mxu0
        %6039 = vmatprep.mubr.bf16.mxu0 0
        %6040 = vmatmul.mubr.bf16.gmra.mrb[0].mxu0 %v5964
        %v6041 = vpop.f32.mrb[0].mxu0
        %v6042 = vadd.f32 0.0, %v6041
        %v6043 = vpop.f32.mrb[0].mxu0
        %v6044 = vpop.f32.mrb[0].mxu0
        %v6045 = vadd.f32 0.0, %v6044
        %v6046 = vpop.f32.mrb[0].mxu0
        %6047 = vmatprep.mubr.bf16.mxu0 0
        %6048 = vmatmul.mubr.bf16.gmra.mrb[0].mxu0 %v5965
        %v6049 = vpop.f32.mrb[0].mxu0
        %v6050 = vadd.f32 0.0, %v6049
        %v6051 = vpop.f32.mrb[0].mxu0
        %v6052 = vpop.f32.mrb[0].mxu0
        %v6053 = vadd.f32 0.0, %v6052
        %v6054 = vpop.f32.mrb[0].mxu0
        %6055 = vmatprep.mubr.bf16.mxu0 0
        %6056 = vmatmul.mubr.bf16.gmra.mrb[0].mxu0 %v5966
        %v6057 = vpop.f32.mrb[0].mxu0
        %v6058 = vadd.f32 0.0, %v6057
        %v6059 = vpop.f32.mrb[0].mxu0
        %v6060 = vpop.f32.mrb[0].mxu0
        %v6061 = vadd.f32 0.0, %v6060
        %v6062 = vpop.f32.mrb[0].mxu0
        %6063 = vdwg.mxu0
        %v6064 = vadd.f32 %v5453, %v6002
        %v6065 = vadd.f32 %v5454, %v6005
        %v6066 = vadd.f32 %v5455, %v6010
        %v6067 = vadd.f32 %v5456, %v6013
        %v6068 = vadd.f32 %v5457, %v6018
        %v6069 = vadd.f32 %v5458, %v6021
        %v6070 = vadd.f32 %v5459, %v6026
        %v6071 = vadd.f32 %v5460, %v6029
        %v6072 = vadd.f32 %v5461, %v6034
        %v6073 = vadd.f32 %v5462, %v6037
        %v6074 = vadd.f32 %v5463, %v6042
        %v6075 = vadd.f32 %v5464, %v6045
        %v6076 = vadd.f32 %v5465, %v6050
        %v6077 = vadd.f32 %v5466, %v6053
        %v6078 = vadd.f32 %v5467, %v6058
        %v6079 = vadd.f32 %v5468, %v6061
        %v6080 = vld [vmem:[%s433] sm:$0xff]
        %v6081 = vld [vmem:[%s433 + $0x8] sm:$0xff]
        %v6082 = vld [vmem:[%s433 + $0x10] sm:$0xff]
        %v6083 = vld [vmem:[%s433 + $0x18] sm:$0xff]
        %v6084 = vld [vmem:[%s433 + $0x20] sm:$0xff]
        %v6085 = vld [vmem:[%s433 + $0x28] sm:$0xff]
        %v6086 = vld [vmem:[%s433 + $0x30] sm:$0xff]
        %v6087 = vld [vmem:[%s433 + $0x38] sm:$0xff]
        %v6088 = vld [vmem:[%s433 + $0x40] sm:$0xff]
        %v6089 = vld [vmem:[%s433 + $0x48] sm:$0xff]
        %v6090 = vld [vmem:[%s433 + $0x50] sm:$0xff]
        %v6091 = vld [vmem:[%s433 + $0x58] sm:$0xff]
        %v6092 = vld [vmem:[%s433 + $0x60] sm:$0xff]
        %v6093 = vld [vmem:[%s433 + $0x68] sm:$0xff]
        %v6094 = vld [vmem:[%s433 + $0x70] sm:$0xff]
        %v6095 = vld [vmem:[%s433 + $0x78] sm:$0xff]
        %v6096 = vadd.f32 %v6080, %v6064
        %v6097 = vadd.f32 %v6081, %v6065
        %v6098 = vadd.f32 %v6082, %v6066
        %v6099 = vadd.f32 %v6083, %v6067
        %v6100 = vadd.f32 %v6084, %v6068
        %v6101 = vadd.f32 %v6085, %v6069
        %v6102 = vadd.f32 %v6086, %v6070
        %v6103 = vadd.f32 %v6087, %v6071
        %v6104 = vadd.f32 %v6088, %v6072
        %v6105 = vadd.f32 %v6089, %v6073
        %v6106 = vadd.f32 %v6090, %v6074
        %v6107 = vadd.f32 %v6091, %v6075
        %v6108 = vadd.f32 %v6092, %v6076
        %v6109 = vadd.f32 %v6093, %v6077
        %v6110 = vadd.f32 %v6094, %v6078
        %v6111 = vadd.f32 %v6095, %v6079
        %v6112 = vld [vmem:[%s3] sm:$0x1]
        %v6114 = vlaneseq
        %v6115 = vshrl.u32 %v6114, 7
        %v6116 = vsub.s32 0, %v6115
        %v6117 = vrot.slane %v6112, %v6116
        %v6119 = vadd.f32 %v6096, %v6117
        %v6120 = vadd.f32 %v6097, %v6117
        %v6121 = vadd.f32 %v6098, %v6117
        %v6122 = vadd.f32 %v6099, %v6117
        %v6123 = vadd.f32 %v6100, %v6117
        %v6124 = vadd.f32 %v6101, %v6117
        %v6125 = vadd.f32 %v6102, %v6117
        %v6126 = vadd.f32 %v6103, %v6117
        %v6127 = vadd.f32 %v6104, %v6117
        %v6128 = vadd.f32 %v6105, %v6117
        %v6129 = vadd.f32 %v6106, %v6117
        %v6130 = vadd.f32 %v6107, %v6117
        %v6131 = vadd.f32 %v6108, %v6117
        %v6132 = vadd.f32 %v6109, %v6117
        %v6133 = vadd.f32 %v6110, %v6117
        %v6134 = vadd.f32 %v6111, %v6117
        %v6135 = vld [vmem:[%s6] sm:$0x1]
        %v6136 = vld [vmem:[%s7] sm:$0x1]
        %6137 = vadd.xlane.f32.xlu0 %v6119
        %v6138 = vpop.xlane.xlu0 %6137
        %6139 = vadd.xlane.f32.xlu0 %v6120
        %v6140 = vpop.xlane.xlu0 %6139
        %6141 = vadd.xlane.f32.xlu0 %v6121
        %v6142 = vpop.xlane.xlu0 %6141
        %6143 = vadd.xlane.f32.xlu0 %v6122
        %v6144 = vpop.xlane.xlu0 %6143
        %6145 = vadd.xlane.f32.xlu0 %v6123
        %v6146 = vpop.xlane.xlu0 %6145
        %6147 = vadd.xlane.f32.xlu0 %v6124
        %v6148 = vpop.xlane.xlu0 %6147
        %6149 = vadd.xlane.f32.xlu0 %v6125
        %v6150 = vpop.xlane.xlu0 %6149
        %6151 = vadd.xlane.f32.xlu0 %v6126
        %v6152 = vpop.xlane.xlu0 %6151
        %6153 = vadd.xlane.f32.xlu0 %v6127
        %v6154 = vpop.xlane.xlu0 %6153
        %6155 = vadd.xlane.f32.xlu0 %v6128
        %v6156 = vpop.xlane.xlu0 %6155
        %6157 = vadd.xlane.f32.xlu0 %v6129
        %v6158 = vpop.xlane.xlu0 %6157
        %6159 = vadd.xlane.f32.xlu0 %v6130
        %v6160 = vpop.xlane.xlu0 %6159
        %6161 = vadd.xlane.f32.xlu0 %v6131
        %v6162 = vpop.xlane.xlu0 %6161
        %6163 = vadd.xlane.f32.xlu0 %v6132
        %v6164 = vpop.xlane.xlu0 %6163
        %6165 = vadd.xlane.f32.xlu0 %v6133
        %v6166 = vpop.xlane.xlu0 %6165
        %6167 = vadd.xlane.f32.xlu0 %v6134
        %v6168 = vpop.xlane.xlu0 %6167
        %v6169 = vmul.f32 %v6138, %v541
        %v6170 = vmul.f32 %v6140, %v541
        %v6171 = vmul.f32 %v6142, %v541
        %v6172 = vmul.f32 %v6144, %v541
        %v6173 = vmul.f32 %v6146, %v541
        %v6174 = vmul.f32 %v6148, %v541
        %v6175 = vmul.f32 %v6150, %v541
        %v6176 = vmul.f32 %v6152, %v541
        %v6177 = vmul.f32 %v6154, %v541
        %v6178 = vmul.f32 %v6156, %v541
        %v6179 = vmul.f32 %v6158, %v541
        %v6180 = vmul.f32 %v6160, %v541
        %v6181 = vmul.f32 %v6162, %v541
        %v6182 = vmul.f32 %v6164, %v541
        %v6183 = vmul.f32 %v6166, %v541
        %v6184 = vmul.f32 %v6168, %v541
        %v6185 = vmul.f32 %v6119, %v6119
        %v6186 = vmul.f32 %v6120, %v6120
        %v6187 = vmul.f32 %v6121, %v6121
        %v6188 = vmul.f32 %v6122, %v6122
        %v6189 = vmul.f32 %v6123, %v6123
        %v6190 = vmul.f32 %v6124, %v6124
        %v6191 = vmul.f32 %v6125, %v6125
        %v6192 = vmul.f32 %v6126, %v6126
        %v6193 = vmul.f32 %v6127, %v6127
        %v6194 = vmul.f32 %v6128, %v6128
        %v6195 = vmul.f32 %v6129, %v6129
        %v6196 = vmul.f32 %v6130, %v6130
        %v6197 = vmul.f32 %v6131, %v6131
        %v6198 = vmul.f32 %v6132, %v6132
        %v6199 = vmul.f32 %v6133, %v6133
        %v6200 = vmul.f32 %v6134, %v6134
        %6201 = vadd.xlane.f32.xlu0 %v6185
        %v6202 = vpop.xlane.xlu0 %6201
        %6203 = vadd.xlane.f32.xlu0 %v6186
        %v6204 = vpop.xlane.xlu0 %6203
        %6205 = vadd.xlane.f32.xlu0 %v6187
        %v6206 = vpop.xlane.xlu0 %6205
        %6207 = vadd.xlane.f32.xlu0 %v6188
        %v6208 = vpop.xlane.xlu0 %6207
        %6209 = vadd.xlane.f32.xlu0 %v6189
        %v6210 = vpop.xlane.xlu0 %6209
        %6211 = vadd.xlane.f32.xlu0 %v6190
        %v6212 = vpop.xlane.xlu0 %6211
        %6213 = vadd.xlane.f32.xlu0 %v6191
        %v6214 = vpop.xlane.xlu0 %6213
        %6215 = vadd.xlane.f32.xlu0 %v6192
        %v6216 = vpop.xlane.xlu0 %6215
        %6217 = vadd.xlane.f32.xlu0 %v6193
        %v6218 = vpop.xlane.xlu0 %6217
        %6219 = vadd.xlane.f32.xlu0 %v6194
        %v6220 = vpop.xlane.xlu0 %6219
        %6221 = vadd.xlane.f32.xlu0 %v6195
        %v6222 = vpop.xlane.xlu0 %6221
        %6223 = vadd.xlane.f32.xlu0 %v6196
        %v6224 = vpop.xlane.xlu0 %6223
        %6225 = vadd.xlane.f32.xlu0 %v6197
        %v6226 = vpop.xlane.xlu0 %6225
        %6227 = vadd.xlane.f32.xlu0 %v6198
        %v6228 = vpop.xlane.xlu0 %6227
        %6229 = vadd.xlane.f32.xlu0 %v6199
        %v6230 = vpop.xlane.xlu0 %6229
        %6231 = vadd.xlane.f32.xlu0 %v6200
        %v6232 = vpop.xlane.xlu0 %6231
        %v6233 = vmul.f32 %v6202, %v541
        %v6234 = vmul.f32 %v6204, %v541
        %v6235 = vmul.f32 %v6206, %v541
        %v6236 = vmul.f32 %v6208, %v541
        %v6237 = vmul.f32 %v6210, %v541
        %v6238 = vmul.f32 %v6212, %v541
        %v6239 = vmul.f32 %v6214, %v541
        %v6240 = vmul.f32 %v6216, %v541
        %v6241 = vmul.f32 %v6218, %v541
        %v6242 = vmul.f32 %v6220, %v541
        %v6243 = vmul.f32 %v6222, %v541
        %v6244 = vmul.f32 %v6224, %v541
        %v6245 = vmul.f32 %v6226, %v541
        %v6246 = vmul.f32 %v6228, %v541
        %v6247 = vmul.f32 %v6230, %v541
        %v6248 = vmul.f32 %v6232, %v541
        %v6249 = vmul.f32 %v6169, %v6169
        %v6250 = vmul.f32 %v6170, %v6170
        %v6251 = vmul.f32 %v6171, %v6171
        %v6252 = vmul.f32 %v6172, %v6172
        %v6253 = vmul.f32 %v6173, %v6173
        %v6254 = vmul.f32 %v6174, %v6174
        %v6255 = vmul.f32 %v6175, %v6175
        %v6256 = vmul.f32 %v6176, %v6176
        %v6257 = vmul.f32 %v6177, %v6177
        %v6258 = vmul.f32 %v6178, %v6178
        %v6259 = vmul.f32 %v6179, %v6179
        %v6260 = vmul.f32 %v6180, %v6180
        %v6261 = vmul.f32 %v6181, %v6181
        %v6262 = vmul.f32 %v6182, %v6182
        %v6263 = vmul.f32 %v6183, %v6183
        %v6264 = vmul.f32 %v6184, %v6184
        %v6265 = vsub.f32 %v6233, %v6249
        %v6266 = vsub.f32 %v6234, %v6250
        %v6267 = vsub.f32 %v6235, %v6251
        %v6268 = vsub.f32 %v6236, %v6252
        %v6269 = vsub.f32 %v6237, %v6253
        %v6270 = vsub.f32 %v6238, %v6254
        %v6271 = vsub.f32 %v6239, %v6255
        %v6272 = vsub.f32 %v6240, %v6256
        %v6273 = vsub.f32 %v6241, %v6257
        %v6274 = vsub.f32 %v6242, %v6258
        %v6275 = vsub.f32 %v6243, %v6259
        %v6276 = vsub.f32 %v6244, %v6260
        %v6277 = vsub.f32 %v6245, %v6261
        %v6278 = vsub.f32 %v6246, %v6262
        %v6279 = vsub.f32 %v6247, %v6263
        %v6280 = vsub.f32 %v6248, %v6264
        %v6281 = vsub.f32 %v6119, %v6169
        %v6282 = vsub.f32 %v6120, %v6170
        %v6283 = vsub.f32 %v6121, %v6171
        %v6284 = vsub.f32 %v6122, %v6172
        %v6285 = vsub.f32 %v6123, %v6173
        %v6286 = vsub.f32 %v6124, %v6174
        %v6287 = vsub.f32 %v6125, %v6175
        %v6288 = vsub.f32 %v6126, %v6176
        %v6289 = vsub.f32 %v6127, %v6177
        %v6290 = vsub.f32 %v6128, %v6178
        %v6291 = vsub.f32 %v6129, %v6179
        %v6292 = vsub.f32 %v6130, %v6180
        %v6293 = vsub.f32 %v6131, %v6181
        %v6294 = vsub.f32 %v6132, %v6182
        %v6295 = vsub.f32 %v6133, %v6183
        %v6296 = vsub.f32 %v6134, %v6184
        %v6297 = vadd.f32 %v6265, 1e-05
        %v6298 = vadd.f32 %v6266, 1e-05
        %v6299 = vadd.f32 %v6267, 1e-05
        %v6300 = vadd.f32 %v6268, 1e-05
        %v6301 = vadd.f32 %v6269, 1e-05
        %v6302 = vadd.f32 %v6270, 1e-05
        %v6303 = vadd.f32 %v6271, 1e-05
        %v6304 = vadd.f32 %v6272, 1e-05
        %v6305 = vadd.f32 %v6273, 1e-05
        %v6306 = vadd.f32 %v6274, 1e-05
        %v6307 = vadd.f32 %v6275, 1e-05
        %v6308 = vadd.f32 %v6276, 1e-05
        %v6309 = vadd.f32 %v6277, 1e-05
        %v6310 = vadd.f32 %v6278, 1e-05
        %v6311 = vadd.f32 %v6279, 1e-05
        %v6312 = vadd.f32 %v6280, 1e-05
        %v6313 = vrsqrt.pop %v6297
        %v6314 = vrsqrt.pop %v6298
        %v6315 = vrsqrt.pop %v6299
        %v6316 = vrsqrt.pop %v6300
        %v6317 = vrsqrt.pop %v6301
        %v6318 = vrsqrt.pop %v6302
        %v6319 = vrsqrt.pop %v6303
        %v6320 = vrsqrt.pop %v6304
        %v6321 = vrsqrt.pop %v6305
        %v6322 = vrsqrt.pop %v6306
        %v6323 = vrsqrt.pop %v6307
        %v6324 = vrsqrt.pop %v6308
        %v6325 = vrsqrt.pop %v6309
        %v6326 = vrsqrt.pop %v6310
        %v6327 = vrsqrt.pop %v6311
        %v6328 = vrsqrt.pop %v6312
        %v6329 = vmul.f32 %v6281, %v6313
        %v6330 = vmul.f32 %v6282, %v6314
        %v6331 = vmul.f32 %v6283, %v6315
        %v6332 = vmul.f32 %v6284, %v6316
        %v6333 = vmul.f32 %v6285, %v6317
        %v6334 = vmul.f32 %v6286, %v6318
        %v6335 = vmul.f32 %v6287, %v6319
        %v6336 = vmul.f32 %v6288, %v6320
        %v6337 = vmul.f32 %v6289, %v6321
        %v6338 = vmul.f32 %v6290, %v6322
        %v6339 = vmul.f32 %v6291, %v6323
        %v6340 = vmul.f32 %v6292, %v6324
        %v6341 = vmul.f32 %v6293, %v6325
        %v6342 = vmul.f32 %v6294, %v6326
        %v6343 = vmul.f32 %v6295, %v6327
        %v6344 = vmul.f32 %v6296, %v6328
        %v6346 = vlaneseq
        %v6347 = vshrl.u32 %v6346, 7
        %v6348 = vsub.s32 0, %v6347
        %v6349 = vrot.slane %v6135, %v6348
        %v6351 = vmul.f32 %v6329, %v6349
        %v6352 = vmul.f32 %v6330, %v6349
        %v6353 = vmul.f32 %v6331, %v6349
        %v6354 = vmul.f32 %v6332, %v6349
        %v6355 = vmul.f32 %v6333, %v6349
        %v6356 = vmul.f32 %v6334, %v6349
        %v6357 = vmul.f32 %v6335, %v6349
        %v6358 = vmul.f32 %v6336, %v6349
        %v6359 = vmul.f32 %v6337, %v6349
        %v6360 = vmul.f32 %v6338, %v6349
        %v6361 = vmul.f32 %v6339, %v6349
        %v6362 = vmul.f32 %v6340, %v6349
        %v6363 = vmul.f32 %v6341, %v6349
        %v6364 = vmul.f32 %v6342, %v6349
        %v6365 = vmul.f32 %v6343, %v6349
        %v6366 = vmul.f32 %v6344, %v6349
        %v6368 = vlaneseq
        %v6369 = vshrl.u32 %v6368, 7
        %v6370 = vsub.s32 0, %v6369
        %v6371 = vrot.slane %v6136, %v6370
        %v6373 = vadd.f32 %v6351, %v6371
        %v6374 = vadd.f32 %v6352, %v6371
        %v6375 = vadd.f32 %v6353, %v6371
        %v6376 = vadd.f32 %v6354, %v6371
        %v6377 = vadd.f32 %v6355, %v6371
        %v6378 = vadd.f32 %v6356, %v6371
        %v6379 = vadd.f32 %v6357, %v6371
        %v6380 = vadd.f32 %v6358, %v6371
        %v6381 = vadd.f32 %v6359, %v6371
        %v6382 = vadd.f32 %v6360, %v6371
        %v6383 = vadd.f32 %v6361, %v6371
        %v6384 = vadd.f32 %v6362, %v6371
        %v6385 = vadd.f32 %v6363, %v6371
        %v6386 = vadd.f32 %v6364, %v6371
        %v6387 = vadd.f32 %v6365, %v6371
        %v6388 = vadd.f32 %v6366, %v6371
        %v6389 = vpack.c.bf16 %v6374, %v6373
        %v6390 = vpack.c.bf16 %v6376, %v6375
        %v6391 = vpack.c.bf16 %v6378, %v6377
        %v6392 = vpack.c.bf16 %v6380, %v6379
        %v6393 = vpack.c.bf16 %v6382, %v6381
        %v6394 = vpack.c.bf16 %v6384, %v6383
        %v6395 = vpack.c.bf16 %v6386, %v6385
        %v6396 = vpack.c.bf16 %v6388, %v6387
        %v6397 = vld [vmem:[#allocation9] sm:$0xff]
        %v6398 = vld [vmem:[#allocation9 + $0x8] sm:$0xff]
        %v6399 = vld [vmem:[#allocation9 + $0x10] sm:$0xff]
        %v6400 = vld [vmem:[#allocation9 + $0x18] sm:$0xff]
        %v6401 = vld [vmem:[#allocation9 + $0x20] sm:$0xff]
        %v6402 = vld [vmem:[#allocation9 + $0x28] sm:$0xff]
        %v6403 = vld [vmem:[#allocation9 + $0x30] sm:$0xff]
        %v6404 = vld [vmem:[#allocation9 + $0x38] sm:$0xff]
        %v6405 = vld [vmem:[#allocation9 + $0x40] sm:$0xff]
        %v6406 = vld [vmem:[#allocation9 + $0x48] sm:$0xff]
        %v6407 = vld [vmem:[#allocation9 + $0x50] sm:$0xff]
        %v6408 = vld [vmem:[#allocation9 + $0x58] sm:$0xff]
        %v6409 = vld [vmem:[#allocation9 + $0x60] sm:$0xff]
        %v6410 = vld [vmem:[#allocation9 + $0x68] sm:$0xff]
        %v6411 = vld [vmem:[#allocation9 + $0x70] sm:$0xff]
        %v6412 = vld [vmem:[#allocation9 + $0x78] sm:$0xff]
        %v6413 = vld [vmem:[#allocation9 + $0x80] sm:$0xff]
        %v6414 = vld [vmem:[#allocation9 + $0x88] sm:$0xff]
        %v6415 = vld [vmem:[#allocation9 + $0x90] sm:$0xff]
        %v6416 = vld [vmem:[#allocation9 + $0x98] sm:$0xff]
        %v6417 = vld [vmem:[#allocation9 + $0xa0] sm:$0xff]
        %v6418 = vld [vmem:[#allocation9 + $0xa8] sm:$0xff]
        %v6419 = vld [vmem:[#allocation9 + $0xb0] sm:$0xff]
        %v6420 = vld [vmem:[#allocation9 + $0xb8] sm:$0xff]
        %v6421 = vld [vmem:[#allocation9 + $0xc0] sm:$0xff]
        %v6422 = vld [vmem:[#allocation9 + $0xc8] sm:$0xff]
        %v6423 = vld [vmem:[#allocation9 + $0xd0] sm:$0xff]
        %v6424 = vld [vmem:[#allocation9 + $0xd8] sm:$0xff]
        %v6425 = vld [vmem:[#allocation9 + $0xe0] sm:$0xff]
        %v6426 = vld [vmem:[#allocation9 + $0xe8] sm:$0xff]
        %v6427 = vld [vmem:[#allocation9 + $0xf0] sm:$0xff]
        %v6428 = vld [vmem:[#allocation9 + $0xf8] sm:$0xff]
        %v6429 = vld [vmem:[%s9] sm:$0xf]
        %v6431 = vlaneseq
        %v6432 = vshrl.u32 %v6431, 7
        %v6433 = vsub.s32 0, %v6432
        %v6434 = vrot.slane %v6429, %v6433
        %v6435 = vlaneseq
        %v6436 = vshrl.u32 %v6435, 7
        %v6437 = vsub.s32 1, %v6436
        %v6438 = vrot.slane %v6429, %v6437
        %v6439 = vlaneseq
        %v6440 = vshrl.u32 %v6439, 7
        %v6441 = vsub.s32 2, %v6440
        %v6442 = vrot.slane %v6429, %v6441
        %v6443 = vlaneseq
        %v6444 = vshrl.u32 %v6443, 7
        %v6445 = vsub.s32 3, %v6444
        %v6446 = vrot.slane %v6429, %v6445
        %v6483 = vunpack.c.l.b16 %v6397
        %v6484 = vunpack.c.h.b16 %v6397
        %v6485 = vunpack.c.l.b16 %v6398
        %v6486 = vunpack.c.h.b16 %v6398
        %v6487 = vunpack.c.l.b16 %v6399
        %v6488 = vunpack.c.h.b16 %v6399
        %v6489 = vunpack.c.l.b16 %v6400
        %v6490 = vunpack.c.h.b16 %v6400
        %v6491 = vunpack.c.l.b16 %v6401
        %v6492 = vunpack.c.h.b16 %v6401
        %v6493 = vunpack.c.l.b16 %v6402
        %v6494 = vunpack.c.h.b16 %v6402
        %v6495 = vunpack.c.l.b16 %v6403
        %v6496 = vunpack.c.h.b16 %v6403
        %v6497 = vunpack.c.l.b16 %v6404
        %v6498 = vunpack.c.h.b16 %v6404
        %v6499 = vunpack.c.l.b16 %v6405
        %v6500 = vunpack.c.h.b16 %v6405
        %v6501 = vunpack.c.l.b16 %v6406
        %v6502 = vunpack.c.h.b16 %v6406
        %v6503 = vunpack.c.l.b16 %v6407
        %v6504 = vunpack.c.h.b16 %v6407
        %v6505 = vunpack.c.l.b16 %v6408
        %v6506 = vunpack.c.h.b16 %v6408
        %v6507 = vunpack.c.l.b16 %v6409
        %v6508 = vunpack.c.h.b16 %v6409
        %v6509 = vunpack.c.l.b16 %v6410
        %v6510 = vunpack.c.h.b16 %v6410
        %v6511 = vunpack.c.l.b16 %v6411
        %v6512 = vunpack.c.h.b16 %v6411
        %v6513 = vunpack.c.l.b16 %v6412
        %v6514 = vunpack.c.h.b16 %v6412
        %v6515 = vunpack.c.l.b16 %v6413
        %v6516 = vunpack.c.h.b16 %v6413
        %v6517 = vunpack.c.l.b16 %v6414
        %v6518 = vunpack.c.h.b16 %v6414
        %v6519 = vunpack.c.l.b16 %v6415
        %v6520 = vunpack.c.h.b16 %v6415
        %v6521 = vunpack.c.l.b16 %v6416
        %v6522 = vunpack.c.h.b16 %v6416
        %v6523 = vunpack.c.l.b16 %v6417
        %v6524 = vunpack.c.h.b16 %v6417
        %v6525 = vunpack.c.l.b16 %v6418
        %v6526 = vunpack.c.h.b16 %v6418
        %v6527 = vunpack.c.l.b16 %v6419
        %v6528 = vunpack.c.h.b16 %v6419
        %v6529 = vunpack.c.l.b16 %v6420
        %v6530 = vunpack.c.h.b16 %v6420
        %v6531 = vunpack.c.l.b16 %v6421
        %v6532 = vunpack.c.h.b16 %v6421
        %v6533 = vunpack.c.l.b16 %v6422
        %v6534 = vunpack.c.h.b16 %v6422
        %v6535 = vunpack.c.l.b16 %v6423
        %v6536 = vunpack.c.h.b16 %v6423
        %v6537 = vunpack.c.l.b16 %v6424
        %v6538 = vunpack.c.h.b16 %v6424
        %v6539 = vunpack.c.l.b16 %v6425
        %v6540 = vunpack.c.h.b16 %v6425
        %v6541 = vunpack.c.l.b16 %v6426
        %v6542 = vunpack.c.h.b16 %v6426
        %v6543 = vunpack.c.l.b16 %v6427
        %v6544 = vunpack.c.h.b16 %v6427
        %v6545 = vunpack.c.l.b16 %v6428
        %v6546 = vunpack.c.h.b16 %v6428
        %v6547 = vpack.c.b16 %v6487, %v6483
        %v6548 = vpack.c.b16 %v6488, %v6484
        %v6549 = vpack.c.b16 %v6489, %v6485
        %v6550 = vpack.c.b16 %v6490, %v6486
        %v6551 = vpack.c.b16 %v6495, %v6491
        %v6552 = vpack.c.b16 %v6496, %v6492
        %v6553 = vpack.c.b16 %v6497, %v6493
        %v6554 = vpack.c.b16 %v6498, %v6494
        %v6555 = vpack.c.b16 %v6503, %v6499
        %v6556 = vpack.c.b16 %v6504, %v6500
        %v6557 = vpack.c.b16 %v6505, %v6501
        %v6558 = vpack.c.b16 %v6506, %v6502
        %v6559 = vpack.c.b16 %v6511, %v6507
        %v6560 = vpack.c.b16 %v6512, %v6508
        %v6561 = vpack.c.b16 %v6513, %v6509
        %v6562 = vpack.c.b16 %v6514, %v6510
        %v6563 = vpack.c.b16 %v6519, %v6515
        %v6564 = vpack.c.b16 %v6520, %v6516
        %v6565 = vpack.c.b16 %v6521, %v6517
        %v6566 = vpack.c.b16 %v6522, %v6518
        %v6567 = vpack.c.b16 %v6527, %v6523
        %v6568 = vpack.c.b16 %v6528, %v6524
        %v6569 = vpack.c.b16 %v6529, %v6525
        %v6570 = vpack.c.b16 %v6530, %v6526
        %v6571 = vpack.c.b16 %v6535, %v6531
        %v6572 = vpack.c.b16 %v6536, %v6532
        %v6573 = vpack.c.b16 %v6537, %v6533
        %v6574 = vpack.c.b16 %v6538, %v6534
        %v6575 = vpack.c.b16 %v6543, %v6539
        %v6576 = vpack.c.b16 %v6544, %v6540
        %v6577 = vpack.c.b16 %v6545, %v6541
        %v6578 = vpack.c.b16 %v6546, %v6542
        %6611 = vmatprep.subr.bf16.mxu0 %v6548
        %6612 = vmatpush1.bf16.msra.mxu0 %v6547
        %6613 = vmatprep.subr.bf16.mxu0 %v6552
        %6614 = vmatpush1.bf16.msra.mxu0 %v6551
        %6615 = vmatprep.subr.bf16.mxu0 %v6556
        %6616 = vmatpush1.bf16.msra.mxu0 %v6555
        %6617 = vmatprep.subr.bf16.mxu0 %v6560
        %6618 = vmatpush1.bf16.msra.mxu0 %v6559
        %6619 = vmatprep.subr.bf16.mxu0 %v6564
        %6620 = vmatpush1.bf16.msra.mxu0 %v6563
        %6621 = vmatprep.subr.bf16.mxu0 %v6568
        %6622 = vmatpush1.bf16.msra.mxu0 %v6567
        %6623 = vmatprep.subr.bf16.mxu0 %v6572
        %6624 = vmatpush1.bf16.msra.mxu0 %v6571
        %6625 = vmatprep.subr.bf16.mxu0 %v6576
        %6626 = vmatpush1.bf16.msra.mxu0 %v6575
        %6627 = vmatprep.subr.bf16.mxu0 0
        %6628 = vmatpush1.bf16.msra.mxu0 0
        %6629 = vmatprep.subr.bf16.mxu0 0
        %6630 = vmatpush1.bf16.msra.mxu0 0
        %6631 = vmatprep.subr.bf16.mxu0 0
        %6632 = vmatpush1.bf16.msra.mxu0 0
        %6633 = vmatprep.subr.bf16.mxu0 0
        %6634 = vmatpush1.bf16.msra.mxu0 0
        %6635 = vmatprep.subr.bf16.mxu0 0
        %6636 = vmatpush1.bf16.msra.mxu0 0
        %6637 = vmatprep.subr.bf16.mxu0 0
        %6638 = vmatpush1.bf16.msra.mxu0 0
        %6639 = vmatprep.subr.bf16.mxu0 0
        %6640 = vmatpush1.bf16.msra.mxu0 0
        %6641 = vmatprep.subr.bf16.mxu0 0
        %6642 = vmatpush1.bf16.msra.mxu0 0
        %6643 = vmatprep.mubr.bf16.mxu0 0
        %6644 = vmatmul.mubr.bf16.gmra.mrb[0].mxu0 %v6389
        %v6645 = vpop.f32.mrb[0].mxu0
        %v6646 = vadd.f32 %v6434, %v6645
        %v6647 = vpop.f32.mrb[0].mxu0
        %v6648 = vadd.f32 %v6438, %v6647
        %v6649 = vpop.f32.mrb[0].mxu0
        %v6650 = vadd.f32 %v6434, %v6649
        %v6651 = vpop.f32.mrb[0].mxu0
        %v6652 = vadd.f32 %v6438, %v6651
        %6653 = vmatprep.mubr.bf16.mxu0 0
        %6654 = vmatmul.mubr.bf16.gmra.mrb[0].mxu0 %v6390
        %v6655 = vpop.f32.mrb[0].mxu0
        %v6656 = vadd.f32 %v6434, %v6655
        %v6657 = vpop.f32.mrb[0].mxu0
        %v6658 = vadd.f32 %v6438, %v6657
        %v6659 = vpop.f32.mrb[0].mxu0
        %v6660 = vadd.f32 %v6434, %v6659
        %v6661 = vpop.f32.mrb[0].mxu0
        %v6662 = vadd.f32 %v6438, %v6661
        %6663 = vmatprep.mubr.bf16.mxu0 0
        %6664 = vmatmul.mubr.bf16.gmra.mrb[0].mxu0 %v6391
        %v6665 = vpop.f32.mrb[0].mxu0
        %v6666 = vadd.f32 %v6434, %v6665
        %v6667 = vpop.f32.mrb[0].mxu0
        %v6668 = vadd.f32 %v6438, %v6667
        %v6669 = vpop.f32.mrb[0].mxu0
        %v6670 = vadd.f32 %v6434, %v6669
        %v6671 = vpop.f32.mrb[0].mxu0
        %v6672 = vadd.f32 %v6438, %v6671
        %6673 = vmatprep.mubr.bf16.mxu0 0
        %6674 = vmatmul.mubr.bf16.gmra.mrb[0].mxu0 %v6392
        %v6675 = vpop.f32.mrb[0].mxu0
        %v6676 = vadd.f32 %v6434, %v6675
        %v6677 = vpop.f32.mrb[0].mxu0
        %v6678 = vadd.f32 %v6438, %v6677
        %v6679 = vpop.f32.mrb[0].mxu0
        %v6680 = vadd.f32 %v6434, %v6679
        %v6681 = vpop.f32.mrb[0].mxu0
        %v6682 = vadd.f32 %v6438, %v6681
        %6683 = vmatprep.mubr.bf16.mxu0 0
        %6684 = vmatmul.mubr.bf16.gmra.mrb[0].mxu0 %v6393
        %v6685 = vpop.f32.mrb[0].mxu0
        %v6686 = vadd.f32 %v6434, %v6685
        %v6687 = vpop.f32.mrb[0].mxu0
        %v6688 = vadd.f32 %v6438, %v6687
        %v6689 = vpop.f32.mrb[0].mxu0
        %v6690 = vadd.f32 %v6434, %v6689
        %v6691 = vpop.f32.mrb[0].mxu0
        %v6692 = vadd.f32 %v6438, %v6691
        %6693 = vmatprep.mubr.bf16.mxu0 0
        %6694 = vmatmul.mubr.bf16.gmra.mrb[0].mxu0 %v6394
        %v6695 = vpop.f32.mrb[0].mxu0
        %v6696 = vadd.f32 %v6434, %v6695
        %v6697 = vpop.f32.mrb[0].mxu0
        %v6698 = vadd.f32 %v6438, %v6697
        %v6699 = vpop.f32.mrb[0].mxu0
        %v6700 = vadd.f32 %v6434, %v6699
        %v6701 = vpop.f32.mrb[0].mxu0
        %v6702 = vadd.f32 %v6438, %v6701
        %6703 = vmatprep.mubr.bf16.mxu0 0
        %6704 = vmatmul.mubr.bf16.gmra.mrb[0].mxu0 %v6395
        %v6705 = vpop.f32.mrb[0].mxu0
        %v6706 = vadd.f32 %v6434, %v6705
        %v6707 = vpop.f32.mrb[0].mxu0
        %v6708 = vadd.f32 %v6438, %v6707
        %v6709 = vpop.f32.mrb[0].mxu0
        %v6710 = vadd.f32 %v6434, %v6709
        %v6711 = vpop.f32.mrb[0].mxu0
        %v6712 = vadd.f32 %v6438, %v6711
        %6713 = vmatprep.mubr.bf16.mxu0 0
        %6714 = vmatmul.mubr.bf16.gmra.mrb[0].mxu0 %v6396
        %v6715 = vpop.f32.mrb[0].mxu0
        %v6716 = vadd.f32 %v6434, %v6715
        %v6717 = vpop.f32.mrb[0].mxu0
        %v6718 = vadd.f32 %v6438, %v6717
        %v6719 = vpop.f32.mrb[0].mxu0
        %v6720 = vadd.f32 %v6434, %v6719
        %v6721 = vpop.f32.mrb[0].mxu0
        %v6722 = vadd.f32 %v6438, %v6721
        %6723 = vdwg.mxu0
        %6724 = vmatprep.subr.bf16.mxu0 %v6550
        %6725 = vmatpush1.bf16.msra.mxu0 %v6549
        %6726 = vmatprep.subr.bf16.mxu0 %v6554
        %6727 = vmatpush1.bf16.msra.mxu0 %v6553
        %6728 = vmatprep.subr.bf16.mxu0 %v6558
        %6729 = vmatpush1.bf16.msra.mxu0 %v6557
        %6730 = vmatprep.subr.bf16.mxu0 %v6562
        %6731 = vmatpush1.bf16.msra.mxu0 %v6561
        %6732 = vmatprep.subr.bf16.mxu0 %v6566
        %6733 = vmatpush1.bf16.msra.mxu0 %v6565
        %6734 = vmatprep.subr.bf16.mxu0 %v6570
        %6735 = vmatpush1.bf16.msra.mxu0 %v6569
        %6736 = vmatprep.subr.bf16.mxu0 %v6574
        %6737 = vmatpush1.bf16.msra.mxu0 %v6573
        %6738 = vmatprep.subr.bf16.mxu0 %v6578
        %6739 = vmatpush1.bf16.msra.mxu0 %v6577
        %6740 = vmatprep.subr.bf16.mxu0 0
        %6741 = vmatpush1.bf16.msra.mxu0 0
        %6742 = vmatprep.subr.bf16.mxu0 0
        %6743 = vmatpush1.bf16.msra.mxu0 0
        %6744 = vmatprep.subr.bf16.mxu0 0
        %6745 = vmatpush1.bf16.msra.mxu0 0
        %6746 = vmatprep.subr.bf16.mxu0 0
        %6747 = vmatpush1.bf16.msra.mxu0 0
        %6748 = vmatprep.subr.bf16.mxu0 0
        %6749 = vmatpush1.bf16.msra.mxu0 0
        %6750 = vmatprep.subr.bf16.mxu0 0
        %6751 = vmatpush1.bf16.msra.mxu0 0
        %6752 = vmatprep.subr.bf16.mxu0 0
        %6753 = vmatpush1.bf16.msra.mxu0 0
        %6754 = vmatprep.subr.bf16.mxu0 0
        %6755 = vmatpush1.bf16.msra.mxu0 0
        %6756 = vmatprep.mubr.bf16.mxu0 0
        %6757 = vmatmul.mubr.bf16.gmra.mrb[0].mxu0 %v6389
        %v6758 = vpop.f32.mrb[0].mxu0
        %v6759 = vadd.f32 %v6442, %v6758
        %v6760 = vpop.f32.mrb[0].mxu0
        %v6761 = vadd.f32 %v6446, %v6760
        %v6762 = vpop.f32.mrb[0].mxu0
        %v6763 = vadd.f32 %v6442, %v6762
        %v6764 = vpop.f32.mrb[0].mxu0
        %v6765 = vadd.f32 %v6446, %v6764
        %6766 = vmatprep.mubr.bf16.mxu0 0
        %6767 = vmatmul.mubr.bf16.gmra.mrb[0].mxu0 %v6390
        %v6768 = vpop.f32.mrb[0].mxu0
        %v6769 = vadd.f32 %v6442, %v6768
        %v6770 = vpop.f32.mrb[0].mxu0
        %v6771 = vadd.f32 %v6446, %v6770
        %v6772 = vpop.f32.mrb[0].mxu0
        %v6773 = vadd.f32 %v6442, %v6772
        %v6774 = vpop.f32.mrb[0].mxu0
        %v6775 = vadd.f32 %v6446, %v6774
        %6776 = vmatprep.mubr.bf16.mxu0 0
        %6777 = vmatmul.mubr.bf16.gmra.mrb[0].mxu0 %v6391
        %v6778 = vpop.f32.mrb[0].mxu0
        %v6779 = vadd.f32 %v6442, %v6778
        %v6780 = vpop.f32.mrb[0].mxu0
        %v6781 = vadd.f32 %v6446, %v6780
        %v6782 = vpop.f32.mrb[0].mxu0
        %v6783 = vadd.f32 %v6442, %v6782
        %v6784 = vpop.f32.mrb[0].mxu0
        %v6785 = vadd.f32 %v6446, %v6784
        %6786 = vmatprep.mubr.bf16.mxu0 0
        %6787 = vmatmul.mubr.bf16.gmra.mrb[0].mxu0 %v6392
        %v6788 = vpop.f32.mrb[0].mxu0
        %v6789 = vadd.f32 %v6442, %v6788
        %v6790 = vpop.f32.mrb[0].mxu0
        %v6791 = vadd.f32 %v6446, %v6790
        %v6792 = vpop.f32.mrb[0].mxu0
        %v6793 = vadd.f32 %v6442, %v6792
        %v6794 = vpop.f32.mrb[0].mxu0
        %v6795 = vadd.f32 %v6446, %v6794
        %6796 = vmatprep.mubr.bf16.mxu0 0
        %6797 = vmatmul.mubr.bf16.gmra.mrb[0].mxu0 %v6393
        %v6798 = vpop.f32.mrb[0].mxu0
        %v6799 = vadd.f32 %v6442, %v6798
        %v6800 = vpop.f32.mrb[0].mxu0
        %v6801 = vadd.f32 %v6446, %v6800
        %v6802 = vpop.f32.mrb[0].mxu0
        %v6803 = vadd.f32 %v6442, %v6802
        %v6804 = vpop.f32.mrb[0].mxu0
        %v6805 = vadd.f32 %v6446, %v6804
        %6806 = vmatprep.mubr.bf16.mxu0 0
        %6807 = vmatmul.mubr.bf16.gmra.mrb[0].mxu0 %v6394
        %v6808 = vpop.f32.mrb[0].mxu0
        %v6809 = vadd.f32 %v6442, %v6808
        %v6810 = vpop.f32.mrb[0].mxu0
        %v6811 = vadd.f32 %v6446, %v6810
        %v6812 = vpop.f32.mrb[0].mxu0
        %v6813 = vadd.f32 %v6442, %v6812
        %v6814 = vpop.f32.mrb[0].mxu0
        %v6815 = vadd.f32 %v6446, %v6814
        %6816 = vmatprep.mubr.bf16.mxu0 0
        %6817 = vmatmul.mubr.bf16.gmra.mrb[0].mxu0 %v6395
        %v6818 = vpop.f32.mrb[0].mxu0
        %v6819 = vadd.f32 %v6442, %v6818
        %v6820 = vpop.f32.mrb[0].mxu0
        %v6821 = vadd.f32 %v6446, %v6820
        %v6822 = vpop.f32.mrb[0].mxu0
        %v6823 = vadd.f32 %v6442, %v6822
        %v6824 = vpop.f32.mrb[0].mxu0
        %v6825 = vadd.f32 %v6446, %v6824
        %6826 = vmatprep.mubr.bf16.mxu0 0
        %6827 = vmatmul.mubr.bf16.gmra.mrb[0].mxu0 %v6396
        %v6828 = vpop.f32.mrb[0].mxu0
        %v6829 = vadd.f32 %v6442, %v6828
        %v6830 = vpop.f32.mrb[0].mxu0
        %v6831 = vadd.f32 %v6446, %v6830
        %v6832 = vpop.f32.mrb[0].mxu0
        %v6833 = vadd.f32 %v6442, %v6832
        %v6834 = vpop.f32.mrb[0].mxu0
        %v6835 = vadd.f32 %v6446, %v6834
        %6836 = vdwg.mxu0
        %v6837 = vmax.f32 %v6646, 0.0
        %v6838 = vmax.f32 %v6648, 0.0
        %v6839 = vmax.f32 %v6759, 0.0
        %v6840 = vmax.f32 %v6761, 0.0
        %v6841 = vmax.f32 %v6650, 0.0
        %v6842 = vmax.f32 %v6652, 0.0
        %v6843 = vmax.f32 %v6763, 0.0
        %v6844 = vmax.f32 %v6765, 0.0
        %v6845 = vmax.f32 %v6656, 0.0
        %v6846 = vmax.f32 %v6658, 0.0
        %v6847 = vmax.f32 %v6769, 0.0
        %v6848 = vmax.f32 %v6771, 0.0
        %v6849 = vmax.f32 %v6660, 0.0
        %v6850 = vmax.f32 %v6662, 0.0
        %v6851 = vmax.f32 %v6773, 0.0
        %v6852 = vmax.f32 %v6775, 0.0
        %v6853 = vmax.f32 %v6666, 0.0
        %v6854 = vmax.f32 %v6668, 0.0
        %v6855 = vmax.f32 %v6779, 0.0
        %v6856 = vmax.f32 %v6781, 0.0
        %v6857 = vmax.f32 %v6670, 0.0
        %v6858 = vmax.f32 %v6672, 0.0
        %v6859 = vmax.f32 %v6783, 0.0
        %v6860 = vmax.f32 %v6785, 0.0
        %v6861 = vmax.f32 %v6676, 0.0
        %v6862 = vmax.f32 %v6678, 0.0
        %v6863 = vmax.f32 %v6789, 0.0
        %v6864 = vmax.f32 %v6791, 0.0
        %v6865 = vmax.f32 %v6680, 0.0
        %v6866 = vmax.f32 %v6682, 0.0
        %v6867 = vmax.f32 %v6793, 0.0
        %v6868 = vmax.f32 %v6795, 0.0
        %v6869 = vmax.f32 %v6686, 0.0
        %v6870 = vmax.f32 %v6688, 0.0
        %v6871 = vmax.f32 %v6799, 0.0
        %v6872 = vmax.f32 %v6801, 0.0
        %v6873 = vmax.f32 %v6690, 0.0
        %v6874 = vmax.f32 %v6692, 0.0
        %v6875 = vmax.f32 %v6803, 0.0
        %v6876 = vmax.f32 %v6805, 0.0
        %v6877 = vmax.f32 %v6696, 0.0
        %v6878 = vmax.f32 %v6698, 0.0
        %v6879 = vmax.f32 %v6809, 0.0
        %v6880 = vmax.f32 %v6811, 0.0
        %v6881 = vmax.f32 %v6700, 0.0
        %v6882 = vmax.f32 %v6702, 0.0
        %v6883 = vmax.f32 %v6813, 0.0
        %v6884 = vmax.f32 %v6815, 0.0
        %v6885 = vmax.f32 %v6706, 0.0
        %v6886 = vmax.f32 %v6708, 0.0
        %v6887 = vmax.f32 %v6819, 0.0
        %v6888 = vmax.f32 %v6821, 0.0
        %v6889 = vmax.f32 %v6710, 0.0
        %v6890 = vmax.f32 %v6712, 0.0
        %v6891 = vmax.f32 %v6823, 0.0
        %v6892 = vmax.f32 %v6825, 0.0
        %v6893 = vmax.f32 %v6716, 0.0
        %v6894 = vmax.f32 %v6718, 0.0
        %v6895 = vmax.f32 %v6829, 0.0
        %v6896 = vmax.f32 %v6831, 0.0
        %v6897 = vmax.f32 %v6720, 0.0
        %v6898 = vmax.f32 %v6722, 0.0
        %v6899 = vmax.f32 %v6833, 0.0
        %v6900 = vmax.f32 %v6835, 0.0
        %v6901 = vpack.c.bf16 %v6841, %v6837
        %v6902 = vpack.c.bf16 %v6842, %v6838
        %v6903 = vpack.c.bf16 %v6843, %v6839
        %v6904 = vpack.c.bf16 %v6844, %v6840
        %v6905 = vpack.c.bf16 %v6849, %v6845
        %v6906 = vpack.c.bf16 %v6850, %v6846
        %v6907 = vpack.c.bf16 %v6851, %v6847
        %v6908 = vpack.c.bf16 %v6852, %v6848
        %v6909 = vpack.c.bf16 %v6857, %v6853
        %v6910 = vpack.c.bf16 %v6858, %v6854
        %v6911 = vpack.c.bf16 %v6859, %v6855
        %v6912 = vpack.c.bf16 %v6860, %v6856
        %v6913 = vpack.c.bf16 %v6865, %v6861
        %v6914 = vpack.c.bf16 %v6866, %v6862
        %v6915 = vpack.c.bf16 %v6867, %v6863
        %v6916 = vpack.c.bf16 %v6868, %v6864
        %v6917 = vpack.c.bf16 %v6873, %v6869
        %v6918 = vpack.c.bf16 %v6874, %v6870
        %v6919 = vpack.c.bf16 %v6875, %v6871
        %v6920 = vpack.c.bf16 %v6876, %v6872
        %v6921 = vpack.c.bf16 %v6881, %v6877
        %v6922 = vpack.c.bf16 %v6882, %v6878
        %v6923 = vpack.c.bf16 %v6883, %v6879
        %v6924 = vpack.c.bf16 %v6884, %v6880
        %v6925 = vpack.c.bf16 %v6889, %v6885
        %v6926 = vpack.c.bf16 %v6890, %v6886
        %v6927 = vpack.c.bf16 %v6891, %v6887
        %v6928 = vpack.c.bf16 %v6892, %v6888
        %v6929 = vpack.c.bf16 %v6897, %v6893
        %v6930 = vpack.c.bf16 %v6898, %v6894
        %v6931 = vpack.c.bf16 %v6899, %v6895
        %v6932 = vpack.c.bf16 %v6900, %v6896
        %v6933 = vld [vmem:[#allocation11] sm:$0xf]
        %v6934 = vld [vmem:[#allocation11 + $0x4] sm:$0xf]
        %v6935 = vld [vmem:[#allocation11 + $0x8] sm:$0xf]
        %v6936 = vld [vmem:[#allocation11 + $0xc] sm:$0xf]
        %v6937 = vld [vmem:[#allocation11 + $0x10] sm:$0xf]
        %v6938 = vld [vmem:[#allocation11 + $0x14] sm:$0xf]
        %v6939 = vld [vmem:[#allocation11 + $0x18] sm:$0xf]
        %v6940 = vld [vmem:[#allocation11 + $0x1c] sm:$0xf]
        %v6941 = vld [vmem:[#allocation11 + $0x20] sm:$0xf]
        %v6942 = vld [vmem:[#allocation11 + $0x24] sm:$0xf]
        %v6943 = vld [vmem:[#allocation11 + $0x28] sm:$0xf]
        %v6944 = vld [vmem:[#allocation11 + $0x2c] sm:$0xf]
        %v6945 = vld [vmem:[#allocation11 + $0x30] sm:$0xf]
        %v6946 = vld [vmem:[#allocation11 + $0x34] sm:$0xf]
        %v6947 = vld [vmem:[#allocation11 + $0x38] sm:$0xf]
        %v6948 = vld [vmem:[#allocation11 + $0x3c] sm:$0xf]
        %v6949 = vld [vmem:[#allocation11 + $0x40] sm:$0xf]
        %v6950 = vld [vmem:[#allocation11 + $0x44] sm:$0xf]
        %v6951 = vld [vmem:[#allocation11 + $0x48] sm:$0xf]
        %v6952 = vld [vmem:[#allocation11 + $0x4c] sm:$0xf]
        %v6953 = vld [vmem:[#allocation11 + $0x50] sm:$0xf]
        %v6954 = vld [vmem:[#allocation11 + $0x54] sm:$0xf]
        %v6955 = vld [vmem:[#allocation11 + $0x58] sm:$0xf]
        %v6956 = vld [vmem:[#allocation11 + $0x5c] sm:$0xf]
        %v6957 = vld [vmem:[#allocation11 + $0x60] sm:$0xf]
        %v6958 = vld [vmem:[#allocation11 + $0x64] sm:$0xf]
        %v6959 = vld [vmem:[#allocation11 + $0x68] sm:$0xf]
        %v6960 = vld [vmem:[#allocation11 + $0x6c] sm:$0xf]
        %v6961 = vld [vmem:[#allocation11 + $0x70] sm:$0xf]
        %v6962 = vld [vmem:[#allocation11 + $0x74] sm:$0xf]
        %v6963 = vld [vmem:[#allocation11 + $0x78] sm:$0xf]
        %v6964 = vld [vmem:[#allocation11 + $0x7c] sm:$0xf]
        %v6965 = vld [vmem:[#allocation11 + $0x80] sm:$0xf]
        %v6966 = vld [vmem:[#allocation11 + $0x84] sm:$0xf]
        %v6967 = vld [vmem:[#allocation11 + $0x88] sm:$0xf]
        %v6968 = vld [vmem:[#allocation11 + $0x8c] sm:$0xf]
        %v6969 = vld [vmem:[#allocation11 + $0x90] sm:$0xf]
        %v6970 = vld [vmem:[#allocation11 + $0x94] sm:$0xf]
        %v6971 = vld [vmem:[#allocation11 + $0x98] sm:$0xf]
        %v6972 = vld [vmem:[#allocation11 + $0x9c] sm:$0xf]
        %v6973 = vld [vmem:[#allocation11 + $0xa0] sm:$0xf]
        %v6974 = vld [vmem:[#allocation11 + $0xa4] sm:$0xf]
        %v6975 = vld [vmem:[#allocation11 + $0xa8] sm:$0xf]
        %v6976 = vld [vmem:[#allocation11 + $0xac] sm:$0xf]
        %v6977 = vld [vmem:[#allocation11 + $0xb0] sm:$0xf]
        %v6978 = vld [vmem:[#allocation11 + $0xb4] sm:$0xf]
        %v6979 = vld [vmem:[#allocation11 + $0xb8] sm:$0xf]
        %v6980 = vld [vmem:[#allocation11 + $0xbc] sm:$0xf]
        %v6981 = vld [vmem:[#allocation11 + $0xc0] sm:$0xf]
        %v6982 = vld [vmem:[#allocation11 + $0xc4] sm:$0xf]
        %v6983 = vld [vmem:[#allocation11 + $0xc8] sm:$0xf]
        %v6984 = vld [vmem:[#allocation11 + $0xcc] sm:$0xf]
        %v6985 = vld [vmem:[#allocation11 + $0xd0] sm:$0xf]
        %v6986 = vld [vmem:[#allocation11 + $0xd4] sm:$0xf]
        %v6987 = vld [vmem:[#allocation11 + $0xd8] sm:$0xf]
        %v6988 = vld [vmem:[#allocation11 + $0xdc] sm:$0xf]
        %v6989 = vld [vmem:[#allocation11 + $0xe0] sm:$0xf]
        %v6990 = vld [vmem:[#allocation11 + $0xe4] sm:$0xf]
        %v6991 = vld [vmem:[#allocation11 + $0xe8] sm:$0xf]
        %v6992 = vld [vmem:[#allocation11 + $0xec] sm:$0xf]
        %v6993 = vld [vmem:[#allocation11 + $0xf0] sm:$0xf]
        %v6994 = vld [vmem:[#allocation11 + $0xf4] sm:$0xf]
        %v6995 = vld [vmem:[#allocation11 + $0xf8] sm:$0xf]
        %v6996 = vld [vmem:[#allocation11 + $0xfc] sm:$0xf]
        %v6997 = vld [vmem:[%s11] sm:$0x1]
        %v6999 = vlaneseq
        %v7000 = vshrl.u32 %v6999, 7
        %v7001 = vsub.s32 0, %v7000
        %v7002 = vrot.slane %v6997, %v7001
        %v7068 = vunpack.c.l.b16 %v6933
        %v7069 = vunpack.c.l.b16 %v6934
        %v7070 = vunpack.c.l.b16 %v6935
        %v7071 = vunpack.c.l.b16 %v6936
        %v7072 = vunpack.c.l.b16 %v6937
        %v7073 = vunpack.c.l.b16 %v6938
        %v7074 = vunpack.c.l.b16 %v6939
        %v7075 = vunpack.c.l.b16 %v6940
        %v7076 = vunpack.c.l.b16 %v6941
        %v7077 = vunpack.c.l.b16 %v6942
        %v7078 = vunpack.c.l.b16 %v6943
        %v7079 = vunpack.c.l.b16 %v6944
        %v7080 = vunpack.c.l.b16 %v6945
        %v7081 = vunpack.c.l.b16 %v6946
        %v7082 = vunpack.c.l.b16 %v6947
        %v7083 = vunpack.c.l.b16 %v6948
        %v7084 = vunpack.c.l.b16 %v6949
        %v7085 = vunpack.c.l.b16 %v6950
        %v7086 = vunpack.c.l.b16 %v6951
        %v7087 = vunpack.c.l.b16 %v6952
        %v7088 = vunpack.c.l.b16 %v6953
        %v7089 = vunpack.c.l.b16 %v6954
        %v7090 = vunpack.c.l.b16 %v6955
        %v7091 = vunpack.c.l.b16 %v6956
        %v7092 = vunpack.c.l.b16 %v6957
        %v7093 = vunpack.c.l.b16 %v6958
        %v7094 = vunpack.c.l.b16 %v6959
        %v7095 = vunpack.c.l.b16 %v6960
        %v7096 = vunpack.c.l.b16 %v6961
        %v7097 = vunpack.c.l.b16 %v6962
        %v7098 = vunpack.c.l.b16 %v6963
        %v7099 = vunpack.c.l.b16 %v6964
        %v7100 = vunpack.c.l.b16 %v6965
        %v7101 = vunpack.c.l.b16 %v6966
        %v7102 = vunpack.c.l.b16 %v6967
        %v7103 = vunpack.c.l.b16 %v6968
        %v7104 = vunpack.c.l.b16 %v6969
        %v7105 = vunpack.c.l.b16 %v6970
        %v7106 = vunpack.c.l.b16 %v6971
        %v7107 = vunpack.c.l.b16 %v6972
        %v7108 = vunpack.c.l.b16 %v6973
        %v7109 = vunpack.c.l.b16 %v6974
        %v7110 = vunpack.c.l.b16 %v6975
        %v7111 = vunpack.c.l.b16 %v6976
        %v7112 = vunpack.c.l.b16 %v6977
        %v7113 = vunpack.c.l.b16 %v6978
        %v7114 = vunpack.c.l.b16 %v6979
        %v7115 = vunpack.c.l.b16 %v6980
        %v7116 = vunpack.c.l.b16 %v6981
        %v7117 = vunpack.c.l.b16 %v6982
        %v7118 = vunpack.c.l.b16 %v6983
        %v7119 = vunpack.c.l.b16 %v6984
        %v7120 = vunpack.c.l.b16 %v6985
        %v7121 = vunpack.c.l.b16 %v6986
        %v7122 = vunpack.c.l.b16 %v6987
        %v7123 = vunpack.c.l.b16 %v6988
        %v7124 = vunpack.c.l.b16 %v6989
        %v7125 = vunpack.c.l.b16 %v6990
        %v7126 = vunpack.c.l.b16 %v6991
        %v7127 = vunpack.c.l.b16 %v6992
        %v7128 = vunpack.c.l.b16 %v6993
        %v7129 = vunpack.c.l.b16 %v6994
        %v7130 = vunpack.c.l.b16 %v6995
        %v7131 = vunpack.c.l.b16 %v6996
        %v7132 = vpack.c.b16 %v7069, %v7068
        %v7133 = vpack.c.b16 %v7071, %v7070
        %v7134 = vpack.c.b16 %v7073, %v7072
        %v7135 = vpack.c.b16 %v7075, %v7074
        %v7136 = vpack.c.b16 %v7077, %v7076
        %v7137 = vpack.c.b16 %v7079, %v7078
        %v7138 = vpack.c.b16 %v7081, %v7080
        %v7139 = vpack.c.b16 %v7083, %v7082
        %v7140 = vpack.c.b16 %v7085, %v7084
        %v7141 = vpack.c.b16 %v7087, %v7086
        %v7142 = vpack.c.b16 %v7089, %v7088
        %v7143 = vpack.c.b16 %v7091, %v7090
        %v7144 = vpack.c.b16 %v7093, %v7092
        %v7145 = vpack.c.b16 %v7095, %v7094
        %v7146 = vpack.c.b16 %v7097, %v7096
        %v7147 = vpack.c.b16 %v7099, %v7098
        %v7148 = vpack.c.b16 %v7101, %v7100
        %v7149 = vpack.c.b16 %v7103, %v7102
        %v7150 = vpack.c.b16 %v7105, %v7104
        %v7151 = vpack.c.b16 %v7107, %v7106
        %v7152 = vpack.c.b16 %v7109, %v7108
        %v7153 = vpack.c.b16 %v7111, %v7110
        %v7154 = vpack.c.b16 %v7113, %v7112
        %v7155 = vpack.c.b16 %v7115, %v7114
        %v7156 = vpack.c.b16 %v7117, %v7116
        %v7157 = vpack.c.b16 %v7119, %v7118
        %v7158 = vpack.c.b16 %v7121, %v7120
        %v7159 = vpack.c.b16 %v7123, %v7122
        %v7160 = vpack.c.b16 %v7125, %v7124
        %v7161 = vpack.c.b16 %v7127, %v7126
        %v7162 = vpack.c.b16 %v7129, %v7128
        %v7163 = vpack.c.b16 %v7131, %v7130
        %7196 = vmatprep.subr.bf16.mxu0 0
        %7197 = vmatpush1.bf16.msra.mxu0 %v7132
        %7198 = vmatprep.subr.bf16.mxu0 0
        %7199 = vmatpush1.bf16.msra.mxu0 %v7133
        %7200 = vmatprep.subr.bf16.mxu0 0
        %7201 = vmatpush1.bf16.msra.mxu0 %v7134
        %7202 = vmatprep.subr.bf16.mxu0 0
        %7203 = vmatpush1.bf16.msra.mxu0 %v7135
        %7204 = vmatprep.subr.bf16.mxu0 0
        %7205 = vmatpush1.bf16.msra.mxu0 %v7136
        %7206 = vmatprep.subr.bf16.mxu0 0
        %7207 = vmatpush1.bf16.msra.mxu0 %v7137
        %7208 = vmatprep.subr.bf16.mxu0 0
        %7209 = vmatpush1.bf16.msra.mxu0 %v7138
        %7210 = vmatprep.subr.bf16.mxu0 0
        %7211 = vmatpush1.bf16.msra.mxu0 %v7139
        %7212 = vmatprep.subr.bf16.mxu0 0
        %7213 = vmatpush1.bf16.msra.mxu0 %v7140
        %7214 = vmatprep.subr.bf16.mxu0 0
        %7215 = vmatpush1.bf16.msra.mxu0 %v7141
        %7216 = vmatprep.subr.bf16.mxu0 0
        %7217 = vmatpush1.bf16.msra.mxu0 %v7142
        %7218 = vmatprep.subr.bf16.mxu0 0
        %7219 = vmatpush1.bf16.msra.mxu0 %v7143
        %7220 = vmatprep.subr.bf16.mxu0 0
        %7221 = vmatpush1.bf16.msra.mxu0 %v7144
        %7222 = vmatprep.subr.bf16.mxu0 0
        %7223 = vmatpush1.bf16.msra.mxu0 %v7145
        %7224 = vmatprep.subr.bf16.mxu0 0
        %7225 = vmatpush1.bf16.msra.mxu0 %v7146
        %7226 = vmatprep.subr.bf16.mxu0 0
        %7227 = vmatpush1.bf16.msra.mxu0 %v7147
        %7228 = vmatprep.mubr.bf16.mxu0 %v6902
        %7229 = vmatmul.mubr.bf16.gmra.mrb[0].mxu0 %v6901
        %v7230 = vpop.f32.mrb[0].mxu0
        %v7231 = vadd.f32 %v7002, %v7230
        %v7232 = vpop.f32.mrb[0].mxu0
        %v7233 = vpop.f32.mrb[0].mxu0
        %v7234 = vadd.f32 %v7002, %v7233
        %v7235 = vpop.f32.mrb[0].mxu0
        %7236 = vmatprep.mubr.bf16.mxu0 %v6906
        %7237 = vmatmul.mubr.bf16.gmra.mrb[0].mxu0 %v6905
        %v7238 = vpop.f32.mrb[0].mxu0
        %v7239 = vadd.f32 %v7002, %v7238
        %v7240 = vpop.f32.mrb[0].mxu0
        %v7241 = vpop.f32.mrb[0].mxu0
        %v7242 = vadd.f32 %v7002, %v7241
        %v7243 = vpop.f32.mrb[0].mxu0
        %7244 = vmatprep.mubr.bf16.mxu0 %v6910
        %7245 = vmatmul.mubr.bf16.gmra.mrb[0].mxu0 %v6909
        %v7246 = vpop.f32.mrb[0].mxu0
        %v7247 = vadd.f32 %v7002, %v7246
        %v7248 = vpop.f32.mrb[0].mxu0
        %v7249 = vpop.f32.mrb[0].mxu0
        %v7250 = vadd.f32 %v7002, %v7249
        %v7251 = vpop.f32.mrb[0].mxu0
        %7252 = vmatprep.mubr.bf16.mxu0 %v6914
        %7253 = vmatmul.mubr.bf16.gmra.mrb[0].mxu0 %v6913
        %v7254 = vpop.f32.mrb[0].mxu0
        %v7255 = vadd.f32 %v7002, %v7254
        %v7256 = vpop.f32.mrb[0].mxu0
        %v7257 = vpop.f32.mrb[0].mxu0
        %v7258 = vadd.f32 %v7002, %v7257
        %v7259 = vpop.f32.mrb[0].mxu0
        %7260 = vmatprep.mubr.bf16.mxu0 %v6918
        %7261 = vmatmul.mubr.bf16.gmra.mrb[0].mxu0 %v6917
        %v7262 = vpop.f32.mrb[0].mxu0
        %v7263 = vadd.f32 %v7002, %v7262
        %v7264 = vpop.f32.mrb[0].mxu0
        %v7265 = vpop.f32.mrb[0].mxu0
        %v7266 = vadd.f32 %v7002, %v7265
        %v7267 = vpop.f32.mrb[0].mxu0
        %7268 = vmatprep.mubr.bf16.mxu0 %v6922
        %7269 = vmatmul.mubr.bf16.gmra.mrb[0].mxu0 %v6921
        %v7270 = vpop.f32.mrb[0].mxu0
        %v7271 = vadd.f32 %v7002, %v7270
        %v7272 = vpop.f32.mrb[0].mxu0
        %v7273 = vpop.f32.mrb[0].mxu0
        %v7274 = vadd.f32 %v7002, %v7273
        %v7275 = vpop.f32.mrb[0].mxu0
        %7276 = vmatprep.mubr.bf16.mxu0 %v6926
        %7277 = vmatmul.mubr.bf16.gmra.mrb[0].mxu0 %v6925
        %v7278 = vpop.f32.mrb[0].mxu0
        %v7279 = vadd.f32 %v7002, %v7278
        %v7280 = vpop.f32.mrb[0].mxu0
        %v7281 = vpop.f32.mrb[0].mxu0
        %v7282 = vadd.f32 %v7002, %v7281
        %v7283 = vpop.f32.mrb[0].mxu0
        %7284 = vmatprep.mubr.bf16.mxu0 %v6930
        %7285 = vmatmul.mubr.bf16.gmra.mrb[0].mxu0 %v6929
        %v7286 = vpop.f32.mrb[0].mxu0
        %v7287 = vadd.f32 %v7002, %v7286
        %v7288 = vpop.f32.mrb[0].mxu0
        %v7289 = vpop.f32.mrb[0].mxu0
        %v7290 = vadd.f32 %v7002, %v7289
        %v7291 = vpop.f32.mrb[0].mxu0
        %7292 = vdwg.mxu0
        %7293 = vmatprep.subr.bf16.mxu0 0
        %7294 = vmatpush1.bf16.msra.mxu0 %v7148
        %7295 = vmatprep.subr.bf16.mxu0 0
        %7296 = vmatpush1.bf16.msra.mxu0 %v7149
        %7297 = vmatprep.subr.bf16.mxu0 0
        %7298 = vmatpush1.bf16.msra.mxu0 %v7150
        %7299 = vmatprep.subr.bf16.mxu0 0
        %7300 = vmatpush1.bf16.msra.mxu0 %v7151
        %7301 = vmatprep.subr.bf16.mxu0 0
        %7302 = vmatpush1.bf16.msra.mxu0 %v7152
        %7303 = vmatprep.subr.bf16.mxu0 0
        %7304 = vmatpush1.bf16.msra.mxu0 %v7153
        %7305 = vmatprep.subr.bf16.mxu0 0
        %7306 = vmatpush1.bf16.msra.mxu0 %v7154
        %7307 = vmatprep.subr.bf16.mxu0 0
        %7308 = vmatpush1.bf16.msra.mxu0 %v7155
        %7309 = vmatprep.subr.bf16.mxu0 0
        %7310 = vmatpush1.bf16.msra.mxu0 %v7156
        %7311 = vmatprep.subr.bf16.mxu0 0
        %7312 = vmatpush1.bf16.msra.mxu0 %v7157
        %7313 = vmatprep.subr.bf16.mxu0 0
        %7314 = vmatpush1.bf16.msra.mxu0 %v7158
        %7315 = vmatprep.subr.bf16.mxu0 0
        %7316 = vmatpush1.bf16.msra.mxu0 %v7159
        %7317 = vmatprep.subr.bf16.mxu0 0
        %7318 = vmatpush1.bf16.msra.mxu0 %v7160
        %7319 = vmatprep.subr.bf16.mxu0 0
        %7320 = vmatpush1.bf16.msra.mxu0 %v7161
        %7321 = vmatprep.subr.bf16.mxu0 0
        %7322 = vmatpush1.bf16.msra.mxu0 %v7162
        %7323 = vmatprep.subr.bf16.mxu0 0
        %7324 = vmatpush1.bf16.msra.mxu0 %v7163
        %7325 = vmatprep.mubr.bf16.mxu0 %v6904
        %7326 = vmatmul.mubr.bf16.gmra.mrb[0].mxu0 %v6903
        %v7327 = vpop.f32.mrb[0].mxu0
        %v7328 = vadd.f32 %v7231, %v7327
        %v7329 = vpop.f32.mrb[0].mxu0
        %v7330 = vpop.f32.mrb[0].mxu0
        %v7331 = vadd.f32 %v7234, %v7330
        %v7332 = vpop.f32.mrb[0].mxu0
        %7333 = vmatprep.mubr.bf16.mxu0 %v6908
        %7334 = vmatmul.mubr.bf16.gmra.mrb[0].mxu0 %v6907
        %v7335 = vpop.f32.mrb[0].mxu0
        %v7336 = vadd.f32 %v7239, %v7335
        %v7337 = vpop.f32.mrb[0].mxu0
        %v7338 = vpop.f32.mrb[0].mxu0
        %v7339 = vadd.f32 %v7242, %v7338
        %v7340 = vpop.f32.mrb[0].mxu0
        %7341 = vmatprep.mubr.bf16.mxu0 %v6912
        %7342 = vmatmul.mubr.bf16.gmra.mrb[0].mxu0 %v6911
        %v7343 = vpop.f32.mrb[0].mxu0
        %v7344 = vadd.f32 %v7247, %v7343
        %v7345 = vpop.f32.mrb[0].mxu0
        %v7346 = vpop.f32.mrb[0].mxu0
        %v7347 = vadd.f32 %v7250, %v7346
        %v7348 = vpop.f32.mrb[0].mxu0
        %7349 = vmatprep.mubr.bf16.mxu0 %v6916
        %7350 = vmatmul.mubr.bf16.gmra.mrb[0].mxu0 %v6915
        %v7351 = vpop.f32.mrb[0].mxu0
        %v7352 = vadd.f32 %v7255, %v7351
        %v7353 = vpop.f32.mrb[0].mxu0
        %v7354 = vpop.f32.mrb[0].mxu0
        %v7355 = vadd.f32 %v7258, %v7354
        %v7356 = vpop.f32.mrb[0].mxu0
        %7357 = vmatprep.mubr.bf16.mxu0 %v6920
        %7358 = vmatmul.mubr.bf16.gmra.mrb[0].mxu0 %v6919
        %v7359 = vpop.f32.mrb[0].mxu0
        %v7360 = vadd.f32 %v7263, %v7359
        %v7361 = vpop.f32.mrb[0].mxu0
        %v7362 = vpop.f32.mrb[0].mxu0
        %v7363 = vadd.f32 %v7266, %v7362
        %v7364 = vpop.f32.mrb[0].mxu0
        %7365 = vmatprep.mubr.bf16.mxu0 %v6924
        %7366 = vmatmul.mubr.bf16.gmra.mrb[0].mxu0 %v6923
        %v7367 = vpop.f32.mrb[0].mxu0
        %v7368 = vadd.f32 %v7271, %v7367
        %v7369 = vpop.f32.mrb[0].mxu0
        %v7370 = vpop.f32.mrb[0].mxu0
        %v7371 = vadd.f32 %v7274, %v7370
        %v7372 = vpop.f32.mrb[0].mxu0
        %7373 = vmatprep.mubr.bf16.mxu0 %v6928
        %7374 = vmatmul.mubr.bf16.gmra.mrb[0].mxu0 %v6927
        %v7375 = vpop.f32.mrb[0].mxu0
        %v7376 = vadd.f32 %v7279, %v7375
        %v7377 = vpop.f32.mrb[0].mxu0
        %v7378 = vpop.f32.mrb[0].mxu0
        %v7379 = vadd.f32 %v7282, %v7378
        %v7380 = vpop.f32.mrb[0].mxu0
        %7381 = vmatprep.mubr.bf16.mxu0 %v6932
        %7382 = vmatmul.mubr.bf16.gmra.mrb[0].mxu0 %v6931
        %v7383 = vpop.f32.mrb[0].mxu0
        %v7384 = vadd.f32 %v7287, %v7383
        %v7385 = vpop.f32.mrb[0].mxu0
        %v7386 = vpop.f32.mrb[0].mxu0
        %v7387 = vadd.f32 %v7290, %v7386
        %v7388 = vpop.f32.mrb[0].mxu0
        %7389 = vdwg.mxu0
        %v7390 = vadd.f32 %v6119, %v7328
        %v7391 = vadd.f32 %v6120, %v7331
        %v7392 = vadd.f32 %v6121, %v7336
        %v7393 = vadd.f32 %v6122, %v7339
        %v7394 = vadd.f32 %v6123, %v7344
        %v7395 = vadd.f32 %v6124, %v7347
        %v7396 = vadd.f32 %v6125, %v7352
        %v7397 = vadd.f32 %v6126, %v7355
        %v7398 = vadd.f32 %v6127, %v7360
        %v7399 = vadd.f32 %v6128, %v7363
        %v7400 = vadd.f32 %v6129, %v7368
        %v7401 = vadd.f32 %v6130, %v7371
        %v7402 = vadd.f32 %v6131, %v7376
        %v7403 = vadd.f32 %v6132, %v7379
        %v7404 = vadd.f32 %v6133, %v7384
        %v7405 = vadd.f32 %v6134, %v7387
        %7406 = vst [vmem:[%s489] sm:$0xff] %v7390
        %7407 = vst [vmem:[%s489 + $0x8] sm:$0xff] %v7391
        %7408 = vst [vmem:[%s489 + $0x10] sm:$0xff] %v7392
        %7409 = vst [vmem:[%s489 + $0x18] sm:$0xff] %v7393
        %7410 = vst [vmem:[%s489 + $0x20] sm:$0xff] %v7394
        %7411 = vst [vmem:[%s489 + $0x28] sm:$0xff] %v7395
        %7412 = vst [vmem:[%s489 + $0x30] sm:$0xff] %v7396
        %7413 = vst [vmem:[%s489 + $0x38] sm:$0xff] %v7397
        %7414 = vst [vmem:[%s489 + $0x40] sm:$0xff] %v7398
        %7415 = vst [vmem:[%s489 + $0x48] sm:$0xff] %v7399
        %7416 = vst [vmem:[%s489 + $0x50] sm:$0xff] %v7400
        %7417 = vst [vmem:[%s489 + $0x58] sm:$0xff] %v7401
        %7418 = vst [vmem:[%s489 + $0x60] sm:$0xff] %v7402
        %7419 = vst [vmem:[%s489 + $0x68] sm:$0xff] %v7403
        %7420 = vst [vmem:[%s489 + $0x70] sm:$0xff] %v7404
        %7421 = vst [vmem:[%s489 + $0x78] sm:$0xff] %v7405
        %s7422 = sand.u32 %s296, 1
        %s7423 = scalar_lea.sflag [#allocation5], %s7422
        %s7424 = sand.u32 %s296, 1
        %s7425 = smul.addr %s7424, 128
        %s7426 = scalar_lea.vmem [#allocation12], %s7425
        // Predicated region
        $region89: #{tpu_custom_call.1} parent=67 // pred_check
          %p7427 = pneg %p306
        $region90: #{tpu_custom_call.1} parent=67 // pred_check_branch
          %7429 = sbr.rel (%p7427) target = $region92
        $region91: #{tpu_custom_call.1} parent=67 // pred_region
          %s7431 = ssub.s32 2048, 2048
          %7432 = vsyncadd %s7423, %s7431
          %s7433 = smul.addr %s31, 16
          %s7434 = smul.addr %s7433, 128
          %s7435 = scalar_lea.hbm %s12, %s7434
          %s7436 = sshll.u32 %s7426, 4
          %s7437 = int_to_ptr.vmem [resolvable:$true] %s7436
          %7442 = dma.vmem_to_hbm [thread:$0]  %s7437, 2048, %s7435, %s7423, 128, 128, 8
        $region92: #{tpu_custom_call.1} parent=67 // pred_fallthru
          _
      $region68: #{tpu_custom_call.1} parent=5 // pred_fallthru
        _
      %p7443 = scmp.le.s32.totalorder 2, %s26
      // Predicated region
      $region93: #{tpu_custom_call.1} parent=5 // pred_check
        %p7444 = pneg %p7443
      $region94: #{tpu_custom_call.1} parent=5 // pred_check_branch
        %7446 = sbr.rel (%p7444) target = $region96
      $region95: #{tpu_custom_call.1} parent=5 // pred_region
        %s7447 = ssub.s32 %s26, 2
        // Predicated region
        $region97: #{tpu_custom_call.1} parent=95 // pred_check
          %p7448 = pneg %p312
        $region98: #{tpu_custom_call.1} parent=95 // pred_check_branch
          %7450 = sbr.rel (%p7448) target = $region100
        $region99: #{tpu_custom_call.1} parent=95 // pred_region
          %s7451 = sand.u32 %s297, 1
          %s7452 = scalar_lea.sflag [#allocation5], %s7451
          %s7453 = sand.u32 %s297, 1
          %s7454 = smul.addr %s7453, 128
          %s7455 = scalar_lea.vmem [#allocation12], %s7454
          %7456 = dma.done %s7452, 2048
        $region100: #{tpu_custom_call.1} parent=95 // pred_fallthru
          _
      $region96: #{tpu_custom_call.1} parent=5 // pred_fallthru
        _
    $region6: #{tpu_custom_call.1} parent=1 // loop_footer
      %s30 = sadd.s32 1, %s26
    $region7: #{tpu_custom_call.1} parent=1 // loop_footer_branch
      %25 = sbr.rel target = $region3
    $region8: #{tpu_custom_call.1} parent=1 // loop_exit
      _
    %7457 = vsyncpa [#allocation4], 1
    %s7458 = scalar_lea.sflag [#allocation4], 1
    %7459 = vsyncpa %s7458, 1
    %7460 = vsyncpa [#allocation7], 1
    %7461 = vsyncpa [#allocation10], 1
    %7462 = vsyncpa [#allocation5], 1
    %s7463 = scalar_lea.sflag [#allocation5], 1
    %7464 = vsyncpa %s7463, 1

</llo_original>
